<compile_context>
chip_gen: v7x
topology: tpu7x:2x2x1
jax: 0.10.0
libtpu: 0.0.40
codegen_flags: <defaults>
</compile_context>

<pallas_src>
import jax
import jax.numpy as jnp
from jax.experimental import pallas as pl
from jax.experimental.pallas import tpu as pltpu

BN_EPS = 1e-5


def _conv_relu_im2col(x_bf, w_ref, b_ref, k):
    """'same' Conv1d (BN folded) + ReLU as ONE im2col matmul. For small Cin (conv1).

    x_bf:  (BB, T, Cin) bf16
    w_ref: (k*Cin, Cout) bf16   (tap-major, channel-minor)
    b_ref: (1, Cout) f32        (conv bias + BN shift folded)
    """
    BB, T, Cin = x_bf.shape
    Cout = w_ref.shape[-1]
    pad_l = (k - 1) // 2                        # torch 'same': left = total // 2
    pad_r = (k - 1) - pad_l
    zl = jnp.zeros((BB, pad_l, Cin), x_bf.dtype)
    zr = jnp.zeros((BB, pad_r, Cin), x_bf.dtype)
    xp = jnp.concatenate([zl, x_bf, zr], axis=1)              # (BB, T+k-1, Cin) bf16
    cols = jnp.concatenate([xp[:, j:j + T, :] for j in range(k)], axis=-1)
    out = jnp.dot(cols.reshape(BB * T, k * Cin), w_ref[...],
                  preferred_element_type=jnp.float32)
    out = out.reshape(BB, T, Cout) + b_ref[...].reshape(1, 1, Cout)
    return jnp.maximum(out, 0.0)


def _conv_relu_taps(y, w_ref, b_ref, k):
    """'same' Conv1d (BN folded) + ReLU as k per-tap MXU matmuls with f32 accumulation.
    Avoids the k-times-duplicated im2col slab for the wide-channel convs (conv2/conv3).

    y:     (BB, T, Cin) f32
    w_ref: (k, Cin, Cout) bf16
    b_ref: (1, Cout) f32
    """
    BB, T, Cin = y.shape
    Cout = w_ref.shape[-1]
    pad_l = (k - 1) // 2
    pad_r = (k - 1) - pad_l
    yb = y.astype(w_ref.dtype)                                # cast ONCE, not per tap
    zl = jnp.zeros((BB, pad_l, Cin), yb.dtype)
    zr = jnp.zeros((BB, pad_r, Cin), yb.dtype)
    yp = jnp.concatenate([zl, yb, zr], axis=1)                # (BB, T+k-1, Cin)
    acc = jnp.zeros((BB * T, Cout), jnp.float32)
    for j in range(k):                                        # static taps, K = Cin each
        tap = yp[:, j:j + T, :].reshape(BB * T, Cin)
        acc = acc + jnp.dot(tap, w_ref[j], preferred_element_type=jnp.float32)
    out = acc.reshape(BB, T, Cout) + b_ref[...].reshape(1, 1, Cout)
    return jnp.maximum(out, 0.0)


def mlstm_fcn_kernel(x_ref, wih_ref, whh_ref, bl_ref,
                     w1_ref, b1_ref, w2_ref, b2_ref, w3_ref, b3_ref,
                     sew1_ref, sew2_ref, fcw_ref, fcb_ref,
                     out_ref, gx_ref):
    BB, T, F = x_ref.shape
    H = whh_ref.shape[0]

    # Single bf16 cast of the input block, reused by the LSTM projection and conv1.
    x_bf = x_ref[...].astype(jnp.bfloat16)

    # ---------------- LSTM branch -------------------------------------------------------
    # Hoisted input projection: one (BB*T, F) @ (F, 4H) matmul, both LSTM biases folded.
    gx = (jnp.dot(x_bf.reshape(BB * T, F), wih_ref[...],
                  preferred_element_type=jnp.float32) + bl_ref[...])
    gx_ref[...] = gx.reshape(BB, T, 4 * H)                    # VMEM scratch
    whh = whh_ref[...]                                        # (H, 4H) bf16

    def lstm_step(t, carry):
        h, c = carry                                          # f32 (BB, H) carries
        g = (gx_ref[:, pl.ds(t, 1), :].reshape(BB, 4 * H)
             + jnp.dot(h.astype(whh.dtype), whh, preferred_element_type=jnp.float32))
        i_g = jax.nn.sigmoid(g[:, 0 * H:1 * H])
        f_g = jax.nn.sigmoid(g[:, 1 * H:2 * H])
        g_g = jnp.tanh(g[:, 2 * H:3 * H])
        o_g = jax.nn.sigmoid(g[:, 3 * H:4 * H])
        c = f_g * c + i_g * g_g
        h = o_g * jnp.tanh(c)
        return (h, c)

    h0 = jnp.zeros((BB, H), jnp.float32)
    c0 = jnp.zeros((BB, H), jnp.float32)
    # T is small & static: full unroll lets the scheduler overlap next-step gx loads and
    # the EUP sigmoid/tanh chain with the current recurrent matmul.
    h, _ = jax.lax.fori_loop(0, T, lstm_step, (h0, c0), unroll=True)
    lstm_out = h                                              # == lstm_out[:, -1, :]
    # TODO(synk): nn.Dropout(0.8) is an eval-mode identity here (no RNG mask applied).

    # ---------------- FCN branch --------------------------------------------------------
    y = _conv_relu_im2col(x_bf, w1_ref, b1_ref, 8)            # (BB, T, 128)
    y = _conv_relu_taps(y, w2_ref, b2_ref, 5)                 # (BB, T, 256)
    y = _conv_relu_taps(y, w3_ref, b3_ref, 3)                 # (BB, T, 128)

    # Squeeze-Excite + GAP, fused: SE channel scale is time-invariant, so
    # mean_t(y * scale) == mean_t(y) * scale  -> one time reduction, no (BB,T,128) mul.
    s0 = jnp.mean(y, axis=1)                                  # (BB, 128) avg over time
    z = jnp.maximum(jnp.dot(s0, sew1_ref[...],
                            preferred_element_type=jnp.float32), 0.0)     # (BB, cr)
    scale = jax.nn.sigmoid(jnp.dot(z, sew2_ref[...],
                                   preferred_element_type=jnp.float32))   # (BB, 128)
    gap = s0 * scale                                          # (BB, 128)

    # ---------------- head: Linear + softmax over lane-dense padded classes -------------
    feat = jnp.concatenate([lstm_out, gap], axis=1)           # (BB, H + 128)
    logits = (jnp.dot(feat.astype(fcw_ref.dtype), fcw_ref[...],
                      preferred_element_type=jnp.float32)
              + fcb_ref[...])                                 # pads biased to -1e30
    m = jnp.max(logits, axis=1, keepdims=True)
    e = jnp.exp(logits - m)
    out_ref[...] = (e / jnp.sum(e, axis=1, keepdims=True)).astype(out_ref.dtype)


def _per_example_vmem_bytes(T, F, H, nc_pad):
    f32, bf16 = 4, 2
    b = 2 * T * F * f32                   # double-buffered x block
    b += T * 4 * H * f32                  # gx scratch
    b += T * (128 + 256 + 128) * f32      # conv / ReLU f32 intermediates
    b += T * 8 * F * bf16                 # conv1 im2col slab
    b += 2 * T * 256 * bf16               # bf16 tap inputs for conv2/conv3 (transient)
    b += 2 * nc_pad * f32                 # double-buffered output block
    return b


def _pick_batch_block(B, T, F, H, nc_pad, target_rows=256, vmem_budget=24 << 20):
    """Fill the MXU M dimension (>=256 rows on v6e/v7x, fallback 128 for v5e), keep
    >=2 grid steps so the 'parallel' axis shards across TCs (v7x), keep the output
    block sublane-legal, and respect a VMEM budget that fits v7x's 64 MiB."""
    per_bb = _per_example_vmem_bytes(T, F, H, nc_pad)
    divisors = [d for d in range(1, B + 1) if B % d == 0]
    legal = [d for d in divisors if d % 8 == 0 or d == B]     # (d, nc_pad) block legality
    fits = [d for d in legal if d * per_bb <= vmem_budget] or [min(legal)]
    for rows in (target_rows, 128):
        cand = [d for d in fits if d * T >= rows and B // d >= 2]
        if cand:
            return min(cand)
    cand = [d for d in fits if B // d >= 2]
    if cand:
        return max(cand)
    return max(fits)


def mlstm_fcn_forward(params, x, *, batch_block=None):
    B, T, F = x.shape
    H = params["w_hh_T"].shape[0]
    nc_pad = params["fc_b_pad"].shape[-1]
    cr = params["se_w1"].shape[-1]
    num_classes = params["num_classes"]

    if batch_block is None:
        batch_block = _pick_batch_block(B, T, F, H, nc_pad)
    assert B % batch_block == 0, "batch_block must divide the batch"
    assert batch_block % 8 == 0 or batch_block == B, \
        "output block (batch_block, nc_pad) must be sublane-legal"
    nb = B // batch_block

    args = (x,
            params["w_ih_T"], params["w_hh_T"], params["b_lstm"],
            params["w1"], params["b1"],
            params["w2"], params["b2"],
            params["w3"], params["b3"],
            params["se_w1"], params["se_w2"],
            params["fc_w_pad"], params["fc_b_pad"])

    def full_spec(a):
        zeros = (0,) * a.ndim
        # NOTE: constant weights are revisited every grid step; pl.Buffered(1) could
        # shave VMEM on v7x but is skipped for maximum compile portability.
        return pl.BlockSpec(a.shape, lambda b, _z=zeros: _z)

    in_specs = [pl.BlockSpec((batch_block, T, F), lambda b: (b, 0, 0))]
    in_specs += [full_spec(a) for a in args[1:]]

    weight_bytes = sum(int(v.size) * v.dtype.itemsize
                       for k, v in params.items() if k != "num_classes")
    per_bb = _per_example_vmem_bytes(T, F, H, nc_pad)
    vmem_limit = int(min(64 << 20,
                         max(32 << 20, 2 * (weight_bytes + batch_block * per_bb))))

    # Advisory cost so XLA schedules surrounding ops around the custom call correctly.
    conv_flops = 2 * T * (8 * F * 128 + 5 * 128 * 256 + 3 * 256 * 128)
    lstm_flops = 2 * T * (F * 4 * H + H * 4 * H)
    head_flops = 2 * (128 * cr + cr * 128 + (H + 128) * nc_pad)
    trans = T * 5 * H + 128 + nc_pad
    cost = pl.CostEstimate(
        flops=int(B * (conv_flops + lstm_flops + head_flops)),
        transcendentals=int(B * trans),
        bytes_accessed=int(x.size * x.dtype.itemsize
                           + B * nc_pad * 4 + nb * weight_bytes))

    out = pl.pallas_call(
        mlstm_fcn_kernel,
        out_shape=jax.ShapeDtypeStruct((B, nc_pad), jnp.float32),
        grid=(nb,),
        in_specs=in_specs,
        out_specs=pl.BlockSpec((batch_block, nc_pad), lambda b: (b, 0)),
        scratch_shapes=[pltpu.VMEM((batch_block, T, 4 * H), jnp.float32)],
        compiler_params=pltpu.CompilerParams(
            dimension_semantics=("parallel",),
            vmem_limit_bytes=vmem_limit),
        cost_estimate=cost,
    )(*args)
    return out[:, :num_classes]


def init_params(key, input_dim, num_classes, hidden_dim=32, reduction=16):
    """Deterministic synthetic parameters matching the nn.Module's shapes, with
    eval-mode BatchNorm folded into the conv weights/bias and weights pre-packed
    for row-major MXU matmuls (bf16 weights, f32 biases)."""
    ks = jax.random.split(key, 32)
    H = hidden_dim

    def nrm(k, shape, scale=0.1):
        return jax.random.normal(k, shape, jnp.float32) * scale

    p = {"num_classes": num_classes}

    # LSTM: torch weight_ih_l0 (4H, F), weight_hh_l0 (4H, H), biases (4H,)
    w_ih = nrm(ks[0], (4 * H, input_dim))
    w_hh = nrm(ks[1], (4 * H, H))
    b_ih = nrm(ks[2], (4 * H,), 0.05)
    b_hh = nrm(ks[3], (4 * H,), 0.05)
    p["w_ih_T"] = w_ih.T.astype(jnp.bfloat16)                 # (F, 4H) bf16
    p["w_hh_T"] = w_hh.T.astype(jnp.bfloat16)                 # (H, 4H) bf16 (serial path)
    p["b_lstm"] = (b_ih + b_hh).reshape(1, 4 * H)             # f32, biases folded

    def conv_bn_folded(kw, kb, kg, kbeta, km, kv, cin, cout, k, im2col):
        w = nrm(kw, (cout, cin, k))                           # torch Conv1d layout
        b = nrm(kb, (cout,), 0.05)
        gamma = 1.0 + nrm(kg, (cout,), 0.1)
        beta = nrm(kbeta, (cout,), 0.1)
        mean = nrm(km, (cout,), 0.1)
        var = 0.5 + jax.random.uniform(kv, (cout,), jnp.float32)      # strictly positive
        scale = gamma * jax.lax.rsqrt(var + BN_EPS)           # (cout,)
        w_f = jnp.transpose(w, (2, 1, 0)) * scale[None, None, :]      # (k, cin, cout)
        if im2col:
            w_f = w_f.reshape(k * cin, cout)                  # tap-major, channel-minor
        b_f = (b - mean) * scale + beta                       # conv bias + BN shift
        return w_f.astype(jnp.bfloat16), b_f.reshape(1, cout)

    p["w1"], p["b1"] = conv_bn_folded(ks[4], ks[5], ks[10], ks[11], ks[12], ks[13],
                                      input_dim, 128, 8, im2col=True)
    p["w2"], p["b2"] = conv_bn_folded(ks[6], ks[7], ks[14], ks[15], ks[16], ks[17],
                                      128, 256, 5, im2col=False)
    p["w3"], p["b3"] = conv_bn_folded(ks[8], ks[9], ks[18], ks[19], ks[20], ks[21],
                                      256, 128, 3, im2col=False)

    # SE block: Linear(128, 128//r, bias=False) -> ReLU -> Linear(128//r, 128) -> Sigmoid
    cr = 128 // reduction
    p["se_w1"] = nrm(ks[22], (cr, 128)).T                     # (128, cr) f32
    p["se_w2"] = nrm(ks[23], (128, cr)).T                     # (cr, 128) f32

    # classifier: Linear(hidden + 128, num_classes), padded to a multiple of 128 lanes.
    fc_w = nrm(ks[24], (num_classes, H + 128)).T              # (H+128, NC)
    fc_b = nrm(ks[25], (num_classes,), 0.05).reshape(1, num_classes)
    nc_pad = 128 * ((num_classes + 127) // 128)
    # zero-pad weight columns; pad bias with a huge negative so padded classes vanish
    # under softmax (exact for the real classes); wrapper slices them off.
    p["fc_w_pad"] = jnp.pad(fc_w, ((0, 0), (0, nc_pad - num_classes))).astype(jnp.bfloat16)
    p["fc_b_pad"] = jnp.pad(fc_b, ((0, 0), (0, nc_pad - num_classes)),
                            constant_values=-1e30)
    return p


if __name__ == "__main__":
    key = jax.random.PRNGKey(0)
    B, T, F = 16, 16, 4                # batch, time_steps, input_dim
    H, NUM_CLASSES = 32, 6             # hidden_dim (small), num_classes

    kx, kp = jax.random.split(key)
    x = jax.random.normal(kx, (B, T, F), jnp.float32)
    params = init_params(kp, F, NUM_CLASSES, hidden_dim=H)

    out = mlstm_fcn_forward(params, x)         # auto batch_block: 8 -> BB*T=128, nb=2
    out = jax.block_until_ready(out)

    assert out.shape == (B, NUM_CLASSES)
    assert bool(jnp.all(jnp.isfinite(out)))
    assert bool(jnp.allclose(jnp.sum(out, axis=1), 1.0, atol=1e-3))  # softmax rows sum to 1
    print("KERNEL_OK")
</pallas_src>

<mosaic_0001>
module attributes {stable_mosaic.version = 11 : i64} {
  func.func @mlstm_fcn_kernel(%arg0: i32, %arg1: memref<8x16x4xf32, #tpu.memory_space<vmem>>, %arg2: memref<4x128xbf16, #tpu.memory_space<vmem>>, %arg3: memref<32x128xbf16, #tpu.memory_space<vmem>>, %arg4: memref<1x128xf32, #tpu.memory_space<vmem>>, %arg5: memref<32x128xbf16, #tpu.memory_space<vmem>>, %arg6: memref<1x128xf32, #tpu.memory_space<vmem>>, %arg7: memref<5x128x256xbf16, #tpu.memory_space<vmem>>, %arg8: memref<1x256xf32, #tpu.memory_space<vmem>>, %arg9: memref<3x256x128xbf16, #tpu.memory_space<vmem>>, %arg10: memref<1x128xf32, #tpu.memory_space<vmem>>, %arg11: memref<128x8xf32, #tpu.memory_space<vmem>>, %arg12: memref<8x128xf32, #tpu.memory_space<vmem>>, %arg13: memref<160x128xbf16, #tpu.memory_space<vmem>>, %arg14: memref<1x128xf32, #tpu.memory_space<vmem>>, %arg15: memref<8x128xf32, #tpu.memory_space<vmem>>, %arg16: memref<8x16x128xf32, #tpu.memory_space<vmem>>) attributes {dimension_semantics = [#tpu.dimension_semantics<parallel>], iteration_bounds = array<i64: 2>, scalar_prefetch = 0 : i64, scratch_operands = 1 : i64, tpu.core_type = #tpu.core_type<tc>, window_params = [{transform_indices = @transform_0, window_bounds = array<i64: 8, 16, 4>}, {pipeline_mode = #tpu.pipeline_mode<synchronous>, transform_indices = @transform_1, window_bounds = array<i64: 4, 128>}, {pipeline_mode = #tpu.pipeline_mode<synchronous>, transform_indices = @transform_2, window_bounds = array<i64: 32, 128>}, {pipeline_mode = #tpu.pipeline_mode<synchronous>, transform_indices = @transform_3, window_bounds = array<i64: 1, 128>}, {pipeline_mode = #tpu.pipeline_mode<synchronous>, transform_indices = @transform_4, window_bounds = array<i64: 32, 128>}, {pipeline_mode = #tpu.pipeline_mode<synchronous>, transform_indices = @transform_5, window_bounds = array<i64: 1, 128>}, {pipeline_mode = #tpu.pipeline_mode<synchronous>, transform_indices = @transform_6, window_bounds = array<i64: 5, 128, 256>}, {pipeline_mode = #tpu.pipeline_mode<synchronous>, transform_indices = @transform_7, window_bounds = array<i64: 1, 256>}, {pipeline_mode = #tpu.pipeline_mode<synchronous>, transform_indices = @transform_8, window_bounds = array<i64: 3, 256, 128>}, {pipeline_mode = #tpu.pipeline_mode<synchronous>, transform_indices = @transform_9, window_bounds = array<i64: 1, 128>}, {pipeline_mode = #tpu.pipeline_mode<synchronous>, transform_indices = @transform_10, window_bounds = array<i64: 128, 8>}, {pipeline_mode = #tpu.pipeline_mode<synchronous>, transform_indices = @transform_11, window_bounds = array<i64: 8, 128>}, {pipeline_mode = #tpu.pipeline_mode<synchronous>, transform_indices = @transform_12, window_bounds = array<i64: 160, 128>}, {pipeline_mode = #tpu.pipeline_mode<synchronous>, transform_indices = @transform_13, window_bounds = array<i64: 1, 128>}, {transform_indices = @transform_14, window_bounds = array<i64: 8, 128>}]} {
    %c0 = arith.constant 0 : index
    %c0_0 = arith.constant 0 : index
    %c0_1 = arith.constant 0 : index
    %0 = vector.load %arg1[%c0, %c0_0, %c0_1] : memref<8x16x4xf32, #tpu.memory_space<vmem>>, vector<8x16x4xf32>
    %1 = arith.truncf %0 : vector<8x16x4xf32> to vector<8x16x4xbf16>
    %2 = vector.shape_cast %1 : vector<8x16x4xbf16> to vector<128x4xbf16>
    %c0_2 = arith.constant 0 : index
    %c0_3 = arith.constant 0 : index
    %3 = vector.load %arg2[%c0_2, %c0_3] : memref<4x128xbf16, #tpu.memory_space<vmem>>, vector<4x128xbf16>
    %cst = arith.constant dense<0.000000e+00> : vector<128x128xf32>
    %4 = tpu.matmul %2, %3, %cst {dimension_numbers = #tpu.dot_dimension_numbers<[1], [0], [0], [1], [0, 0, 1, 1], [], []>} : vector<128x4xbf16>, vector<4x128xbf16>, vector<128x128xf32> -> vector<128x128xf32>
    %c0_4 = arith.constant 0 : index
    %c0_5 = arith.constant 0 : index
    %5 = vector.load %arg4[%c0_4, %c0_5] : memref<1x128xf32, #tpu.memory_space<vmem>>, vector<1x128xf32>
    %6 = vector.broadcast %5 : vector<1x128xf32> to vector<128x128xf32>
    %7 = arith.addf %4, %6 : vector<128x128xf32>
    %8 = vector.shape_cast %7 : vector<128x128xf32> to vector<8x16x128xf32>
    %c0_6 = arith.constant 0 : index
    %c0_7 = arith.constant 0 : index
    %c0_8 = arith.constant 0 : index
    %9 = vector.load %arg16[%c0_6, %c0_7, %c0_8] : memref<8x16x128xf32, #tpu.memory_space<vmem>>, vector<8x16x128xf32>
    tpu.vector_store %arg16[%c0_6, %c0_7, %c0_8], %8 {strides = array<i32>} : memref<8x16x128xf32, #tpu.memory_space<vmem>>, vector<8x16x128xf32>,
    %c0_9 = arith.constant 0 : index
    %c0_10 = arith.constant 0 : index
    %10 = vector.load %arg3[%c0_9, %c0_10] : memref<32x128xbf16, #tpu.memory_space<vmem>>, vector<32x128xbf16>
    %cst_11 = arith.constant 0.000000e+00 : f32
    %11 = vector.broadcast %cst_11 : f32 to vector<8x32xf32>
    %cst_12 = arith.constant 0.000000e+00 : f32
    %12 = vector.broadcast %cst_12 : f32 to vector<8x32xf32>
    %c0_i32 = arith.constant 0 : i32
    %c0_13 = arith.constant 0 : index
    %13 = arith.index_cast %c0_i32 : i32 to index
    %c0_14 = arith.constant 0 : index
    %14 = vector.load %arg16[%c0_13, %13, %c0_14] : memref<8x16x128xf32, #tpu.memory_space<vmem>>, vector<8x1x128xf32>
    %15 = vector.shape_cast %14 : vector<8x1x128xf32> to vector<8x128xf32>
    %16 = arith.truncf %11 : vector<8x32xf32> to vector<8x32xbf16>
    %cst_15 = arith.constant dense<0.000000e+00> : vector<8x128xf32>
    %17 = tpu.matmul %16, %10, %cst_15 {dimension_numbers = #tpu.dot_dimension_numbers<[1], [0], [0], [1], [0, 0, 1, 1], [], []>} : vector<8x32xbf16>, vector<32x128xbf16>, vector<8x128xf32> -> vector<8x128xf32>
    %18 = arith.addf %15, %17 : vector<8x128xf32>
    %19 = vector.extract_strided_slice %18 {offsets = [0, 0], sizes = [8, 32], strides = [1, 1]} : vector<8x128xf32> to vector<8x32xf32>
    %20 = arith.negf %19 : vector<8x32xf32>
    %21 = math.exp %20 : vector<8x32xf32>
    %cst_16 = arith.constant 1.000000e+00 : f32
    %22 = vector.broadcast %cst_16 : f32 to vector<8x32xf32>
    %23 = arith.addf %22, %21 : vector<8x32xf32>
    %24 = arith.divf %22, %23 : vector<8x32xf32>
    %25 = vector.extract_strided_slice %18 {offsets = [0, 32], sizes = [8, 32], strides = [1, 1]} : vector<8x128xf32> to vector<8x32xf32>
    %26 = arith.negf %25 : vector<8x32xf32>
    %27 = math.exp %26 : vector<8x32xf32>
    %cst_17 = arith.constant 1.000000e+00 : f32
    %28 = vector.broadcast %cst_17 : f32 to vector<8x32xf32>
    %29 = arith.addf %28, %27 : vector<8x32xf32>
    %30 = arith.divf %28, %29 : vector<8x32xf32>
    %31 = vector.extract_strided_slice %18 {offsets = [0, 64], sizes = [8, 32], strides = [1, 1]} : vector<8x128xf32> to vector<8x32xf32>
    %32 = math.tanh %31 : vector<8x32xf32>
    %33 = vector.extract_strided_slice %18 {offsets = [0, 96], sizes = [8, 32], strides = [1, 1]} : vector<8x128xf32> to vector<8x32xf32>
    %34 = arith.negf %33 : vector<8x32xf32>
    %35 = math.exp %34 : vector<8x32xf32>
    %cst_18 = arith.constant 1.000000e+00 : f32
    %36 = vector.broadcast %cst_18 : f32 to vector<8x32xf32>
    %37 = arith.addf %36, %35 : vector<8x32xf32>
    %38 = arith.divf %36, %37 : vector<8x32xf32>
    %39 = arith.mulf %30, %12 : vector<8x32xf32>
    %40 = arith.mulf %24, %32 : vector<8x32xf32>
    %41 = arith.addf %39, %40 : vector<8x32xf32>
    %42 = math.tanh %41 : vector<8x32xf32>
    %43 = arith.mulf %38, %42 : vector<8x32xf32>
    %c1_i32 = arith.constant 1 : i32
    %c0_19 = arith.constant 0 : index
    %44 = arith.index_cast %c1_i32 : i32 to index
    %c0_20 = arith.constant 0 : index
    %45 = vector.load %arg16[%c0_19, %44, %c0_20] : memref<8x16x128xf32, #tpu.memory_space<vmem>>, vector<8x1x128xf32>
    %46 = vector.shape_cast %45 : vector<8x1x128xf32> to vector<8x128xf32>
    %47 = arith.truncf %43 : vector<8x32xf32> to vector<8x32xbf16>
    %cst_21 = arith.constant dense<0.000000e+00> : vector<8x128xf32>
    %48 = tpu.matmul %47, %10, %cst_21 {dimension_numbers = #tpu.dot_dimension_numbers<[1], [0], [0], [1], [0, 0, 1, 1], [], []>} : vector<8x32xbf16>, vector<32x128xbf16>, vector<8x128xf32> -> vector<8x128xf32>
    %49 = arith.addf %46, %48 : vector<8x128xf32>
    %50 = vector.extract_strided_slice %49 {offsets = [0, 0], sizes = [8, 32], strides = [1, 1]} : vector<8x128xf32> to vector<8x32xf32>
    %51 = arith.negf %50 : vector<8x32xf32>
    %52 = math.exp %51 : vector<8x32xf32>
    %cst_22 = arith.constant 1.000000e+00 : f32
    %53 = vector.broadcast %cst_22 : f32 to vector<8x32xf32>
    %54 = arith.addf %53, %52 : vector<8x32xf32>
    %55 = arith.divf %53, %54 : vector<8x32xf32>
    %56 = vector.extract_strided_slice %49 {offsets = [0, 32], sizes = [8, 32], strides = [1, 1]} : vector<8x128xf32> to vector<8x32xf32>
    %57 = arith.negf %56 : vector<8x32xf32>
    %58 = math.exp %57 : vector<8x32xf32>
    %cst_23 = arith.constant 1.000000e+00 : f32
    %59 = vector.broadcast %cst_23 : f32 to vector<8x32xf32>
    %60 = arith.addf %59, %58 : vector<8x32xf32>
    %61 = arith.divf %59, %60 : vector<8x32xf32>
    %62 = vector.extract_strided_slice %49 {offsets = [0, 64], sizes = [8, 32], strides = [1, 1]} : vector<8x128xf32> to vector<8x32xf32>
    %63 = math.tanh %62 : vector<8x32xf32>
    %64 = vector.extract_strided_slice %49 {offsets = [0, 96], sizes = [8, 32], strides = [1, 1]} : vector<8x128xf32> to vector<8x32xf32>
    %65 = arith.negf %64 : vector<8x32xf32>
    %66 = math.exp %65 : vector<8x32xf32>
    %cst_24 = arith.constant 1.000000e+00 : f32
    %67 = vector.broadcast %cst_24 : f32 to vector<8x32xf32>
    %68 = arith.addf %67, %66 : vector<8x32xf32>
    %69 = arith.divf %67, %68 : vector<8x32xf32>
    %70 = arith.mulf %61, %41 : vector<8x32xf32>
    %71 = arith.mulf %55, %63 : vector<8x32xf32>
    %72 = arith.addf %70, %71 : vector<8x32xf32>
    %73 = math.tanh %72 : vector<8x32xf32>
    %74 = arith.mulf %69, %73 : vector<8x32xf32>
    %c2_i32 = arith.constant 2 : i32
    %c0_25 = arith.constant 0 : index
    %75 = arith.index_cast %c2_i32 : i32 to index
    %c0_26 = arith.constant 0 : index
    %76 = vector.load %arg16[%c0_25, %75, %c0_26] : memref<8x16x128xf32, #tpu.memory_space<vmem>>, vector<8x1x128xf32>
    %77 = vector.shape_cast %76 : vector<8x1x128xf32> to vector<8x128xf32>
    %78 = arith.truncf %74 : vector<8x32xf32> to vector<8x32xbf16>
    %cst_27 = arith.constant dense<0.000000e+00> : vector<8x128xf32>
    %79 = tpu.matmul %78, %10, %cst_27 {dimension_numbers = #tpu.dot_dimension_numbers<[1], [0], [0], [1], [0, 0, 1, 1], [], []>} : vector<8x32xbf16>, vector<32x128xbf16>, vector<8x128xf32> -> vector<8x128xf32>
    %80 = arith.addf %77, %79 : vector<8x128xf32>
    %81 = vector.extract_strided_slice %80 {offsets = [0, 0], sizes = [8, 32], strides = [1, 1]} : vector<8x128xf32> to vector<8x32xf32>
    %82 = arith.negf %81 : vector<8x32xf32>
    %83 = math.exp %82 : vector<8x32xf32>
    %cst_28 = arith.constant 1.000000e+00 : f32
    %84 = vector.broadcast %cst_28 : f32 to vector<8x32xf32>
    %85 = arith.addf %84, %83 : vector<8x32xf32>
    %86 = arith.divf %84, %85 : vector<8x32xf32>
    %87 = vector.extract_strided_slice %80 {offsets = [0, 32], sizes = [8, 32], strides = [1, 1]} : vector<8x128xf32> to vector<8x32xf32>
    %88 = arith.negf %87 : vector<8x32xf32>
    %89 = math.exp %88 : vector<8x32xf32>
    %cst_29 = arith.constant 1.000000e+00 : f32
    %90 = vector.broadcast %cst_29 : f32 to vector<8x32xf32>
    %91 = arith.addf %90, %89 : vector<8x32xf32>
    %92 = arith.divf %90, %91 : vector<8x32xf32>
    %93 = vector.extract_strided_slice %80 {offsets = [0, 64], sizes = [8, 32], strides = [1, 1]} : vector<8x128xf32> to vector<8x32xf32>
    %94 = math.tanh %93 : vector<8x32xf32>
    %95 = vector.extract_strided_slice %80 {offsets = [0, 96], sizes = [8, 32], strides = [1, 1]} : vector<8x128xf32> to vector<8x32xf32>
    %96 = arith.negf %95 : vector<8x32xf32>
    %97 = math.exp %96 : vector<8x32xf32>
    %cst_30 = arith.constant 1.000000e+00 : f32
    %98 = vector.broadcast %cst_30 : f32 to vector<8x32xf32>
    %99 = arith.addf %98, %97 : vector<8x32xf32>
    %100 = arith.divf %98, %99 : vector<8x32xf32>
    %101 = arith.mulf %92, %72 : vector<8x32xf32>
    %102 = arith.mulf %86, %94 : vector<8x32xf32>
    %103 = arith.addf %101, %102 : vector<8x32xf32>
    %104 = math.tanh %103 : vector<8x32xf32>
    %105 = arith.mulf %100, %104 : vector<8x32xf32>
    %c3_i32 = arith.constant 3 : i32
    %c0_31 = arith.constant 0 : index
    %106 = arith.index_cast %c3_i32 : i32 to index
    %c0_32 = arith.constant 0 : index
    %107 = vector.load %arg16[%c0_31, %106, %c0_32] : memref<8x16x128xf32, #tpu.memory_space<vmem>>, vector<8x1x128xf32>
    %108 = vector.shape_cast %107 : vector<8x1x128xf32> to vector<8x128xf32>
    %109 = arith.truncf %105 : vector<8x32xf32> to vector<8x32xbf16>
    %cst_33 = arith.constant dense<0.000000e+00> : vector<8x128xf32>
    %110 = tpu.matmul %109, %10, %cst_33 {dimension_numbers = #tpu.dot_dimension_numbers<[1], [0], [0], [1], [0, 0, 1, 1], [], []>} : vector<8x32xbf16>, vector<32x128xbf16>, vector<8x128xf32> -> vector<8x128xf32>
    %111 = arith.addf %108, %110 : vector<8x128xf32>
    %112 = vector.extract_strided_slice %111 {offsets = [0, 0], sizes = [8, 32], strides = [1, 1]} : vector<8x128xf32> to vector<8x32xf32>
    %113 = arith.negf %112 : vector<8x32xf32>
    %114 = math.exp %113 : vector<8x32xf32>
    %cst_34 = arith.constant 1.000000e+00 : f32
    %115 = vector.broadcast %cst_34 : f32 to vector<8x32xf32>
    %116 = arith.addf %115, %114 : vector<8x32xf32>
    %117 = arith.divf %115, %116 : vector<8x32xf32>
    %118 = vector.extract_strided_slice %111 {offsets = [0, 32], sizes = [8, 32], strides = [1, 1]} : vector<8x128xf32> to vector<8x32xf32>
    %119 = arith.negf %118 : vector<8x32xf32>
    %120 = math.exp %119 : vector<8x32xf32>
    %cst_35 = arith.constant 1.000000e+00 : f32
    %121 = vector.broadcast %cst_35 : f32 to vector<8x32xf32>
    %122 = arith.addf %121, %120 : vector<8x32xf32>
    %123 = arith.divf %121, %122 : vector<8x32xf32>
    %124 = vector.extract_strided_slice %111 {offsets = [0, 64], sizes = [8, 32], strides = [1, 1]} : vector<8x128xf32> to vector<8x32xf32>
    %125 = math.tanh %124 : vector<8x32xf32>
    %126 = vector.extract_strided_slice %111 {offsets = [0, 96], sizes = [8, 32], strides = [1, 1]} : vector<8x128xf32> to vector<8x32xf32>
    %127 = arith.negf %126 : vector<8x32xf32>
    %128 = math.exp %127 : vector<8x32xf32>
    %cst_36 = arith.constant 1.000000e+00 : f32
    %129 = vector.broadcast %cst_36 : f32 to vector<8x32xf32>
    %130 = arith.addf %129, %128 : vector<8x32xf32>
    %131 = arith.divf %129, %130 : vector<8x32xf32>
    %132 = arith.mulf %123, %103 : vector<8x32xf32>
    %133 = arith.mulf %117, %125 : vector<8x32xf32>
    %134 = arith.addf %132, %133 : vector<8x32xf32>
    %135 = math.tanh %134 : vector<8x32xf32>
    %136 = arith.mulf %131, %135 : vector<8x32xf32>
    %c4_i32 = arith.constant 4 : i32
    %c0_37 = arith.constant 0 : index
    %137 = arith.index_cast %c4_i32 : i32 to index
    %c0_38 = arith.constant 0 : index
    %138 = vector.load %arg16[%c0_37, %137, %c0_38] : memref<8x16x128xf32, #tpu.memory_space<vmem>>, vector<8x1x128xf32>
    %139 = vector.shape_cast %138 : vector<8x1x128xf32> to vector<8x128xf32>
    %140 = arith.truncf %136 : vector<8x32xf32> to vector<8x32xbf16>
    %cst_39 = arith.constant dense<0.000000e+00> : vector<8x128xf32>
    %141 = tpu.matmul %140, %10, %cst_39 {dimension_numbers = #tpu.dot_dimension_numbers<[1], [0], [0], [1], [0, 0, 1, 1], [], []>} : vector<8x32xbf16>, vector<32x128xbf16>, vector<8x128xf32> -> vector<8x128xf32>
    %142 = arith.addf %139, %141 : vector<8x128xf32>
    %143 = vector.extract_strided_slice %142 {offsets = [0, 0], sizes = [8, 32], strides = [1, 1]} : vector<8x128xf32> to vector<8x32xf32>
    %144 = arith.negf %143 : vector<8x32xf32>
    %145 = math.exp %144 : vector<8x32xf32>
    %cst_40 = arith.constant 1.000000e+00 : f32
    %146 = vector.broadcast %cst_40 : f32 to vector<8x32xf32>
    %147 = arith.addf %146, %145 : vector<8x32xf32>
    %148 = arith.divf %146, %147 : vector<8x32xf32>
    %149 = vector.extract_strided_slice %142 {offsets = [0, 32], sizes = [8, 32], strides = [1, 1]} : vector<8x128xf32> to vector<8x32xf32>
    %150 = arith.negf %149 : vector<8x32xf32>
    %151 = math.exp %150 : vector<8x32xf32>
    %cst_41 = arith.constant 1.000000e+00 : f32
    %152 = vector.broadcast %cst_41 : f32 to vector<8x32xf32>
    %153 = arith.addf %152, %151 : vector<8x32xf32>
    %154 = arith.divf %152, %153 : vector<8x32xf32>
    %155 = vector.extract_strided_slice %142 {offsets = [0, 64], sizes = [8, 32], strides = [1, 1]} : vector<8x128xf32> to vector<8x32xf32>
    %156 = math.tanh %155 : vector<8x32xf32>
    %157 = vector.extract_strided_slice %142 {offsets = [0, 96], sizes = [8, 32], strides = [1, 1]} : vector<8x128xf32> to vector<8x32xf32>
    %158 = arith.negf %157 : vector<8x32xf32>
    %159 = math.exp %158 : vector<8x32xf32>
    %cst_42 = arith.constant 1.000000e+00 : f32
    %160 = vector.broadcast %cst_42 : f32 to vector<8x32xf32>
    %161 = arith.addf %160, %159 : vector<8x32xf32>
    %162 = arith.divf %160, %161 : vector<8x32xf32>
    %163 = arith.mulf %154, %134 : vector<8x32xf32>
    %164 = arith.mulf %148, %156 : vector<8x32xf32>
    %165 = arith.addf %163, %164 : vector<8x32xf32>
    %166 = math.tanh %165 : vector<8x32xf32>
    %167 = arith.mulf %162, %166 : vector<8x32xf32>
    %c5_i32 = arith.constant 5 : i32
    %c0_43 = arith.constant 0 : index
    %168 = arith.index_cast %c5_i32 : i32 to index
    %c0_44 = arith.constant 0 : index
    %169 = vector.load %arg16[%c0_43, %168, %c0_44] : memref<8x16x128xf32, #tpu.memory_space<vmem>>, vector<8x1x128xf32>
    %170 = vector.shape_cast %169 : vector<8x1x128xf32> to vector<8x128xf32>
    %171 = arith.truncf %167 : vector<8x32xf32> to vector<8x32xbf16>
    %cst_45 = arith.constant dense<0.000000e+00> : vector<8x128xf32>
    %172 = tpu.matmul %171, %10, %cst_45 {dimension_numbers = #tpu.dot_dimension_numbers<[1], [0], [0], [1], [0, 0, 1, 1], [], []>} : vector<8x32xbf16>, vector<32x128xbf16>, vector<8x128xf32> -> vector<8x128xf32>
    %173 = arith.addf %170, %172 : vector<8x128xf32>
    %174 = vector.extract_strided_slice %173 {offsets = [0, 0], sizes = [8, 32], strides = [1, 1]} : vector<8x128xf32> to vector<8x32xf32>
    %175 = arith.negf %174 : vector<8x32xf32>
    %176 = math.exp %175 : vector<8x32xf32>
    %cst_46 = arith.constant 1.000000e+00 : f32
    %177 = vector.broadcast %cst_46 : f32 to vector<8x32xf32>
    %178 = arith.addf %177, %176 : vector<8x32xf32>
    %179 = arith.divf %177, %178 : vector<8x32xf32>
    %180 = vector.extract_strided_slice %173 {offsets = [0, 32], sizes = [8, 32], strides = [1, 1]} : vector<8x128xf32> to vector<8x32xf32>
    %181 = arith.negf %180 : vector<8x32xf32>
    %182 = math.exp %181 : vector<8x32xf32>
    %cst_47 = arith.constant 1.000000e+00 : f32
    %183 = vector.broadcast %cst_47 : f32 to vector<8x32xf32>
    %184 = arith.addf %183, %182 : vector<8x32xf32>
    %185 = arith.divf %183, %184 : vector<8x32xf32>
    %186 = vector.extract_strided_slice %173 {offsets = [0, 64], sizes = [8, 32], strides = [1, 1]} : vector<8x128xf32> to vector<8x32xf32>
    %187 = math.tanh %186 : vector<8x32xf32>
    %188 = vector.extract_strided_slice %173 {offsets = [0, 96], sizes = [8, 32], strides = [1, 1]} : vector<8x128xf32> to vector<8x32xf32>
    %189 = arith.negf %188 : vector<8x32xf32>
    %190 = math.exp %189 : vector<8x32xf32>
    %cst_48 = arith.constant 1.000000e+00 : f32
    %191 = vector.broadcast %cst_48 : f32 to vector<8x32xf32>
    %192 = arith.addf %191, %190 : vector<8x32xf32>
    %193 = arith.divf %191, %192 : vector<8x32xf32>
    %194 = arith.mulf %185, %165 : vector<8x32xf32>
    %195 = arith.mulf %179, %187 : vector<8x32xf32>
    %196 = arith.addf %194, %195 : vector<8x32xf32>
    %197 = math.tanh %196 : vector<8x32xf32>
    %198 = arith.mulf %193, %197 : vector<8x32xf32>
    %c6_i32 = arith.constant 6 : i32
    %c0_49 = arith.constant 0 : index
    %199 = arith.index_cast %c6_i32 : i32 to index
    %c0_50 = arith.constant 0 : index
    %200 = vector.load %arg16[%c0_49, %199, %c0_50] : memref<8x16x128xf32, #tpu.memory_space<vmem>>, vector<8x1x128xf32>
    %201 = vector.shape_cast %200 : vector<8x1x128xf32> to vector<8x128xf32>
    %202 = arith.truncf %198 : vector<8x32xf32> to vector<8x32xbf16>
    %cst_51 = arith.constant dense<0.000000e+00> : vector<8x128xf32>
    %203 = tpu.matmul %202, %10, %cst_51 {dimension_numbers = #tpu.dot_dimension_numbers<[1], [0], [0], [1], [0, 0, 1, 1], [], []>} : vector<8x32xbf16>, vector<32x128xbf16>, vector<8x128xf32> -> vector<8x128xf32>
    %204 = arith.addf %201, %203 : vector<8x128xf32>
    %205 = vector.extract_strided_slice %204 {offsets = [0, 0], sizes = [8, 32], strides = [1, 1]} : vector<8x128xf32> to vector<8x32xf32>
    %206 = arith.negf %205 : vector<8x32xf32>
    %207 = math.exp %206 : vector<8x32xf32>
    %cst_52 = arith.constant 1.000000e+00 : f32
    %208 = vector.broadcast %cst_52 : f32 to vector<8x32xf32>
    %209 = arith.addf %208, %207 : vector<8x32xf32>
    %210 = arith.divf %208, %209 : vector<8x32xf32>
    %211 = vector.extract_strided_slice %204 {offsets = [0, 32], sizes = [8, 32], strides = [1, 1]} : vector<8x128xf32> to vector<8x32xf32>
    %212 = arith.negf %211 : vector<8x32xf32>
    %213 = math.exp %212 : vector<8x32xf32>
    %cst_53 = arith.constant 1.000000e+00 : f32
    %214 = vector.broadcast %cst_53 : f32 to vector<8x32xf32>
    %215 = arith.addf %214, %213 : vector<8x32xf32>
    %216 = arith.divf %214, %215 : vector<8x32xf32>
    %217 = vector.extract_strided_slice %204 {offsets = [0, 64], sizes = [8, 32], strides = [1, 1]} : vector<8x128xf32> to vector<8x32xf32>
    %218 = math.tanh %217 : vector<8x32xf32>
    %219 = vector.extract_strided_slice %204 {offsets = [0, 96], sizes = [8, 32], strides = [1, 1]} : vector<8x128xf32> to vector<8x32xf32>
    %220 = arith.negf %219 : vector<8x32xf32>
    %221 = math.exp %220 : vector<8x32xf32>
    %cst_54 = arith.constant 1.000000e+00 : f32
    %222 = vector.broadcast %cst_54 : f32 to vector<8x32xf32>
    %223 = arith.addf %222, %221 : vector<8x32xf32>
    %224 = arith.divf %222, %223 : vector<8x32xf32>
    %225 = arith.mulf %216, %196 : vector<8x32xf32>
    %226 = arith.mulf %210, %218 : vector<8x32xf32>
    %227 = arith.addf %225, %226 : vector<8x32xf32>
    %228 = math.tanh %227 : vector<8x32xf32>
    %229 = arith.mulf %224, %228 : vector<8x32xf32>
    %c7_i32 = arith.constant 7 : i32
    %c0_55 = arith.constant 0 : index
    %230 = arith.index_cast %c7_i32 : i32 to index
    %c0_56 = arith.constant 0 : index
    %231 = vector.load %arg16[%c0_55, %230, %c0_56] : memref<8x16x128xf32, #tpu.memory_space<vmem>>, vector<8x1x128xf32>
    %232 = vector.shape_cast %231 : vector<8x1x128xf32> to vector<8x128xf32>
    %233 = arith.truncf %229 : vector<8x32xf32> to vector<8x32xbf16>
    %cst_57 = arith.constant dense<0.000000e+00> : vector<8x128xf32>
    %234 = tpu.matmul %233, %10, %cst_57 {dimension_numbers = #tpu.dot_dimension_numbers<[1], [0], [0], [1], [0, 0, 1, 1], [], []>} : vector<8x32xbf16>, vector<32x128xbf16>, vector<8x128xf32> -> vector<8x128xf32>
    %235 = arith.addf %232, %234 : vector<8x128xf32>
    %236 = vector.extract_strided_slice %235 {offsets = [0, 0], sizes = [8, 32], strides = [1, 1]} : vector<8x128xf32> to vector<8x32xf32>
    %237 = arith.negf %236 : vector<8x32xf32>
    %238 = math.exp %237 : vector<8x32xf32>
    %cst_58 = arith.constant 1.000000e+00 : f32
    %239 = vector.broadcast %cst_58 : f32 to vector<8x32xf32>
    %240 = arith.addf %239, %238 : vector<8x32xf32>
    %241 = arith.divf %239, %240 : vector<8x32xf32>
    %242 = vector.extract_strided_slice %235 {offsets = [0, 32], sizes = [8, 32], strides = [1, 1]} : vector<8x128xf32> to vector<8x32xf32>
    %243 = arith.negf %242 : vector<8x32xf32>
    %244 = math.exp %243 : vector<8x32xf32>
    %cst_59 = arith.constant 1.000000e+00 : f32
    %245 = vector.broadcast %cst_59 : f32 to vector<8x32xf32>
    %246 = arith.addf %245, %244 : vector<8x32xf32>
    %247 = arith.divf %245, %246 : vector<8x32xf32>
    %248 = vector.extract_strided_slice %235 {offsets = [0, 64], sizes = [8, 32], strides = [1, 1]} : vector<8x128xf32> to vector<8x32xf32>
    %249 = math.tanh %248 : vector<8x32xf32>
    %250 = vector.extract_strided_slice %235 {offsets = [0, 96], sizes = [8, 32], strides = [1, 1]} : vector<8x128xf32> to vector<8x32xf32>
    %251 = arith.negf %250 : vector<8x32xf32>
    %252 = math.exp %251 : vector<8x32xf32>
    %cst_60 = arith.constant 1.000000e+00 : f32
    %253 = vector.broadcast %cst_60 : f32 to vector<8x32xf32>
    %254 = arith.addf %253, %252 : vector<8x32xf32>
    %255 = arith.divf %253, %254 : vector<8x32xf32>
    %256 = arith.mulf %247, %227 : vector<8x32xf32>
    %257 = arith.mulf %241, %249 : vector<8x32xf32>
    %258 = arith.addf %256, %257 : vector<8x32xf32>
    %259 = math.tanh %258 : vector<8x32xf32>
    %260 = arith.mulf %255, %259 : vector<8x32xf32>
    %c8_i32 = arith.constant 8 : i32
    %c0_61 = arith.constant 0 : index
    %261 = arith.index_cast %c8_i32 : i32 to index
    %c0_62 = arith.constant 0 : index
    %262 = vector.load %arg16[%c0_61, %261, %c0_62] : memref<8x16x128xf32, #tpu.memory_space<vmem>>, vector<8x1x128xf32>
    %263 = vector.shape_cast %262 : vector<8x1x128xf32> to vector<8x128xf32>
    %264 = arith.truncf %260 : vector<8x32xf32> to vector<8x32xbf16>
    %cst_63 = arith.constant dense<0.000000e+00> : vector<8x128xf32>
    %265 = tpu.matmul %264, %10, %cst_63 {dimension_numbers = #tpu.dot_dimension_numbers<[1], [0], [0], [1], [0, 0, 1, 1], [], []>} : vector<8x32xbf16>, vector<32x128xbf16>, vector<8x128xf32> -> vector<8x128xf32>
    %266 = arith.addf %263, %265 : vector<8x128xf32>
    %267 = vector.extract_strided_slice %266 {offsets = [0, 0], sizes = [8, 32], strides = [1, 1]} : vector<8x128xf32> to vector<8x32xf32>
    %268 = arith.negf %267 : vector<8x32xf32>
    %269 = math.exp %268 : vector<8x32xf32>
    %cst_64 = arith.constant 1.000000e+00 : f32
    %270 = vector.broadcast %cst_64 : f32 to vector<8x32xf32>
    %271 = arith.addf %270, %269 : vector<8x32xf32>
    %272 = arith.divf %270, %271 : vector<8x32xf32>
    %273 = vector.extract_strided_slice %266 {offsets = [0, 32], sizes = [8, 32], strides = [1, 1]} : vector<8x128xf32> to vector<8x32xf32>
    %274 = arith.negf %273 : vector<8x32xf32>
    %275 = math.exp %274 : vector<8x32xf32>
    %cst_65 = arith.constant 1.000000e+00 : f32
    %276 = vector.broadcast %cst_65 : f32 to vector<8x32xf32>
    %277 = arith.addf %276, %275 : vector<8x32xf32>
    %278 = arith.divf %276, %277 : vector<8x32xf32>
    %279 = vector.extract_strided_slice %266 {offsets = [0, 64], sizes = [8, 32], strides = [1, 1]} : vector<8x128xf32> to vector<8x32xf32>
    %280 = math.tanh %279 : vector<8x32xf32>
    %281 = vector.extract_strided_slice %266 {offsets = [0, 96], sizes = [8, 32], strides = [1, 1]} : vector<8x128xf32> to vector<8x32xf32>
    %282 = arith.negf %281 : vector<8x32xf32>
    %283 = math.exp %282 : vector<8x32xf32>
    %cst_66 = arith.constant 1.000000e+00 : f32
    %284 = vector.broadcast %cst_66 : f32 to vector<8x32xf32>
    %285 = arith.addf %284, %283 : vector<8x32xf32>
    %286 = arith.divf %284, %285 : vector<8x32xf32>
    %287 = arith.mulf %278, %258 : vector<8x32xf32>
    %288 = arith.mulf %272, %280 : vector<8x32xf32>
    %289 = arith.addf %287, %288 : vector<8x32xf32>
    %290 = math.tanh %289 : vector<8x32xf32>
    %291 = arith.mulf %286, %290 : vector<8x32xf32>
    %c9_i32 = arith.constant 9 : i32
    %c0_67 = arith.constant 0 : index
    %292 = arith.index_cast %c9_i32 : i32 to index
    %c0_68 = arith.constant 0 : index
    %293 = vector.load %arg16[%c0_67, %292, %c0_68] : memref<8x16x128xf32, #tpu.memory_space<vmem>>, vector<8x1x128xf32>
    %294 = vector.shape_cast %293 : vector<8x1x128xf32> to vector<8x128xf32>
    %295 = arith.truncf %291 : vector<8x32xf32> to vector<8x32xbf16>
    %cst_69 = arith.constant dense<0.000000e+00> : vector<8x128xf32>
    %296 = tpu.matmul %295, %10, %cst_69 {dimension_numbers = #tpu.dot_dimension_numbers<[1], [0], [0], [1], [0, 0, 1, 1], [], []>} : vector<8x32xbf16>, vector<32x128xbf16>, vector<8x128xf32> -> vector<8x128xf32>
    %297 = arith.addf %294, %296 : vector<8x128xf32>
    %298 = vector.extract_strided_slice %297 {offsets = [0, 0], sizes = [8, 32], strides = [1, 1]} : vector<8x128xf32> to vector<8x32xf32>
    %299 = arith.negf %298 : vector<8x32xf32>
    %300 = math.exp %299 : vector<8x32xf32>
    %cst_70 = arith.constant 1.000000e+00 : f32
    %301 = vector.broadcast %cst_70 : f32 to vector<8x32xf32>
    %302 = arith.addf %301, %300 : vector<8x32xf32>
    %303 = arith.divf %301, %302 : vector<8x32xf32>
    %304 = vector.extract_strided_slice %297 {offsets = [0, 32], sizes = [8, 32], strides = [1, 1]} : vector<8x128xf32> to vector<8x32xf32>
    %305 = arith.negf %304 : vector<8x32xf32>
    %306 = math.exp %305 : vector<8x32xf32>
    %cst_71 = arith.constant 1.000000e+00 : f32
    %307 = vector.broadcast %cst_71 : f32 to vector<8x32xf32>
    %308 = arith.addf %307, %306 : vector<8x32xf32>
    %309 = arith.divf %307, %308 : vector<8x32xf32>
    %310 = vector.extract_strided_slice %297 {offsets = [0, 64], sizes = [8, 32], strides = [1, 1]} : vector<8x128xf32> to vector<8x32xf32>
    %311 = math.tanh %310 : vector<8x32xf32>
    %312 = vector.extract_strided_slice %297 {offsets = [0, 96], sizes = [8, 32], strides = [1, 1]} : vector<8x128xf32> to vector<8x32xf32>
    %313 = arith.negf %312 : vector<8x32xf32>
    %314 = math.exp %313 : vector<8x32xf32>
    %cst_72 = arith.constant 1.000000e+00 : f32
    %315 = vector.broadcast %cst_72 : f32 to vector<8x32xf32>
    %316 = arith.addf %315, %314 : vector<8x32xf32>
    %317 = arith.divf %315, %316 : vector<8x32xf32>
    %318 = arith.mulf %309, %289 : vector<8x32xf32>
    %319 = arith.mulf %303, %311 : vector<8x32xf32>
    %320 = arith.addf %318, %319 : vector<8x32xf32>
    %321 = math.tanh %320 : vector<8x32xf32>
    %322 = arith.mulf %317, %321 : vector<8x32xf32>
    %c10_i32 = arith.constant 10 : i32
    %c0_73 = arith.constant 0 : index
    %323 = arith.index_cast %c10_i32 : i32 to index
    %c0_74 = arith.constant 0 : index
    %324 = vector.load %arg16[%c0_73, %323, %c0_74] : memref<8x16x128xf32, #tpu.memory_space<vmem>>, vector<8x1x128xf32>
    %325 = vector.shape_cast %324 : vector<8x1x128xf32> to vector<8x128xf32>
    %326 = arith.truncf %322 : vector<8x32xf32> to vector<8x32xbf16>
    %cst_75 = arith.constant dense<0.000000e+00> : vector<8x128xf32>
    %327 = tpu.matmul %326, %10, %cst_75 {dimension_numbers = #tpu.dot_dimension_numbers<[1], [0], [0], [1], [0, 0, 1, 1], [], []>} : vector<8x32xbf16>, vector<32x128xbf16>, vector<8x128xf32> -> vector<8x128xf32>
    %328 = arith.addf %325, %327 : vector<8x128xf32>
    %329 = vector.extract_strided_slice %328 {offsets = [0, 0], sizes = [8, 32], strides = [1, 1]} : vector<8x128xf32> to vector<8x32xf32>
    %330 = arith.negf %329 : vector<8x32xf32>
    %331 = math.exp %330 : vector<8x32xf32>
    %cst_76 = arith.constant 1.000000e+00 : f32
    %332 = vector.broadcast %cst_76 : f32 to vector<8x32xf32>
    %333 = arith.addf %332, %331 : vector<8x32xf32>
    %334 = arith.divf %332, %333 : vector<8x32xf32>
    %335 = vector.extract_strided_slice %328 {offsets = [0, 32], sizes = [8, 32], strides = [1, 1]} : vector<8x128xf32> to vector<8x32xf32>
    %336 = arith.negf %335 : vector<8x32xf32>
    %337 = math.exp %336 : vector<8x32xf32>
    %cst_77 = arith.constant 1.000000e+00 : f32
    %338 = vector.broadcast %cst_77 : f32 to vector<8x32xf32>
    %339 = arith.addf %338, %337 : vector<8x32xf32>
    %340 = arith.divf %338, %339 : vector<8x32xf32>
    %341 = vector.extract_strided_slice %328 {offsets = [0, 64], sizes = [8, 32], strides = [1, 1]} : vector<8x128xf32> to vector<8x32xf32>
    %342 = math.tanh %341 : vector<8x32xf32>
    %343 = vector.extract_strided_slice %328 {offsets = [0, 96], sizes = [8, 32], strides = [1, 1]} : vector<8x128xf32> to vector<8x32xf32>
    %344 = arith.negf %343 : vector<8x32xf32>
    %345 = math.exp %344 : vector<8x32xf32>
    %cst_78 = arith.constant 1.000000e+00 : f32
    %346 = vector.broadcast %cst_78 : f32 to vector<8x32xf32>
    %347 = arith.addf %346, %345 : vector<8x32xf32>
    %348 = arith.divf %346, %347 : vector<8x32xf32>
    %349 = arith.mulf %340, %320 : vector<8x32xf32>
    %350 = arith.mulf %334, %342 : vector<8x32xf32>
    %351 = arith.addf %349, %350 : vector<8x32xf32>
    %352 = math.tanh %351 : vector<8x32xf32>
    %353 = arith.mulf %348, %352 : vector<8x32xf32>
    %c11_i32 = arith.constant 11 : i32
    %c0_79 = arith.constant 0 : index
    %354 = arith.index_cast %c11_i32 : i32 to index
    %c0_80 = arith.constant 0 : index
    %355 = vector.load %arg16[%c0_79, %354, %c0_80] : memref<8x16x128xf32, #tpu.memory_space<vmem>>, vector<8x1x128xf32>
    %356 = vector.shape_cast %355 : vector<8x1x128xf32> to vector<8x128xf32>
    %357 = arith.truncf %353 : vector<8x32xf32> to vector<8x32xbf16>
    %cst_81 = arith.constant dense<0.000000e+00> : vector<8x128xf32>
    %358 = tpu.matmul %357, %10, %cst_81 {dimension_numbers = #tpu.dot_dimension_numbers<[1], [0], [0], [1], [0, 0, 1, 1], [], []>} : vector<8x32xbf16>, vector<32x128xbf16>, vector<8x128xf32> -> vector<8x128xf32>
    %359 = arith.addf %356, %358 : vector<8x128xf32>
    %360 = vector.extract_strided_slice %359 {offsets = [0, 0], sizes = [8, 32], strides = [1, 1]} : vector<8x128xf32> to vector<8x32xf32>
    %361 = arith.negf %360 : vector<8x32xf32>
    %362 = math.exp %361 : vector<8x32xf32>
    %cst_82 = arith.constant 1.000000e+00 : f32
    %363 = vector.broadcast %cst_82 : f32 to vector<8x32xf32>
    %364 = arith.addf %363, %362 : vector<8x32xf32>
    %365 = arith.divf %363, %364 : vector<8x32xf32>
    %366 = vector.extract_strided_slice %359 {offsets = [0, 32], sizes = [8, 32], strides = [1, 1]} : vector<8x128xf32> to vector<8x32xf32>
    %367 = arith.negf %366 : vector<8x32xf32>
    %368 = math.exp %367 : vector<8x32xf32>
    %cst_83 = arith.constant 1.000000e+00 : f32
    %369 = vector.broadcast %cst_83 : f32 to vector<8x32xf32>
    %370 = arith.addf %369, %368 : vector<8x32xf32>
    %371 = arith.divf %369, %370 : vector<8x32xf32>
    %372 = vector.extract_strided_slice %359 {offsets = [0, 64], sizes = [8, 32], strides = [1, 1]} : vector<8x128xf32> to vector<8x32xf32>
    %373 = math.tanh %372 : vector<8x32xf32>
    %374 = vector.extract_strided_slice %359 {offsets = [0, 96], sizes = [8, 32], strides = [1, 1]} : vector<8x128xf32> to vector<8x32xf32>
    %375 = arith.negf %374 : vector<8x32xf32>
    %376 = math.exp %375 : vector<8x32xf32>
    %cst_84 = arith.constant 1.000000e+00 : f32
    %377 = vector.broadcast %cst_84 : f32 to vector<8x32xf32>
    %378 = arith.addf %377, %376 : vector<8x32xf32>
    %379 = arith.divf %377, %378 : vector<8x32xf32>
    %380 = arith.mulf %371, %351 : vector<8x32xf32>
    %381 = arith.mulf %365, %373 : vector<8x32xf32>
    %382 = arith.addf %380, %381 : vector<8x32xf32>
    %383 = math.tanh %382 : vector<8x32xf32>
    %384 = arith.mulf %379, %383 : vector<8x32xf32>
    %c12_i32 = arith.constant 12 : i32
    %c0_85 = arith.constant 0 : index
    %385 = arith.index_cast %c12_i32 : i32 to index
    %c0_86 = arith.constant 0 : index
    %386 = vector.load %arg16[%c0_85, %385, %c0_86] : memref<8x16x128xf32, #tpu.memory_space<vmem>>, vector<8x1x128xf32>
    %387 = vector.shape_cast %386 : vector<8x1x128xf32> to vector<8x128xf32>
    %388 = arith.truncf %384 : vector<8x32xf32> to vector<8x32xbf16>
    %cst_87 = arith.constant dense<0.000000e+00> : vector<8x128xf32>
    %389 = tpu.matmul %388, %10, %cst_87 {dimension_numbers = #tpu.dot_dimension_numbers<[1], [0], [0], [1], [0, 0, 1, 1], [], []>} : vector<8x32xbf16>, vector<32x128xbf16>, vector<8x128xf32> -> vector<8x128xf32>
    %390 = arith.addf %387, %389 : vector<8x128xf32>
    %391 = vector.extract_strided_slice %390 {offsets = [0, 0], sizes = [8, 32], strides = [1, 1]} : vector<8x128xf32> to vector<8x32xf32>
    %392 = arith.negf %391 : vector<8x32xf32>
    %393 = math.exp %392 : vector<8x32xf32>
    %cst_88 = arith.constant 1.000000e+00 : f32
    %394 = vector.broadcast %cst_88 : f32 to vector<8x32xf32>
    %395 = arith.addf %394, %393 : vector<8x32xf32>
    %396 = arith.divf %394, %395 : vector<8x32xf32>
    %397 = vector.extract_strided_slice %390 {offsets = [0, 32], sizes = [8, 32], strides = [1, 1]} : vector<8x128xf32> to vector<8x32xf32>
    %398 = arith.negf %397 : vector<8x32xf32>
    %399 = math.exp %398 : vector<8x32xf32>
    %cst_89 = arith.constant 1.000000e+00 : f32
    %400 = vector.broadcast %cst_89 : f32 to vector<8x32xf32>
    %401 = arith.addf %400, %399 : vector<8x32xf32>
    %402 = arith.divf %400, %401 : vector<8x32xf32>
    %403 = vector.extract_strided_slice %390 {offsets = [0, 64], sizes = [8, 32], strides = [1, 1]} : vector<8x128xf32> to vector<8x32xf32>
    %404 = math.tanh %403 : vector<8x32xf32>
    %405 = vector.extract_strided_slice %390 {offsets = [0, 96], sizes = [8, 32], strides = [1, 1]} : vector<8x128xf32> to vector<8x32xf32>
    %406 = arith.negf %405 : vector<8x32xf32>
    %407 = math.exp %406 : vector<8x32xf32>
    %cst_90 = arith.constant 1.000000e+00 : f32
    %408 = vector.broadcast %cst_90 : f32 to vector<8x32xf32>
    %409 = arith.addf %408, %407 : vector<8x32xf32>
    %410 = arith.divf %408, %409 : vector<8x32xf32>
    %411 = arith.mulf %402, %382 : vector<8x32xf32>
    %412 = arith.mulf %396, %404 : vector<8x32xf32>
    %413 = arith.addf %411, %412 : vector<8x32xf32>
    %414 = math.tanh %413 : vector<8x32xf32>
    %415 = arith.mulf %410, %414 : vector<8x32xf32>
    %c13_i32 = arith.constant 13 : i32
    %c0_91 = arith.constant 0 : index
    %416 = arith.index_cast %c13_i32 : i32 to index
    %c0_92 = arith.constant 0 : index
    %417 = vector.load %arg16[%c0_91, %416, %c0_92] : memref<8x16x128xf32, #tpu.memory_space<vmem>>, vector<8x1x128xf32>
    %418 = vector.shape_cast %417 : vector<8x1x128xf32> to vector<8x128xf32>
    %419 = arith.truncf %415 : vector<8x32xf32> to vector<8x32xbf16>
    %cst_93 = arith.constant dense<0.000000e+00> : vector<8x128xf32>
    %420 = tpu.matmul %419, %10, %cst_93 {dimension_numbers = #tpu.dot_dimension_numbers<[1], [0], [0], [1], [0, 0, 1, 1], [], []>} : vector<8x32xbf16>, vector<32x128xbf16>, vector<8x128xf32> -> vector<8x128xf32>
    %421 = arith.addf %418, %420 : vector<8x128xf32>
    %422 = vector.extract_strided_slice %421 {offsets = [0, 0], sizes = [8, 32], strides = [1, 1]} : vector<8x128xf32> to vector<8x32xf32>
    %423 = arith.negf %422 : vector<8x32xf32>
    %424 = math.exp %423 : vector<8x32xf32>
    %cst_94 = arith.constant 1.000000e+00 : f32
    %425 = vector.broadcast %cst_94 : f32 to vector<8x32xf32>
    %426 = arith.addf %425, %424 : vector<8x32xf32>
    %427 = arith.divf %425, %426 : vector<8x32xf32>
    %428 = vector.extract_strided_slice %421 {offsets = [0, 32], sizes = [8, 32], strides = [1, 1]} : vector<8x128xf32> to vector<8x32xf32>
    %429 = arith.negf %428 : vector<8x32xf32>
    %430 = math.exp %429 : vector<8x32xf32>
    %cst_95 = arith.constant 1.000000e+00 : f32
    %431 = vector.broadcast %cst_95 : f32 to vector<8x32xf32>
    %432 = arith.addf %431, %430 : vector<8x32xf32>
    %433 = arith.divf %431, %432 : vector<8x32xf32>
    %434 = vector.extract_strided_slice %421 {offsets = [0, 64], sizes = [8, 32], strides = [1, 1]} : vector<8x128xf32> to vector<8x32xf32>
    %435 = math.tanh %434 : vector<8x32xf32>
    %436 = vector.extract_strided_slice %421 {offsets = [0, 96], sizes = [8, 32], strides = [1, 1]} : vector<8x128xf32> to vector<8x32xf32>
    %437 = arith.negf %436 : vector<8x32xf32>
    %438 = math.exp %437 : vector<8x32xf32>
    %cst_96 = arith.constant 1.000000e+00 : f32
    %439 = vector.broadcast %cst_96 : f32 to vector<8x32xf32>
    %440 = arith.addf %439, %438 : vector<8x32xf32>
    %441 = arith.divf %439, %440 : vector<8x32xf32>
    %442 = arith.mulf %433, %413 : vector<8x32xf32>
    %443 = arith.mulf %427, %435 : vector<8x32xf32>
    %444 = arith.addf %442, %443 : vector<8x32xf32>
    %445 = math.tanh %444 : vector<8x32xf32>
    %446 = arith.mulf %441, %445 : vector<8x32xf32>
    %c14_i32 = arith.constant 14 : i32
    %c0_97 = arith.constant 0 : index
    %447 = arith.index_cast %c14_i32 : i32 to index
    %c0_98 = arith.constant 0 : index
    %448 = vector.load %arg16[%c0_97, %447, %c0_98] : memref<8x16x128xf32, #tpu.memory_space<vmem>>, vector<8x1x128xf32>
    %449 = vector.shape_cast %448 : vector<8x1x128xf32> to vector<8x128xf32>
    %450 = arith.truncf %446 : vector<8x32xf32> to vector<8x32xbf16>
    %cst_99 = arith.constant dense<0.000000e+00> : vector<8x128xf32>
    %451 = tpu.matmul %450, %10, %cst_99 {dimension_numbers = #tpu.dot_dimension_numbers<[1], [0], [0], [1], [0, 0, 1, 1], [], []>} : vector<8x32xbf16>, vector<32x128xbf16>, vector<8x128xf32> -> vector<8x128xf32>
    %452 = arith.addf %449, %451 : vector<8x128xf32>
    %453 = vector.extract_strided_slice %452 {offsets = [0, 0], sizes = [8, 32], strides = [1, 1]} : vector<8x128xf32> to vector<8x32xf32>
    %454 = arith.negf %453 : vector<8x32xf32>
    %455 = math.exp %454 : vector<8x32xf32>
    %cst_100 = arith.constant 1.000000e+00 : f32
    %456 = vector.broadcast %cst_100 : f32 to vector<8x32xf32>
    %457 = arith.addf %456, %455 : vector<8x32xf32>
    %458 = arith.divf %456, %457 : vector<8x32xf32>
    %459 = vector.extract_strided_slice %452 {offsets = [0, 32], sizes = [8, 32], strides = [1, 1]} : vector<8x128xf32> to vector<8x32xf32>
    %460 = arith.negf %459 : vector<8x32xf32>
    %461 = math.exp %460 : vector<8x32xf32>
    %cst_101 = arith.constant 1.000000e+00 : f32
    %462 = vector.broadcast %cst_101 : f32 to vector<8x32xf32>
    %463 = arith.addf %462, %461 : vector<8x32xf32>
    %464 = arith.divf %462, %463 : vector<8x32xf32>
    %465 = vector.extract_strided_slice %452 {offsets = [0, 64], sizes = [8, 32], strides = [1, 1]} : vector<8x128xf32> to vector<8x32xf32>
    %466 = math.tanh %465 : vector<8x32xf32>
    %467 = vector.extract_strided_slice %452 {offsets = [0, 96], sizes = [8, 32], strides = [1, 1]} : vector<8x128xf32> to vector<8x32xf32>
    %468 = arith.negf %467 : vector<8x32xf32>
    %469 = math.exp %468 : vector<8x32xf32>
    %cst_102 = arith.constant 1.000000e+00 : f32
    %470 = vector.broadcast %cst_102 : f32 to vector<8x32xf32>
    %471 = arith.addf %470, %469 : vector<8x32xf32>
    %472 = arith.divf %470, %471 : vector<8x32xf32>
    %473 = arith.mulf %464, %444 : vector<8x32xf32>
    %474 = arith.mulf %458, %466 : vector<8x32xf32>
    %475 = arith.addf %473, %474 : vector<8x32xf32>
    %476 = math.tanh %475 : vector<8x32xf32>
    %477 = arith.mulf %472, %476 : vector<8x32xf32>
    %c15_i32 = arith.constant 15 : i32
    %c0_103 = arith.constant 0 : index
    %478 = arith.index_cast %c15_i32 : i32 to index
    %c0_104 = arith.constant 0 : index
    %479 = vector.load %arg16[%c0_103, %478, %c0_104] : memref<8x16x128xf32, #tpu.memory_space<vmem>>, vector<8x1x128xf32>
    %480 = vector.shape_cast %479 : vector<8x1x128xf32> to vector<8x128xf32>
    %481 = arith.truncf %477 : vector<8x32xf32> to vector<8x32xbf16>
    %cst_105 = arith.constant dense<0.000000e+00> : vector<8x128xf32>
    %482 = tpu.matmul %481, %10, %cst_105 {dimension_numbers = #tpu.dot_dimension_numbers<[1], [0], [0], [1], [0, 0, 1, 1], [], []>} : vector<8x32xbf16>, vector<32x128xbf16>, vector<8x128xf32> -> vector<8x128xf32>
    %483 = arith.addf %480, %482 : vector<8x128xf32>
    %484 = vector.extract_strided_slice %483 {offsets = [0, 0], sizes = [8, 32], strides = [1, 1]} : vector<8x128xf32> to vector<8x32xf32>
    %485 = arith.negf %484 : vector<8x32xf32>
    %486 = math.exp %485 : vector<8x32xf32>
    %cst_106 = arith.constant 1.000000e+00 : f32
    %487 = vector.broadcast %cst_106 : f32 to vector<8x32xf32>
    %488 = arith.addf %487, %486 : vector<8x32xf32>
    %489 = arith.divf %487, %488 : vector<8x32xf32>
    %490 = vector.extract_strided_slice %483 {offsets = [0, 32], sizes = [8, 32], strides = [1, 1]} : vector<8x128xf32> to vector<8x32xf32>
    %491 = arith.negf %490 : vector<8x32xf32>
    %492 = math.exp %491 : vector<8x32xf32>
    %cst_107 = arith.constant 1.000000e+00 : f32
    %493 = vector.broadcast %cst_107 : f32 to vector<8x32xf32>
    %494 = arith.addf %493, %492 : vector<8x32xf32>
    %495 = arith.divf %493, %494 : vector<8x32xf32>
    %496 = vector.extract_strided_slice %483 {offsets = [0, 64], sizes = [8, 32], strides = [1, 1]} : vector<8x128xf32> to vector<8x32xf32>
    %497 = math.tanh %496 : vector<8x32xf32>
    %498 = vector.extract_strided_slice %483 {offsets = [0, 96], sizes = [8, 32], strides = [1, 1]} : vector<8x128xf32> to vector<8x32xf32>
    %499 = arith.negf %498 : vector<8x32xf32>
    %500 = math.exp %499 : vector<8x32xf32>
    %cst_108 = arith.constant 1.000000e+00 : f32
    %501 = vector.broadcast %cst_108 : f32 to vector<8x32xf32>
    %502 = arith.addf %501, %500 : vector<8x32xf32>
    %503 = arith.divf %501, %502 : vector<8x32xf32>
    %504 = arith.mulf %495, %475 : vector<8x32xf32>
    %505 = arith.mulf %489, %497 : vector<8x32xf32>
    %506 = arith.addf %504, %505 : vector<8x32xf32>
    %507 = math.tanh %506 : vector<8x32xf32>
    %508 = arith.mulf %503, %507 : vector<8x32xf32>
    %c16_i32 = arith.constant 16 : i32
    %cst_109 = arith.constant 0.000000e+00 : bf16
    %509 = vector.broadcast %cst_109 : bf16 to vector<8x3x4xbf16>
    %cst_110 = arith.constant 0.000000e+00 : bf16
    %510 = vector.broadcast %cst_110 : bf16 to vector<8x4x4xbf16>
    %511 = tpu.concatenate %509, %1, %510 in 1 : vector<8x3x4xbf16>, vector<8x16x4xbf16>, vector<8x4x4xbf16> -> vector<8x23x4xbf16>
    %512 = vector.extract_strided_slice %511 {offsets = [0, 0, 0], sizes = [8, 16, 4], strides = [1, 1, 1]} : vector<8x23x4xbf16> to vector<8x16x4xbf16>
    %513 = vector.extract_strided_slice %511 {offsets = [0, 1, 0], sizes = [8, 16, 4], strides = [1, 1, 1]} : vector<8x23x4xbf16> to vector<8x16x4xbf16>
    %514 = vector.extract_strided_slice %511 {offsets = [0, 2, 0], sizes = [8, 16, 4], strides = [1, 1, 1]} : vector<8x23x4xbf16> to vector<8x16x4xbf16>
    %515 = vector.extract_strided_slice %511 {offsets = [0, 3, 0], sizes = [8, 16, 4], strides = [1, 1, 1]} : vector<8x23x4xbf16> to vector<8x16x4xbf16>
    %516 = vector.extract_strided_slice %511 {offsets = [0, 4, 0], sizes = [8, 16, 4], strides = [1, 1, 1]} : vector<8x23x4xbf16> to vector<8x16x4xbf16>
    %517 = vector.extract_strided_slice %511 {offsets = [0, 5, 0], sizes = [8, 16, 4], strides = [1, 1, 1]} : vector<8x23x4xbf16> to vector<8x16x4xbf16>
    %518 = vector.extract_strided_slice %511 {offsets = [0, 6, 0], sizes = [8, 16, 4], strides = [1, 1, 1]} : vector<8x23x4xbf16> to vector<8x16x4xbf16>
    %519 = vector.extract_strided_slice %511 {offsets = [0, 7, 0], sizes = [8, 16, 4], strides = [1, 1, 1]} : vector<8x23x4xbf16> to vector<8x16x4xbf16>
    %520 = tpu.concatenate %512, %513, %514, %515, %516, %517, %518, %519 in 2 : vector<8x16x4xbf16>, vector<8x16x4xbf16>, vector<8x16x4xbf16>, vector<8x16x4xbf16>, vector<8x16x4xbf16>, vector<8x16x4xbf16>, vector<8x16x4xbf16>, vector<8x16x4xbf16> -> vector<8x16x32xbf16>
    %521 = vector.shape_cast %520 : vector<8x16x32xbf16> to vector<128x32xbf16>
    %c0_111 = arith.constant 0 : index
    %c0_112 = arith.constant 0 : index
    %522 = vector.load %arg5[%c0_111, %c0_112] : memref<32x128xbf16, #tpu.memory_space<vmem>>, vector<32x128xbf16>
    %cst_113 = arith.constant dense<0.000000e+00> : vector<128x128xf32>
    %523 = tpu.matmul %521, %522, %cst_113 {dimension_numbers = #tpu.dot_dimension_numbers<[1], [0], [0], [1], [0, 0, 1, 1], [], []>} : vector<128x32xbf16>, vector<32x128xbf16>, vector<128x128xf32> -> vector<128x128xf32>
    %524 = vector.shape_cast %523 : vector<128x128xf32> to vector<8x16x128xf32>
    %c0_114 = arith.constant 0 : index
    %c0_115 = arith.constant 0 : index
    %525 = vector.load %arg6[%c0_114, %c0_115] : memref<1x128xf32, #tpu.memory_space<vmem>>, vector<1x128xf32>
    %526 = vector.shape_cast %525 : vector<1x128xf32> to vector<1x1x128xf32>
    %527 = vector.broadcast %526 : vector<1x1x128xf32> to vector<8x16x128xf32>
    %528 = arith.addf %524, %527 : vector<8x16x128xf32>
    %cst_116 = arith.constant 0.000000e+00 : f32
    %529 = vector.broadcast %cst_116 : f32 to vector<8x16x128xf32>
    %530 = arith.maximumf %528, %529 : vector<8x16x128xf32>
    %531 = arith.truncf %530 : vector<8x16x128xf32> to vector<8x16x128xbf16>
    %cst_117 = arith.constant 0.000000e+00 : bf16
    %532 = vector.broadcast %cst_117 : bf16 to vector<8x2x128xbf16>
    %cst_118 = arith.constant 0.000000e+00 : bf16
    %533 = vector.broadcast %cst_118 : bf16 to vector<8x2x128xbf16>
    %534 = tpu.concatenate %532, %531, %533 in 1 : vector<8x2x128xbf16>, vector<8x16x128xbf16>, vector<8x2x128xbf16> -> vector<8x20x128xbf16>
    %cst_119 = arith.constant 0.000000e+00 : f32
    %535 = vector.broadcast %cst_119 : f32 to vector<128x256xf32>
    %536 = vector.extract_strided_slice %534 {offsets = [0, 0, 0], sizes = [8, 16, 128], strides = [1, 1, 1]} : vector<8x20x128xbf16> to vector<8x16x128xbf16>
    %537 = vector.shape_cast %536 : vector<8x16x128xbf16> to vector<128x128xbf16>
    %c0_120 = arith.constant 0 : index
    %c0_121 = arith.constant 0 : index
    %c0_122 = arith.constant 0 : index
    %538 = vector.load %arg7[%c0_120, %c0_121, %c0_122] : memref<5x128x256xbf16, #tpu.memory_space<vmem>>, vector<1x128x256xbf16>
    %539 = vector.shape_cast %538 : vector<1x128x256xbf16> to vector<128x256xbf16>
    %cst_123 = arith.constant dense<0.000000e+00> : vector<128x256xf32>
    %540 = tpu.matmul %537, %539, %cst_123 {dimension_numbers = #tpu.dot_dimension_numbers<[1], [0], [0], [1], [0, 0, 1, 1], [], []>} : vector<128x128xbf16>, vector<128x256xbf16>, vector<128x256xf32> -> vector<128x256xf32>
    %541 = arith.addf %535, %540 : vector<128x256xf32>
    %542 = vector.extract_strided_slice %534 {offsets = [0, 1, 0], sizes = [8, 16, 128], strides = [1, 1, 1]} : vector<8x20x128xbf16> to vector<8x16x128xbf16>
    %543 = vector.shape_cast %542 : vector<8x16x128xbf16> to vector<128x128xbf16>
    %c1 = arith.constant 1 : index
    %c0_124 = arith.constant 0 : index
    %c0_125 = arith.constant 0 : index
    %544 = vector.load %arg7[%c1, %c0_124, %c0_125] : memref<5x128x256xbf16, #tpu.memory_space<vmem>>, vector<1x128x256xbf16>
    %545 = vector.shape_cast %544 : vector<1x128x256xbf16> to vector<128x256xbf16>
    %cst_126 = arith.constant dense<0.000000e+00> : vector<128x256xf32>
    %546 = tpu.matmul %543, %545, %cst_126 {dimension_numbers = #tpu.dot_dimension_numbers<[1], [0], [0], [1], [0, 0, 1, 1], [], []>} : vector<128x128xbf16>, vector<128x256xbf16>, vector<128x256xf32> -> vector<128x256xf32>
    %547 = arith.addf %541, %546 : vector<128x256xf32>
    %548 = vector.extract_strided_slice %534 {offsets = [0, 2, 0], sizes = [8, 16, 128], strides = [1, 1, 1]} : vector<8x20x128xbf16> to vector<8x16x128xbf16>
    %549 = vector.shape_cast %548 : vector<8x16x128xbf16> to vector<128x128xbf16>
    %c2 = arith.constant 2 : index
    %c0_127 = arith.constant 0 : index
    %c0_128 = arith.constant 0 : index
    %550 = vector.load %arg7[%c2, %c0_127, %c0_128] : memref<5x128x256xbf16, #tpu.memory_space<vmem>>, vector<1x128x256xbf16>
    %551 = vector.shape_cast %550 : vector<1x128x256xbf16> to vector<128x256xbf16>
    %cst_129 = arith.constant dense<0.000000e+00> : vector<128x256xf32>
    %552 = tpu.matmul %549, %551, %cst_129 {dimension_numbers = #tpu.dot_dimension_numbers<[1], [0], [0], [1], [0, 0, 1, 1], [], []>} : vector<128x128xbf16>, vector<128x256xbf16>, vector<128x256xf32> -> vector<128x256xf32>
    %553 = arith.addf %547, %552 : vector<128x256xf32>
    %554 = vector.extract_strided_slice %534 {offsets = [0, 3, 0], sizes = [8, 16, 128], strides = [1, 1, 1]} : vector<8x20x128xbf16> to vector<8x16x128xbf16>
    %555 = vector.shape_cast %554 : vector<8x16x128xbf16> to vector<128x128xbf16>
    %c3 = arith.constant 3 : index
    %c0_130 = arith.constant 0 : index
    %c0_131 = arith.constant 0 : index
    %556 = vector.load %arg7[%c3, %c0_130, %c0_131] : memref<5x128x256xbf16, #tpu.memory_space<vmem>>, vector<1x128x256xbf16>
    %557 = vector.shape_cast %556 : vector<1x128x256xbf16> to vector<128x256xbf16>
    %cst_132 = arith.constant dense<0.000000e+00> : vector<128x256xf32>
    %558 = tpu.matmul %555, %557, %cst_132 {dimension_numbers = #tpu.dot_dimension_numbers<[1], [0], [0], [1], [0, 0, 1, 1], [], []>} : vector<128x128xbf16>, vector<128x256xbf16>, vector<128x256xf32> -> vector<128x256xf32>
    %559 = arith.addf %553, %558 : vector<128x256xf32>
    %560 = vector.extract_strided_slice %534 {offsets = [0, 4, 0], sizes = [8, 16, 128], strides = [1, 1, 1]} : vector<8x20x128xbf16> to vector<8x16x128xbf16>
    %561 = vector.shape_cast %560 : vector<8x16x128xbf16> to vector<128x128xbf16>
    %c4 = arith.constant 4 : index
    %c0_133 = arith.constant 0 : index
    %c0_134 = arith.constant 0 : index
    %562 = vector.load %arg7[%c4, %c0_133, %c0_134] : memref<5x128x256xbf16, #tpu.memory_space<vmem>>, vector<1x128x256xbf16>
    %563 = vector.shape_cast %562 : vector<1x128x256xbf16> to vector<128x256xbf16>
    %cst_135 = arith.constant dense<0.000000e+00> : vector<128x256xf32>
    %564 = tpu.matmul %561, %563, %cst_135 {dimension_numbers = #tpu.dot_dimension_numbers<[1], [0], [0], [1], [0, 0, 1, 1], [], []>} : vector<128x128xbf16>, vector<128x256xbf16>, vector<128x256xf32> -> vector<128x256xf32>
    %565 = arith.addf %559, %564 : vector<128x256xf32>
    %566 = vector.shape_cast %565 : vector<128x256xf32> to vector<8x16x256xf32>
    %c0_136 = arith.constant 0 : index
    %c0_137 = arith.constant 0 : index
    %567 = vector.load %arg8[%c0_136, %c0_137] : memref<1x256xf32, #tpu.memory_space<vmem>>, vector<1x256xf32>
    %568 = vector.shape_cast %567 : vector<1x256xf32> to vector<1x1x256xf32>
    %569 = vector.broadcast %568 : vector<1x1x256xf32> to vector<8x16x256xf32>
    %570 = arith.addf %566, %569 : vector<8x16x256xf32>
    %cst_138 = arith.constant 0.000000e+00 : f32
    %571 = vector.broadcast %cst_138 : f32 to vector<8x16x256xf32>
    %572 = arith.maximumf %570, %571 : vector<8x16x256xf32>
    %573 = arith.truncf %572 : vector<8x16x256xf32> to vector<8x16x256xbf16>
    %cst_139 = arith.constant 0.000000e+00 : bf16
    %574 = vector.broadcast %cst_139 : bf16 to vector<8x1x256xbf16>
    %cst_140 = arith.constant 0.000000e+00 : bf16
    %575 = vector.broadcast %cst_140 : bf16 to vector<8x1x256xbf16>
    %576 = tpu.concatenate %574, %573, %575 in 1 : vector<8x1x256xbf16>, vector<8x16x256xbf16>, vector<8x1x256xbf16> -> vector<8x18x256xbf16>
    %cst_141 = arith.constant 0.000000e+00 : f32
    %577 = vector.broadcast %cst_141 : f32 to vector<128x128xf32>
    %578 = vector.extract_strided_slice %576 {offsets = [0, 0, 0], sizes = [8, 16, 256], strides = [1, 1, 1]} : vector<8x18x256xbf16> to vector<8x16x256xbf16>
    %579 = vector.shape_cast %578 : vector<8x16x256xbf16> to vector<128x256xbf16>
    %c0_142 = arith.constant 0 : index
    %c0_143 = arith.constant 0 : index
    %c0_144 = arith.constant 0 : index
    %580 = vector.load %arg9[%c0_142, %c0_143, %c0_144] : memref<3x256x128xbf16, #tpu.memory_space<vmem>>, vector<1x256x128xbf16>
    %581 = vector.shape_cast %580 : vector<1x256x128xbf16> to vector<256x128xbf16>
    %cst_145 = arith.constant dense<0.000000e+00> : vector<128x128xf32>
    %582 = tpu.matmul %579, %581, %cst_145 {dimension_numbers = #tpu.dot_dimension_numbers<[1], [0], [0], [1], [0, 0, 1, 1], [], []>} : vector<128x256xbf16>, vector<256x128xbf16>, vector<128x128xf32> -> vector<128x128xf32>
    %583 = arith.addf %577, %582 : vector<128x128xf32>
    %584 = vector.extract_strided_slice %576 {offsets = [0, 1, 0], sizes = [8, 16, 256], strides = [1, 1, 1]} : vector<8x18x256xbf16> to vector<8x16x256xbf16>
    %585 = vector.shape_cast %584 : vector<8x16x256xbf16> to vector<128x256xbf16>
    %c1_146 = arith.constant 1 : index
    %c0_147 = arith.constant 0 : index
    %c0_148 = arith.constant 0 : index
    %586 = vector.load %arg9[%c1_146, %c0_147, %c0_148] : memref<3x256x128xbf16, #tpu.memory_space<vmem>>, vector<1x256x128xbf16>
    %587 = vector.shape_cast %586 : vector<1x256x128xbf16> to vector<256x128xbf16>
    %cst_149 = arith.constant dense<0.000000e+00> : vector<128x128xf32>
    %588 = tpu.matmul %585, %587, %cst_149 {dimension_numbers = #tpu.dot_dimension_numbers<[1], [0], [0], [1], [0, 0, 1, 1], [], []>} : vector<128x256xbf16>, vector<256x128xbf16>, vector<128x128xf32> -> vector<128x128xf32>
    %589 = arith.addf %583, %588 : vector<128x128xf32>
    %590 = vector.extract_strided_slice %576 {offsets = [0, 2, 0], sizes = [8, 16, 256], strides = [1, 1, 1]} : vector<8x18x256xbf16> to vector<8x16x256xbf16>
    %591 = vector.shape_cast %590 : vector<8x16x256xbf16> to vector<128x256xbf16>
    %c2_150 = arith.constant 2 : index
    %c0_151 = arith.constant 0 : index
    %c0_152 = arith.constant 0 : index
    %592 = vector.load %arg9[%c2_150, %c0_151, %c0_152] : memref<3x256x128xbf16, #tpu.memory_space<vmem>>, vector<1x256x128xbf16>
    %593 = vector.shape_cast %592 : vector<1x256x128xbf16> to vector<256x128xbf16>
    %cst_153 = arith.constant dense<0.000000e+00> : vector<128x128xf32>
    %594 = tpu.matmul %591, %593, %cst_153 {dimension_numbers = #tpu.dot_dimension_numbers<[1], [0], [0], [1], [0, 0, 1, 1], [], []>} : vector<128x256xbf16>, vector<256x128xbf16>, vector<128x128xf32> -> vector<128x128xf32>
    %595 = arith.addf %589, %594 : vector<128x128xf32>
    %596 = vector.shape_cast %595 : vector<128x128xf32> to vector<8x16x128xf32>
    %c0_154 = arith.constant 0 : index
    %c0_155 = arith.constant 0 : index
    %597 = vector.load %arg10[%c0_154, %c0_155] : memref<1x128xf32, #tpu.memory_space<vmem>>, vector<1x128xf32>
    %598 = vector.shape_cast %597 : vector<1x128xf32> to vector<1x1x128xf32>
    %599 = vector.broadcast %598 : vector<1x1x128xf32> to vector<8x16x128xf32>
    %600 = arith.addf %596, %599 : vector<8x16x128xf32>
    %cst_156 = arith.constant 0.000000e+00 : f32
    %601 = vector.broadcast %cst_156 : f32 to vector<8x16x128xf32>
    %602 = arith.maximumf %600, %601 : vector<8x16x128xf32>
    %cst_157 = arith.constant dense<0.000000e+00> : vector<8x128xf32>
    %603 = vector.multi_reduction <add>, %602, %cst_157 [1] : vector<8x16x128xf32> to vector<8x128xf32>
    %cst_158 = arith.constant 1.600000e+01 : f32
    %604 = vector.broadcast %cst_158 : f32 to vector<8x128xf32>
    %605 = arith.divf %603, %604 : vector<8x128xf32>
    %c0_159 = arith.constant 0 : index
    %c0_160 = arith.constant 0 : index
    %606 = vector.load %arg11[%c0_159, %c0_160] : memref<128x8xf32, #tpu.memory_space<vmem>>, vector<128x8xf32>
    %cst_161 = arith.constant dense<0.000000e+00> : vector<8x8xf32>
    %607 = tpu.matmul %605, %606, %cst_161 {dimension_numbers = #tpu.dot_dimension_numbers<[1], [0], [0], [1], [0, 0, 1, 1], [], []>} : vector<8x128xf32>, vector<128x8xf32>, vector<8x8xf32> -> vector<8x8xf32>
    %cst_162 = arith.constant 0.000000e+00 : f32
    %608 = vector.broadcast %cst_162 : f32 to vector<8x8xf32>
    %609 = arith.maximumf %607, %608 : vector<8x8xf32>
    %c0_163 = arith.constant 0 : index
    %c0_164 = arith.constant 0 : index
    %610 = vector.load %arg12[%c0_163, %c0_164] : memref<8x128xf32, #tpu.memory_space<vmem>>, vector<8x128xf32>
    %cst_165 = arith.constant dense<0.000000e+00> : vector<8x128xf32>
    %611 = tpu.matmul %609, %610, %cst_165 {dimension_numbers = #tpu.dot_dimension_numbers<[1], [0], [0], [1], [0, 0, 1, 1], [], []>} : vector<8x8xf32>, vector<8x128xf32>, vector<8x128xf32> -> vector<8x128xf32>
    %612 = arith.negf %611 : vector<8x128xf32>
    %613 = math.exp %612 : vector<8x128xf32>
    %cst_166 = arith.constant 1.000000e+00 : f32
    %614 = vector.broadcast %cst_166 : f32 to vector<8x128xf32>
    %615 = arith.addf %614, %613 : vector<8x128xf32>
    %616 = arith.divf %614, %615 : vector<8x128xf32>
    %617 = arith.mulf %605, %616 : vector<8x128xf32>
    %618 = tpu.concatenate %508, %617 in 1 : vector<8x32xf32>, vector<8x128xf32> -> vector<8x160xf32>
    %619 = arith.truncf %618 : vector<8x160xf32> to vector<8x160xbf16>
    %c0_167 = arith.constant 0 : index
    %c0_168 = arith.constant 0 : index
    %620 = vector.load %arg13[%c0_167, %c0_168] : memref<160x128xbf16, #tpu.memory_space<vmem>>, vector<160x128xbf16>
    %cst_169 = arith.constant dense<0.000000e+00> : vector<8x128xf32>
    %621 = tpu.matmul %619, %620, %cst_169 {dimension_numbers = #tpu.dot_dimension_numbers<[1], [0], [0], [1], [0, 0, 1, 1], [], []>} : vector<8x160xbf16>, vector<160x128xbf16>, vector<8x128xf32> -> vector<8x128xf32>
    %c0_170 = arith.constant 0 : index
    %c0_171 = arith.constant 0 : index
    %622 = vector.load %arg14[%c0_170, %c0_171] : memref<1x128xf32, #tpu.memory_space<vmem>>, vector<1x128xf32>
    %623 = vector.broadcast %622 : vector<1x128xf32> to vector<8x128xf32>
    %624 = arith.addf %621, %623 : vector<8x128xf32>
    %cst_172 = arith.constant dense<0xFF800000> : vector<8xf32>
    %625 = vector.multi_reduction <maximumf>, %624, %cst_172 [1] : vector<8x128xf32> to vector<8xf32>
    %626 = vector.shape_cast %625 : vector<8xf32> to vector<8x1xf32>
    %627 = vector.broadcast %626 : vector<8x1xf32> to vector<8x128xf32>
    %628 = arith.subf %624, %627 : vector<8x128xf32>
    %629 = math.exp %628 : vector<8x128xf32>
    %cst_173 = arith.constant dense<0.000000e+00> : vector<8xf32>
    %630 = vector.multi_reduction <add>, %629, %cst_173 [1] : vector<8x128xf32> to vector<8xf32>
    %631 = vector.shape_cast %630 : vector<8xf32> to vector<8x1xf32>
    %632 = vector.broadcast %631 : vector<8x1xf32> to vector<8x128xf32>
    %633 = arith.divf %629, %632 : vector<8x128xf32>
    %c0_174 = arith.constant 0 : index
    %c0_175 = arith.constant 0 : index
    %634 = vector.load %arg15[%c0_174, %c0_175] : memref<8x128xf32, #tpu.memory_space<vmem>>, vector<8x128xf32>
    tpu.vector_store %arg15[%c0_174, %c0_175], %633 {strides = array<i32>} : memref<8x128xf32, #tpu.memory_space<vmem>>, vector<8x128xf32>,
    return
  }
  func.func @transform_0(%arg0: i32) -> (i32, i32, i32) {
    %c0_i32 = arith.constant 0 : i32
    %c0_i32_0 = arith.constant 0 : i32
    %c0_i32_1 = arith.constant 0 : i32
    return %arg0, %c0_i32, %c0_i32_0 : i32, i32, i32
  }
  func.func @transform_1(%arg0: i32) -> (i32, i32) {
    %c0_i32 = arith.constant 0 : i32
    %c0_i32_0 = arith.constant 0 : i32
    %c0_i32_1 = arith.constant 0 : i32
    return %c0_i32, %c0_i32_0 : i32, i32
  }
  func.func @transform_2(%arg0: i32) -> (i32, i32) {
    %c0_i32 = arith.constant 0 : i32
    %c0_i32_0 = arith.constant 0 : i32
    %c0_i32_1 = arith.constant 0 : i32
    return %c0_i32, %c0_i32_0 : i32, i32
  }
  func.func @transform_3(%arg0: i32) -> (i32, i32) {
    %c0_i32 = arith.constant 0 : i32
    %c0_i32_0 = arith.constant 0 : i32
    %c0_i32_1 = arith.constant 0 : i32
    return %c0_i32, %c0_i32_0 : i32, i32
  }
  func.func @transform_4(%arg0: i32) -> (i32, i32) {
    %c0_i32 = arith.constant 0 : i32
    %c0_i32_0 = arith.constant 0 : i32
    %c0_i32_1 = arith.constant 0 : i32
    return %c0_i32, %c0_i32_0 : i32, i32
  }
  func.func @transform_5(%arg0: i32) -> (i32, i32) {
    %c0_i32 = arith.constant 0 : i32
    %c0_i32_0 = arith.constant 0 : i32
    %c0_i32_1 = arith.constant 0 : i32
    return %c0_i32, %c0_i32_0 : i32, i32
  }
  func.func @transform_6(%arg0: i32) -> (i32, i32, i32) {
    %c0_i32 = arith.constant 0 : i32
    %c0_i32_0 = arith.constant 0 : i32
    %c0_i32_1 = arith.constant 0 : i32
    %c0_i32_2 = arith.constant 0 : i32
    return %c0_i32, %c0_i32_0, %c0_i32_1 : i32, i32, i32
  }
  func.func @transform_7(%arg0: i32) -> (i32, i32) {
    %c0_i32 = arith.constant 0 : i32
    %c0_i32_0 = arith.constant 0 : i32
    %c0_i32_1 = arith.constant 0 : i32
    return %c0_i32, %c0_i32_0 : i32, i32
  }
  func.func @transform_8(%arg0: i32) -> (i32, i32, i32) {
    %c0_i32 = arith.constant 0 : i32
    %c0_i32_0 = arith.constant 0 : i32
    %c0_i32_1 = arith.constant 0 : i32
    %c0_i32_2 = arith.constant 0 : i32
    return %c0_i32, %c0_i32_0, %c0_i32_1 : i32, i32, i32
  }
  func.func @transform_9(%arg0: i32) -> (i32, i32) {
    %c0_i32 = arith.constant 0 : i32
    %c0_i32_0 = arith.constant 0 : i32
    %c0_i32_1 = arith.constant 0 : i32
    return %c0_i32, %c0_i32_0 : i32, i32
  }
  func.func @transform_10(%arg0: i32) -> (i32, i32) {
    %c0_i32 = arith.constant 0 : i32
    %c0_i32_0 = arith.constant 0 : i32
    %c0_i32_1 = arith.constant 0 : i32
    return %c0_i32, %c0_i32_0 : i32, i32
  }
  func.func @transform_11(%arg0: i32) -> (i32, i32) {
    %c0_i32 = arith.constant 0 : i32
    %c0_i32_0 = arith.constant 0 : i32
    %c0_i32_1 = arith.constant 0 : i32
    return %c0_i32, %c0_i32_0 : i32, i32
  }
  func.func @transform_12(%arg0: i32) -> (i32, i32) {
    %c0_i32 = arith.constant 0 : i32
    %c0_i32_0 = arith.constant 0 : i32
    %c0_i32_1 = arith.constant 0 : i32
    return %c0_i32, %c0_i32_0 : i32, i32
  }
  func.func @transform_13(%arg0: i32) -> (i32, i32) {
    %c0_i32 = arith.constant 0 : i32
    %c0_i32_0 = arith.constant 0 : i32
    %c0_i32_1 = arith.constant 0 : i32
    return %c0_i32, %c0_i32_0 : i32, i32
  }
  func.func @transform_14(%arg0: i32) -> (i32, i32) {
    %c0_i32 = arith.constant 0 : i32
    %c0_i32_0 = arith.constant 0 : i32
    return %arg0, %c0_i32 : i32, i32
  }
}

</mosaic_0001>

<llo_original>
// kernel: tpu_custom_call.1
$region0: #{tpu_custom_call.1}
  #allocation0 [shape = 'u32[]', space=smem, size = 0x4, offset = 0x4, fixed_abs, tag = 'smem constant byte address 0x4 - core index']
  #allocation1 [shape = 'u32[144,128]{1,0:T(1,128)}', space=vmem, size = 0x12000, scoped, tag = 'internal scratch']
  #allocation2 [shape = 'f32[8,16,128]{2,1,0:T(8,128)}', space=vmem, size = 0x10000, scoped, tag = 'scratch operand']
  %s0 = inlined_call_operand.vmem [shape: f32[16,16,4], index: 0, kind: input, shape index: {}]
  %s1 = inlined_call_operand.vmem [shape: bf16[4,128], index: 1, kind: input, shape index: {}]
  %s2 = inlined_call_operand.vmem [shape: bf16[32,128], index: 2, kind: input, shape index: {}]
  %s3 = inlined_call_operand.vmem [shape: f32[1,128], index: 3, kind: input, shape index: {}]
  %s4 = inlined_call_operand.hbm [shape: bf16[32,128], index: 4, kind: input, shape index: {}]
  %s5 = inlined_call_operand.hbm [shape: f32[1,128], index: 5, kind: input, shape index: {}]
  %s6 = inlined_call_operand.hbm [shape: bf16[5,128,256], index: 6, kind: input, shape index: {}]
  %s7 = inlined_call_operand.vmem [shape: f32[1,256], index: 7, kind: input, shape index: {}]
  %s8 = inlined_call_operand.vmem [shape: bf16[3,256,128], index: 8, kind: input, shape index: {}]
  %s9 = inlined_call_operand.hbm [shape: f32[1,128], index: 9, kind: input, shape index: {}]
  %s10 = inlined_call_operand.vmem [shape: f32[128,8], index: 10, kind: input, shape index: {}]
  %s11 = inlined_call_operand.vmem [shape: f32[8,128], index: 11, kind: input, shape index: {}]
  %s12 = inlined_call_operand.vmem [shape: bf16[160,128], index: 12, kind: input, shape index: {}]
  %s13 = inlined_call_operand.vmem [shape: f32[1,128], index: 13, kind: input, shape index: {}]
  %s14 = inlined_call_operand.hbm [shape: f32[16,128], index: 14, kind: output, shape index: {}]
  %s15 = sld [smem:[#allocation0]]
  $region105: #{tpu_custom_call.1} parent=0
    _
  %s17 = ssub.s32 1, %s15
  %s18 = scalar_select 0, %s17, %s15
  $region1: #{tpu_custom_call.1} parent=0
    #allocation3 [shape = 'u8[8192]{0}', space=vmem, size = 0x2000, scoped, tag = 'input window, operand 4, single buffered']
    #allocation4 [shape = 's32[2]{0}', space=sflag, size = 0x8, scoped, tag = 'scoped memory for tpu_custom_call.1']
    #allocation5 [shape = 's32[2]{0}', space=sflag, size = 0x8, scoped, tag = 'scoped memory for tpu_custom_call.1']
    #allocation6 [shape = 'u8[512]{0}', space=vmem, size = 0x400, scoped, tag = 'input window, operand 5, single buffered']
    #allocation7 [shape = 's32[1]{0}', space=sflag, size = 0x4, scoped, tag = 'scoped memory for tpu_custom_call.1']
    #allocation8 [shape = 'u8[327680]{0}', space=vmem, size = 0x50000, scoped, tag = 'input window, operand 6, single buffered']
    #allocation9 [shape = 'u8[512]{0}', space=vmem, size = 0x400, scoped, tag = 'input window, operand 9, single buffered']
    #allocation10 [shape = 's32[1]{0}', space=sflag, size = 0x4, scoped, tag = 'scoped memory for tpu_custom_call.1']
    #allocation11 [shape = 'u8[8192]{0}', space=vmem, size = 0x2000, scoped, tag = 'output window, operand 0']
    %19 = vsyncpa [#allocation4], 0
    %20 = vsyncpa [#allocation7], 0
    %21 = vsyncpa [#allocation10], 0
    %22 = vsyncpa [#allocation5], 0
    %s23 = scalar_lea.sflag [#allocation5], 1
    %24 = vsyncpa %s23, 0
    loop: start=0, step=1, limit=4
    $region2: #{tpu_custom_call.1} parent=1 // loop_pre_header
      _
    $region3: #{tpu_custom_call.1} parent=1 // loop_header
      %s26 = sphi 0, %s30
      %p27 = scmp.ge.s32.totalorder %s26, 4
      %s36 = sphi 0, %s38
      %s39 = sphi 0, %s36
      %s40 = sphi 0, %s39
      %s56 = sphi 0, %s40
      %s60 = sphi 0, %s60
      %s62 = sphi 0, %s60
      %s63 = sphi 0, %s62
      %s77 = sphi 0, %s63
      %s81 = sphi 0, %s81
      %s83 = sphi 0, %s81
      %s84 = sphi 0, %s83
      %s98 = sphi 0, %s84
      %s102 = sphi 0, %s102
      %s104 = sphi 0, %s102
      %s105 = sphi 0, %s104
      %s119 = sphi 0, %s105
      %s123 = sphi 0, %s123
      %s125 = sphi 0, %s123
      %s126 = sphi 0, %s125
      %s140 = sphi 0, %s126
      %s144 = sphi 0, %s144
      %s146 = sphi 0, %s144
      %s147 = sphi 0, %s146
      %s161 = sphi 0, %s147
      %s165 = sphi 0, %s165
      %s167 = sphi 0, %s165
      %s168 = sphi 0, %s167
      %s182 = sphi 0, %s168
      %s186 = sphi 0, %s186
      %s188 = sphi 0, %s186
      %s189 = sphi 0, %s188
      %s203 = sphi 0, %s189
      %s207 = sphi 0, %s207
      %s209 = sphi 0, %s207
      %s210 = sphi 0, %s209
      %s224 = sphi 0, %s210
      %s228 = sphi 0, %s228
      %s230 = sphi 0, %s228
      %s231 = sphi 0, %s230
      %s245 = sphi 0, %s231
      %s249 = sphi 0, %s249
      %s251 = sphi 0, %s249
      %s252 = sphi 0, %s251
      %s266 = sphi 0, %s252
      %s270 = sphi 0, %s270
      %s272 = sphi 0, %s270
      %s273 = sphi 0, %s272
      %s287 = sphi 0, %s273
      %s291 = sphi 0, %s291
      %s293 = sphi 0, %s291
      %s294 = sphi 0, %s293
      %s308 = sphi 0, %s294
      %s312 = sphi 0, %s312
      %s314 = sphi 0, %s312
      %s315 = sphi 0, %s314
      %s329 = sphi 0, %s315
      %s335 = sphi 0, %s337
      %s338 = sphi 0, %s335
      %s339 = sphi 0, %s338
      %s355 = sphi 0, %s339
    $region4: #{tpu_custom_call.1} parent=1 // loop_header_branch
      %29 = sbr.rel (%p27) target = $region8
    $region5: #{tpu_custom_call.1} parent=1 // loop_body
      %s31 = ssub.s32 %s26, 1
      %s32 = ssub.s32 %s26, 2
      %s33 = sadd.s32 %s26, 1
      %s34 = ssub.s32 %s26, %s33
      %p35 = scmp.eq.s32.totalorder %s34, 0
      %s37 = sadd.s32 %s36, 1
      %s38 = scalar_select %p35, %s36, %s37
      %p41 = pneg %p35
      %p42 = scmp.eq.s32.totalorder %s26, 1
      %p43 = por %p41, %p42
      %p44 = scmp.ne.s32.totalorder %s36, %s39
      %p45 = scmp.eq.s32.totalorder %s26, 0
      %p46 = por %p44, %p45
      %p47 = scmp.ne.s32.totalorder %s36, %s39
      %p48 = scmp.eq.s32.totalorder %s31, 1
      %p49 = por %p47, %p48
      %p50 = scmp.ne.s32.totalorder %s39, %s40
      %p51 = scmp.eq.s32.totalorder %s31, 0
      %p52 = por %p50, %p51
      %p53 = scmp.ne.s32.totalorder %s39, %s40
      %p54 = scmp.eq.s32.totalorder %s32, 1
      %p55 = por %p53, %p54
      %p57 = scmp.ne.s32.totalorder %s40, %s56
      %p58 = scmp.eq.s32.totalorder %s32, 0
      %p59 = por %p57, %p58
      %s61 = sadd.s32 %s60, 1
      %p64 = scmp.eq.s32.totalorder %s26, 1
      %p65 = scmp.ne.s32.totalorder %s60, %s62
      %p66 = scmp.eq.s32.totalorder %s26, 0
      %p67 = por %p65, %p66
      %p68 = scmp.ne.s32.totalorder %s60, %s62
      %p69 = scmp.eq.s32.totalorder %s31, 1
      %p70 = por %p68, %p69
      %p71 = scmp.ne.s32.totalorder %s62, %s63
      %p72 = scmp.eq.s32.totalorder %s31, 0
      %p73 = por %p71, %p72
      %p74 = scmp.ne.s32.totalorder %s62, %s63
      %p75 = scmp.eq.s32.totalorder %s32, 1
      %p76 = por %p74, %p75
      %p78 = scmp.ne.s32.totalorder %s63, %s77
      %p79 = scmp.eq.s32.totalorder %s32, 0
      %p80 = por %p78, %p79
      %s82 = sadd.s32 %s81, 1
      %p85 = scmp.eq.s32.totalorder %s26, 1
      %p86 = scmp.ne.s32.totalorder %s81, %s83
      %p87 = scmp.eq.s32.totalorder %s26, 0
      %p88 = por %p86, %p87
      %p89 = scmp.ne.s32.totalorder %s81, %s83
      %p90 = scmp.eq.s32.totalorder %s31, 1
      %p91 = por %p89, %p90
      %p92 = scmp.ne.s32.totalorder %s83, %s84
      %p93 = scmp.eq.s32.totalorder %s31, 0
      %p94 = por %p92, %p93
      %p95 = scmp.ne.s32.totalorder %s83, %s84
      %p96 = scmp.eq.s32.totalorder %s32, 1
      %p97 = por %p95, %p96
      %p99 = scmp.ne.s32.totalorder %s84, %s98
      %p100 = scmp.eq.s32.totalorder %s32, 0
      %p101 = por %p99, %p100
      %s103 = sadd.s32 %s102, 1
      %p106 = scmp.eq.s32.totalorder %s26, 1
      %p107 = scmp.ne.s32.totalorder %s102, %s104
      %p108 = scmp.eq.s32.totalorder %s26, 0
      %p109 = por %p107, %p108
      %p110 = scmp.ne.s32.totalorder %s102, %s104
      %p111 = scmp.eq.s32.totalorder %s31, 1
      %p112 = por %p110, %p111
      %p113 = scmp.ne.s32.totalorder %s104, %s105
      %p114 = scmp.eq.s32.totalorder %s31, 0
      %p115 = por %p113, %p114
      %p116 = scmp.ne.s32.totalorder %s104, %s105
      %p117 = scmp.eq.s32.totalorder %s32, 1
      %p118 = por %p116, %p117
      %p120 = scmp.ne.s32.totalorder %s105, %s119
      %p121 = scmp.eq.s32.totalorder %s32, 0
      %p122 = por %p120, %p121
      %s124 = sadd.s32 %s123, 1
      %p127 = scmp.eq.s32.totalorder %s26, 1
      %p128 = scmp.ne.s32.totalorder %s123, %s125
      %p129 = scmp.eq.s32.totalorder %s26, 0
      %p130 = por %p128, %p129
      %p131 = scmp.ne.s32.totalorder %s123, %s125
      %p132 = scmp.eq.s32.totalorder %s31, 1
      %p133 = por %p131, %p132
      %p134 = scmp.ne.s32.totalorder %s125, %s126
      %p135 = scmp.eq.s32.totalorder %s31, 0
      %p136 = por %p134, %p135
      %p137 = scmp.ne.s32.totalorder %s125, %s126
      %p138 = scmp.eq.s32.totalorder %s32, 1
      %p139 = por %p137, %p138
      %p141 = scmp.ne.s32.totalorder %s126, %s140
      %p142 = scmp.eq.s32.totalorder %s32, 0
      %p143 = por %p141, %p142
      %s145 = sadd.s32 %s144, 1
      %p148 = scmp.eq.s32.totalorder %s26, 1
      %p149 = scmp.ne.s32.totalorder %s144, %s146
      %p150 = scmp.eq.s32.totalorder %s26, 0
      %p151 = por %p149, %p150
      %p152 = scmp.ne.s32.totalorder %s144, %s146
      %p153 = scmp.eq.s32.totalorder %s31, 1
      %p154 = por %p152, %p153
      %p155 = scmp.ne.s32.totalorder %s146, %s147
      %p156 = scmp.eq.s32.totalorder %s31, 0
      %p157 = por %p155, %p156
      %p158 = scmp.ne.s32.totalorder %s146, %s147
      %p159 = scmp.eq.s32.totalorder %s32, 1
      %p160 = por %p158, %p159
      %p162 = scmp.ne.s32.totalorder %s147, %s161
      %p163 = scmp.eq.s32.totalorder %s32, 0
      %p164 = por %p162, %p163
      %s166 = sadd.s32 %s165, 1
      %p169 = scmp.eq.s32.totalorder %s26, 1
      %p170 = scmp.ne.s32.totalorder %s165, %s167
      %p171 = scmp.eq.s32.totalorder %s26, 0
      %p172 = por %p170, %p171
      %p173 = scmp.ne.s32.totalorder %s165, %s167
      %p174 = scmp.eq.s32.totalorder %s31, 1
      %p175 = por %p173, %p174
      %p176 = scmp.ne.s32.totalorder %s167, %s168
      %p177 = scmp.eq.s32.totalorder %s31, 0
      %p178 = por %p176, %p177
      %p179 = scmp.ne.s32.totalorder %s167, %s168
      %p180 = scmp.eq.s32.totalorder %s32, 1
      %p181 = por %p179, %p180
      %p183 = scmp.ne.s32.totalorder %s168, %s182
      %p184 = scmp.eq.s32.totalorder %s32, 0
      %p185 = por %p183, %p184
      %s187 = sadd.s32 %s186, 1
      %p190 = scmp.eq.s32.totalorder %s26, 1
      %p191 = scmp.ne.s32.totalorder %s186, %s188
      %p192 = scmp.eq.s32.totalorder %s26, 0
      %p193 = por %p191, %p192
      %p194 = scmp.ne.s32.totalorder %s186, %s188
      %p195 = scmp.eq.s32.totalorder %s31, 1
      %p196 = por %p194, %p195
      %p197 = scmp.ne.s32.totalorder %s188, %s189
      %p198 = scmp.eq.s32.totalorder %s31, 0
      %p199 = por %p197, %p198
      %p200 = scmp.ne.s32.totalorder %s188, %s189
      %p201 = scmp.eq.s32.totalorder %s32, 1
      %p202 = por %p200, %p201
      %p204 = scmp.ne.s32.totalorder %s189, %s203
      %p205 = scmp.eq.s32.totalorder %s32, 0
      %p206 = por %p204, %p205
      %s208 = sadd.s32 %s207, 1
      %p211 = scmp.eq.s32.totalorder %s26, 1
      %p212 = scmp.ne.s32.totalorder %s207, %s209
      %p213 = scmp.eq.s32.totalorder %s26, 0
      %p214 = por %p212, %p213
      %p215 = scmp.ne.s32.totalorder %s207, %s209
      %p216 = scmp.eq.s32.totalorder %s31, 1
      %p217 = por %p215, %p216
      %p218 = scmp.ne.s32.totalorder %s209, %s210
      %p219 = scmp.eq.s32.totalorder %s31, 0
      %p220 = por %p218, %p219
      %p221 = scmp.ne.s32.totalorder %s209, %s210
      %p222 = scmp.eq.s32.totalorder %s32, 1
      %p223 = por %p221, %p222
      %p225 = scmp.ne.s32.totalorder %s210, %s224
      %p226 = scmp.eq.s32.totalorder %s32, 0
      %p227 = por %p225, %p226
      %s229 = sadd.s32 %s228, 1
      %p232 = scmp.eq.s32.totalorder %s26, 1
      %p233 = scmp.ne.s32.totalorder %s228, %s230
      %p234 = scmp.eq.s32.totalorder %s26, 0
      %p235 = por %p233, %p234
      %p236 = scmp.ne.s32.totalorder %s228, %s230
      %p237 = scmp.eq.s32.totalorder %s31, 1
      %p238 = por %p236, %p237
      %p239 = scmp.ne.s32.totalorder %s230, %s231
      %p240 = scmp.eq.s32.totalorder %s31, 0
      %p241 = por %p239, %p240
      %p242 = scmp.ne.s32.totalorder %s230, %s231
      %p243 = scmp.eq.s32.totalorder %s32, 1
      %p244 = por %p242, %p243
      %p246 = scmp.ne.s32.totalorder %s231, %s245
      %p247 = scmp.eq.s32.totalorder %s32, 0
      %p248 = por %p246, %p247
      %s250 = sadd.s32 %s249, 1
      %p253 = scmp.eq.s32.totalorder %s26, 1
      %p254 = scmp.ne.s32.totalorder %s249, %s251
      %p255 = scmp.eq.s32.totalorder %s26, 0
      %p256 = por %p254, %p255
      %p257 = scmp.ne.s32.totalorder %s249, %s251
      %p258 = scmp.eq.s32.totalorder %s31, 1
      %p259 = por %p257, %p258
      %p260 = scmp.ne.s32.totalorder %s251, %s252
      %p261 = scmp.eq.s32.totalorder %s31, 0
      %p262 = por %p260, %p261
      %p263 = scmp.ne.s32.totalorder %s251, %s252
      %p264 = scmp.eq.s32.totalorder %s32, 1
      %p265 = por %p263, %p264
      %p267 = scmp.ne.s32.totalorder %s252, %s266
      %p268 = scmp.eq.s32.totalorder %s32, 0
      %p269 = por %p267, %p268
      %s271 = sadd.s32 %s270, 1
      %p274 = scmp.eq.s32.totalorder %s26, 1
      %p275 = scmp.ne.s32.totalorder %s270, %s272
      %p276 = scmp.eq.s32.totalorder %s26, 0
      %p277 = por %p275, %p276
      %p278 = scmp.ne.s32.totalorder %s270, %s272
      %p279 = scmp.eq.s32.totalorder %s31, 1
      %p280 = por %p278, %p279
      %p281 = scmp.ne.s32.totalorder %s272, %s273
      %p282 = scmp.eq.s32.totalorder %s31, 0
      %p283 = por %p281, %p282
      %p284 = scmp.ne.s32.totalorder %s272, %s273
      %p285 = scmp.eq.s32.totalorder %s32, 1
      %p286 = por %p284, %p285
      %p288 = scmp.ne.s32.totalorder %s273, %s287
      %p289 = scmp.eq.s32.totalorder %s32, 0
      %p290 = por %p288, %p289
      %s292 = sadd.s32 %s291, 1
      %p295 = scmp.eq.s32.totalorder %s26, 1
      %p296 = scmp.ne.s32.totalorder %s291, %s293
      %p297 = scmp.eq.s32.totalorder %s26, 0
      %p298 = por %p296, %p297
      %p299 = scmp.ne.s32.totalorder %s291, %s293
      %p300 = scmp.eq.s32.totalorder %s31, 1
      %p301 = por %p299, %p300
      %p302 = scmp.ne.s32.totalorder %s293, %s294
      %p303 = scmp.eq.s32.totalorder %s31, 0
      %p304 = por %p302, %p303
      %p305 = scmp.ne.s32.totalorder %s293, %s294
      %p306 = scmp.eq.s32.totalorder %s32, 1
      %p307 = por %p305, %p306
      %p309 = scmp.ne.s32.totalorder %s294, %s308
      %p310 = scmp.eq.s32.totalorder %s32, 0
      %p311 = por %p309, %p310
      %s313 = sadd.s32 %s312, 1
      %p316 = scmp.eq.s32.totalorder %s26, 1
      %p317 = scmp.ne.s32.totalorder %s312, %s314
      %p318 = scmp.eq.s32.totalorder %s26, 0
      %p319 = por %p317, %p318
      %p320 = scmp.ne.s32.totalorder %s312, %s314
      %p321 = scmp.eq.s32.totalorder %s31, 1
      %p322 = por %p320, %p321
      %p323 = scmp.ne.s32.totalorder %s314, %s315
      %p324 = scmp.eq.s32.totalorder %s31, 0
      %p325 = por %p323, %p324
      %p326 = scmp.ne.s32.totalorder %s314, %s315
      %p327 = scmp.eq.s32.totalorder %s32, 1
      %p328 = por %p326, %p327
      %p330 = scmp.ne.s32.totalorder %s315, %s329
      %p331 = scmp.eq.s32.totalorder %s32, 0
      %p332 = por %p330, %p331
      %s333 = ssub.s32 %s26, %s33
      %p334 = scmp.eq.s32.totalorder %s333, 0
      %s336 = sadd.s32 %s335, 1
      %s337 = scalar_select %p334, %s335, %s336
      %p340 = pneg %p334
      %p341 = scmp.eq.s32.totalorder %s26, 1
      %p342 = por %p340, %p341
      %p343 = scmp.ne.s32.totalorder %s335, %s338
      %p344 = scmp.eq.s32.totalorder %s26, 0
      %p345 = por %p343, %p344
      %p346 = scmp.ne.s32.totalorder %s335, %s338
      %p347 = scmp.eq.s32.totalorder %s31, 1
      %p348 = por %p346, %p347
      %p349 = scmp.ne.s32.totalorder %s338, %s339
      %p350 = scmp.eq.s32.totalorder %s31, 0
      %p351 = por %p349, %p350
      %p352 = scmp.ne.s32.totalorder %s338, %s339
      %p353 = scmp.eq.s32.totalorder %s32, 1
      %p354 = por %p352, %p353
      %p356 = scmp.ne.s32.totalorder %s339, %s355
      %p357 = scmp.eq.s32.totalorder %s32, 0
      %p358 = por %p356, %p357
      %p359 = scmp.le.s32.totalorder 1, %s26
      %p360 = scmp.lt.s32.totalorder %s26, 3
      %p361 = pnand %p359, %p360
      %p362 = pneg %p361
      // Predicated region
      $region9: #{tpu_custom_call.1} parent=5 // pred_check
        _
      $region10: #{tpu_custom_call.1} parent=5 // pred_check_branch
        %364 = sbr.rel (%p361) target = $region12
      $region11: #{tpu_custom_call.1} parent=5 // pred_region
        %s365 = ssub.s32 %s26, 1
        // Predicated region
        $region13: #{tpu_custom_call.1} parent=11 // pred_check
          %p366 = pneg %p73
        $region14: #{tpu_custom_call.1} parent=11 // pred_check_branch
          %368 = sbr.rel (%p366) target = $region16
        $region15: #{tpu_custom_call.1} parent=11 // pred_region
          _
        $region16: #{tpu_custom_call.1} parent=11 // pred_fallthru
          _
        // Predicated region
        $region17: #{tpu_custom_call.1} parent=11 // pred_check
          %p369 = pneg %p94
        $region18: #{tpu_custom_call.1} parent=11 // pred_check_branch
          %371 = sbr.rel (%p369) target = $region20
        $region19: #{tpu_custom_call.1} parent=11 // pred_region
          _
        $region20: #{tpu_custom_call.1} parent=11 // pred_fallthru
          _
        // Predicated region
        $region21: #{tpu_custom_call.1} parent=11 // pred_check
          %p372 = pneg %p115
        $region22: #{tpu_custom_call.1} parent=11 // pred_check_branch
          %374 = sbr.rel (%p372) target = $region24
        $region23: #{tpu_custom_call.1} parent=11 // pred_region
          _
        $region24: #{tpu_custom_call.1} parent=11 // pred_fallthru
          _
        // Predicated region
        $region25: #{tpu_custom_call.1} parent=11 // pred_check
          %p375 = pneg %p136
        $region26: #{tpu_custom_call.1} parent=11 // pred_check_branch
          %377 = sbr.rel (%p375) target = $region28
        $region27: #{tpu_custom_call.1} parent=11 // pred_region
          %s379 = ssub.s32 256, 256
          %380 = vsyncadd [#allocation4], %s379
          %s381 = sshll.u32 [#allocation3], 4
          %s382 = int_to_ptr.vmem [resolvable:$true] %s381
          %387 = dma.hbm_to_vmem [thread:$0]  %s4, 256, %s382, [#allocation4], 64, 64, 4
        $region28: #{tpu_custom_call.1} parent=11 // pred_fallthru
          _
        // Predicated region
        $region29: #{tpu_custom_call.1} parent=11 // pred_check
          %p388 = pneg %p157
        $region30: #{tpu_custom_call.1} parent=11 // pred_check_branch
          %390 = sbr.rel (%p388) target = $region32
        $region31: #{tpu_custom_call.1} parent=11 // pred_region
          %s392 = ssub.s32 16, 16
          %393 = vsyncadd [#allocation7], %s392
          %s395 = sshll.u32 [#allocation6], 4
          %s396 = int_to_ptr.vmem [resolvable:$true] %s395
          %398 = dma.hbm_to_vmem [thread:$0]  %s5, 16, %s396, [#allocation7]
        $region32: #{tpu_custom_call.1} parent=11 // pred_fallthru
          _
        // Predicated region
        $region33: #{tpu_custom_call.1} parent=11 // pred_check
          %p399 = pneg %p178
        $region34: #{tpu_custom_call.1} parent=11 // pred_check_branch
          %401 = sbr.rel (%p399) target = $region36
        $region35: #{tpu_custom_call.1} parent=11 // pred_region
          %s403 = ssub.s32 10240, 10240
          %404 = vsyncadd [#allocation7], %s403
          %s405 = sshll.u32 [#allocation8], 4
          %s406 = int_to_ptr.vmem [resolvable:$true] %s405
          %411 = dma.hbm_to_vmem [thread:$0]  %s6, 10240, %s406, [#allocation7], 128, 128, 8
        $region36: #{tpu_custom_call.1} parent=11 // pred_fallthru
          _
        // Predicated region
        $region37: #{tpu_custom_call.1} parent=11 // pred_check
          %p412 = pneg %p199
        $region38: #{tpu_custom_call.1} parent=11 // pred_check_branch
          %414 = sbr.rel (%p412) target = $region40
        $region39: #{tpu_custom_call.1} parent=11 // pred_region
          _
        $region40: #{tpu_custom_call.1} parent=11 // pred_fallthru
          _
        // Predicated region
        $region41: #{tpu_custom_call.1} parent=11 // pred_check
          %p415 = pneg %p220
        $region42: #{tpu_custom_call.1} parent=11 // pred_check_branch
          %417 = sbr.rel (%p415) target = $region44
        $region43: #{tpu_custom_call.1} parent=11 // pred_region
          _
        $region44: #{tpu_custom_call.1} parent=11 // pred_fallthru
          _
        // Predicated region
        $region45: #{tpu_custom_call.1} parent=11 // pred_check
          %p418 = pneg %p241
        $region46: #{tpu_custom_call.1} parent=11 // pred_check_branch
          %420 = sbr.rel (%p418) target = $region48
        $region47: #{tpu_custom_call.1} parent=11 // pred_region
          %s422 = ssub.s32 16, 16
          %423 = vsyncadd [#allocation10], %s422
          %s425 = sshll.u32 [#allocation9], 4
          %s426 = int_to_ptr.vmem [resolvable:$true] %s425
          %428 = dma.hbm_to_vmem [thread:$0]  %s9, 16, %s426, [#allocation10]
        $region48: #{tpu_custom_call.1} parent=11 // pred_fallthru
          _
        // Predicated region
        $region49: #{tpu_custom_call.1} parent=11 // pred_check
          %p429 = pneg %p262
        $region50: #{tpu_custom_call.1} parent=11 // pred_check_branch
          %431 = sbr.rel (%p429) target = $region52
        $region51: #{tpu_custom_call.1} parent=11 // pred_region
          _
        $region52: #{tpu_custom_call.1} parent=11 // pred_fallthru
          _
        // Predicated region
        $region53: #{tpu_custom_call.1} parent=11 // pred_check
          %p432 = pneg %p283
        $region54: #{tpu_custom_call.1} parent=11 // pred_check_branch
          %434 = sbr.rel (%p432) target = $region56
        $region55: #{tpu_custom_call.1} parent=11 // pred_region
          _
        $region56: #{tpu_custom_call.1} parent=11 // pred_fallthru
          _
        // Predicated region
        $region57: #{tpu_custom_call.1} parent=11 // pred_check
          %p435 = pneg %p304
        $region58: #{tpu_custom_call.1} parent=11 // pred_check_branch
          %437 = sbr.rel (%p435) target = $region60
        $region59: #{tpu_custom_call.1} parent=11 // pred_region
          _
        $region60: #{tpu_custom_call.1} parent=11 // pred_fallthru
          _
        // Predicated region
        $region61: #{tpu_custom_call.1} parent=11 // pred_check
          %p438 = pneg %p325
        $region62: #{tpu_custom_call.1} parent=11 // pred_check_branch
          %440 = sbr.rel (%p438) target = $region64
        $region63: #{tpu_custom_call.1} parent=11 // pred_region
          _
        $region64: #{tpu_custom_call.1} parent=11 // pred_fallthru
          _
      $region12: #{tpu_custom_call.1} parent=5 // pred_fallthru
        _
      %p441 = scmp.lt.s32.totalorder %s26, 2
      // Predicated region
      $region65: #{tpu_custom_call.1} parent=5 // pred_check
        %p442 = pneg %p441
      $region66: #{tpu_custom_call.1} parent=5 // pred_check_branch
        %444 = sbr.rel (%p442) target = $region68
      $region67: #{tpu_custom_call.1} parent=5 // pred_region
        // Predicated region
        $region69: #{tpu_custom_call.1} parent=67 // pred_check
          %p445 = pneg %p46
        $region70: #{tpu_custom_call.1} parent=67 // pred_check_branch
          %447 = sbr.rel (%p445) target = $region72
        $region71: #{tpu_custom_call.1} parent=67 // pred_region
          %s448 = smul.u32 8, %s26
          %p449 = scmp.lt.s32.totalorder %s448, 15
          %s450 = scalar_select %p449, %s448, 15
          %s451 = smul.addr %s450, 2
          %s452 = smul.addr %s451, 8
          %s453 = scalar_lea.vmem %s0, %s452
          %s454 = smul.u32 8, %s26
        $region72: #{tpu_custom_call.1} parent=67 // pred_fallthru
          _
      $region68: #{tpu_custom_call.1} parent=5 // pred_fallthru
        _
      %p455 = scmp.le.s32.totalorder 1, %s26
      %p456 = scmp.lt.s32.totalorder %s26, 3
      %p457 = pnand %p455, %p456
      %p458 = pneg %p457
      // Predicated region
      $region73: #{tpu_custom_call.1} parent=5 // pred_check
        _
      $region74: #{tpu_custom_call.1} parent=5 // pred_check_branch
        %460 = sbr.rel (%p457) target = $region76
      $region75: #{tpu_custom_call.1} parent=5 // pred_region
        %s461 = ssub.s32 %s26, 1
        // Predicated region
        $region77: #{tpu_custom_call.1} parent=75 // pred_check
          %p462 = pneg %p136
        $region78: #{tpu_custom_call.1} parent=75 // pred_check_branch
          %464 = sbr.rel (%p462) target = $region80
        $region79: #{tpu_custom_call.1} parent=75 // pred_region
          %465 = dma.done [#allocation4], 256
        $region80: #{tpu_custom_call.1} parent=75 // pred_fallthru
          _
        // Predicated region
        $region81: #{tpu_custom_call.1} parent=75 // pred_check
          %p466 = pneg %p157
        $region82: #{tpu_custom_call.1} parent=75 // pred_check_branch
          %468 = sbr.rel (%p466) target = $region84
        $region83: #{tpu_custom_call.1} parent=75 // pred_region
          %469 = dma.done [#allocation7], 16
        $region84: #{tpu_custom_call.1} parent=75 // pred_fallthru
          _
        // Predicated region
        $region85: #{tpu_custom_call.1} parent=75 // pred_check
          %p470 = pneg %p178
        $region86: #{tpu_custom_call.1} parent=75 // pred_check_branch
          %472 = sbr.rel (%p470) target = $region88
        $region87: #{tpu_custom_call.1} parent=75 // pred_region
          %473 = dma.done [#allocation7], 10240
        $region88: #{tpu_custom_call.1} parent=75 // pred_fallthru
          _
        // Predicated region
        $region89: #{tpu_custom_call.1} parent=75 // pred_check
          %p474 = pneg %p241
        $region90: #{tpu_custom_call.1} parent=75 // pred_check_branch
          %476 = sbr.rel (%p474) target = $region92
        $region91: #{tpu_custom_call.1} parent=75 // pred_region
          %477 = dma.done [#allocation10], 16
        $region92: #{tpu_custom_call.1} parent=75 // pred_fallthru
          _
        %s478 = smul.u32 8, %s31
        %p479 = scmp.lt.s32.totalorder %s478, 15
        %s480 = scalar_select %p479, %s478, 15
        %s481 = smul.addr %s480, 2
        %s482 = smul.addr %s481, 8
        %s483 = scalar_lea.vmem %s0, %s482
        %p484 = pneg %p52
        %p485 = pneg %p49
        %p486 = pneg %p73
        %p487 = pneg %p70
        %p488 = pneg %p94
        %p489 = pneg %p91
        %p490 = pneg %p115
        %p491 = pneg %p112
        %p492 = pneg %p136
        %p493 = pneg %p133
        %p494 = pneg %p157
        %p495 = pneg %p154
        %p496 = pneg %p178
        %p497 = pneg %p175
        %p498 = pneg %p199
        %p499 = pneg %p196
        %p500 = pneg %p220
        %p501 = pneg %p217
        %p502 = pneg %p241
        %p503 = pneg %p238
        %p504 = pneg %p262
        %p505 = pneg %p259
        %p506 = pneg %p283
        %p507 = pneg %p280
        %p508 = pneg %p304
        %p509 = pneg %p301
        %p510 = pneg %p325
        %p511 = pneg %p322
        %p512 = pneg %p351
        %p513 = pneg %p348
        %s514 = sand.u32 %s338, 1
        %s515 = scalar_lea.sflag [#allocation5], %s514
        %s516 = sand.u32 %s338, 1
        %s517 = smul.addr %s516, 8
        %s518 = scalar_lea.vmem [#allocation11], %s517
        %s519 = smul.u32 8, %s31
        %p520 = scmp.lt.s32.totalorder %s519, 15
        %s521 = scalar_select %p520, %s519, 15
        %s522 = smul.addr %s521, 2
        %s523 = smul.addr %s522, 8
        %s524 = scalar_lea.vmem %s0, %s523
        %s525 = smul.u32 8, %s31
        %v527 = vld [vmem:[%s524] sm:$0xff]
        %v528 = vld [vmem:[%s524 + $0x8] sm:$0xff]
        %v529 = vld [vmem:[%s524 + $0x10] sm:$0xff]
        %v530 = vld [vmem:[%s524 + $0x18] sm:$0xff]
        %v531 = vld [vmem:[%s524 + $0x20] sm:$0xff]
        %v532 = vld [vmem:[%s524 + $0x28] sm:$0xff]
        %v533 = vld [vmem:[%s524 + $0x30] sm:$0xff]
        %v534 = vld [vmem:[%s524 + $0x38] sm:$0xff]
        %v535 = vld [vmem:[%s524 + $0x40] sm:$0xff]
        %v536 = vld [vmem:[%s524 + $0x48] sm:$0xff]
        %v537 = vld [vmem:[%s524 + $0x50] sm:$0xff]
        %v538 = vld [vmem:[%s524 + $0x58] sm:$0xff]
        %v539 = vld [vmem:[%s524 + $0x60] sm:$0xff]
        %v540 = vld [vmem:[%s524 + $0x68] sm:$0xff]
        %v541 = vld [vmem:[%s524 + $0x70] sm:$0xff]
        %v542 = vld [vmem:[%s524 + $0x78] sm:$0xff]
        %v543 = vpack.c.bf16 %v528, %v527
        %v544 = vpack.c.bf16 %v530, %v529
        %v545 = vpack.c.bf16 %v532, %v531
        %v546 = vpack.c.bf16 %v534, %v533
        %v547 = vpack.c.bf16 %v536, %v535
        %v548 = vpack.c.bf16 %v538, %v537
        %v549 = vpack.c.bf16 %v540, %v539
        %v550 = vpack.c.bf16 %v542, %v541
        %v551 = vld [vmem:[%s1] sm:$0x3]
        %v552 = vld [vmem:[%s3] sm:$0x1]
        %v554 = vlaneseq
        %v555 = vshrl.u32 %v554, 7
        %v556 = vsub.s32 0, %v555
        %v557 = vrot.slane %v552, %v556
        %vm559 = vcmask 31744
        %v561 = vsel %vm559, %v543, 0
        %v564 = vsel %vm559, %v544, 0
        %v567 = vsel %vm559, %v545, 0
        %v570 = vsel %vm559, %v546, 0
        %v573 = vsel %vm559, %v547, 0
        %v576 = vsel %vm559, %v548, 0
        %v579 = vsel %vm559, %v549, 0
        %v582 = vsel %vm559, %v550, 0
        %vm584 = vcmask 1041408
        %v586 = vsel %vm584, %v551, 0
        %588 = vmatprep.subr.bf16.mxu0 0
        %589 = vmatpush1.bf16.msra.mxu0 %v586
        %590 = vmatprep.subr.bf16.mxu0 0
        %591 = vmatpush1.bf16.msra.mxu0 0
        %592 = vmatprep.subr.bf16.mxu0 0
        %593 = vmatpush1.bf16.msra.mxu0 0
        %594 = vmatprep.subr.bf16.mxu0 0
        %595 = vmatpush1.bf16.msra.mxu0 0
        %596 = vmatprep.subr.bf16.mxu0 0
        %597 = vmatpush1.bf16.msra.mxu0 0
        %598 = vmatprep.subr.bf16.mxu0 0
        %599 = vmatpush1.bf16.msra.mxu0 0
        %600 = vmatprep.subr.bf16.mxu0 0
        %601 = vmatpush1.bf16.msra.mxu0 0
        %602 = vmatprep.subr.bf16.mxu0 0
        %603 = vmatpush1.bf16.msra.mxu0 0
        %604 = vmatprep.subr.bf16.mxu0 0
        %605 = vmatpush1.bf16.msra.mxu0 0
        %606 = vmatprep.subr.bf16.mxu0 0
        %607 = vmatpush1.bf16.msra.mxu0 0
        %608 = vmatprep.subr.bf16.mxu0 0
        %609 = vmatpush1.bf16.msra.mxu0 0
        %610 = vmatprep.subr.bf16.mxu0 0
        %611 = vmatpush1.bf16.msra.mxu0 0
        %612 = vmatprep.subr.bf16.mxu0 0
        %613 = vmatpush1.bf16.msra.mxu0 0
        %614 = vmatprep.subr.bf16.mxu0 0
        %615 = vmatpush1.bf16.msra.mxu0 0
        %616 = vmatprep.subr.bf16.mxu0 0
        %617 = vmatpush1.bf16.msra.mxu0 0
        %618 = vmatprep.subr.bf16.mxu0 0
        %619 = vmatpush1.bf16.msra.mxu0 0
        %620 = vmatprep.mubr.bf16.mxu0 0
        %621 = vmatmul.mubr.bf16.gmra.mrb[0].mxu0 %v561
        %v622 = vpop.f32.mrb[0].mxu0
        %v623 = vadd.f32 %v557, %v622
        %v624 = vpop.f32.mrb[0].mxu0
        %v625 = vpop.f32.mrb[0].mxu0
        %v626 = vadd.f32 %v557, %v625
        %v627 = vpop.f32.mrb[0].mxu0
        %628 = vmatprep.mubr.bf16.mxu0 0
        %629 = vmatmul.mubr.bf16.gmra.mrb[0].mxu0 %v564
        %v630 = vpop.f32.mrb[0].mxu0
        %v631 = vadd.f32 %v557, %v630
        %v632 = vpop.f32.mrb[0].mxu0
        %v633 = vpop.f32.mrb[0].mxu0
        %v634 = vadd.f32 %v557, %v633
        %v635 = vpop.f32.mrb[0].mxu0
        %636 = vmatprep.mubr.bf16.mxu0 0
        %637 = vmatmul.mubr.bf16.gmra.mrb[0].mxu0 %v567
        %v638 = vpop.f32.mrb[0].mxu0
        %v639 = vadd.f32 %v557, %v638
        %v640 = vpop.f32.mrb[0].mxu0
        %v641 = vpop.f32.mrb[0].mxu0
        %v642 = vadd.f32 %v557, %v641
        %v643 = vpop.f32.mrb[0].mxu0
        %644 = vmatprep.mubr.bf16.mxu0 0
        %645 = vmatmul.mubr.bf16.gmra.mrb[0].mxu0 %v570
        %v646 = vpop.f32.mrb[0].mxu0
        %v647 = vadd.f32 %v557, %v646
        %v648 = vpop.f32.mrb[0].mxu0
        %v649 = vpop.f32.mrb[0].mxu0
        %v650 = vadd.f32 %v557, %v649
        %v651 = vpop.f32.mrb[0].mxu0
        %652 = vmatprep.mubr.bf16.mxu0 0
        %653 = vmatmul.mubr.bf16.gmra.mrb[0].mxu0 %v573
        %v654 = vpop.f32.mrb[0].mxu0
        %v655 = vadd.f32 %v557, %v654
        %v656 = vpop.f32.mrb[0].mxu0
        %v657 = vpop.f32.mrb[0].mxu0
        %v658 = vadd.f32 %v557, %v657
        %v659 = vpop.f32.mrb[0].mxu0
        %660 = vmatprep.mubr.bf16.mxu0 0
        %661 = vmatmul.mubr.bf16.gmra.mrb[0].mxu0 %v576
        %v662 = vpop.f32.mrb[0].mxu0
        %v663 = vadd.f32 %v557, %v662
        %v664 = vpop.f32.mrb[0].mxu0
        %v665 = vpop.f32.mrb[0].mxu0
        %v666 = vadd.f32 %v557, %v665
        %v667 = vpop.f32.mrb[0].mxu0
        %668 = vmatprep.mubr.bf16.mxu0 0
        %669 = vmatmul.mubr.bf16.gmra.mrb[0].mxu0 %v579
        %v670 = vpop.f32.mrb[0].mxu0
        %v671 = vadd.f32 %v557, %v670
        %v672 = vpop.f32.mrb[0].mxu0
        %v673 = vpop.f32.mrb[0].mxu0
        %v674 = vadd.f32 %v557, %v673
        %v675 = vpop.f32.mrb[0].mxu0
        %676 = vmatprep.mubr.bf16.mxu0 0
        %677 = vmatmul.mubr.bf16.gmra.mrb[0].mxu0 %v582
        %v678 = vpop.f32.mrb[0].mxu0
        %v679 = vadd.f32 %v557, %v678
        %v680 = vpop.f32.mrb[0].mxu0
        %v681 = vpop.f32.mrb[0].mxu0
        %v682 = vadd.f32 %v557, %v681
        %v683 = vpop.f32.mrb[0].mxu0
        %684 = vdwg.mxu0
        %685 = vst [vmem:[#allocation2] sm:$0xff] %v623
        %686 = vst [vmem:[#allocation2 + $0x8] sm:$0xff] %v626
        %687 = vst [vmem:[#allocation2 + $0x10] sm:$0xff] %v631
        %688 = vst [vmem:[#allocation2 + $0x18] sm:$0xff] %v634
        %689 = vst [vmem:[#allocation2 + $0x20] sm:$0xff] %v639
        %690 = vst [vmem:[#allocation2 + $0x28] sm:$0xff] %v642
        %691 = vst [vmem:[#allocation2 + $0x30] sm:$0xff] %v647
        %692 = vst [vmem:[#allocation2 + $0x38] sm:$0xff] %v650
        %693 = vst [vmem:[#allocation2 + $0x40] sm:$0xff] %v655
        %694 = vst [vmem:[#allocation2 + $0x48] sm:$0xff] %v658
        %695 = vst [vmem:[#allocation2 + $0x50] sm:$0xff] %v663
        %696 = vst [vmem:[#allocation2 + $0x58] sm:$0xff] %v666
        %697 = vst [vmem:[#allocation2 + $0x60] sm:$0xff] %v671
        %698 = vst [vmem:[#allocation2 + $0x68] sm:$0xff] %v674
        %699 = vst [vmem:[#allocation2 + $0x70] sm:$0xff] %v679
        %700 = vst [vmem:[#allocation2 + $0x78] sm:$0xff] %v682
        %v701 = vld [vmem:[%s2] sm:$0xf]
        %v702 = vld [vmem:[%s2 + $0x4] sm:$0xf]
        %v703 = vld [vmem:[%s2 + $0x8] sm:$0xf]
        %v704 = vld [vmem:[%s2 + $0xc] sm:$0xf]
        %v705 = vld [vmem:[#allocation2] sm:$0x1]
        %v706 = vld [vmem:[#allocation2 + $0x10] sm:$0x1]
        %v707 = vld [vmem:[#allocation2 + $0x20] sm:$0x1]
        %v708 = vld [vmem:[#allocation2 + $0x30] sm:$0x1]
        %v709 = vld [vmem:[#allocation2 + $0x40] sm:$0x1]
        %v710 = vld [vmem:[#allocation2 + $0x50] sm:$0x1]
        %v711 = vld [vmem:[#allocation2 + $0x60] sm:$0x1]
        %v712 = vld [vmem:[#allocation2 + $0x70] sm:$0x1]
        %v717 = vunpack.c.l.b16 %v701
        %v718 = vunpack.c.l.b16 %v702
        %v719 = vunpack.c.l.b16 %v703
        %v720 = vunpack.c.l.b16 %v704
        %v721 = vpack.c.b16 %v718, %v717
        %v722 = vpack.c.b16 %v720, %v719
        %vm725 = vcmask 261120
        %v727 = vsel %vm725, 0, 0
        %729 = vmatprep.subr.bf16.mxu0 0
        %730 = vmatpush1.bf16.msra.mxu0 %v721
        %731 = vmatprep.subr.bf16.mxu0 0
        %732 = vmatpush1.bf16.msra.mxu0 %v722
        %733 = vmatprep.subr.bf16.mxu0 0
        %734 = vmatpush1.bf16.msra.mxu0 0
        %735 = vmatprep.subr.bf16.mxu0 0
        %736 = vmatpush1.bf16.msra.mxu0 0
        %737 = vmatprep.subr.bf16.mxu0 0
        %738 = vmatpush1.bf16.msra.mxu0 0
        %739 = vmatprep.subr.bf16.mxu0 0
        %740 = vmatpush1.bf16.msra.mxu0 0
        %741 = vmatprep.subr.bf16.mxu0 0
        %742 = vmatpush1.bf16.msra.mxu0 0
        %743 = vmatprep.subr.bf16.mxu0 0
        %744 = vmatpush1.bf16.msra.mxu0 0
        %745 = vmatprep.subr.bf16.mxu0 0
        %746 = vmatpush1.bf16.msra.mxu0 0
        %747 = vmatprep.subr.bf16.mxu0 0
        %748 = vmatpush1.bf16.msra.mxu0 0
        %749 = vmatprep.subr.bf16.mxu0 0
        %750 = vmatpush1.bf16.msra.mxu0 0
        %751 = vmatprep.subr.bf16.mxu0 0
        %752 = vmatpush1.bf16.msra.mxu0 0
        %753 = vmatprep.subr.bf16.mxu0 0
        %754 = vmatpush1.bf16.msra.mxu0 0
        %755 = vmatprep.subr.bf16.mxu0 0
        %756 = vmatpush1.bf16.msra.mxu0 0
        %757 = vmatprep.subr.bf16.mxu0 0
        %758 = vmatpush1.bf16.msra.mxu0 0
        %759 = vmatprep.subr.bf16.mxu0 0
        %760 = vmatpush1.bf16.msra.mxu0 0
        %761 = vmatprep.mubr.bf16.mxu0 0
        %762 = vmatmul.mubr.bf16.gmra.mrb[0].mxu0 %v727
        %v763 = vpop.f32.mrb[0].mxu0
        %v764 = vadd.f32 0.0, %v763
        %v765 = vpop.f32.mrb[0].mxu0
        %v766 = vpop.f32.mrb[0].mxu0
        %v767 = vpop.f32.mrb[0].mxu0
        %768 = vdwg.mxu0
        %v770 = vrot.slane %v764, 1
        %v771 = vrot.slane %v764, 2
        %v772 = vrot.slane %v764, 3
        %v773 = vrot.slane %v764, 4
        %v774 = vrot.slane %v764, 5
        %v775 = vrot.slane %v764, 6
        %v776 = vrot.slane %v764, 7
        %v785 = vadd.f32 %v705, %v764
        %v786 = vadd.f32 %v706, %v770
        %v787 = vadd.f32 %v707, %v771
        %v788 = vadd.f32 %v708, %v772
        %v789 = vadd.f32 %v709, %v773
        %v790 = vadd.f32 %v710, %v774
        %v791 = vadd.f32 %v711, %v775
        %v792 = vadd.f32 %v712, %v776
        %v793 = vxor.u32 %v785, 2147483648
        %v794 = vxor.u32 %v786, 2147483648
        %v795 = vxor.u32 %v787, 2147483648
        %v796 = vxor.u32 %v788, 2147483648
        %v797 = vxor.u32 %v789, 2147483648
        %v798 = vxor.u32 %v790, 2147483648
        %v799 = vxor.u32 %v791, 2147483648
        %v800 = vxor.u32 %v792, 2147483648
        %v801 = vmul.f32 %v793, 1.442695
        %v802 = vpow.pop %v801
        %v803 = vmul.f32 %v794, 1.442695
        %v804 = vpow.pop %v803
        %v805 = vmul.f32 %v795, 1.442695
        %v806 = vpow.pop %v805
        %v807 = vmul.f32 %v796, 1.442695
        %v808 = vpow.pop %v807
        %v809 = vmul.f32 %v797, 1.442695
        %v810 = vpow.pop %v809
        %v811 = vmul.f32 %v798, 1.442695
        %v812 = vpow.pop %v811
        %v813 = vmul.f32 %v799, 1.442695
        %v814 = vpow.pop %v813
        %v815 = vmul.f32 %v800, 1.442695
        %v816 = vpow.pop %v815
        %v817 = vadd.f32 %v802, 1.0
        %v818 = vadd.f32 %v804, 1.0
        %v819 = vadd.f32 %v806, 1.0
        %v820 = vadd.f32 %v808, 1.0
        %v821 = vadd.f32 %v810, 1.0
        %v822 = vadd.f32 %v812, 1.0
        %v823 = vadd.f32 %v814, 1.0
        %v824 = vadd.f32 %v816, 1.0
        %v825 = vrcp.pop %v817
        %v826 = vmul.f32 1.0, %v825
        %v827 = vrcp.pop %v818
        %v828 = vmul.f32 1.0, %v827
        %v829 = vrcp.pop %v819
        %v830 = vmul.f32 1.0, %v829
        %v831 = vrcp.pop %v820
        %v832 = vmul.f32 1.0, %v831
        %v833 = vrcp.pop %v821
        %v834 = vmul.f32 1.0, %v833
        %v835 = vrcp.pop %v822
        %v836 = vmul.f32 1.0, %v835
        %v837 = vrcp.pop %v823
        %v838 = vmul.f32 1.0, %v837
        %v839 = vrcp.pop %v824
        %v840 = vmul.f32 1.0, %v839
        %v841 = vtanh.pop %v785
        %v842 = vtanh.pop %v786
        %v843 = vtanh.pop %v787
        %v844 = vtanh.pop %v788
        %v845 = vtanh.pop %v789
        %v846 = vtanh.pop %v790
        %v847 = vtanh.pop %v791
        %v848 = vtanh.pop %v792
        %v849 = vmul.f32 %v826, 0.0
        %v850 = vmul.f32 %v828, 0.0
        %v851 = vmul.f32 %v830, 0.0
        %v852 = vmul.f32 %v832, 0.0
        %v853 = vmul.f32 %v834, 0.0
        %v854 = vmul.f32 %v836, 0.0
        %v855 = vmul.f32 %v838, 0.0
        %v856 = vmul.f32 %v840, 0.0
        %865 = vrot.lane.b32.xlu0 %v841, 64
        %v866 = vpop.permute.xlu0 %865
        %867 = vrot.lane.b32.xlu0 %v842, 64
        %v868 = vpop.permute.xlu0 %867
        %869 = vrot.lane.b32.xlu0 %v843, 64
        %v870 = vpop.permute.xlu0 %869
        %871 = vrot.lane.b32.xlu0 %v844, 64
        %v872 = vpop.permute.xlu0 %871
        %873 = vrot.lane.b32.xlu0 %v845, 64
        %v874 = vpop.permute.xlu0 %873
        %875 = vrot.lane.b32.xlu0 %v846, 64
        %v876 = vpop.permute.xlu0 %875
        %877 = vrot.lane.b32.xlu0 %v847, 64
        %v878 = vpop.permute.xlu0 %877
        %879 = vrot.lane.b32.xlu0 %v848, 64
        %v880 = vpop.permute.xlu0 %879
        %v889 = vmul.f32 %v826, %v866
        %v890 = vmul.f32 %v828, %v868
        %v891 = vmul.f32 %v830, %v870
        %v892 = vmul.f32 %v832, %v872
        %v893 = vmul.f32 %v834, %v874
        %v894 = vmul.f32 %v836, %v876
        %v895 = vmul.f32 %v838, %v878
        %v896 = vmul.f32 %v840, %v880
        %905 = vrot.lane.b32.xlu0 %v889, 32
        %v906 = vpop.permute.xlu0 %905
        %907 = vrot.lane.b32.xlu0 %v890, 32
        %v908 = vpop.permute.xlu0 %907
        %909 = vrot.lane.b32.xlu0 %v891, 32
        %v910 = vpop.permute.xlu0 %909
        %911 = vrot.lane.b32.xlu0 %v892, 32
        %v912 = vpop.permute.xlu0 %911
        %913 = vrot.lane.b32.xlu0 %v893, 32
        %v914 = vpop.permute.xlu0 %913
        %915 = vrot.lane.b32.xlu0 %v894, 32
        %v916 = vpop.permute.xlu0 %915
        %917 = vrot.lane.b32.xlu0 %v895, 32
        %v918 = vpop.permute.xlu0 %917
        %919 = vrot.lane.b32.xlu0 %v896, 32
        %v920 = vpop.permute.xlu0 %919
        %v929 = vadd.f32 %v849, %v906
        %v930 = vadd.f32 %v850, %v908
        %v931 = vadd.f32 %v851, %v910
        %v932 = vadd.f32 %v852, %v912
        %v933 = vadd.f32 %v853, %v914
        %v934 = vadd.f32 %v854, %v916
        %v935 = vadd.f32 %v855, %v918
        %v936 = vadd.f32 %v856, %v920
        %v937 = vtanh.pop %v929
        %v938 = vtanh.pop %v930
        %v939 = vtanh.pop %v931
        %v940 = vtanh.pop %v932
        %v941 = vtanh.pop %v933
        %v942 = vtanh.pop %v934
        %v943 = vtanh.pop %v935
        %v944 = vtanh.pop %v936
        %953 = vrot.lane.b32.xlu0 %v937, 64
        %v954 = vpop.permute.xlu0 %953
        %955 = vrot.lane.b32.xlu0 %v938, 64
        %v956 = vpop.permute.xlu0 %955
        %957 = vrot.lane.b32.xlu0 %v939, 64
        %v958 = vpop.permute.xlu0 %957
        %959 = vrot.lane.b32.xlu0 %v940, 64
        %v960 = vpop.permute.xlu0 %959
        %961 = vrot.lane.b32.xlu0 %v941, 64
        %v962 = vpop.permute.xlu0 %961
        %963 = vrot.lane.b32.xlu0 %v942, 64
        %v964 = vpop.permute.xlu0 %963
        %965 = vrot.lane.b32.xlu0 %v943, 64
        %v966 = vpop.permute.xlu0 %965
        %967 = vrot.lane.b32.xlu0 %v944, 64
        %v968 = vpop.permute.xlu0 %967
        %v977 = vmul.f32 %v826, %v954
        %v978 = vmul.f32 %v828, %v956
        %v979 = vmul.f32 %v830, %v958
        %v980 = vmul.f32 %v832, %v960
        %v981 = vmul.f32 %v834, %v962
        %v982 = vmul.f32 %v836, %v964
        %v983 = vmul.f32 %v838, %v966
        %v984 = vmul.f32 %v840, %v968
        %v985 = vld [vmem:[#allocation2 + $0x1] sm:$0x1]
        %v986 = vld [vmem:[#allocation2 + $0x11] sm:$0x1]
        %v987 = vld [vmem:[#allocation2 + $0x21] sm:$0x1]
        %v988 = vld [vmem:[#allocation2 + $0x31] sm:$0x1]
        %v989 = vld [vmem:[#allocation2 + $0x41] sm:$0x1]
        %v990 = vld [vmem:[#allocation2 + $0x51] sm:$0x1]
        %v991 = vld [vmem:[#allocation2 + $0x61] sm:$0x1]
        %v992 = vld [vmem:[#allocation2 + $0x71] sm:$0x1]
        %v993 = vpack.c.bf16 %v977, %v977
        %v994 = vpack.c.bf16 %v978, %v978
        %v995 = vpack.c.bf16 %v979, %v979
        %v996 = vpack.c.bf16 %v980, %v980
        %v997 = vpack.c.bf16 %v981, %v981
        %v998 = vpack.c.bf16 %v982, %v982
        %v999 = vpack.c.bf16 %v983, %v983
        %v1000 = vpack.c.bf16 %v984, %v984
        %v1009 = vunpack.c.l.b16 %v993
        %v1010 = vunpack.c.l.b16 %v994
        %v1011 = vunpack.c.l.b16 %v995
        %v1012 = vunpack.c.l.b16 %v996
        %v1013 = vunpack.c.l.b16 %v997
        %v1014 = vunpack.c.l.b16 %v998
        %v1015 = vunpack.c.l.b16 %v999
        %v1016 = vunpack.c.l.b16 %v1000
        %v1017 = vrot.slane %v1010, 7
        %vm1018 = vcmask 1041409
        %v1019 = vsel %vm1018, %v1017, %v1009
        %v1020 = vrot.slane %v1011, 6
        %vm1021 = vcmask 1042434
        %v1022 = vsel %vm1021, %v1020, %v1019
        %v1023 = vrot.slane %v1012, 5
        %vm1024 = vcmask 1043459
        %v1025 = vsel %vm1024, %v1023, %v1022
        %v1026 = vrot.slane %v1013, 4
        %vm1027 = vcmask 1044484
        %v1028 = vsel %vm1027, %v1026, %v1025
        %v1029 = vrot.slane %v1014, 3
        %vm1030 = vcmask 1045509
        %v1031 = vsel %vm1030, %v1029, %v1028
        %v1032 = vrot.slane %v1015, 2
        %vm1033 = vcmask 1046534
        %v1034 = vsel %vm1033, %v1032, %v1031
        %v1035 = vrot.slane %v1016, 1
        %vm1036 = vcmask 1047559
        %v1037 = vsel %vm1036, %v1035, %v1034
        %v1038 = vpack.c.b16 %v1037, %v1037
        %1039 = vrot.lane.b32.xlu0 %v1038, 32
        %v1040 = vpop.permute.xlu0 %1039
        %v1042 = vsel %vm725, %v1040, 0
        %1044 = vmatprep.subr.bf16.mxu0 0
        %1045 = vmatpush1.bf16.msra.mxu0 %v721
        %1046 = vmatprep.subr.bf16.mxu0 0
        %1047 = vmatpush1.bf16.msra.mxu0 %v722
        %1048 = vmatprep.subr.bf16.mxu0 0
        %1049 = vmatpush1.bf16.msra.mxu0 0
        %1050 = vmatprep.subr.bf16.mxu0 0
        %1051 = vmatpush1.bf16.msra.mxu0 0
        %1052 = vmatprep.subr.bf16.mxu0 0
        %1053 = vmatpush1.bf16.msra.mxu0 0
        %1054 = vmatprep.subr.bf16.mxu0 0
        %1055 = vmatpush1.bf16.msra.mxu0 0
        %1056 = vmatprep.subr.bf16.mxu0 0
        %1057 = vmatpush1.bf16.msra.mxu0 0
        %1058 = vmatprep.subr.bf16.mxu0 0
        %1059 = vmatpush1.bf16.msra.mxu0 0
        %1060 = vmatprep.subr.bf16.mxu0 0
        %1061 = vmatpush1.bf16.msra.mxu0 0
        %1062 = vmatprep.subr.bf16.mxu0 0
        %1063 = vmatpush1.bf16.msra.mxu0 0
        %1064 = vmatprep.subr.bf16.mxu0 0
        %1065 = vmatpush1.bf16.msra.mxu0 0
        %1066 = vmatprep.subr.bf16.mxu0 0
        %1067 = vmatpush1.bf16.msra.mxu0 0
        %1068 = vmatprep.subr.bf16.mxu0 0
        %1069 = vmatpush1.bf16.msra.mxu0 0
        %1070 = vmatprep.subr.bf16.mxu0 0
        %1071 = vmatpush1.bf16.msra.mxu0 0
        %1072 = vmatprep.subr.bf16.mxu0 0
        %1073 = vmatpush1.bf16.msra.mxu0 0
        %1074 = vmatprep.subr.bf16.mxu0 0
        %1075 = vmatpush1.bf16.msra.mxu0 0
        %1076 = vmatprep.mubr.bf16.mxu0 0
        %1077 = vmatmul.mubr.bf16.gmra.mrb[0].mxu0 %v1042
        %v1078 = vpop.f32.mrb[0].mxu0
        %v1079 = vadd.f32 0.0, %v1078
        %v1080 = vpop.f32.mrb[0].mxu0
        %v1081 = vpop.f32.mrb[0].mxu0
        %v1082 = vpop.f32.mrb[0].mxu0
        %1083 = vdwg.mxu0
        %v1085 = vrot.slane %v1079, 1
        %v1086 = vrot.slane %v1079, 2
        %v1087 = vrot.slane %v1079, 3
        %v1088 = vrot.slane %v1079, 4
        %v1089 = vrot.slane %v1079, 5
        %v1090 = vrot.slane %v1079, 6
        %v1091 = vrot.slane %v1079, 7
        %v1100 = vadd.f32 %v985, %v1079
        %v1101 = vadd.f32 %v986, %v1085
        %v1102 = vadd.f32 %v987, %v1086
        %v1103 = vadd.f32 %v988, %v1087
        %v1104 = vadd.f32 %v989, %v1088
        %v1105 = vadd.f32 %v990, %v1089
        %v1106 = vadd.f32 %v991, %v1090
        %v1107 = vadd.f32 %v992, %v1091
        %v1108 = vxor.u32 %v1100, 2147483648
        %v1109 = vxor.u32 %v1101, 2147483648
        %v1110 = vxor.u32 %v1102, 2147483648
        %v1111 = vxor.u32 %v1103, 2147483648
        %v1112 = vxor.u32 %v1104, 2147483648
        %v1113 = vxor.u32 %v1105, 2147483648
        %v1114 = vxor.u32 %v1106, 2147483648
        %v1115 = vxor.u32 %v1107, 2147483648
        %v1116 = vmul.f32 %v1108, 1.442695
        %v1117 = vpow.pop %v1116
        %v1118 = vmul.f32 %v1109, 1.442695
        %v1119 = vpow.pop %v1118
        %v1120 = vmul.f32 %v1110, 1.442695
        %v1121 = vpow.pop %v1120
        %v1122 = vmul.f32 %v1111, 1.442695
        %v1123 = vpow.pop %v1122
        %v1124 = vmul.f32 %v1112, 1.442695
        %v1125 = vpow.pop %v1124
        %v1126 = vmul.f32 %v1113, 1.442695
        %v1127 = vpow.pop %v1126
        %v1128 = vmul.f32 %v1114, 1.442695
        %v1129 = vpow.pop %v1128
        %v1130 = vmul.f32 %v1115, 1.442695
        %v1131 = vpow.pop %v1130
        %v1132 = vadd.f32 %v1117, 1.0
        %v1133 = vadd.f32 %v1119, 1.0
        %v1134 = vadd.f32 %v1121, 1.0
        %v1135 = vadd.f32 %v1123, 1.0
        %v1136 = vadd.f32 %v1125, 1.0
        %v1137 = vadd.f32 %v1127, 1.0
        %v1138 = vadd.f32 %v1129, 1.0
        %v1139 = vadd.f32 %v1131, 1.0
        %v1140 = vrcp.pop %v1132
        %v1141 = vmul.f32 1.0, %v1140
        %v1142 = vrcp.pop %v1133
        %v1143 = vmul.f32 1.0, %v1142
        %v1144 = vrcp.pop %v1134
        %v1145 = vmul.f32 1.0, %v1144
        %v1146 = vrcp.pop %v1135
        %v1147 = vmul.f32 1.0, %v1146
        %v1148 = vrcp.pop %v1136
        %v1149 = vmul.f32 1.0, %v1148
        %v1150 = vrcp.pop %v1137
        %v1151 = vmul.f32 1.0, %v1150
        %v1152 = vrcp.pop %v1138
        %v1153 = vmul.f32 1.0, %v1152
        %v1154 = vrcp.pop %v1139
        %v1155 = vmul.f32 1.0, %v1154
        %v1156 = vtanh.pop %v1100
        %v1157 = vtanh.pop %v1101
        %v1158 = vtanh.pop %v1102
        %v1159 = vtanh.pop %v1103
        %v1160 = vtanh.pop %v1104
        %v1161 = vtanh.pop %v1105
        %v1162 = vtanh.pop %v1106
        %v1163 = vtanh.pop %v1107
        %v1164 = vmul.f32 %v1141, %v929
        %v1165 = vmul.f32 %v1143, %v930
        %v1166 = vmul.f32 %v1145, %v931
        %v1167 = vmul.f32 %v1147, %v932
        %v1168 = vmul.f32 %v1149, %v933
        %v1169 = vmul.f32 %v1151, %v934
        %v1170 = vmul.f32 %v1153, %v935
        %v1171 = vmul.f32 %v1155, %v936
        %1180 = vrot.lane.b32.xlu0 %v1156, 64
        %v1181 = vpop.permute.xlu0 %1180
        %1182 = vrot.lane.b32.xlu0 %v1157, 64
        %v1183 = vpop.permute.xlu0 %1182
        %1184 = vrot.lane.b32.xlu0 %v1158, 64
        %v1185 = vpop.permute.xlu0 %1184
        %1186 = vrot.lane.b32.xlu0 %v1159, 64
        %v1187 = vpop.permute.xlu0 %1186
        %1188 = vrot.lane.b32.xlu0 %v1160, 64
        %v1189 = vpop.permute.xlu0 %1188
        %1190 = vrot.lane.b32.xlu0 %v1161, 64
        %v1191 = vpop.permute.xlu0 %1190
        %1192 = vrot.lane.b32.xlu0 %v1162, 64
        %v1193 = vpop.permute.xlu0 %1192
        %1194 = vrot.lane.b32.xlu0 %v1163, 64
        %v1195 = vpop.permute.xlu0 %1194
        %v1204 = vmul.f32 %v1141, %v1181
        %v1205 = vmul.f32 %v1143, %v1183
        %v1206 = vmul.f32 %v1145, %v1185
        %v1207 = vmul.f32 %v1147, %v1187
        %v1208 = vmul.f32 %v1149, %v1189
        %v1209 = vmul.f32 %v1151, %v1191
        %v1210 = vmul.f32 %v1153, %v1193
        %v1211 = vmul.f32 %v1155, %v1195
        %1220 = vrot.lane.b32.xlu0 %v1204, 32
        %v1221 = vpop.permute.xlu0 %1220
        %1222 = vrot.lane.b32.xlu0 %v1205, 32
        %v1223 = vpop.permute.xlu0 %1222
        %1224 = vrot.lane.b32.xlu0 %v1206, 32
        %v1225 = vpop.permute.xlu0 %1224
        %1226 = vrot.lane.b32.xlu0 %v1207, 32
        %v1227 = vpop.permute.xlu0 %1226
        %1228 = vrot.lane.b32.xlu0 %v1208, 32
        %v1229 = vpop.permute.xlu0 %1228
        %1230 = vrot.lane.b32.xlu0 %v1209, 32
        %v1231 = vpop.permute.xlu0 %1230
        %1232 = vrot.lane.b32.xlu0 %v1210, 32
        %v1233 = vpop.permute.xlu0 %1232
        %1234 = vrot.lane.b32.xlu0 %v1211, 32
        %v1235 = vpop.permute.xlu0 %1234
        %v1244 = vadd.f32 %v1164, %v1221
        %v1245 = vadd.f32 %v1165, %v1223
        %v1246 = vadd.f32 %v1166, %v1225
        %v1247 = vadd.f32 %v1167, %v1227
        %v1248 = vadd.f32 %v1168, %v1229
        %v1249 = vadd.f32 %v1169, %v1231
        %v1250 = vadd.f32 %v1170, %v1233
        %v1251 = vadd.f32 %v1171, %v1235
        %v1252 = vtanh.pop %v1244
        %v1253 = vtanh.pop %v1245
        %v1254 = vtanh.pop %v1246
        %v1255 = vtanh.pop %v1247
        %v1256 = vtanh.pop %v1248
        %v1257 = vtanh.pop %v1249
        %v1258 = vtanh.pop %v1250
        %v1259 = vtanh.pop %v1251
        %1268 = vrot.lane.b32.xlu0 %v1252, 64
        %v1269 = vpop.permute.xlu0 %1268
        %1270 = vrot.lane.b32.xlu0 %v1253, 64
        %v1271 = vpop.permute.xlu0 %1270
        %1272 = vrot.lane.b32.xlu0 %v1254, 64
        %v1273 = vpop.permute.xlu0 %1272
        %1274 = vrot.lane.b32.xlu0 %v1255, 64
        %v1275 = vpop.permute.xlu0 %1274
        %1276 = vrot.lane.b32.xlu0 %v1256, 64
        %v1277 = vpop.permute.xlu0 %1276
        %1278 = vrot.lane.b32.xlu0 %v1257, 64
        %v1279 = vpop.permute.xlu0 %1278
        %1280 = vrot.lane.b32.xlu0 %v1258, 64
        %v1281 = vpop.permute.xlu0 %1280
        %1282 = vrot.lane.b32.xlu0 %v1259, 64
        %v1283 = vpop.permute.xlu0 %1282
        %v1292 = vmul.f32 %v1141, %v1269
        %v1293 = vmul.f32 %v1143, %v1271
        %v1294 = vmul.f32 %v1145, %v1273
        %v1295 = vmul.f32 %v1147, %v1275
        %v1296 = vmul.f32 %v1149, %v1277
        %v1297 = vmul.f32 %v1151, %v1279
        %v1298 = vmul.f32 %v1153, %v1281
        %v1299 = vmul.f32 %v1155, %v1283
        %v1300 = vld [vmem:[#allocation2 + $0x2] sm:$0x1]
        %v1301 = vld [vmem:[#allocation2 + $0x12] sm:$0x1]
        %v1302 = vld [vmem:[#allocation2 + $0x22] sm:$0x1]
        %v1303 = vld [vmem:[#allocation2 + $0x32] sm:$0x1]
        %v1304 = vld [vmem:[#allocation2 + $0x42] sm:$0x1]
        %v1305 = vld [vmem:[#allocation2 + $0x52] sm:$0x1]
        %v1306 = vld [vmem:[#allocation2 + $0x62] sm:$0x1]
        %v1307 = vld [vmem:[#allocation2 + $0x72] sm:$0x1]
        %v1308 = vpack.c.bf16 %v1292, %v1292
        %v1309 = vpack.c.bf16 %v1293, %v1293
        %v1310 = vpack.c.bf16 %v1294, %v1294
        %v1311 = vpack.c.bf16 %v1295, %v1295
        %v1312 = vpack.c.bf16 %v1296, %v1296
        %v1313 = vpack.c.bf16 %v1297, %v1297
        %v1314 = vpack.c.bf16 %v1298, %v1298
        %v1315 = vpack.c.bf16 %v1299, %v1299
        %v1324 = vunpack.c.l.b16 %v1308
        %v1325 = vunpack.c.l.b16 %v1309
        %v1326 = vunpack.c.l.b16 %v1310
        %v1327 = vunpack.c.l.b16 %v1311
        %v1328 = vunpack.c.l.b16 %v1312
        %v1329 = vunpack.c.l.b16 %v1313
        %v1330 = vunpack.c.l.b16 %v1314
        %v1331 = vunpack.c.l.b16 %v1315
        %v1332 = vrot.slane %v1325, 7
        %v1333 = vsel %vm1018, %v1332, %v1324
        %v1334 = vrot.slane %v1326, 6
        %v1335 = vsel %vm1021, %v1334, %v1333
        %v1336 = vrot.slane %v1327, 5
        %v1337 = vsel %vm1024, %v1336, %v1335
        %v1338 = vrot.slane %v1328, 4
        %v1339 = vsel %vm1027, %v1338, %v1337
        %v1340 = vrot.slane %v1329, 3
        %v1341 = vsel %vm1030, %v1340, %v1339
        %v1342 = vrot.slane %v1330, 2
        %v1343 = vsel %vm1033, %v1342, %v1341
        %v1344 = vrot.slane %v1331, 1
        %v1345 = vsel %vm1036, %v1344, %v1343
        %v1346 = vpack.c.b16 %v1345, %v1345
        %1347 = vrot.lane.b32.xlu0 %v1346, 32
        %v1348 = vpop.permute.xlu0 %1347
        %v1350 = vsel %vm725, %v1348, 0
        %1352 = vmatprep.subr.bf16.mxu0 0
        %1353 = vmatpush1.bf16.msra.mxu0 %v721
        %1354 = vmatprep.subr.bf16.mxu0 0
        %1355 = vmatpush1.bf16.msra.mxu0 %v722
        %1356 = vmatprep.subr.bf16.mxu0 0
        %1357 = vmatpush1.bf16.msra.mxu0 0
        %1358 = vmatprep.subr.bf16.mxu0 0
        %1359 = vmatpush1.bf16.msra.mxu0 0
        %1360 = vmatprep.subr.bf16.mxu0 0
        %1361 = vmatpush1.bf16.msra.mxu0 0
        %1362 = vmatprep.subr.bf16.mxu0 0
        %1363 = vmatpush1.bf16.msra.mxu0 0
        %1364 = vmatprep.subr.bf16.mxu0 0
        %1365 = vmatpush1.bf16.msra.mxu0 0
        %1366 = vmatprep.subr.bf16.mxu0 0
        %1367 = vmatpush1.bf16.msra.mxu0 0
        %1368 = vmatprep.subr.bf16.mxu0 0
        %1369 = vmatpush1.bf16.msra.mxu0 0
        %1370 = vmatprep.subr.bf16.mxu0 0
        %1371 = vmatpush1.bf16.msra.mxu0 0
        %1372 = vmatprep.subr.bf16.mxu0 0
        %1373 = vmatpush1.bf16.msra.mxu0 0
        %1374 = vmatprep.subr.bf16.mxu0 0
        %1375 = vmatpush1.bf16.msra.mxu0 0
        %1376 = vmatprep.subr.bf16.mxu0 0
        %1377 = vmatpush1.bf16.msra.mxu0 0
        %1378 = vmatprep.subr.bf16.mxu0 0
        %1379 = vmatpush1.bf16.msra.mxu0 0
        %1380 = vmatprep.subr.bf16.mxu0 0
        %1381 = vmatpush1.bf16.msra.mxu0 0
        %1382 = vmatprep.subr.bf16.mxu0 0
        %1383 = vmatpush1.bf16.msra.mxu0 0
        %1384 = vmatprep.mubr.bf16.mxu0 0
        %1385 = vmatmul.mubr.bf16.gmra.mrb[0].mxu0 %v1350
        %v1386 = vpop.f32.mrb[0].mxu0
        %v1387 = vadd.f32 0.0, %v1386
        %v1388 = vpop.f32.mrb[0].mxu0
        %v1389 = vpop.f32.mrb[0].mxu0
        %v1390 = vpop.f32.mrb[0].mxu0
        %1391 = vdwg.mxu0
        %v1393 = vrot.slane %v1387, 1
        %v1394 = vrot.slane %v1387, 2
        %v1395 = vrot.slane %v1387, 3
        %v1396 = vrot.slane %v1387, 4
        %v1397 = vrot.slane %v1387, 5
        %v1398 = vrot.slane %v1387, 6
        %v1399 = vrot.slane %v1387, 7
        %v1408 = vadd.f32 %v1300, %v1387
        %v1409 = vadd.f32 %v1301, %v1393
        %v1410 = vadd.f32 %v1302, %v1394
        %v1411 = vadd.f32 %v1303, %v1395
        %v1412 = vadd.f32 %v1304, %v1396
        %v1413 = vadd.f32 %v1305, %v1397
        %v1414 = vadd.f32 %v1306, %v1398
        %v1415 = vadd.f32 %v1307, %v1399
        %v1416 = vxor.u32 %v1408, 2147483648
        %v1417 = vxor.u32 %v1409, 2147483648
        %v1418 = vxor.u32 %v1410, 2147483648
        %v1419 = vxor.u32 %v1411, 2147483648
        %v1420 = vxor.u32 %v1412, 2147483648
        %v1421 = vxor.u32 %v1413, 2147483648
        %v1422 = vxor.u32 %v1414, 2147483648
        %v1423 = vxor.u32 %v1415, 2147483648
        %v1424 = vmul.f32 %v1416, 1.442695
        %v1425 = vpow.pop %v1424
        %v1426 = vmul.f32 %v1417, 1.442695
        %v1427 = vpow.pop %v1426
        %v1428 = vmul.f32 %v1418, 1.442695
        %v1429 = vpow.pop %v1428
        %v1430 = vmul.f32 %v1419, 1.442695
        %v1431 = vpow.pop %v1430
        %v1432 = vmul.f32 %v1420, 1.442695
        %v1433 = vpow.pop %v1432
        %v1434 = vmul.f32 %v1421, 1.442695
        %v1435 = vpow.pop %v1434
        %v1436 = vmul.f32 %v1422, 1.442695
        %v1437 = vpow.pop %v1436
        %v1438 = vmul.f32 %v1423, 1.442695
        %v1439 = vpow.pop %v1438
        %v1440 = vadd.f32 %v1425, 1.0
        %v1441 = vadd.f32 %v1427, 1.0
        %v1442 = vadd.f32 %v1429, 1.0
        %v1443 = vadd.f32 %v1431, 1.0
        %v1444 = vadd.f32 %v1433, 1.0
        %v1445 = vadd.f32 %v1435, 1.0
        %v1446 = vadd.f32 %v1437, 1.0
        %v1447 = vadd.f32 %v1439, 1.0
        %v1448 = vrcp.pop %v1440
        %v1449 = vmul.f32 1.0, %v1448
        %v1450 = vrcp.pop %v1441
        %v1451 = vmul.f32 1.0, %v1450
        %v1452 = vrcp.pop %v1442
        %v1453 = vmul.f32 1.0, %v1452
        %v1454 = vrcp.pop %v1443
        %v1455 = vmul.f32 1.0, %v1454
        %v1456 = vrcp.pop %v1444
        %v1457 = vmul.f32 1.0, %v1456
        %v1458 = vrcp.pop %v1445
        %v1459 = vmul.f32 1.0, %v1458
        %v1460 = vrcp.pop %v1446
        %v1461 = vmul.f32 1.0, %v1460
        %v1462 = vrcp.pop %v1447
        %v1463 = vmul.f32 1.0, %v1462
        %v1464 = vtanh.pop %v1408
        %v1465 = vtanh.pop %v1409
        %v1466 = vtanh.pop %v1410
        %v1467 = vtanh.pop %v1411
        %v1468 = vtanh.pop %v1412
        %v1469 = vtanh.pop %v1413
        %v1470 = vtanh.pop %v1414
        %v1471 = vtanh.pop %v1415
        %v1472 = vmul.f32 %v1449, %v1244
        %v1473 = vmul.f32 %v1451, %v1245
        %v1474 = vmul.f32 %v1453, %v1246
        %v1475 = vmul.f32 %v1455, %v1247
        %v1476 = vmul.f32 %v1457, %v1248
        %v1477 = vmul.f32 %v1459, %v1249
        %v1478 = vmul.f32 %v1461, %v1250
        %v1479 = vmul.f32 %v1463, %v1251
        %1488 = vrot.lane.b32.xlu0 %v1464, 64
        %v1489 = vpop.permute.xlu0 %1488
        %1490 = vrot.lane.b32.xlu0 %v1465, 64
        %v1491 = vpop.permute.xlu0 %1490
        %1492 = vrot.lane.b32.xlu0 %v1466, 64
        %v1493 = vpop.permute.xlu0 %1492
        %1494 = vrot.lane.b32.xlu0 %v1467, 64
        %v1495 = vpop.permute.xlu0 %1494
        %1496 = vrot.lane.b32.xlu0 %v1468, 64
        %v1497 = vpop.permute.xlu0 %1496
        %1498 = vrot.lane.b32.xlu0 %v1469, 64
        %v1499 = vpop.permute.xlu0 %1498
        %1500 = vrot.lane.b32.xlu0 %v1470, 64
        %v1501 = vpop.permute.xlu0 %1500
        %1502 = vrot.lane.b32.xlu0 %v1471, 64
        %v1503 = vpop.permute.xlu0 %1502
        %v1512 = vmul.f32 %v1449, %v1489
        %v1513 = vmul.f32 %v1451, %v1491
        %v1514 = vmul.f32 %v1453, %v1493
        %v1515 = vmul.f32 %v1455, %v1495
        %v1516 = vmul.f32 %v1457, %v1497
        %v1517 = vmul.f32 %v1459, %v1499
        %v1518 = vmul.f32 %v1461, %v1501
        %v1519 = vmul.f32 %v1463, %v1503
        %1528 = vrot.lane.b32.xlu0 %v1512, 32
        %v1529 = vpop.permute.xlu0 %1528
        %1530 = vrot.lane.b32.xlu0 %v1513, 32
        %v1531 = vpop.permute.xlu0 %1530
        %1532 = vrot.lane.b32.xlu0 %v1514, 32
        %v1533 = vpop.permute.xlu0 %1532
        %1534 = vrot.lane.b32.xlu0 %v1515, 32
        %v1535 = vpop.permute.xlu0 %1534
        %1536 = vrot.lane.b32.xlu0 %v1516, 32
        %v1537 = vpop.permute.xlu0 %1536
        %1538 = vrot.lane.b32.xlu0 %v1517, 32
        %v1539 = vpop.permute.xlu0 %1538
        %1540 = vrot.lane.b32.xlu0 %v1518, 32
        %v1541 = vpop.permute.xlu0 %1540
        %1542 = vrot.lane.b32.xlu0 %v1519, 32
        %v1543 = vpop.permute.xlu0 %1542
        %v1552 = vadd.f32 %v1472, %v1529
        %v1553 = vadd.f32 %v1473, %v1531
        %v1554 = vadd.f32 %v1474, %v1533
        %v1555 = vadd.f32 %v1475, %v1535
        %v1556 = vadd.f32 %v1476, %v1537
        %v1557 = vadd.f32 %v1477, %v1539
        %v1558 = vadd.f32 %v1478, %v1541
        %v1559 = vadd.f32 %v1479, %v1543
        %v1560 = vtanh.pop %v1552
        %v1561 = vtanh.pop %v1553
        %v1562 = vtanh.pop %v1554
        %v1563 = vtanh.pop %v1555
        %v1564 = vtanh.pop %v1556
        %v1565 = vtanh.pop %v1557
        %v1566 = vtanh.pop %v1558
        %v1567 = vtanh.pop %v1559
        %1576 = vrot.lane.b32.xlu0 %v1560, 64
        %v1577 = vpop.permute.xlu0 %1576
        %1578 = vrot.lane.b32.xlu0 %v1561, 64
        %v1579 = vpop.permute.xlu0 %1578
        %1580 = vrot.lane.b32.xlu0 %v1562, 64
        %v1581 = vpop.permute.xlu0 %1580
        %1582 = vrot.lane.b32.xlu0 %v1563, 64
        %v1583 = vpop.permute.xlu0 %1582
        %1584 = vrot.lane.b32.xlu0 %v1564, 64
        %v1585 = vpop.permute.xlu0 %1584
        %1586 = vrot.lane.b32.xlu0 %v1565, 64
        %v1587 = vpop.permute.xlu0 %1586
        %1588 = vrot.lane.b32.xlu0 %v1566, 64
        %v1589 = vpop.permute.xlu0 %1588
        %1590 = vrot.lane.b32.xlu0 %v1567, 64
        %v1591 = vpop.permute.xlu0 %1590
        %v1600 = vmul.f32 %v1449, %v1577
        %v1601 = vmul.f32 %v1451, %v1579
        %v1602 = vmul.f32 %v1453, %v1581
        %v1603 = vmul.f32 %v1455, %v1583
        %v1604 = vmul.f32 %v1457, %v1585
        %v1605 = vmul.f32 %v1459, %v1587
        %v1606 = vmul.f32 %v1461, %v1589
        %v1607 = vmul.f32 %v1463, %v1591
        %v1608 = vld [vmem:[#allocation2 + $0x3] sm:$0x1]
        %v1609 = vld [vmem:[#allocation2 + $0x13] sm:$0x1]
        %v1610 = vld [vmem:[#allocation2 + $0x23] sm:$0x1]
        %v1611 = vld [vmem:[#allocation2 + $0x33] sm:$0x1]
        %v1612 = vld [vmem:[#allocation2 + $0x43] sm:$0x1]
        %v1613 = vld [vmem:[#allocation2 + $0x53] sm:$0x1]
        %v1614 = vld [vmem:[#allocation2 + $0x63] sm:$0x1]
        %v1615 = vld [vmem:[#allocation2 + $0x73] sm:$0x1]
        %v1616 = vpack.c.bf16 %v1600, %v1600
        %v1617 = vpack.c.bf16 %v1601, %v1601
        %v1618 = vpack.c.bf16 %v1602, %v1602
        %v1619 = vpack.c.bf16 %v1603, %v1603
        %v1620 = vpack.c.bf16 %v1604, %v1604
        %v1621 = vpack.c.bf16 %v1605, %v1605
        %v1622 = vpack.c.bf16 %v1606, %v1606
        %v1623 = vpack.c.bf16 %v1607, %v1607
        %v1632 = vunpack.c.l.b16 %v1616
        %v1633 = vunpack.c.l.b16 %v1617
        %v1634 = vunpack.c.l.b16 %v1618
        %v1635 = vunpack.c.l.b16 %v1619
        %v1636 = vunpack.c.l.b16 %v1620
        %v1637 = vunpack.c.l.b16 %v1621
        %v1638 = vunpack.c.l.b16 %v1622
        %v1639 = vunpack.c.l.b16 %v1623
        %v1640 = vrot.slane %v1633, 7
        %v1641 = vsel %vm1018, %v1640, %v1632
        %v1642 = vrot.slane %v1634, 6
        %v1643 = vsel %vm1021, %v1642, %v1641
        %v1644 = vrot.slane %v1635, 5
        %v1645 = vsel %vm1024, %v1644, %v1643
        %v1646 = vrot.slane %v1636, 4
        %v1647 = vsel %vm1027, %v1646, %v1645
        %v1648 = vrot.slane %v1637, 3
        %v1649 = vsel %vm1030, %v1648, %v1647
        %v1650 = vrot.slane %v1638, 2
        %v1651 = vsel %vm1033, %v1650, %v1649
        %v1652 = vrot.slane %v1639, 1
        %v1653 = vsel %vm1036, %v1652, %v1651
        %v1654 = vpack.c.b16 %v1653, %v1653
        %1655 = vrot.lane.b32.xlu0 %v1654, 32
        %v1656 = vpop.permute.xlu0 %1655
        %v1658 = vsel %vm725, %v1656, 0
        %1660 = vmatprep.subr.bf16.mxu0 0
        %1661 = vmatpush1.bf16.msra.mxu0 %v721
        %1662 = vmatprep.subr.bf16.mxu0 0
        %1663 = vmatpush1.bf16.msra.mxu0 %v722
        %1664 = vmatprep.subr.bf16.mxu0 0
        %1665 = vmatpush1.bf16.msra.mxu0 0
        %1666 = vmatprep.subr.bf16.mxu0 0
        %1667 = vmatpush1.bf16.msra.mxu0 0
        %1668 = vmatprep.subr.bf16.mxu0 0
        %1669 = vmatpush1.bf16.msra.mxu0 0
        %1670 = vmatprep.subr.bf16.mxu0 0
        %1671 = vmatpush1.bf16.msra.mxu0 0
        %1672 = vmatprep.subr.bf16.mxu0 0
        %1673 = vmatpush1.bf16.msra.mxu0 0
        %1674 = vmatprep.subr.bf16.mxu0 0
        %1675 = vmatpush1.bf16.msra.mxu0 0
        %1676 = vmatprep.subr.bf16.mxu0 0
        %1677 = vmatpush1.bf16.msra.mxu0 0
        %1678 = vmatprep.subr.bf16.mxu0 0
        %1679 = vmatpush1.bf16.msra.mxu0 0
        %1680 = vmatprep.subr.bf16.mxu0 0
        %1681 = vmatpush1.bf16.msra.mxu0 0
        %1682 = vmatprep.subr.bf16.mxu0 0
        %1683 = vmatpush1.bf16.msra.mxu0 0
        %1684 = vmatprep.subr.bf16.mxu0 0
        %1685 = vmatpush1.bf16.msra.mxu0 0
        %1686 = vmatprep.subr.bf16.mxu0 0
        %1687 = vmatpush1.bf16.msra.mxu0 0
        %1688 = vmatprep.subr.bf16.mxu0 0
        %1689 = vmatpush1.bf16.msra.mxu0 0
        %1690 = vmatprep.subr.bf16.mxu0 0
        %1691 = vmatpush1.bf16.msra.mxu0 0
        %1692 = vmatprep.mubr.bf16.mxu0 0
        %1693 = vmatmul.mubr.bf16.gmra.mrb[0].mxu0 %v1658
        %v1694 = vpop.f32.mrb[0].mxu0
        %v1695 = vadd.f32 0.0, %v1694
        %v1696 = vpop.f32.mrb[0].mxu0
        %v1697 = vpop.f32.mrb[0].mxu0
        %v1698 = vpop.f32.mrb[0].mxu0
        %1699 = vdwg.mxu0
        %v1701 = vrot.slane %v1695, 1
        %v1702 = vrot.slane %v1695, 2
        %v1703 = vrot.slane %v1695, 3
        %v1704 = vrot.slane %v1695, 4
        %v1705 = vrot.slane %v1695, 5
        %v1706 = vrot.slane %v1695, 6
        %v1707 = vrot.slane %v1695, 7
        %v1716 = vadd.f32 %v1608, %v1695
        %v1717 = vadd.f32 %v1609, %v1701
        %v1718 = vadd.f32 %v1610, %v1702
        %v1719 = vadd.f32 %v1611, %v1703
        %v1720 = vadd.f32 %v1612, %v1704
        %v1721 = vadd.f32 %v1613, %v1705
        %v1722 = vadd.f32 %v1614, %v1706
        %v1723 = vadd.f32 %v1615, %v1707
        %v1724 = vxor.u32 %v1716, 2147483648
        %v1725 = vxor.u32 %v1717, 2147483648
        %v1726 = vxor.u32 %v1718, 2147483648
        %v1727 = vxor.u32 %v1719, 2147483648
        %v1728 = vxor.u32 %v1720, 2147483648
        %v1729 = vxor.u32 %v1721, 2147483648
        %v1730 = vxor.u32 %v1722, 2147483648
        %v1731 = vxor.u32 %v1723, 2147483648
        %v1732 = vmul.f32 %v1724, 1.442695
        %v1733 = vpow.pop %v1732
        %v1734 = vmul.f32 %v1725, 1.442695
        %v1735 = vpow.pop %v1734
        %v1736 = vmul.f32 %v1726, 1.442695
        %v1737 = vpow.pop %v1736
        %v1738 = vmul.f32 %v1727, 1.442695
        %v1739 = vpow.pop %v1738
        %v1740 = vmul.f32 %v1728, 1.442695
        %v1741 = vpow.pop %v1740
        %v1742 = vmul.f32 %v1729, 1.442695
        %v1743 = vpow.pop %v1742
        %v1744 = vmul.f32 %v1730, 1.442695
        %v1745 = vpow.pop %v1744
        %v1746 = vmul.f32 %v1731, 1.442695
        %v1747 = vpow.pop %v1746
        %v1748 = vadd.f32 %v1733, 1.0
        %v1749 = vadd.f32 %v1735, 1.0
        %v1750 = vadd.f32 %v1737, 1.0
        %v1751 = vadd.f32 %v1739, 1.0
        %v1752 = vadd.f32 %v1741, 1.0
        %v1753 = vadd.f32 %v1743, 1.0
        %v1754 = vadd.f32 %v1745, 1.0
        %v1755 = vadd.f32 %v1747, 1.0
        %v1756 = vrcp.pop %v1748
        %v1757 = vmul.f32 1.0, %v1756
        %v1758 = vrcp.pop %v1749
        %v1759 = vmul.f32 1.0, %v1758
        %v1760 = vrcp.pop %v1750
        %v1761 = vmul.f32 1.0, %v1760
        %v1762 = vrcp.pop %v1751
        %v1763 = vmul.f32 1.0, %v1762
        %v1764 = vrcp.pop %v1752
        %v1765 = vmul.f32 1.0, %v1764
        %v1766 = vrcp.pop %v1753
        %v1767 = vmul.f32 1.0, %v1766
        %v1768 = vrcp.pop %v1754
        %v1769 = vmul.f32 1.0, %v1768
        %v1770 = vrcp.pop %v1755
        %v1771 = vmul.f32 1.0, %v1770
        %v1772 = vtanh.pop %v1716
        %v1773 = vtanh.pop %v1717
        %v1774 = vtanh.pop %v1718
        %v1775 = vtanh.pop %v1719
        %v1776 = vtanh.pop %v1720
        %v1777 = vtanh.pop %v1721
        %v1778 = vtanh.pop %v1722
        %v1779 = vtanh.pop %v1723
        %v1780 = vmul.f32 %v1757, %v1552
        %v1781 = vmul.f32 %v1759, %v1553
        %v1782 = vmul.f32 %v1761, %v1554
        %v1783 = vmul.f32 %v1763, %v1555
        %v1784 = vmul.f32 %v1765, %v1556
        %v1785 = vmul.f32 %v1767, %v1557
        %v1786 = vmul.f32 %v1769, %v1558
        %v1787 = vmul.f32 %v1771, %v1559
        %1796 = vrot.lane.b32.xlu0 %v1772, 64
        %v1797 = vpop.permute.xlu0 %1796
        %1798 = vrot.lane.b32.xlu0 %v1773, 64
        %v1799 = vpop.permute.xlu0 %1798
        %1800 = vrot.lane.b32.xlu0 %v1774, 64
        %v1801 = vpop.permute.xlu0 %1800
        %1802 = vrot.lane.b32.xlu0 %v1775, 64
        %v1803 = vpop.permute.xlu0 %1802
        %1804 = vrot.lane.b32.xlu0 %v1776, 64
        %v1805 = vpop.permute.xlu0 %1804
        %1806 = vrot.lane.b32.xlu0 %v1777, 64
        %v1807 = vpop.permute.xlu0 %1806
        %1808 = vrot.lane.b32.xlu0 %v1778, 64
        %v1809 = vpop.permute.xlu0 %1808
        %1810 = vrot.lane.b32.xlu0 %v1779, 64
        %v1811 = vpop.permute.xlu0 %1810
        %v1820 = vmul.f32 %v1757, %v1797
        %v1821 = vmul.f32 %v1759, %v1799
        %v1822 = vmul.f32 %v1761, %v1801
        %v1823 = vmul.f32 %v1763, %v1803
        %v1824 = vmul.f32 %v1765, %v1805
        %v1825 = vmul.f32 %v1767, %v1807
        %v1826 = vmul.f32 %v1769, %v1809
        %v1827 = vmul.f32 %v1771, %v1811
        %1836 = vrot.lane.b32.xlu0 %v1820, 32
        %v1837 = vpop.permute.xlu0 %1836
        %1838 = vrot.lane.b32.xlu0 %v1821, 32
        %v1839 = vpop.permute.xlu0 %1838
        %1840 = vrot.lane.b32.xlu0 %v1822, 32
        %v1841 = vpop.permute.xlu0 %1840
        %1842 = vrot.lane.b32.xlu0 %v1823, 32
        %v1843 = vpop.permute.xlu0 %1842
        %1844 = vrot.lane.b32.xlu0 %v1824, 32
        %v1845 = vpop.permute.xlu0 %1844
        %1846 = vrot.lane.b32.xlu0 %v1825, 32
        %v1847 = vpop.permute.xlu0 %1846
        %1848 = vrot.lane.b32.xlu0 %v1826, 32
        %v1849 = vpop.permute.xlu0 %1848
        %1850 = vrot.lane.b32.xlu0 %v1827, 32
        %v1851 = vpop.permute.xlu0 %1850
        %v1860 = vadd.f32 %v1780, %v1837
        %v1861 = vadd.f32 %v1781, %v1839
        %v1862 = vadd.f32 %v1782, %v1841
        %v1863 = vadd.f32 %v1783, %v1843
        %v1864 = vadd.f32 %v1784, %v1845
        %v1865 = vadd.f32 %v1785, %v1847
        %v1866 = vadd.f32 %v1786, %v1849
        %v1867 = vadd.f32 %v1787, %v1851
        %v1868 = vtanh.pop %v1860
        %v1869 = vtanh.pop %v1861
        %v1870 = vtanh.pop %v1862
        %v1871 = vtanh.pop %v1863
        %v1872 = vtanh.pop %v1864
        %v1873 = vtanh.pop %v1865
        %v1874 = vtanh.pop %v1866
        %v1875 = vtanh.pop %v1867
        %1884 = vrot.lane.b32.xlu0 %v1868, 64
        %v1885 = vpop.permute.xlu0 %1884
        %1886 = vrot.lane.b32.xlu0 %v1869, 64
        %v1887 = vpop.permute.xlu0 %1886
        %1888 = vrot.lane.b32.xlu0 %v1870, 64
        %v1889 = vpop.permute.xlu0 %1888
        %1890 = vrot.lane.b32.xlu0 %v1871, 64
        %v1891 = vpop.permute.xlu0 %1890
        %1892 = vrot.lane.b32.xlu0 %v1872, 64
        %v1893 = vpop.permute.xlu0 %1892
        %1894 = vrot.lane.b32.xlu0 %v1873, 64
        %v1895 = vpop.permute.xlu0 %1894
        %1896 = vrot.lane.b32.xlu0 %v1874, 64
        %v1897 = vpop.permute.xlu0 %1896
        %1898 = vrot.lane.b32.xlu0 %v1875, 64
        %v1899 = vpop.permute.xlu0 %1898
        %v1908 = vmul.f32 %v1757, %v1885
        %v1909 = vmul.f32 %v1759, %v1887
        %v1910 = vmul.f32 %v1761, %v1889
        %v1911 = vmul.f32 %v1763, %v1891
        %v1912 = vmul.f32 %v1765, %v1893
        %v1913 = vmul.f32 %v1767, %v1895
        %v1914 = vmul.f32 %v1769, %v1897
        %v1915 = vmul.f32 %v1771, %v1899
        %v1916 = vld [vmem:[#allocation2 + $0x4] sm:$0x1]
        %v1917 = vld [vmem:[#allocation2 + $0x14] sm:$0x1]
        %v1918 = vld [vmem:[#allocation2 + $0x24] sm:$0x1]
        %v1919 = vld [vmem:[#allocation2 + $0x34] sm:$0x1]
        %v1920 = vld [vmem:[#allocation2 + $0x44] sm:$0x1]
        %v1921 = vld [vmem:[#allocation2 + $0x54] sm:$0x1]
        %v1922 = vld [vmem:[#allocation2 + $0x64] sm:$0x1]
        %v1923 = vld [vmem:[#allocation2 + $0x74] sm:$0x1]
        %v1924 = vpack.c.bf16 %v1908, %v1908
        %v1925 = vpack.c.bf16 %v1909, %v1909
        %v1926 = vpack.c.bf16 %v1910, %v1910
        %v1927 = vpack.c.bf16 %v1911, %v1911
        %v1928 = vpack.c.bf16 %v1912, %v1912
        %v1929 = vpack.c.bf16 %v1913, %v1913
        %v1930 = vpack.c.bf16 %v1914, %v1914
        %v1931 = vpack.c.bf16 %v1915, %v1915
        %v1940 = vunpack.c.l.b16 %v1924
        %v1941 = vunpack.c.l.b16 %v1925
        %v1942 = vunpack.c.l.b16 %v1926
        %v1943 = vunpack.c.l.b16 %v1927
        %v1944 = vunpack.c.l.b16 %v1928
        %v1945 = vunpack.c.l.b16 %v1929
        %v1946 = vunpack.c.l.b16 %v1930
        %v1947 = vunpack.c.l.b16 %v1931
        %v1948 = vrot.slane %v1941, 7
        %v1949 = vsel %vm1018, %v1948, %v1940
        %v1950 = vrot.slane %v1942, 6
        %v1951 = vsel %vm1021, %v1950, %v1949
        %v1952 = vrot.slane %v1943, 5
        %v1953 = vsel %vm1024, %v1952, %v1951
        %v1954 = vrot.slane %v1944, 4
        %v1955 = vsel %vm1027, %v1954, %v1953
        %v1956 = vrot.slane %v1945, 3
        %v1957 = vsel %vm1030, %v1956, %v1955
        %v1958 = vrot.slane %v1946, 2
        %v1959 = vsel %vm1033, %v1958, %v1957
        %v1960 = vrot.slane %v1947, 1
        %v1961 = vsel %vm1036, %v1960, %v1959
        %v1962 = vpack.c.b16 %v1961, %v1961
        %1963 = vrot.lane.b32.xlu0 %v1962, 32
        %v1964 = vpop.permute.xlu0 %1963
        %v1966 = vsel %vm725, %v1964, 0
        %1968 = vmatprep.subr.bf16.mxu0 0
        %1969 = vmatpush1.bf16.msra.mxu0 %v721
        %1970 = vmatprep.subr.bf16.mxu0 0
        %1971 = vmatpush1.bf16.msra.mxu0 %v722
        %1972 = vmatprep.subr.bf16.mxu0 0
        %1973 = vmatpush1.bf16.msra.mxu0 0
        %1974 = vmatprep.subr.bf16.mxu0 0
        %1975 = vmatpush1.bf16.msra.mxu0 0
        %1976 = vmatprep.subr.bf16.mxu0 0
        %1977 = vmatpush1.bf16.msra.mxu0 0
        %1978 = vmatprep.subr.bf16.mxu0 0
        %1979 = vmatpush1.bf16.msra.mxu0 0
        %1980 = vmatprep.subr.bf16.mxu0 0
        %1981 = vmatpush1.bf16.msra.mxu0 0
        %1982 = vmatprep.subr.bf16.mxu0 0
        %1983 = vmatpush1.bf16.msra.mxu0 0
        %1984 = vmatprep.subr.bf16.mxu0 0
        %1985 = vmatpush1.bf16.msra.mxu0 0
        %1986 = vmatprep.subr.bf16.mxu0 0
        %1987 = vmatpush1.bf16.msra.mxu0 0
        %1988 = vmatprep.subr.bf16.mxu0 0
        %1989 = vmatpush1.bf16.msra.mxu0 0
        %1990 = vmatprep.subr.bf16.mxu0 0
        %1991 = vmatpush1.bf16.msra.mxu0 0
        %1992 = vmatprep.subr.bf16.mxu0 0
        %1993 = vmatpush1.bf16.msra.mxu0 0
        %1994 = vmatprep.subr.bf16.mxu0 0
        %1995 = vmatpush1.bf16.msra.mxu0 0
        %1996 = vmatprep.subr.bf16.mxu0 0
        %1997 = vmatpush1.bf16.msra.mxu0 0
        %1998 = vmatprep.subr.bf16.mxu0 0
        %1999 = vmatpush1.bf16.msra.mxu0 0
        %2000 = vmatprep.mubr.bf16.mxu0 0
        %2001 = vmatmul.mubr.bf16.gmra.mrb[0].mxu0 %v1966
        %v2002 = vpop.f32.mrb[0].mxu0
        %v2003 = vadd.f32 0.0, %v2002
        %v2004 = vpop.f32.mrb[0].mxu0
        %v2005 = vpop.f32.mrb[0].mxu0
        %v2006 = vpop.f32.mrb[0].mxu0
        %2007 = vdwg.mxu0
        %v2009 = vrot.slane %v2003, 1
        %v2010 = vrot.slane %v2003, 2
        %v2011 = vrot.slane %v2003, 3
        %v2012 = vrot.slane %v2003, 4
        %v2013 = vrot.slane %v2003, 5
        %v2014 = vrot.slane %v2003, 6
        %v2015 = vrot.slane %v2003, 7
        %v2024 = vadd.f32 %v1916, %v2003
        %v2025 = vadd.f32 %v1917, %v2009
        %v2026 = vadd.f32 %v1918, %v2010
        %v2027 = vadd.f32 %v1919, %v2011
        %v2028 = vadd.f32 %v1920, %v2012
        %v2029 = vadd.f32 %v1921, %v2013
        %v2030 = vadd.f32 %v1922, %v2014
        %v2031 = vadd.f32 %v1923, %v2015
        %v2032 = vxor.u32 %v2024, 2147483648
        %v2033 = vxor.u32 %v2025, 2147483648
        %v2034 = vxor.u32 %v2026, 2147483648
        %v2035 = vxor.u32 %v2027, 2147483648
        %v2036 = vxor.u32 %v2028, 2147483648
        %v2037 = vxor.u32 %v2029, 2147483648
        %v2038 = vxor.u32 %v2030, 2147483648
        %v2039 = vxor.u32 %v2031, 2147483648
        %v2040 = vmul.f32 %v2032, 1.442695
        %v2041 = vpow.pop %v2040
        %v2042 = vmul.f32 %v2033, 1.442695
        %v2043 = vpow.pop %v2042
        %v2044 = vmul.f32 %v2034, 1.442695
        %v2045 = vpow.pop %v2044
        %v2046 = vmul.f32 %v2035, 1.442695
        %v2047 = vpow.pop %v2046
        %v2048 = vmul.f32 %v2036, 1.442695
        %v2049 = vpow.pop %v2048
        %v2050 = vmul.f32 %v2037, 1.442695
        %v2051 = vpow.pop %v2050
        %v2052 = vmul.f32 %v2038, 1.442695
        %v2053 = vpow.pop %v2052
        %v2054 = vmul.f32 %v2039, 1.442695
        %v2055 = vpow.pop %v2054
        %v2056 = vadd.f32 %v2041, 1.0
        %v2057 = vadd.f32 %v2043, 1.0
        %v2058 = vadd.f32 %v2045, 1.0
        %v2059 = vadd.f32 %v2047, 1.0
        %v2060 = vadd.f32 %v2049, 1.0
        %v2061 = vadd.f32 %v2051, 1.0
        %v2062 = vadd.f32 %v2053, 1.0
        %v2063 = vadd.f32 %v2055, 1.0
        %v2064 = vrcp.pop %v2056
        %v2065 = vmul.f32 1.0, %v2064
        %v2066 = vrcp.pop %v2057
        %v2067 = vmul.f32 1.0, %v2066
        %v2068 = vrcp.pop %v2058
        %v2069 = vmul.f32 1.0, %v2068
        %v2070 = vrcp.pop %v2059
        %v2071 = vmul.f32 1.0, %v2070
        %v2072 = vrcp.pop %v2060
        %v2073 = vmul.f32 1.0, %v2072
        %v2074 = vrcp.pop %v2061
        %v2075 = vmul.f32 1.0, %v2074
        %v2076 = vrcp.pop %v2062
        %v2077 = vmul.f32 1.0, %v2076
        %v2078 = vrcp.pop %v2063
        %v2079 = vmul.f32 1.0, %v2078
        %v2080 = vtanh.pop %v2024
        %v2081 = vtanh.pop %v2025
        %v2082 = vtanh.pop %v2026
        %v2083 = vtanh.pop %v2027
        %v2084 = vtanh.pop %v2028
        %v2085 = vtanh.pop %v2029
        %v2086 = vtanh.pop %v2030
        %v2087 = vtanh.pop %v2031
        %v2088 = vmul.f32 %v2065, %v1860
        %v2089 = vmul.f32 %v2067, %v1861
        %v2090 = vmul.f32 %v2069, %v1862
        %v2091 = vmul.f32 %v2071, %v1863
        %v2092 = vmul.f32 %v2073, %v1864
        %v2093 = vmul.f32 %v2075, %v1865
        %v2094 = vmul.f32 %v2077, %v1866
        %v2095 = vmul.f32 %v2079, %v1867
        %2104 = vrot.lane.b32.xlu0 %v2080, 64
        %v2105 = vpop.permute.xlu0 %2104
        %2106 = vrot.lane.b32.xlu0 %v2081, 64
        %v2107 = vpop.permute.xlu0 %2106
        %2108 = vrot.lane.b32.xlu0 %v2082, 64
        %v2109 = vpop.permute.xlu0 %2108
        %2110 = vrot.lane.b32.xlu0 %v2083, 64
        %v2111 = vpop.permute.xlu0 %2110
        %2112 = vrot.lane.b32.xlu0 %v2084, 64
        %v2113 = vpop.permute.xlu0 %2112
        %2114 = vrot.lane.b32.xlu0 %v2085, 64
        %v2115 = vpop.permute.xlu0 %2114
        %2116 = vrot.lane.b32.xlu0 %v2086, 64
        %v2117 = vpop.permute.xlu0 %2116
        %2118 = vrot.lane.b32.xlu0 %v2087, 64
        %v2119 = vpop.permute.xlu0 %2118
        %v2128 = vmul.f32 %v2065, %v2105
        %v2129 = vmul.f32 %v2067, %v2107
        %v2130 = vmul.f32 %v2069, %v2109
        %v2131 = vmul.f32 %v2071, %v2111
        %v2132 = vmul.f32 %v2073, %v2113
        %v2133 = vmul.f32 %v2075, %v2115
        %v2134 = vmul.f32 %v2077, %v2117
        %v2135 = vmul.f32 %v2079, %v2119
        %2144 = vrot.lane.b32.xlu0 %v2128, 32
        %v2145 = vpop.permute.xlu0 %2144
        %2146 = vrot.lane.b32.xlu0 %v2129, 32
        %v2147 = vpop.permute.xlu0 %2146
        %2148 = vrot.lane.b32.xlu0 %v2130, 32
        %v2149 = vpop.permute.xlu0 %2148
        %2150 = vrot.lane.b32.xlu0 %v2131, 32
        %v2151 = vpop.permute.xlu0 %2150
        %2152 = vrot.lane.b32.xlu0 %v2132, 32
        %v2153 = vpop.permute.xlu0 %2152
        %2154 = vrot.lane.b32.xlu0 %v2133, 32
        %v2155 = vpop.permute.xlu0 %2154
        %2156 = vrot.lane.b32.xlu0 %v2134, 32
        %v2157 = vpop.permute.xlu0 %2156
        %2158 = vrot.lane.b32.xlu0 %v2135, 32
        %v2159 = vpop.permute.xlu0 %2158
        %v2168 = vadd.f32 %v2088, %v2145
        %v2169 = vadd.f32 %v2089, %v2147
        %v2170 = vadd.f32 %v2090, %v2149
        %v2171 = vadd.f32 %v2091, %v2151
        %v2172 = vadd.f32 %v2092, %v2153
        %v2173 = vadd.f32 %v2093, %v2155
        %v2174 = vadd.f32 %v2094, %v2157
        %v2175 = vadd.f32 %v2095, %v2159
        %v2176 = vtanh.pop %v2168
        %v2177 = vtanh.pop %v2169
        %v2178 = vtanh.pop %v2170
        %v2179 = vtanh.pop %v2171
        %v2180 = vtanh.pop %v2172
        %v2181 = vtanh.pop %v2173
        %v2182 = vtanh.pop %v2174
        %v2183 = vtanh.pop %v2175
        %2192 = vrot.lane.b32.xlu0 %v2176, 64
        %v2193 = vpop.permute.xlu0 %2192
        %2194 = vrot.lane.b32.xlu0 %v2177, 64
        %v2195 = vpop.permute.xlu0 %2194
        %2196 = vrot.lane.b32.xlu0 %v2178, 64
        %v2197 = vpop.permute.xlu0 %2196
        %2198 = vrot.lane.b32.xlu0 %v2179, 64
        %v2199 = vpop.permute.xlu0 %2198
        %2200 = vrot.lane.b32.xlu0 %v2180, 64
        %v2201 = vpop.permute.xlu0 %2200
        %2202 = vrot.lane.b32.xlu0 %v2181, 64
        %v2203 = vpop.permute.xlu0 %2202
        %2204 = vrot.lane.b32.xlu0 %v2182, 64
        %v2205 = vpop.permute.xlu0 %2204
        %2206 = vrot.lane.b32.xlu0 %v2183, 64
        %v2207 = vpop.permute.xlu0 %2206
        %v2216 = vmul.f32 %v2065, %v2193
        %v2217 = vmul.f32 %v2067, %v2195
        %v2218 = vmul.f32 %v2069, %v2197
        %v2219 = vmul.f32 %v2071, %v2199
        %v2220 = vmul.f32 %v2073, %v2201
        %v2221 = vmul.f32 %v2075, %v2203
        %v2222 = vmul.f32 %v2077, %v2205
        %v2223 = vmul.f32 %v2079, %v2207
        %v2224 = vld [vmem:[#allocation2 + $0x5] sm:$0x1]
        %v2225 = vld [vmem:[#allocation2 + $0x15] sm:$0x1]
        %v2226 = vld [vmem:[#allocation2 + $0x25] sm:$0x1]
        %v2227 = vld [vmem:[#allocation2 + $0x35] sm:$0x1]
        %v2228 = vld [vmem:[#allocation2 + $0x45] sm:$0x1]
        %v2229 = vld [vmem:[#allocation2 + $0x55] sm:$0x1]
        %v2230 = vld [vmem:[#allocation2 + $0x65] sm:$0x1]
        %v2231 = vld [vmem:[#allocation2 + $0x75] sm:$0x1]
        %v2232 = vpack.c.bf16 %v2216, %v2216
        %v2233 = vpack.c.bf16 %v2217, %v2217
        %v2234 = vpack.c.bf16 %v2218, %v2218
        %v2235 = vpack.c.bf16 %v2219, %v2219
        %v2236 = vpack.c.bf16 %v2220, %v2220
        %v2237 = vpack.c.bf16 %v2221, %v2221
        %v2238 = vpack.c.bf16 %v2222, %v2222
        %v2239 = vpack.c.bf16 %v2223, %v2223
        %v2248 = vunpack.c.l.b16 %v2232
        %v2249 = vunpack.c.l.b16 %v2233
        %v2250 = vunpack.c.l.b16 %v2234
        %v2251 = vunpack.c.l.b16 %v2235
        %v2252 = vunpack.c.l.b16 %v2236
        %v2253 = vunpack.c.l.b16 %v2237
        %v2254 = vunpack.c.l.b16 %v2238
        %v2255 = vunpack.c.l.b16 %v2239
        %v2256 = vrot.slane %v2249, 7
        %v2257 = vsel %vm1018, %v2256, %v2248
        %v2258 = vrot.slane %v2250, 6
        %v2259 = vsel %vm1021, %v2258, %v2257
        %v2260 = vrot.slane %v2251, 5
        %v2261 = vsel %vm1024, %v2260, %v2259
        %v2262 = vrot.slane %v2252, 4
        %v2263 = vsel %vm1027, %v2262, %v2261
        %v2264 = vrot.slane %v2253, 3
        %v2265 = vsel %vm1030, %v2264, %v2263
        %v2266 = vrot.slane %v2254, 2
        %v2267 = vsel %vm1033, %v2266, %v2265
        %v2268 = vrot.slane %v2255, 1
        %v2269 = vsel %vm1036, %v2268, %v2267
        %v2270 = vpack.c.b16 %v2269, %v2269
        %2271 = vrot.lane.b32.xlu0 %v2270, 32
        %v2272 = vpop.permute.xlu0 %2271
        %v2274 = vsel %vm725, %v2272, 0
        %2276 = vmatprep.subr.bf16.mxu0 0
        %2277 = vmatpush1.bf16.msra.mxu0 %v721
        %2278 = vmatprep.subr.bf16.mxu0 0
        %2279 = vmatpush1.bf16.msra.mxu0 %v722
        %2280 = vmatprep.subr.bf16.mxu0 0
        %2281 = vmatpush1.bf16.msra.mxu0 0
        %2282 = vmatprep.subr.bf16.mxu0 0
        %2283 = vmatpush1.bf16.msra.mxu0 0
        %2284 = vmatprep.subr.bf16.mxu0 0
        %2285 = vmatpush1.bf16.msra.mxu0 0
        %2286 = vmatprep.subr.bf16.mxu0 0
        %2287 = vmatpush1.bf16.msra.mxu0 0
        %2288 = vmatprep.subr.bf16.mxu0 0
        %2289 = vmatpush1.bf16.msra.mxu0 0
        %2290 = vmatprep.subr.bf16.mxu0 0
        %2291 = vmatpush1.bf16.msra.mxu0 0
        %2292 = vmatprep.subr.bf16.mxu0 0
        %2293 = vmatpush1.bf16.msra.mxu0 0
        %2294 = vmatprep.subr.bf16.mxu0 0
        %2295 = vmatpush1.bf16.msra.mxu0 0
        %2296 = vmatprep.subr.bf16.mxu0 0
        %2297 = vmatpush1.bf16.msra.mxu0 0
        %2298 = vmatprep.subr.bf16.mxu0 0
        %2299 = vmatpush1.bf16.msra.mxu0 0
        %2300 = vmatprep.subr.bf16.mxu0 0
        %2301 = vmatpush1.bf16.msra.mxu0 0
        %2302 = vmatprep.subr.bf16.mxu0 0
        %2303 = vmatpush1.bf16.msra.mxu0 0
        %2304 = vmatprep.subr.bf16.mxu0 0
        %2305 = vmatpush1.bf16.msra.mxu0 0
        %2306 = vmatprep.subr.bf16.mxu0 0
        %2307 = vmatpush1.bf16.msra.mxu0 0
        %2308 = vmatprep.mubr.bf16.mxu0 0
        %2309 = vmatmul.mubr.bf16.gmra.mrb[0].mxu0 %v2274
        %v2310 = vpop.f32.mrb[0].mxu0
        %v2311 = vadd.f32 0.0, %v2310
        %v2312 = vpop.f32.mrb[0].mxu0
        %v2313 = vpop.f32.mrb[0].mxu0
        %v2314 = vpop.f32.mrb[0].mxu0
        %2315 = vdwg.mxu0
        %v2317 = vrot.slane %v2311, 1
        %v2318 = vrot.slane %v2311, 2
        %v2319 = vrot.slane %v2311, 3
        %v2320 = vrot.slane %v2311, 4
        %v2321 = vrot.slane %v2311, 5
        %v2322 = vrot.slane %v2311, 6
        %v2323 = vrot.slane %v2311, 7
        %v2332 = vadd.f32 %v2224, %v2311
        %v2333 = vadd.f32 %v2225, %v2317
        %v2334 = vadd.f32 %v2226, %v2318
        %v2335 = vadd.f32 %v2227, %v2319
        %v2336 = vadd.f32 %v2228, %v2320
        %v2337 = vadd.f32 %v2229, %v2321
        %v2338 = vadd.f32 %v2230, %v2322
        %v2339 = vadd.f32 %v2231, %v2323
        %v2340 = vxor.u32 %v2332, 2147483648
        %v2341 = vxor.u32 %v2333, 2147483648
        %v2342 = vxor.u32 %v2334, 2147483648
        %v2343 = vxor.u32 %v2335, 2147483648
        %v2344 = vxor.u32 %v2336, 2147483648
        %v2345 = vxor.u32 %v2337, 2147483648
        %v2346 = vxor.u32 %v2338, 2147483648
        %v2347 = vxor.u32 %v2339, 2147483648
        %v2348 = vmul.f32 %v2340, 1.442695
        %v2349 = vpow.pop %v2348
        %v2350 = vmul.f32 %v2341, 1.442695
        %v2351 = vpow.pop %v2350
        %v2352 = vmul.f32 %v2342, 1.442695
        %v2353 = vpow.pop %v2352
        %v2354 = vmul.f32 %v2343, 1.442695
        %v2355 = vpow.pop %v2354
        %v2356 = vmul.f32 %v2344, 1.442695
        %v2357 = vpow.pop %v2356
        %v2358 = vmul.f32 %v2345, 1.442695
        %v2359 = vpow.pop %v2358
        %v2360 = vmul.f32 %v2346, 1.442695
        %v2361 = vpow.pop %v2360
        %v2362 = vmul.f32 %v2347, 1.442695
        %v2363 = vpow.pop %v2362
        %v2364 = vadd.f32 %v2349, 1.0
        %v2365 = vadd.f32 %v2351, 1.0
        %v2366 = vadd.f32 %v2353, 1.0
        %v2367 = vadd.f32 %v2355, 1.0
        %v2368 = vadd.f32 %v2357, 1.0
        %v2369 = vadd.f32 %v2359, 1.0
        %v2370 = vadd.f32 %v2361, 1.0
        %v2371 = vadd.f32 %v2363, 1.0
        %v2372 = vrcp.pop %v2364
        %v2373 = vmul.f32 1.0, %v2372
        %v2374 = vrcp.pop %v2365
        %v2375 = vmul.f32 1.0, %v2374
        %v2376 = vrcp.pop %v2366
        %v2377 = vmul.f32 1.0, %v2376
        %v2378 = vrcp.pop %v2367
        %v2379 = vmul.f32 1.0, %v2378
        %v2380 = vrcp.pop %v2368
        %v2381 = vmul.f32 1.0, %v2380
        %v2382 = vrcp.pop %v2369
        %v2383 = vmul.f32 1.0, %v2382
        %v2384 = vrcp.pop %v2370
        %v2385 = vmul.f32 1.0, %v2384
        %v2386 = vrcp.pop %v2371
        %v2387 = vmul.f32 1.0, %v2386
        %v2388 = vtanh.pop %v2332
        %v2389 = vtanh.pop %v2333
        %v2390 = vtanh.pop %v2334
        %v2391 = vtanh.pop %v2335
        %v2392 = vtanh.pop %v2336
        %v2393 = vtanh.pop %v2337
        %v2394 = vtanh.pop %v2338
        %v2395 = vtanh.pop %v2339
        %v2396 = vmul.f32 %v2373, %v2168
        %v2397 = vmul.f32 %v2375, %v2169
        %v2398 = vmul.f32 %v2377, %v2170
        %v2399 = vmul.f32 %v2379, %v2171
        %v2400 = vmul.f32 %v2381, %v2172
        %v2401 = vmul.f32 %v2383, %v2173
        %v2402 = vmul.f32 %v2385, %v2174
        %v2403 = vmul.f32 %v2387, %v2175
        %2412 = vrot.lane.b32.xlu0 %v2388, 64
        %v2413 = vpop.permute.xlu0 %2412
        %2414 = vrot.lane.b32.xlu0 %v2389, 64
        %v2415 = vpop.permute.xlu0 %2414
        %2416 = vrot.lane.b32.xlu0 %v2390, 64
        %v2417 = vpop.permute.xlu0 %2416
        %2418 = vrot.lane.b32.xlu0 %v2391, 64
        %v2419 = vpop.permute.xlu0 %2418
        %2420 = vrot.lane.b32.xlu0 %v2392, 64
        %v2421 = vpop.permute.xlu0 %2420
        %2422 = vrot.lane.b32.xlu0 %v2393, 64
        %v2423 = vpop.permute.xlu0 %2422
        %2424 = vrot.lane.b32.xlu0 %v2394, 64
        %v2425 = vpop.permute.xlu0 %2424
        %2426 = vrot.lane.b32.xlu0 %v2395, 64
        %v2427 = vpop.permute.xlu0 %2426
        %v2436 = vmul.f32 %v2373, %v2413
        %v2437 = vmul.f32 %v2375, %v2415
        %v2438 = vmul.f32 %v2377, %v2417
        %v2439 = vmul.f32 %v2379, %v2419
        %v2440 = vmul.f32 %v2381, %v2421
        %v2441 = vmul.f32 %v2383, %v2423
        %v2442 = vmul.f32 %v2385, %v2425
        %v2443 = vmul.f32 %v2387, %v2427
        %2452 = vrot.lane.b32.xlu0 %v2436, 32
        %v2453 = vpop.permute.xlu0 %2452
        %2454 = vrot.lane.b32.xlu0 %v2437, 32
        %v2455 = vpop.permute.xlu0 %2454
        %2456 = vrot.lane.b32.xlu0 %v2438, 32
        %v2457 = vpop.permute.xlu0 %2456
        %2458 = vrot.lane.b32.xlu0 %v2439, 32
        %v2459 = vpop.permute.xlu0 %2458
        %2460 = vrot.lane.b32.xlu0 %v2440, 32
        %v2461 = vpop.permute.xlu0 %2460
        %2462 = vrot.lane.b32.xlu0 %v2441, 32
        %v2463 = vpop.permute.xlu0 %2462
        %2464 = vrot.lane.b32.xlu0 %v2442, 32
        %v2465 = vpop.permute.xlu0 %2464
        %2466 = vrot.lane.b32.xlu0 %v2443, 32
        %v2467 = vpop.permute.xlu0 %2466
        %v2476 = vadd.f32 %v2396, %v2453
        %v2477 = vadd.f32 %v2397, %v2455
        %v2478 = vadd.f32 %v2398, %v2457
        %v2479 = vadd.f32 %v2399, %v2459
        %v2480 = vadd.f32 %v2400, %v2461
        %v2481 = vadd.f32 %v2401, %v2463
        %v2482 = vadd.f32 %v2402, %v2465
        %v2483 = vadd.f32 %v2403, %v2467
        %v2484 = vtanh.pop %v2476
        %v2485 = vtanh.pop %v2477
        %v2486 = vtanh.pop %v2478
        %v2487 = vtanh.pop %v2479
        %v2488 = vtanh.pop %v2480
        %v2489 = vtanh.pop %v2481
        %v2490 = vtanh.pop %v2482
        %v2491 = vtanh.pop %v2483
        %2500 = vrot.lane.b32.xlu0 %v2484, 64
        %v2501 = vpop.permute.xlu0 %2500
        %2502 = vrot.lane.b32.xlu0 %v2485, 64
        %v2503 = vpop.permute.xlu0 %2502
        %2504 = vrot.lane.b32.xlu0 %v2486, 64
        %v2505 = vpop.permute.xlu0 %2504
        %2506 = vrot.lane.b32.xlu0 %v2487, 64
        %v2507 = vpop.permute.xlu0 %2506
        %2508 = vrot.lane.b32.xlu0 %v2488, 64
        %v2509 = vpop.permute.xlu0 %2508
        %2510 = vrot.lane.b32.xlu0 %v2489, 64
        %v2511 = vpop.permute.xlu0 %2510
        %2512 = vrot.lane.b32.xlu0 %v2490, 64
        %v2513 = vpop.permute.xlu0 %2512
        %2514 = vrot.lane.b32.xlu0 %v2491, 64
        %v2515 = vpop.permute.xlu0 %2514
        %v2524 = vmul.f32 %v2373, %v2501
        %v2525 = vmul.f32 %v2375, %v2503
        %v2526 = vmul.f32 %v2377, %v2505
        %v2527 = vmul.f32 %v2379, %v2507
        %v2528 = vmul.f32 %v2381, %v2509
        %v2529 = vmul.f32 %v2383, %v2511
        %v2530 = vmul.f32 %v2385, %v2513
        %v2531 = vmul.f32 %v2387, %v2515
        %v2532 = vld [vmem:[#allocation2 + $0x6] sm:$0x1]
        %v2533 = vld [vmem:[#allocation2 + $0x16] sm:$0x1]
        %v2534 = vld [vmem:[#allocation2 + $0x26] sm:$0x1]
        %v2535 = vld [vmem:[#allocation2 + $0x36] sm:$0x1]
        %v2536 = vld [vmem:[#allocation2 + $0x46] sm:$0x1]
        %v2537 = vld [vmem:[#allocation2 + $0x56] sm:$0x1]
        %v2538 = vld [vmem:[#allocation2 + $0x66] sm:$0x1]
        %v2539 = vld [vmem:[#allocation2 + $0x76] sm:$0x1]
        %v2540 = vpack.c.bf16 %v2524, %v2524
        %v2541 = vpack.c.bf16 %v2525, %v2525
        %v2542 = vpack.c.bf16 %v2526, %v2526
        %v2543 = vpack.c.bf16 %v2527, %v2527
        %v2544 = vpack.c.bf16 %v2528, %v2528
        %v2545 = vpack.c.bf16 %v2529, %v2529
        %v2546 = vpack.c.bf16 %v2530, %v2530
        %v2547 = vpack.c.bf16 %v2531, %v2531
        %v2556 = vunpack.c.l.b16 %v2540
        %v2557 = vunpack.c.l.b16 %v2541
        %v2558 = vunpack.c.l.b16 %v2542
        %v2559 = vunpack.c.l.b16 %v2543
        %v2560 = vunpack.c.l.b16 %v2544
        %v2561 = vunpack.c.l.b16 %v2545
        %v2562 = vunpack.c.l.b16 %v2546
        %v2563 = vunpack.c.l.b16 %v2547
        %v2564 = vrot.slane %v2557, 7
        %v2565 = vsel %vm1018, %v2564, %v2556
        %v2566 = vrot.slane %v2558, 6
        %v2567 = vsel %vm1021, %v2566, %v2565
        %v2568 = vrot.slane %v2559, 5
        %v2569 = vsel %vm1024, %v2568, %v2567
        %v2570 = vrot.slane %v2560, 4
        %v2571 = vsel %vm1027, %v2570, %v2569
        %v2572 = vrot.slane %v2561, 3
        %v2573 = vsel %vm1030, %v2572, %v2571
        %v2574 = vrot.slane %v2562, 2
        %v2575 = vsel %vm1033, %v2574, %v2573
        %v2576 = vrot.slane %v2563, 1
        %v2577 = vsel %vm1036, %v2576, %v2575
        %v2578 = vpack.c.b16 %v2577, %v2577
        %2579 = vrot.lane.b32.xlu0 %v2578, 32
        %v2580 = vpop.permute.xlu0 %2579
        %v2582 = vsel %vm725, %v2580, 0
        %2584 = vmatprep.subr.bf16.mxu0 0
        %2585 = vmatpush1.bf16.msra.mxu0 %v721
        %2586 = vmatprep.subr.bf16.mxu0 0
        %2587 = vmatpush1.bf16.msra.mxu0 %v722
        %2588 = vmatprep.subr.bf16.mxu0 0
        %2589 = vmatpush1.bf16.msra.mxu0 0
        %2590 = vmatprep.subr.bf16.mxu0 0
        %2591 = vmatpush1.bf16.msra.mxu0 0
        %2592 = vmatprep.subr.bf16.mxu0 0
        %2593 = vmatpush1.bf16.msra.mxu0 0
        %2594 = vmatprep.subr.bf16.mxu0 0
        %2595 = vmatpush1.bf16.msra.mxu0 0
        %2596 = vmatprep.subr.bf16.mxu0 0
        %2597 = vmatpush1.bf16.msra.mxu0 0
        %2598 = vmatprep.subr.bf16.mxu0 0
        %2599 = vmatpush1.bf16.msra.mxu0 0
        %2600 = vmatprep.subr.bf16.mxu0 0
        %2601 = vmatpush1.bf16.msra.mxu0 0
        %2602 = vmatprep.subr.bf16.mxu0 0
        %2603 = vmatpush1.bf16.msra.mxu0 0
        %2604 = vmatprep.subr.bf16.mxu0 0
        %2605 = vmatpush1.bf16.msra.mxu0 0
        %2606 = vmatprep.subr.bf16.mxu0 0
        %2607 = vmatpush1.bf16.msra.mxu0 0
        %2608 = vmatprep.subr.bf16.mxu0 0
        %2609 = vmatpush1.bf16.msra.mxu0 0
        %2610 = vmatprep.subr.bf16.mxu0 0
        %2611 = vmatpush1.bf16.msra.mxu0 0
        %2612 = vmatprep.subr.bf16.mxu0 0
        %2613 = vmatpush1.bf16.msra.mxu0 0
        %2614 = vmatprep.subr.bf16.mxu0 0
        %2615 = vmatpush1.bf16.msra.mxu0 0
        %2616 = vmatprep.mubr.bf16.mxu0 0
        %2617 = vmatmul.mubr.bf16.gmra.mrb[0].mxu0 %v2582
        %v2618 = vpop.f32.mrb[0].mxu0
        %v2619 = vadd.f32 0.0, %v2618
        %v2620 = vpop.f32.mrb[0].mxu0
        %v2621 = vpop.f32.mrb[0].mxu0
        %v2622 = vpop.f32.mrb[0].mxu0
        %2623 = vdwg.mxu0
        %v2625 = vrot.slane %v2619, 1
        %v2626 = vrot.slane %v2619, 2
        %v2627 = vrot.slane %v2619, 3
        %v2628 = vrot.slane %v2619, 4
        %v2629 = vrot.slane %v2619, 5
        %v2630 = vrot.slane %v2619, 6
        %v2631 = vrot.slane %v2619, 7
        %v2640 = vadd.f32 %v2532, %v2619
        %v2641 = vadd.f32 %v2533, %v2625
        %v2642 = vadd.f32 %v2534, %v2626
        %v2643 = vadd.f32 %v2535, %v2627
        %v2644 = vadd.f32 %v2536, %v2628
        %v2645 = vadd.f32 %v2537, %v2629
        %v2646 = vadd.f32 %v2538, %v2630
        %v2647 = vadd.f32 %v2539, %v2631
        %v2648 = vxor.u32 %v2640, 2147483648
        %v2649 = vxor.u32 %v2641, 2147483648
        %v2650 = vxor.u32 %v2642, 2147483648
        %v2651 = vxor.u32 %v2643, 2147483648
        %v2652 = vxor.u32 %v2644, 2147483648
        %v2653 = vxor.u32 %v2645, 2147483648
        %v2654 = vxor.u32 %v2646, 2147483648
        %v2655 = vxor.u32 %v2647, 2147483648
        %v2656 = vmul.f32 %v2648, 1.442695
        %v2657 = vpow.pop %v2656
        %v2658 = vmul.f32 %v2649, 1.442695
        %v2659 = vpow.pop %v2658
        %v2660 = vmul.f32 %v2650, 1.442695
        %v2661 = vpow.pop %v2660
        %v2662 = vmul.f32 %v2651, 1.442695
        %v2663 = vpow.pop %v2662
        %v2664 = vmul.f32 %v2652, 1.442695
        %v2665 = vpow.pop %v2664
        %v2666 = vmul.f32 %v2653, 1.442695
        %v2667 = vpow.pop %v2666
        %v2668 = vmul.f32 %v2654, 1.442695
        %v2669 = vpow.pop %v2668
        %v2670 = vmul.f32 %v2655, 1.442695
        %v2671 = vpow.pop %v2670
        %v2672 = vadd.f32 %v2657, 1.0
        %v2673 = vadd.f32 %v2659, 1.0
        %v2674 = vadd.f32 %v2661, 1.0
        %v2675 = vadd.f32 %v2663, 1.0
        %v2676 = vadd.f32 %v2665, 1.0
        %v2677 = vadd.f32 %v2667, 1.0
        %v2678 = vadd.f32 %v2669, 1.0
        %v2679 = vadd.f32 %v2671, 1.0
        %v2680 = vrcp.pop %v2672
        %v2681 = vmul.f32 1.0, %v2680
        %v2682 = vrcp.pop %v2673
        %v2683 = vmul.f32 1.0, %v2682
        %v2684 = vrcp.pop %v2674
        %v2685 = vmul.f32 1.0, %v2684
        %v2686 = vrcp.pop %v2675
        %v2687 = vmul.f32 1.0, %v2686
        %v2688 = vrcp.pop %v2676
        %v2689 = vmul.f32 1.0, %v2688
        %v2690 = vrcp.pop %v2677
        %v2691 = vmul.f32 1.0, %v2690
        %v2692 = vrcp.pop %v2678
        %v2693 = vmul.f32 1.0, %v2692
        %v2694 = vrcp.pop %v2679
        %v2695 = vmul.f32 1.0, %v2694
        %v2696 = vtanh.pop %v2640
        %v2697 = vtanh.pop %v2641
        %v2698 = vtanh.pop %v2642
        %v2699 = vtanh.pop %v2643
        %v2700 = vtanh.pop %v2644
        %v2701 = vtanh.pop %v2645
        %v2702 = vtanh.pop %v2646
        %v2703 = vtanh.pop %v2647
        %v2704 = vmul.f32 %v2681, %v2476
        %v2705 = vmul.f32 %v2683, %v2477
        %v2706 = vmul.f32 %v2685, %v2478
        %v2707 = vmul.f32 %v2687, %v2479
        %v2708 = vmul.f32 %v2689, %v2480
        %v2709 = vmul.f32 %v2691, %v2481
        %v2710 = vmul.f32 %v2693, %v2482
        %v2711 = vmul.f32 %v2695, %v2483
        %2720 = vrot.lane.b32.xlu0 %v2696, 64
        %v2721 = vpop.permute.xlu0 %2720
        %2722 = vrot.lane.b32.xlu0 %v2697, 64
        %v2723 = vpop.permute.xlu0 %2722
        %2724 = vrot.lane.b32.xlu0 %v2698, 64
        %v2725 = vpop.permute.xlu0 %2724
        %2726 = vrot.lane.b32.xlu0 %v2699, 64
        %v2727 = vpop.permute.xlu0 %2726
        %2728 = vrot.lane.b32.xlu0 %v2700, 64
        %v2729 = vpop.permute.xlu0 %2728
        %2730 = vrot.lane.b32.xlu0 %v2701, 64
        %v2731 = vpop.permute.xlu0 %2730
        %2732 = vrot.lane.b32.xlu0 %v2702, 64
        %v2733 = vpop.permute.xlu0 %2732
        %2734 = vrot.lane.b32.xlu0 %v2703, 64
        %v2735 = vpop.permute.xlu0 %2734
        %v2744 = vmul.f32 %v2681, %v2721
        %v2745 = vmul.f32 %v2683, %v2723
        %v2746 = vmul.f32 %v2685, %v2725
        %v2747 = vmul.f32 %v2687, %v2727
        %v2748 = vmul.f32 %v2689, %v2729
        %v2749 = vmul.f32 %v2691, %v2731
        %v2750 = vmul.f32 %v2693, %v2733
        %v2751 = vmul.f32 %v2695, %v2735
        %2760 = vrot.lane.b32.xlu0 %v2744, 32
        %v2761 = vpop.permute.xlu0 %2760
        %2762 = vrot.lane.b32.xlu0 %v2745, 32
        %v2763 = vpop.permute.xlu0 %2762
        %2764 = vrot.lane.b32.xlu0 %v2746, 32
        %v2765 = vpop.permute.xlu0 %2764
        %2766 = vrot.lane.b32.xlu0 %v2747, 32
        %v2767 = vpop.permute.xlu0 %2766
        %2768 = vrot.lane.b32.xlu0 %v2748, 32
        %v2769 = vpop.permute.xlu0 %2768
        %2770 = vrot.lane.b32.xlu0 %v2749, 32
        %v2771 = vpop.permute.xlu0 %2770
        %2772 = vrot.lane.b32.xlu0 %v2750, 32
        %v2773 = vpop.permute.xlu0 %2772
        %2774 = vrot.lane.b32.xlu0 %v2751, 32
        %v2775 = vpop.permute.xlu0 %2774
        %v2784 = vadd.f32 %v2704, %v2761
        %v2785 = vadd.f32 %v2705, %v2763
        %v2786 = vadd.f32 %v2706, %v2765
        %v2787 = vadd.f32 %v2707, %v2767
        %v2788 = vadd.f32 %v2708, %v2769
        %v2789 = vadd.f32 %v2709, %v2771
        %v2790 = vadd.f32 %v2710, %v2773
        %v2791 = vadd.f32 %v2711, %v2775
        %v2792 = vtanh.pop %v2784
        %v2793 = vtanh.pop %v2785
        %v2794 = vtanh.pop %v2786
        %v2795 = vtanh.pop %v2787
        %v2796 = vtanh.pop %v2788
        %v2797 = vtanh.pop %v2789
        %v2798 = vtanh.pop %v2790
        %v2799 = vtanh.pop %v2791
        %2808 = vrot.lane.b32.xlu0 %v2792, 64
        %v2809 = vpop.permute.xlu0 %2808
        %2810 = vrot.lane.b32.xlu0 %v2793, 64
        %v2811 = vpop.permute.xlu0 %2810
        %2812 = vrot.lane.b32.xlu0 %v2794, 64
        %v2813 = vpop.permute.xlu0 %2812
        %2814 = vrot.lane.b32.xlu0 %v2795, 64
        %v2815 = vpop.permute.xlu0 %2814
        %2816 = vrot.lane.b32.xlu0 %v2796, 64
        %v2817 = vpop.permute.xlu0 %2816
        %2818 = vrot.lane.b32.xlu0 %v2797, 64
        %v2819 = vpop.permute.xlu0 %2818
        %2820 = vrot.lane.b32.xlu0 %v2798, 64
        %v2821 = vpop.permute.xlu0 %2820
        %2822 = vrot.lane.b32.xlu0 %v2799, 64
        %v2823 = vpop.permute.xlu0 %2822
        %v2832 = vmul.f32 %v2681, %v2809
        %v2833 = vmul.f32 %v2683, %v2811
        %v2834 = vmul.f32 %v2685, %v2813
        %v2835 = vmul.f32 %v2687, %v2815
        %v2836 = vmul.f32 %v2689, %v2817
        %v2837 = vmul.f32 %v2691, %v2819
        %v2838 = vmul.f32 %v2693, %v2821
        %v2839 = vmul.f32 %v2695, %v2823
        %v2840 = vld [vmem:[#allocation2 + $0x7] sm:$0x1]
        %v2841 = vld [vmem:[#allocation2 + $0x17] sm:$0x1]
        %v2842 = vld [vmem:[#allocation2 + $0x27] sm:$0x1]
        %v2843 = vld [vmem:[#allocation2 + $0x37] sm:$0x1]
        %v2844 = vld [vmem:[#allocation2 + $0x47] sm:$0x1]
        %v2845 = vld [vmem:[#allocation2 + $0x57] sm:$0x1]
        %v2846 = vld [vmem:[#allocation2 + $0x67] sm:$0x1]
        %v2847 = vld [vmem:[#allocation2 + $0x77] sm:$0x1]
        %v2848 = vpack.c.bf16 %v2832, %v2832
        %v2849 = vpack.c.bf16 %v2833, %v2833
        %v2850 = vpack.c.bf16 %v2834, %v2834
        %v2851 = vpack.c.bf16 %v2835, %v2835
        %v2852 = vpack.c.bf16 %v2836, %v2836
        %v2853 = vpack.c.bf16 %v2837, %v2837
        %v2854 = vpack.c.bf16 %v2838, %v2838
        %v2855 = vpack.c.bf16 %v2839, %v2839
        %v2864 = vunpack.c.l.b16 %v2848
        %v2865 = vunpack.c.l.b16 %v2849
        %v2866 = vunpack.c.l.b16 %v2850
        %v2867 = vunpack.c.l.b16 %v2851
        %v2868 = vunpack.c.l.b16 %v2852
        %v2869 = vunpack.c.l.b16 %v2853
        %v2870 = vunpack.c.l.b16 %v2854
        %v2871 = vunpack.c.l.b16 %v2855
        %v2872 = vrot.slane %v2865, 7
        %v2873 = vsel %vm1018, %v2872, %v2864
        %v2874 = vrot.slane %v2866, 6
        %v2875 = vsel %vm1021, %v2874, %v2873
        %v2876 = vrot.slane %v2867, 5
        %v2877 = vsel %vm1024, %v2876, %v2875
        %v2878 = vrot.slane %v2868, 4
        %v2879 = vsel %vm1027, %v2878, %v2877
        %v2880 = vrot.slane %v2869, 3
        %v2881 = vsel %vm1030, %v2880, %v2879
        %v2882 = vrot.slane %v2870, 2
        %v2883 = vsel %vm1033, %v2882, %v2881
        %v2884 = vrot.slane %v2871, 1
        %v2885 = vsel %vm1036, %v2884, %v2883
        %v2886 = vpack.c.b16 %v2885, %v2885
        %2887 = vrot.lane.b32.xlu0 %v2886, 32
        %v2888 = vpop.permute.xlu0 %2887
        %v2890 = vsel %vm725, %v2888, 0
        %2892 = vmatprep.subr.bf16.mxu0 0
        %2893 = vmatpush1.bf16.msra.mxu0 %v721
        %2894 = vmatprep.subr.bf16.mxu0 0
        %2895 = vmatpush1.bf16.msra.mxu0 %v722
        %2896 = vmatprep.subr.bf16.mxu0 0
        %2897 = vmatpush1.bf16.msra.mxu0 0
        %2898 = vmatprep.subr.bf16.mxu0 0
        %2899 = vmatpush1.bf16.msra.mxu0 0
        %2900 = vmatprep.subr.bf16.mxu0 0
        %2901 = vmatpush1.bf16.msra.mxu0 0
        %2902 = vmatprep.subr.bf16.mxu0 0
        %2903 = vmatpush1.bf16.msra.mxu0 0
        %2904 = vmatprep.subr.bf16.mxu0 0
        %2905 = vmatpush1.bf16.msra.mxu0 0
        %2906 = vmatprep.subr.bf16.mxu0 0
        %2907 = vmatpush1.bf16.msra.mxu0 0
        %2908 = vmatprep.subr.bf16.mxu0 0
        %2909 = vmatpush1.bf16.msra.mxu0 0
        %2910 = vmatprep.subr.bf16.mxu0 0
        %2911 = vmatpush1.bf16.msra.mxu0 0
        %2912 = vmatprep.subr.bf16.mxu0 0
        %2913 = vmatpush1.bf16.msra.mxu0 0
        %2914 = vmatprep.subr.bf16.mxu0 0
        %2915 = vmatpush1.bf16.msra.mxu0 0
        %2916 = vmatprep.subr.bf16.mxu0 0
        %2917 = vmatpush1.bf16.msra.mxu0 0
        %2918 = vmatprep.subr.bf16.mxu0 0
        %2919 = vmatpush1.bf16.msra.mxu0 0
        %2920 = vmatprep.subr.bf16.mxu0 0
        %2921 = vmatpush1.bf16.msra.mxu0 0
        %2922 = vmatprep.subr.bf16.mxu0 0
        %2923 = vmatpush1.bf16.msra.mxu0 0
        %2924 = vmatprep.mubr.bf16.mxu0 0
        %2925 = vmatmul.mubr.bf16.gmra.mrb[0].mxu0 %v2890
        %v2926 = vpop.f32.mrb[0].mxu0
        %v2927 = vadd.f32 0.0, %v2926
        %v2928 = vpop.f32.mrb[0].mxu0
        %v2929 = vpop.f32.mrb[0].mxu0
        %v2930 = vpop.f32.mrb[0].mxu0
        %2931 = vdwg.mxu0
        %v2933 = vrot.slane %v2927, 1
        %v2934 = vrot.slane %v2927, 2
        %v2935 = vrot.slane %v2927, 3
        %v2936 = vrot.slane %v2927, 4
        %v2937 = vrot.slane %v2927, 5
        %v2938 = vrot.slane %v2927, 6
        %v2939 = vrot.slane %v2927, 7
        %v2948 = vadd.f32 %v2840, %v2927
        %v2949 = vadd.f32 %v2841, %v2933
        %v2950 = vadd.f32 %v2842, %v2934
        %v2951 = vadd.f32 %v2843, %v2935
        %v2952 = vadd.f32 %v2844, %v2936
        %v2953 = vadd.f32 %v2845, %v2937
        %v2954 = vadd.f32 %v2846, %v2938
        %v2955 = vadd.f32 %v2847, %v2939
        %v2956 = vxor.u32 %v2948, 2147483648
        %v2957 = vxor.u32 %v2949, 2147483648
        %v2958 = vxor.u32 %v2950, 2147483648
        %v2959 = vxor.u32 %v2951, 2147483648
        %v2960 = vxor.u32 %v2952, 2147483648
        %v2961 = vxor.u32 %v2953, 2147483648
        %v2962 = vxor.u32 %v2954, 2147483648
        %v2963 = vxor.u32 %v2955, 2147483648
        %v2964 = vmul.f32 %v2956, 1.442695
        %v2965 = vpow.pop %v2964
        %v2966 = vmul.f32 %v2957, 1.442695
        %v2967 = vpow.pop %v2966
        %v2968 = vmul.f32 %v2958, 1.442695
        %v2969 = vpow.pop %v2968
        %v2970 = vmul.f32 %v2959, 1.442695
        %v2971 = vpow.pop %v2970
        %v2972 = vmul.f32 %v2960, 1.442695
        %v2973 = vpow.pop %v2972
        %v2974 = vmul.f32 %v2961, 1.442695
        %v2975 = vpow.pop %v2974
        %v2976 = vmul.f32 %v2962, 1.442695
        %v2977 = vpow.pop %v2976
        %v2978 = vmul.f32 %v2963, 1.442695
        %v2979 = vpow.pop %v2978
        %v2980 = vadd.f32 %v2965, 1.0
        %v2981 = vadd.f32 %v2967, 1.0
        %v2982 = vadd.f32 %v2969, 1.0
        %v2983 = vadd.f32 %v2971, 1.0
        %v2984 = vadd.f32 %v2973, 1.0
        %v2985 = vadd.f32 %v2975, 1.0
        %v2986 = vadd.f32 %v2977, 1.0
        %v2987 = vadd.f32 %v2979, 1.0
        %v2988 = vrcp.pop %v2980
        %v2989 = vmul.f32 1.0, %v2988
        %v2990 = vrcp.pop %v2981
        %v2991 = vmul.f32 1.0, %v2990
        %v2992 = vrcp.pop %v2982
        %v2993 = vmul.f32 1.0, %v2992
        %v2994 = vrcp.pop %v2983
        %v2995 = vmul.f32 1.0, %v2994
        %v2996 = vrcp.pop %v2984
        %v2997 = vmul.f32 1.0, %v2996
        %v2998 = vrcp.pop %v2985
        %v2999 = vmul.f32 1.0, %v2998
        %v3000 = vrcp.pop %v2986
        %v3001 = vmul.f32 1.0, %v3000
        %v3002 = vrcp.pop %v2987
        %v3003 = vmul.f32 1.0, %v3002
        %v3004 = vtanh.pop %v2948
        %v3005 = vtanh.pop %v2949
        %v3006 = vtanh.pop %v2950
        %v3007 = vtanh.pop %v2951
        %v3008 = vtanh.pop %v2952
        %v3009 = vtanh.pop %v2953
        %v3010 = vtanh.pop %v2954
        %v3011 = vtanh.pop %v2955
        %v3012 = vmul.f32 %v2989, %v2784
        %v3013 = vmul.f32 %v2991, %v2785
        %v3014 = vmul.f32 %v2993, %v2786
        %v3015 = vmul.f32 %v2995, %v2787
        %v3016 = vmul.f32 %v2997, %v2788
        %v3017 = vmul.f32 %v2999, %v2789
        %v3018 = vmul.f32 %v3001, %v2790
        %v3019 = vmul.f32 %v3003, %v2791
        %3028 = vrot.lane.b32.xlu0 %v3004, 64
        %v3029 = vpop.permute.xlu0 %3028
        %3030 = vrot.lane.b32.xlu0 %v3005, 64
        %v3031 = vpop.permute.xlu0 %3030
        %3032 = vrot.lane.b32.xlu0 %v3006, 64
        %v3033 = vpop.permute.xlu0 %3032
        %3034 = vrot.lane.b32.xlu0 %v3007, 64
        %v3035 = vpop.permute.xlu0 %3034
        %3036 = vrot.lane.b32.xlu0 %v3008, 64
        %v3037 = vpop.permute.xlu0 %3036
        %3038 = vrot.lane.b32.xlu0 %v3009, 64
        %v3039 = vpop.permute.xlu0 %3038
        %3040 = vrot.lane.b32.xlu0 %v3010, 64
        %v3041 = vpop.permute.xlu0 %3040
        %3042 = vrot.lane.b32.xlu0 %v3011, 64
        %v3043 = vpop.permute.xlu0 %3042
        %v3052 = vmul.f32 %v2989, %v3029
        %v3053 = vmul.f32 %v2991, %v3031
        %v3054 = vmul.f32 %v2993, %v3033
        %v3055 = vmul.f32 %v2995, %v3035
        %v3056 = vmul.f32 %v2997, %v3037
        %v3057 = vmul.f32 %v2999, %v3039
        %v3058 = vmul.f32 %v3001, %v3041
        %v3059 = vmul.f32 %v3003, %v3043
        %3068 = vrot.lane.b32.xlu0 %v3052, 32
        %v3069 = vpop.permute.xlu0 %3068
        %3070 = vrot.lane.b32.xlu0 %v3053, 32
        %v3071 = vpop.permute.xlu0 %3070
        %3072 = vrot.lane.b32.xlu0 %v3054, 32
        %v3073 = vpop.permute.xlu0 %3072
        %3074 = vrot.lane.b32.xlu0 %v3055, 32
        %v3075 = vpop.permute.xlu0 %3074
        %3076 = vrot.lane.b32.xlu0 %v3056, 32
        %v3077 = vpop.permute.xlu0 %3076
        %3078 = vrot.lane.b32.xlu0 %v3057, 32
        %v3079 = vpop.permute.xlu0 %3078
        %3080 = vrot.lane.b32.xlu0 %v3058, 32
        %v3081 = vpop.permute.xlu0 %3080
        %3082 = vrot.lane.b32.xlu0 %v3059, 32
        %v3083 = vpop.permute.xlu0 %3082
        %v3092 = vadd.f32 %v3012, %v3069
        %v3093 = vadd.f32 %v3013, %v3071
        %v3094 = vadd.f32 %v3014, %v3073
        %v3095 = vadd.f32 %v3015, %v3075
        %v3096 = vadd.f32 %v3016, %v3077
        %v3097 = vadd.f32 %v3017, %v3079
        %v3098 = vadd.f32 %v3018, %v3081
        %v3099 = vadd.f32 %v3019, %v3083
        %v3100 = vtanh.pop %v3092
        %v3101 = vtanh.pop %v3093
        %v3102 = vtanh.pop %v3094
        %v3103 = vtanh.pop %v3095
        %v3104 = vtanh.pop %v3096
        %v3105 = vtanh.pop %v3097
        %v3106 = vtanh.pop %v3098
        %v3107 = vtanh.pop %v3099
        %3116 = vrot.lane.b32.xlu0 %v3100, 64
        %v3117 = vpop.permute.xlu0 %3116
        %3118 = vrot.lane.b32.xlu0 %v3101, 64
        %v3119 = vpop.permute.xlu0 %3118
        %3120 = vrot.lane.b32.xlu0 %v3102, 64
        %v3121 = vpop.permute.xlu0 %3120
        %3122 = vrot.lane.b32.xlu0 %v3103, 64
        %v3123 = vpop.permute.xlu0 %3122
        %3124 = vrot.lane.b32.xlu0 %v3104, 64
        %v3125 = vpop.permute.xlu0 %3124
        %3126 = vrot.lane.b32.xlu0 %v3105, 64
        %v3127 = vpop.permute.xlu0 %3126
        %3128 = vrot.lane.b32.xlu0 %v3106, 64
        %v3129 = vpop.permute.xlu0 %3128
        %3130 = vrot.lane.b32.xlu0 %v3107, 64
        %v3131 = vpop.permute.xlu0 %3130
        %v3140 = vmul.f32 %v2989, %v3117
        %v3141 = vmul.f32 %v2991, %v3119
        %v3142 = vmul.f32 %v2993, %v3121
        %v3143 = vmul.f32 %v2995, %v3123
        %v3144 = vmul.f32 %v2997, %v3125
        %v3145 = vmul.f32 %v2999, %v3127
        %v3146 = vmul.f32 %v3001, %v3129
        %v3147 = vmul.f32 %v3003, %v3131
        %v3148 = vld [vmem:[#allocation2 + $0x8] sm:$0x1]
        %v3149 = vld [vmem:[#allocation2 + $0x18] sm:$0x1]
        %v3150 = vld [vmem:[#allocation2 + $0x28] sm:$0x1]
        %v3151 = vld [vmem:[#allocation2 + $0x38] sm:$0x1]
        %v3152 = vld [vmem:[#allocation2 + $0x48] sm:$0x1]
        %v3153 = vld [vmem:[#allocation2 + $0x58] sm:$0x1]
        %v3154 = vld [vmem:[#allocation2 + $0x68] sm:$0x1]
        %v3155 = vld [vmem:[#allocation2 + $0x78] sm:$0x1]
        %v3156 = vpack.c.bf16 %v3140, %v3140
        %v3157 = vpack.c.bf16 %v3141, %v3141
        %v3158 = vpack.c.bf16 %v3142, %v3142
        %v3159 = vpack.c.bf16 %v3143, %v3143
        %v3160 = vpack.c.bf16 %v3144, %v3144
        %v3161 = vpack.c.bf16 %v3145, %v3145
        %v3162 = vpack.c.bf16 %v3146, %v3146
        %v3163 = vpack.c.bf16 %v3147, %v3147
        %v3172 = vunpack.c.l.b16 %v3156
        %v3173 = vunpack.c.l.b16 %v3157
        %v3174 = vunpack.c.l.b16 %v3158
        %v3175 = vunpack.c.l.b16 %v3159
        %v3176 = vunpack.c.l.b16 %v3160
        %v3177 = vunpack.c.l.b16 %v3161
        %v3178 = vunpack.c.l.b16 %v3162
        %v3179 = vunpack.c.l.b16 %v3163
        %v3180 = vrot.slane %v3173, 7
        %v3181 = vsel %vm1018, %v3180, %v3172
        %v3182 = vrot.slane %v3174, 6
        %v3183 = vsel %vm1021, %v3182, %v3181
        %v3184 = vrot.slane %v3175, 5
        %v3185 = vsel %vm1024, %v3184, %v3183
        %v3186 = vrot.slane %v3176, 4
        %v3187 = vsel %vm1027, %v3186, %v3185
        %v3188 = vrot.slane %v3177, 3
        %v3189 = vsel %vm1030, %v3188, %v3187
        %v3190 = vrot.slane %v3178, 2
        %v3191 = vsel %vm1033, %v3190, %v3189
        %v3192 = vrot.slane %v3179, 1
        %v3193 = vsel %vm1036, %v3192, %v3191
        %v3194 = vpack.c.b16 %v3193, %v3193
        %3195 = vrot.lane.b32.xlu0 %v3194, 32
        %v3196 = vpop.permute.xlu0 %3195
        %v3198 = vsel %vm725, %v3196, 0
        %3200 = vmatprep.subr.bf16.mxu0 0
        %3201 = vmatpush1.bf16.msra.mxu0 %v721
        %3202 = vmatprep.subr.bf16.mxu0 0
        %3203 = vmatpush1.bf16.msra.mxu0 %v722
        %3204 = vmatprep.subr.bf16.mxu0 0
        %3205 = vmatpush1.bf16.msra.mxu0 0
        %3206 = vmatprep.subr.bf16.mxu0 0
        %3207 = vmatpush1.bf16.msra.mxu0 0
        %3208 = vmatprep.subr.bf16.mxu0 0
        %3209 = vmatpush1.bf16.msra.mxu0 0
        %3210 = vmatprep.subr.bf16.mxu0 0
        %3211 = vmatpush1.bf16.msra.mxu0 0
        %3212 = vmatprep.subr.bf16.mxu0 0
        %3213 = vmatpush1.bf16.msra.mxu0 0
        %3214 = vmatprep.subr.bf16.mxu0 0
        %3215 = vmatpush1.bf16.msra.mxu0 0
        %3216 = vmatprep.subr.bf16.mxu0 0
        %3217 = vmatpush1.bf16.msra.mxu0 0
        %3218 = vmatprep.subr.bf16.mxu0 0
        %3219 = vmatpush1.bf16.msra.mxu0 0
        %3220 = vmatprep.subr.bf16.mxu0 0
        %3221 = vmatpush1.bf16.msra.mxu0 0
        %3222 = vmatprep.subr.bf16.mxu0 0
        %3223 = vmatpush1.bf16.msra.mxu0 0
        %3224 = vmatprep.subr.bf16.mxu0 0
        %3225 = vmatpush1.bf16.msra.mxu0 0
        %3226 = vmatprep.subr.bf16.mxu0 0
        %3227 = vmatpush1.bf16.msra.mxu0 0
        %3228 = vmatprep.subr.bf16.mxu0 0
        %3229 = vmatpush1.bf16.msra.mxu0 0
        %3230 = vmatprep.subr.bf16.mxu0 0
        %3231 = vmatpush1.bf16.msra.mxu0 0
        %3232 = vmatprep.mubr.bf16.mxu0 0
        %3233 = vmatmul.mubr.bf16.gmra.mrb[0].mxu0 %v3198
        %v3234 = vpop.f32.mrb[0].mxu0
        %v3235 = vadd.f32 0.0, %v3234
        %v3236 = vpop.f32.mrb[0].mxu0
        %v3237 = vpop.f32.mrb[0].mxu0
        %v3238 = vpop.f32.mrb[0].mxu0
        %3239 = vdwg.mxu0
        %v3241 = vrot.slane %v3235, 1
        %v3242 = vrot.slane %v3235, 2
        %v3243 = vrot.slane %v3235, 3
        %v3244 = vrot.slane %v3235, 4
        %v3245 = vrot.slane %v3235, 5
        %v3246 = vrot.slane %v3235, 6
        %v3247 = vrot.slane %v3235, 7
        %v3256 = vadd.f32 %v3148, %v3235
        %v3257 = vadd.f32 %v3149, %v3241
        %v3258 = vadd.f32 %v3150, %v3242
        %v3259 = vadd.f32 %v3151, %v3243
        %v3260 = vadd.f32 %v3152, %v3244
        %v3261 = vadd.f32 %v3153, %v3245
        %v3262 = vadd.f32 %v3154, %v3246
        %v3263 = vadd.f32 %v3155, %v3247
        %v3264 = vxor.u32 %v3256, 2147483648
        %v3265 = vxor.u32 %v3257, 2147483648
        %v3266 = vxor.u32 %v3258, 2147483648
        %v3267 = vxor.u32 %v3259, 2147483648
        %v3268 = vxor.u32 %v3260, 2147483648
        %v3269 = vxor.u32 %v3261, 2147483648
        %v3270 = vxor.u32 %v3262, 2147483648
        %v3271 = vxor.u32 %v3263, 2147483648
        %v3272 = vmul.f32 %v3264, 1.442695
        %v3273 = vpow.pop %v3272
        %v3274 = vmul.f32 %v3265, 1.442695
        %v3275 = vpow.pop %v3274
        %v3276 = vmul.f32 %v3266, 1.442695
        %v3277 = vpow.pop %v3276
        %v3278 = vmul.f32 %v3267, 1.442695
        %v3279 = vpow.pop %v3278
        %v3280 = vmul.f32 %v3268, 1.442695
        %v3281 = vpow.pop %v3280
        %v3282 = vmul.f32 %v3269, 1.442695
        %v3283 = vpow.pop %v3282
        %v3284 = vmul.f32 %v3270, 1.442695
        %v3285 = vpow.pop %v3284
        %v3286 = vmul.f32 %v3271, 1.442695
        %v3287 = vpow.pop %v3286
        %v3288 = vadd.f32 %v3273, 1.0
        %v3289 = vadd.f32 %v3275, 1.0
        %v3290 = vadd.f32 %v3277, 1.0
        %v3291 = vadd.f32 %v3279, 1.0
        %v3292 = vadd.f32 %v3281, 1.0
        %v3293 = vadd.f32 %v3283, 1.0
        %v3294 = vadd.f32 %v3285, 1.0
        %v3295 = vadd.f32 %v3287, 1.0
        %v3296 = vrcp.pop %v3288
        %v3297 = vmul.f32 1.0, %v3296
        %v3298 = vrcp.pop %v3289
        %v3299 = vmul.f32 1.0, %v3298
        %v3300 = vrcp.pop %v3290
        %v3301 = vmul.f32 1.0, %v3300
        %v3302 = vrcp.pop %v3291
        %v3303 = vmul.f32 1.0, %v3302
        %v3304 = vrcp.pop %v3292
        %v3305 = vmul.f32 1.0, %v3304
        %v3306 = vrcp.pop %v3293
        %v3307 = vmul.f32 1.0, %v3306
        %v3308 = vrcp.pop %v3294
        %v3309 = vmul.f32 1.0, %v3308
        %v3310 = vrcp.pop %v3295
        %v3311 = vmul.f32 1.0, %v3310
        %v3312 = vtanh.pop %v3256
        %v3313 = vtanh.pop %v3257
        %v3314 = vtanh.pop %v3258
        %v3315 = vtanh.pop %v3259
        %v3316 = vtanh.pop %v3260
        %v3317 = vtanh.pop %v3261
        %v3318 = vtanh.pop %v3262
        %v3319 = vtanh.pop %v3263
        %v3320 = vmul.f32 %v3297, %v3092
        %v3321 = vmul.f32 %v3299, %v3093
        %v3322 = vmul.f32 %v3301, %v3094
        %v3323 = vmul.f32 %v3303, %v3095
        %v3324 = vmul.f32 %v3305, %v3096
        %v3325 = vmul.f32 %v3307, %v3097
        %v3326 = vmul.f32 %v3309, %v3098
        %v3327 = vmul.f32 %v3311, %v3099
        %3336 = vrot.lane.b32.xlu0 %v3312, 64
        %v3337 = vpop.permute.xlu0 %3336
        %3338 = vrot.lane.b32.xlu0 %v3313, 64
        %v3339 = vpop.permute.xlu0 %3338
        %3340 = vrot.lane.b32.xlu0 %v3314, 64
        %v3341 = vpop.permute.xlu0 %3340
        %3342 = vrot.lane.b32.xlu0 %v3315, 64
        %v3343 = vpop.permute.xlu0 %3342
        %3344 = vrot.lane.b32.xlu0 %v3316, 64
        %v3345 = vpop.permute.xlu0 %3344
        %3346 = vrot.lane.b32.xlu0 %v3317, 64
        %v3347 = vpop.permute.xlu0 %3346
        %3348 = vrot.lane.b32.xlu0 %v3318, 64
        %v3349 = vpop.permute.xlu0 %3348
        %3350 = vrot.lane.b32.xlu0 %v3319, 64
        %v3351 = vpop.permute.xlu0 %3350
        %v3360 = vmul.f32 %v3297, %v3337
        %v3361 = vmul.f32 %v3299, %v3339
        %v3362 = vmul.f32 %v3301, %v3341
        %v3363 = vmul.f32 %v3303, %v3343
        %v3364 = vmul.f32 %v3305, %v3345
        %v3365 = vmul.f32 %v3307, %v3347
        %v3366 = vmul.f32 %v3309, %v3349
        %v3367 = vmul.f32 %v3311, %v3351
        %3376 = vrot.lane.b32.xlu0 %v3360, 32
        %v3377 = vpop.permute.xlu0 %3376
        %3378 = vrot.lane.b32.xlu0 %v3361, 32
        %v3379 = vpop.permute.xlu0 %3378
        %3380 = vrot.lane.b32.xlu0 %v3362, 32
        %v3381 = vpop.permute.xlu0 %3380
        %3382 = vrot.lane.b32.xlu0 %v3363, 32
        %v3383 = vpop.permute.xlu0 %3382
        %3384 = vrot.lane.b32.xlu0 %v3364, 32
        %v3385 = vpop.permute.xlu0 %3384
        %3386 = vrot.lane.b32.xlu0 %v3365, 32
        %v3387 = vpop.permute.xlu0 %3386
        %3388 = vrot.lane.b32.xlu0 %v3366, 32
        %v3389 = vpop.permute.xlu0 %3388
        %3390 = vrot.lane.b32.xlu0 %v3367, 32
        %v3391 = vpop.permute.xlu0 %3390
        %v3400 = vadd.f32 %v3320, %v3377
        %v3401 = vadd.f32 %v3321, %v3379
        %v3402 = vadd.f32 %v3322, %v3381
        %v3403 = vadd.f32 %v3323, %v3383
        %v3404 = vadd.f32 %v3324, %v3385
        %v3405 = vadd.f32 %v3325, %v3387
        %v3406 = vadd.f32 %v3326, %v3389
        %v3407 = vadd.f32 %v3327, %v3391
        %v3408 = vtanh.pop %v3400
        %v3409 = vtanh.pop %v3401
        %v3410 = vtanh.pop %v3402
        %v3411 = vtanh.pop %v3403
        %v3412 = vtanh.pop %v3404
        %v3413 = vtanh.pop %v3405
        %v3414 = vtanh.pop %v3406
        %v3415 = vtanh.pop %v3407
        %3424 = vrot.lane.b32.xlu0 %v3408, 64
        %v3425 = vpop.permute.xlu0 %3424
        %3426 = vrot.lane.b32.xlu0 %v3409, 64
        %v3427 = vpop.permute.xlu0 %3426
        %3428 = vrot.lane.b32.xlu0 %v3410, 64
        %v3429 = vpop.permute.xlu0 %3428
        %3430 = vrot.lane.b32.xlu0 %v3411, 64
        %v3431 = vpop.permute.xlu0 %3430
        %3432 = vrot.lane.b32.xlu0 %v3412, 64
        %v3433 = vpop.permute.xlu0 %3432
        %3434 = vrot.lane.b32.xlu0 %v3413, 64
        %v3435 = vpop.permute.xlu0 %3434
        %3436 = vrot.lane.b32.xlu0 %v3414, 64
        %v3437 = vpop.permute.xlu0 %3436
        %3438 = vrot.lane.b32.xlu0 %v3415, 64
        %v3439 = vpop.permute.xlu0 %3438
        %v3448 = vmul.f32 %v3297, %v3425
        %v3449 = vmul.f32 %v3299, %v3427
        %v3450 = vmul.f32 %v3301, %v3429
        %v3451 = vmul.f32 %v3303, %v3431
        %v3452 = vmul.f32 %v3305, %v3433
        %v3453 = vmul.f32 %v3307, %v3435
        %v3454 = vmul.f32 %v3309, %v3437
        %v3455 = vmul.f32 %v3311, %v3439
        %v3456 = vld [vmem:[#allocation2 + $0x9] sm:$0x1]
        %v3457 = vld [vmem:[#allocation2 + $0x19] sm:$0x1]
        %v3458 = vld [vmem:[#allocation2 + $0x29] sm:$0x1]
        %v3459 = vld [vmem:[#allocation2 + $0x39] sm:$0x1]
        %v3460 = vld [vmem:[#allocation2 + $0x49] sm:$0x1]
        %v3461 = vld [vmem:[#allocation2 + $0x59] sm:$0x1]
        %v3462 = vld [vmem:[#allocation2 + $0x69] sm:$0x1]
        %v3463 = vld [vmem:[#allocation2 + $0x79] sm:$0x1]
        %v3464 = vpack.c.bf16 %v3448, %v3448
        %v3465 = vpack.c.bf16 %v3449, %v3449
        %v3466 = vpack.c.bf16 %v3450, %v3450
        %v3467 = vpack.c.bf16 %v3451, %v3451
        %v3468 = vpack.c.bf16 %v3452, %v3452
        %v3469 = vpack.c.bf16 %v3453, %v3453
        %v3470 = vpack.c.bf16 %v3454, %v3454
        %v3471 = vpack.c.bf16 %v3455, %v3455
        %v3480 = vunpack.c.l.b16 %v3464
        %v3481 = vunpack.c.l.b16 %v3465
        %v3482 = vunpack.c.l.b16 %v3466
        %v3483 = vunpack.c.l.b16 %v3467
        %v3484 = vunpack.c.l.b16 %v3468
        %v3485 = vunpack.c.l.b16 %v3469
        %v3486 = vunpack.c.l.b16 %v3470
        %v3487 = vunpack.c.l.b16 %v3471
        %v3488 = vrot.slane %v3481, 7
        %v3489 = vsel %vm1018, %v3488, %v3480
        %v3490 = vrot.slane %v3482, 6
        %v3491 = vsel %vm1021, %v3490, %v3489
        %v3492 = vrot.slane %v3483, 5
        %v3493 = vsel %vm1024, %v3492, %v3491
        %v3494 = vrot.slane %v3484, 4
        %v3495 = vsel %vm1027, %v3494, %v3493
        %v3496 = vrot.slane %v3485, 3
        %v3497 = vsel %vm1030, %v3496, %v3495
        %v3498 = vrot.slane %v3486, 2
        %v3499 = vsel %vm1033, %v3498, %v3497
        %v3500 = vrot.slane %v3487, 1
        %v3501 = vsel %vm1036, %v3500, %v3499
        %v3502 = vpack.c.b16 %v3501, %v3501
        %3503 = vrot.lane.b32.xlu0 %v3502, 32
        %v3504 = vpop.permute.xlu0 %3503
        %v3506 = vsel %vm725, %v3504, 0
        %3508 = vmatprep.subr.bf16.mxu0 0
        %3509 = vmatpush1.bf16.msra.mxu0 %v721
        %3510 = vmatprep.subr.bf16.mxu0 0
        %3511 = vmatpush1.bf16.msra.mxu0 %v722
        %3512 = vmatprep.subr.bf16.mxu0 0
        %3513 = vmatpush1.bf16.msra.mxu0 0
        %3514 = vmatprep.subr.bf16.mxu0 0
        %3515 = vmatpush1.bf16.msra.mxu0 0
        %3516 = vmatprep.subr.bf16.mxu0 0
        %3517 = vmatpush1.bf16.msra.mxu0 0
        %3518 = vmatprep.subr.bf16.mxu0 0
        %3519 = vmatpush1.bf16.msra.mxu0 0
        %3520 = vmatprep.subr.bf16.mxu0 0
        %3521 = vmatpush1.bf16.msra.mxu0 0
        %3522 = vmatprep.subr.bf16.mxu0 0
        %3523 = vmatpush1.bf16.msra.mxu0 0
        %3524 = vmatprep.subr.bf16.mxu0 0
        %3525 = vmatpush1.bf16.msra.mxu0 0
        %3526 = vmatprep.subr.bf16.mxu0 0
        %3527 = vmatpush1.bf16.msra.mxu0 0
        %3528 = vmatprep.subr.bf16.mxu0 0
        %3529 = vmatpush1.bf16.msra.mxu0 0
        %3530 = vmatprep.subr.bf16.mxu0 0
        %3531 = vmatpush1.bf16.msra.mxu0 0
        %3532 = vmatprep.subr.bf16.mxu0 0
        %3533 = vmatpush1.bf16.msra.mxu0 0
        %3534 = vmatprep.subr.bf16.mxu0 0
        %3535 = vmatpush1.bf16.msra.mxu0 0
        %3536 = vmatprep.subr.bf16.mxu0 0
        %3537 = vmatpush1.bf16.msra.mxu0 0
        %3538 = vmatprep.subr.bf16.mxu0 0
        %3539 = vmatpush1.bf16.msra.mxu0 0
        %3540 = vmatprep.mubr.bf16.mxu0 0
        %3541 = vmatmul.mubr.bf16.gmra.mrb[0].mxu0 %v3506
        %v3542 = vpop.f32.mrb[0].mxu0
        %v3543 = vadd.f32 0.0, %v3542
        %v3544 = vpop.f32.mrb[0].mxu0
        %v3545 = vpop.f32.mrb[0].mxu0
        %v3546 = vpop.f32.mrb[0].mxu0
        %3547 = vdwg.mxu0
        %v3549 = vrot.slane %v3543, 1
        %v3550 = vrot.slane %v3543, 2
        %v3551 = vrot.slane %v3543, 3
        %v3552 = vrot.slane %v3543, 4
        %v3553 = vrot.slane %v3543, 5
        %v3554 = vrot.slane %v3543, 6
        %v3555 = vrot.slane %v3543, 7
        %v3564 = vadd.f32 %v3456, %v3543
        %v3565 = vadd.f32 %v3457, %v3549
        %v3566 = vadd.f32 %v3458, %v3550
        %v3567 = vadd.f32 %v3459, %v3551
        %v3568 = vadd.f32 %v3460, %v3552
        %v3569 = vadd.f32 %v3461, %v3553
        %v3570 = vadd.f32 %v3462, %v3554
        %v3571 = vadd.f32 %v3463, %v3555
        %v3572 = vxor.u32 %v3564, 2147483648
        %v3573 = vxor.u32 %v3565, 2147483648
        %v3574 = vxor.u32 %v3566, 2147483648
        %v3575 = vxor.u32 %v3567, 2147483648
        %v3576 = vxor.u32 %v3568, 2147483648
        %v3577 = vxor.u32 %v3569, 2147483648
        %v3578 = vxor.u32 %v3570, 2147483648
        %v3579 = vxor.u32 %v3571, 2147483648
        %v3580 = vmul.f32 %v3572, 1.442695
        %v3581 = vpow.pop %v3580
        %v3582 = vmul.f32 %v3573, 1.442695
        %v3583 = vpow.pop %v3582
        %v3584 = vmul.f32 %v3574, 1.442695
        %v3585 = vpow.pop %v3584
        %v3586 = vmul.f32 %v3575, 1.442695
        %v3587 = vpow.pop %v3586
        %v3588 = vmul.f32 %v3576, 1.442695
        %v3589 = vpow.pop %v3588
        %v3590 = vmul.f32 %v3577, 1.442695
        %v3591 = vpow.pop %v3590
        %v3592 = vmul.f32 %v3578, 1.442695
        %v3593 = vpow.pop %v3592
        %v3594 = vmul.f32 %v3579, 1.442695
        %v3595 = vpow.pop %v3594
        %v3596 = vadd.f32 %v3581, 1.0
        %v3597 = vadd.f32 %v3583, 1.0
        %v3598 = vadd.f32 %v3585, 1.0
        %v3599 = vadd.f32 %v3587, 1.0
        %v3600 = vadd.f32 %v3589, 1.0
        %v3601 = vadd.f32 %v3591, 1.0
        %v3602 = vadd.f32 %v3593, 1.0
        %v3603 = vadd.f32 %v3595, 1.0
        %v3604 = vrcp.pop %v3596
        %v3605 = vmul.f32 1.0, %v3604
        %v3606 = vrcp.pop %v3597
        %v3607 = vmul.f32 1.0, %v3606
        %v3608 = vrcp.pop %v3598
        %v3609 = vmul.f32 1.0, %v3608
        %v3610 = vrcp.pop %v3599
        %v3611 = vmul.f32 1.0, %v3610
        %v3612 = vrcp.pop %v3600
        %v3613 = vmul.f32 1.0, %v3612
        %v3614 = vrcp.pop %v3601
        %v3615 = vmul.f32 1.0, %v3614
        %v3616 = vrcp.pop %v3602
        %v3617 = vmul.f32 1.0, %v3616
        %v3618 = vrcp.pop %v3603
        %v3619 = vmul.f32 1.0, %v3618
        %v3620 = vtanh.pop %v3564
        %v3621 = vtanh.pop %v3565
        %v3622 = vtanh.pop %v3566
        %v3623 = vtanh.pop %v3567
        %v3624 = vtanh.pop %v3568
        %v3625 = vtanh.pop %v3569
        %v3626 = vtanh.pop %v3570
        %v3627 = vtanh.pop %v3571
        %v3628 = vmul.f32 %v3605, %v3400
        %v3629 = vmul.f32 %v3607, %v3401
        %v3630 = vmul.f32 %v3609, %v3402
        %v3631 = vmul.f32 %v3611, %v3403
        %v3632 = vmul.f32 %v3613, %v3404
        %v3633 = vmul.f32 %v3615, %v3405
        %v3634 = vmul.f32 %v3617, %v3406
        %v3635 = vmul.f32 %v3619, %v3407
        %3644 = vrot.lane.b32.xlu0 %v3620, 64
        %v3645 = vpop.permute.xlu0 %3644
        %3646 = vrot.lane.b32.xlu0 %v3621, 64
        %v3647 = vpop.permute.xlu0 %3646
        %3648 = vrot.lane.b32.xlu0 %v3622, 64
        %v3649 = vpop.permute.xlu0 %3648
        %3650 = vrot.lane.b32.xlu0 %v3623, 64
        %v3651 = vpop.permute.xlu0 %3650
        %3652 = vrot.lane.b32.xlu0 %v3624, 64
        %v3653 = vpop.permute.xlu0 %3652
        %3654 = vrot.lane.b32.xlu0 %v3625, 64
        %v3655 = vpop.permute.xlu0 %3654
        %3656 = vrot.lane.b32.xlu0 %v3626, 64
        %v3657 = vpop.permute.xlu0 %3656
        %3658 = vrot.lane.b32.xlu0 %v3627, 64
        %v3659 = vpop.permute.xlu0 %3658
        %v3668 = vmul.f32 %v3605, %v3645
        %v3669 = vmul.f32 %v3607, %v3647
        %v3670 = vmul.f32 %v3609, %v3649
        %v3671 = vmul.f32 %v3611, %v3651
        %v3672 = vmul.f32 %v3613, %v3653
        %v3673 = vmul.f32 %v3615, %v3655
        %v3674 = vmul.f32 %v3617, %v3657
        %v3675 = vmul.f32 %v3619, %v3659
        %3684 = vrot.lane.b32.xlu0 %v3668, 32
        %v3685 = vpop.permute.xlu0 %3684
        %3686 = vrot.lane.b32.xlu0 %v3669, 32
        %v3687 = vpop.permute.xlu0 %3686
        %3688 = vrot.lane.b32.xlu0 %v3670, 32
        %v3689 = vpop.permute.xlu0 %3688
        %3690 = vrot.lane.b32.xlu0 %v3671, 32
        %v3691 = vpop.permute.xlu0 %3690
        %3692 = vrot.lane.b32.xlu0 %v3672, 32
        %v3693 = vpop.permute.xlu0 %3692
        %3694 = vrot.lane.b32.xlu0 %v3673, 32
        %v3695 = vpop.permute.xlu0 %3694
        %3696 = vrot.lane.b32.xlu0 %v3674, 32
        %v3697 = vpop.permute.xlu0 %3696
        %3698 = vrot.lane.b32.xlu0 %v3675, 32
        %v3699 = vpop.permute.xlu0 %3698
        %v3708 = vadd.f32 %v3628, %v3685
        %v3709 = vadd.f32 %v3629, %v3687
        %v3710 = vadd.f32 %v3630, %v3689
        %v3711 = vadd.f32 %v3631, %v3691
        %v3712 = vadd.f32 %v3632, %v3693
        %v3713 = vadd.f32 %v3633, %v3695
        %v3714 = vadd.f32 %v3634, %v3697
        %v3715 = vadd.f32 %v3635, %v3699
        %v3716 = vtanh.pop %v3708
        %v3717 = vtanh.pop %v3709
        %v3718 = vtanh.pop %v3710
        %v3719 = vtanh.pop %v3711
        %v3720 = vtanh.pop %v3712
        %v3721 = vtanh.pop %v3713
        %v3722 = vtanh.pop %v3714
        %v3723 = vtanh.pop %v3715
        %3732 = vrot.lane.b32.xlu0 %v3716, 64
        %v3733 = vpop.permute.xlu0 %3732
        %3734 = vrot.lane.b32.xlu0 %v3717, 64
        %v3735 = vpop.permute.xlu0 %3734
        %3736 = vrot.lane.b32.xlu0 %v3718, 64
        %v3737 = vpop.permute.xlu0 %3736
        %3738 = vrot.lane.b32.xlu0 %v3719, 64
        %v3739 = vpop.permute.xlu0 %3738
        %3740 = vrot.lane.b32.xlu0 %v3720, 64
        %v3741 = vpop.permute.xlu0 %3740
        %3742 = vrot.lane.b32.xlu0 %v3721, 64
        %v3743 = vpop.permute.xlu0 %3742
        %3744 = vrot.lane.b32.xlu0 %v3722, 64
        %v3745 = vpop.permute.xlu0 %3744
        %3746 = vrot.lane.b32.xlu0 %v3723, 64
        %v3747 = vpop.permute.xlu0 %3746
        %v3756 = vmul.f32 %v3605, %v3733
        %v3757 = vmul.f32 %v3607, %v3735
        %v3758 = vmul.f32 %v3609, %v3737
        %v3759 = vmul.f32 %v3611, %v3739
        %v3760 = vmul.f32 %v3613, %v3741
        %v3761 = vmul.f32 %v3615, %v3743
        %v3762 = vmul.f32 %v3617, %v3745
        %v3763 = vmul.f32 %v3619, %v3747
        %v3764 = vld [vmem:[#allocation2 + $0xa] sm:$0x1]
        %v3765 = vld [vmem:[#allocation2 + $0x1a] sm:$0x1]
        %v3766 = vld [vmem:[#allocation2 + $0x2a] sm:$0x1]
        %v3767 = vld [vmem:[#allocation2 + $0x3a] sm:$0x1]
        %v3768 = vld [vmem:[#allocation2 + $0x4a] sm:$0x1]
        %v3769 = vld [vmem:[#allocation2 + $0x5a] sm:$0x1]
        %v3770 = vld [vmem:[#allocation2 + $0x6a] sm:$0x1]
        %v3771 = vld [vmem:[#allocation2 + $0x7a] sm:$0x1]
        %v3772 = vpack.c.bf16 %v3756, %v3756
        %v3773 = vpack.c.bf16 %v3757, %v3757
        %v3774 = vpack.c.bf16 %v3758, %v3758
        %v3775 = vpack.c.bf16 %v3759, %v3759
        %v3776 = vpack.c.bf16 %v3760, %v3760
        %v3777 = vpack.c.bf16 %v3761, %v3761
        %v3778 = vpack.c.bf16 %v3762, %v3762
        %v3779 = vpack.c.bf16 %v3763, %v3763
        %v3788 = vunpack.c.l.b16 %v3772
        %v3789 = vunpack.c.l.b16 %v3773
        %v3790 = vunpack.c.l.b16 %v3774
        %v3791 = vunpack.c.l.b16 %v3775
        %v3792 = vunpack.c.l.b16 %v3776
        %v3793 = vunpack.c.l.b16 %v3777
        %v3794 = vunpack.c.l.b16 %v3778
        %v3795 = vunpack.c.l.b16 %v3779
        %v3796 = vrot.slane %v3789, 7
        %v3797 = vsel %vm1018, %v3796, %v3788
        %v3798 = vrot.slane %v3790, 6
        %v3799 = vsel %vm1021, %v3798, %v3797
        %v3800 = vrot.slane %v3791, 5
        %v3801 = vsel %vm1024, %v3800, %v3799
        %v3802 = vrot.slane %v3792, 4
        %v3803 = vsel %vm1027, %v3802, %v3801
        %v3804 = vrot.slane %v3793, 3
        %v3805 = vsel %vm1030, %v3804, %v3803
        %v3806 = vrot.slane %v3794, 2
        %v3807 = vsel %vm1033, %v3806, %v3805
        %v3808 = vrot.slane %v3795, 1
        %v3809 = vsel %vm1036, %v3808, %v3807
        %v3810 = vpack.c.b16 %v3809, %v3809
        %3811 = vrot.lane.b32.xlu0 %v3810, 32
        %v3812 = vpop.permute.xlu0 %3811
        %v3814 = vsel %vm725, %v3812, 0
        %3816 = vmatprep.subr.bf16.mxu0 0
        %3817 = vmatpush1.bf16.msra.mxu0 %v721
        %3818 = vmatprep.subr.bf16.mxu0 0
        %3819 = vmatpush1.bf16.msra.mxu0 %v722
        %3820 = vmatprep.subr.bf16.mxu0 0
        %3821 = vmatpush1.bf16.msra.mxu0 0
        %3822 = vmatprep.subr.bf16.mxu0 0
        %3823 = vmatpush1.bf16.msra.mxu0 0
        %3824 = vmatprep.subr.bf16.mxu0 0
        %3825 = vmatpush1.bf16.msra.mxu0 0
        %3826 = vmatprep.subr.bf16.mxu0 0
        %3827 = vmatpush1.bf16.msra.mxu0 0
        %3828 = vmatprep.subr.bf16.mxu0 0
        %3829 = vmatpush1.bf16.msra.mxu0 0
        %3830 = vmatprep.subr.bf16.mxu0 0
        %3831 = vmatpush1.bf16.msra.mxu0 0
        %3832 = vmatprep.subr.bf16.mxu0 0
        %3833 = vmatpush1.bf16.msra.mxu0 0
        %3834 = vmatprep.subr.bf16.mxu0 0
        %3835 = vmatpush1.bf16.msra.mxu0 0
        %3836 = vmatprep.subr.bf16.mxu0 0
        %3837 = vmatpush1.bf16.msra.mxu0 0
        %3838 = vmatprep.subr.bf16.mxu0 0
        %3839 = vmatpush1.bf16.msra.mxu0 0
        %3840 = vmatprep.subr.bf16.mxu0 0
        %3841 = vmatpush1.bf16.msra.mxu0 0
        %3842 = vmatprep.subr.bf16.mxu0 0
        %3843 = vmatpush1.bf16.msra.mxu0 0
        %3844 = vmatprep.subr.bf16.mxu0 0
        %3845 = vmatpush1.bf16.msra.mxu0 0
        %3846 = vmatprep.subr.bf16.mxu0 0
        %3847 = vmatpush1.bf16.msra.mxu0 0
        %3848 = vmatprep.mubr.bf16.mxu0 0
        %3849 = vmatmul.mubr.bf16.gmra.mrb[0].mxu0 %v3814
        %v3850 = vpop.f32.mrb[0].mxu0
        %v3851 = vadd.f32 0.0, %v3850
        %v3852 = vpop.f32.mrb[0].mxu0
        %v3853 = vpop.f32.mrb[0].mxu0
        %v3854 = vpop.f32.mrb[0].mxu0
        %3855 = vdwg.mxu0
        %v3857 = vrot.slane %v3851, 1
        %v3858 = vrot.slane %v3851, 2
        %v3859 = vrot.slane %v3851, 3
        %v3860 = vrot.slane %v3851, 4
        %v3861 = vrot.slane %v3851, 5
        %v3862 = vrot.slane %v3851, 6
        %v3863 = vrot.slane %v3851, 7
        %v3872 = vadd.f32 %v3764, %v3851
        %v3873 = vadd.f32 %v3765, %v3857
        %v3874 = vadd.f32 %v3766, %v3858
        %v3875 = vadd.f32 %v3767, %v3859
        %v3876 = vadd.f32 %v3768, %v3860
        %v3877 = vadd.f32 %v3769, %v3861
        %v3878 = vadd.f32 %v3770, %v3862
        %v3879 = vadd.f32 %v3771, %v3863
        %v3880 = vxor.u32 %v3872, 2147483648
        %v3881 = vxor.u32 %v3873, 2147483648
        %v3882 = vxor.u32 %v3874, 2147483648
        %v3883 = vxor.u32 %v3875, 2147483648
        %v3884 = vxor.u32 %v3876, 2147483648
        %v3885 = vxor.u32 %v3877, 2147483648
        %v3886 = vxor.u32 %v3878, 2147483648
        %v3887 = vxor.u32 %v3879, 2147483648
        %v3888 = vmul.f32 %v3880, 1.442695
        %v3889 = vpow.pop %v3888
        %v3890 = vmul.f32 %v3881, 1.442695
        %v3891 = vpow.pop %v3890
        %v3892 = vmul.f32 %v3882, 1.442695
        %v3893 = vpow.pop %v3892
        %v3894 = vmul.f32 %v3883, 1.442695
        %v3895 = vpow.pop %v3894
        %v3896 = vmul.f32 %v3884, 1.442695
        %v3897 = vpow.pop %v3896
        %v3898 = vmul.f32 %v3885, 1.442695
        %v3899 = vpow.pop %v3898
        %v3900 = vmul.f32 %v3886, 1.442695
        %v3901 = vpow.pop %v3900
        %v3902 = vmul.f32 %v3887, 1.442695
        %v3903 = vpow.pop %v3902
        %v3904 = vadd.f32 %v3889, 1.0
        %v3905 = vadd.f32 %v3891, 1.0
        %v3906 = vadd.f32 %v3893, 1.0
        %v3907 = vadd.f32 %v3895, 1.0
        %v3908 = vadd.f32 %v3897, 1.0
        %v3909 = vadd.f32 %v3899, 1.0
        %v3910 = vadd.f32 %v3901, 1.0
        %v3911 = vadd.f32 %v3903, 1.0
        %v3912 = vrcp.pop %v3904
        %v3913 = vmul.f32 1.0, %v3912
        %v3914 = vrcp.pop %v3905
        %v3915 = vmul.f32 1.0, %v3914
        %v3916 = vrcp.pop %v3906
        %v3917 = vmul.f32 1.0, %v3916
        %v3918 = vrcp.pop %v3907
        %v3919 = vmul.f32 1.0, %v3918
        %v3920 = vrcp.pop %v3908
        %v3921 = vmul.f32 1.0, %v3920
        %v3922 = vrcp.pop %v3909
        %v3923 = vmul.f32 1.0, %v3922
        %v3924 = vrcp.pop %v3910
        %v3925 = vmul.f32 1.0, %v3924
        %v3926 = vrcp.pop %v3911
        %v3927 = vmul.f32 1.0, %v3926
        %v3928 = vtanh.pop %v3872
        %v3929 = vtanh.pop %v3873
        %v3930 = vtanh.pop %v3874
        %v3931 = vtanh.pop %v3875
        %v3932 = vtanh.pop %v3876
        %v3933 = vtanh.pop %v3877
        %v3934 = vtanh.pop %v3878
        %v3935 = vtanh.pop %v3879
        %v3936 = vmul.f32 %v3913, %v3708
        %v3937 = vmul.f32 %v3915, %v3709
        %v3938 = vmul.f32 %v3917, %v3710
        %v3939 = vmul.f32 %v3919, %v3711
        %v3940 = vmul.f32 %v3921, %v3712
        %v3941 = vmul.f32 %v3923, %v3713
        %v3942 = vmul.f32 %v3925, %v3714
        %v3943 = vmul.f32 %v3927, %v3715
        %3952 = vrot.lane.b32.xlu0 %v3928, 64
        %v3953 = vpop.permute.xlu0 %3952
        %3954 = vrot.lane.b32.xlu0 %v3929, 64
        %v3955 = vpop.permute.xlu0 %3954
        %3956 = vrot.lane.b32.xlu0 %v3930, 64
        %v3957 = vpop.permute.xlu0 %3956
        %3958 = vrot.lane.b32.xlu0 %v3931, 64
        %v3959 = vpop.permute.xlu0 %3958
        %3960 = vrot.lane.b32.xlu0 %v3932, 64
        %v3961 = vpop.permute.xlu0 %3960
        %3962 = vrot.lane.b32.xlu0 %v3933, 64
        %v3963 = vpop.permute.xlu0 %3962
        %3964 = vrot.lane.b32.xlu0 %v3934, 64
        %v3965 = vpop.permute.xlu0 %3964
        %3966 = vrot.lane.b32.xlu0 %v3935, 64
        %v3967 = vpop.permute.xlu0 %3966
        %v3976 = vmul.f32 %v3913, %v3953
        %v3977 = vmul.f32 %v3915, %v3955
        %v3978 = vmul.f32 %v3917, %v3957
        %v3979 = vmul.f32 %v3919, %v3959
        %v3980 = vmul.f32 %v3921, %v3961
        %v3981 = vmul.f32 %v3923, %v3963
        %v3982 = vmul.f32 %v3925, %v3965
        %v3983 = vmul.f32 %v3927, %v3967
        %3992 = vrot.lane.b32.xlu0 %v3976, 32
        %v3993 = vpop.permute.xlu0 %3992
        %3994 = vrot.lane.b32.xlu0 %v3977, 32
        %v3995 = vpop.permute.xlu0 %3994
        %3996 = vrot.lane.b32.xlu0 %v3978, 32
        %v3997 = vpop.permute.xlu0 %3996
        %3998 = vrot.lane.b32.xlu0 %v3979, 32
        %v3999 = vpop.permute.xlu0 %3998
        %4000 = vrot.lane.b32.xlu0 %v3980, 32
        %v4001 = vpop.permute.xlu0 %4000
        %4002 = vrot.lane.b32.xlu0 %v3981, 32
        %v4003 = vpop.permute.xlu0 %4002
        %4004 = vrot.lane.b32.xlu0 %v3982, 32
        %v4005 = vpop.permute.xlu0 %4004
        %4006 = vrot.lane.b32.xlu0 %v3983, 32
        %v4007 = vpop.permute.xlu0 %4006
        %v4016 = vadd.f32 %v3936, %v3993
        %v4017 = vadd.f32 %v3937, %v3995
        %v4018 = vadd.f32 %v3938, %v3997
        %v4019 = vadd.f32 %v3939, %v3999
        %v4020 = vadd.f32 %v3940, %v4001
        %v4021 = vadd.f32 %v3941, %v4003
        %v4022 = vadd.f32 %v3942, %v4005
        %v4023 = vadd.f32 %v3943, %v4007
        %v4024 = vtanh.pop %v4016
        %v4025 = vtanh.pop %v4017
        %v4026 = vtanh.pop %v4018
        %v4027 = vtanh.pop %v4019
        %v4028 = vtanh.pop %v4020
        %v4029 = vtanh.pop %v4021
        %v4030 = vtanh.pop %v4022
        %v4031 = vtanh.pop %v4023
        %4040 = vrot.lane.b32.xlu0 %v4024, 64
        %v4041 = vpop.permute.xlu0 %4040
        %4042 = vrot.lane.b32.xlu0 %v4025, 64
        %v4043 = vpop.permute.xlu0 %4042
        %4044 = vrot.lane.b32.xlu0 %v4026, 64
        %v4045 = vpop.permute.xlu0 %4044
        %4046 = vrot.lane.b32.xlu0 %v4027, 64
        %v4047 = vpop.permute.xlu0 %4046
        %4048 = vrot.lane.b32.xlu0 %v4028, 64
        %v4049 = vpop.permute.xlu0 %4048
        %4050 = vrot.lane.b32.xlu0 %v4029, 64
        %v4051 = vpop.permute.xlu0 %4050
        %4052 = vrot.lane.b32.xlu0 %v4030, 64
        %v4053 = vpop.permute.xlu0 %4052
        %4054 = vrot.lane.b32.xlu0 %v4031, 64
        %v4055 = vpop.permute.xlu0 %4054
        %v4064 = vmul.f32 %v3913, %v4041
        %v4065 = vmul.f32 %v3915, %v4043
        %v4066 = vmul.f32 %v3917, %v4045
        %v4067 = vmul.f32 %v3919, %v4047
        %v4068 = vmul.f32 %v3921, %v4049
        %v4069 = vmul.f32 %v3923, %v4051
        %v4070 = vmul.f32 %v3925, %v4053
        %v4071 = vmul.f32 %v3927, %v4055
        %v4072 = vld [vmem:[#allocation2 + $0xb] sm:$0x1]
        %v4073 = vld [vmem:[#allocation2 + $0x1b] sm:$0x1]
        %v4074 = vld [vmem:[#allocation2 + $0x2b] sm:$0x1]
        %v4075 = vld [vmem:[#allocation2 + $0x3b] sm:$0x1]
        %v4076 = vld [vmem:[#allocation2 + $0x4b] sm:$0x1]
        %v4077 = vld [vmem:[#allocation2 + $0x5b] sm:$0x1]
        %v4078 = vld [vmem:[#allocation2 + $0x6b] sm:$0x1]
        %v4079 = vld [vmem:[#allocation2 + $0x7b] sm:$0x1]
        %v4080 = vpack.c.bf16 %v4064, %v4064
        %v4081 = vpack.c.bf16 %v4065, %v4065
        %v4082 = vpack.c.bf16 %v4066, %v4066
        %v4083 = vpack.c.bf16 %v4067, %v4067
        %v4084 = vpack.c.bf16 %v4068, %v4068
        %v4085 = vpack.c.bf16 %v4069, %v4069
        %v4086 = vpack.c.bf16 %v4070, %v4070
        %v4087 = vpack.c.bf16 %v4071, %v4071
        %v4096 = vunpack.c.l.b16 %v4080
        %v4097 = vunpack.c.l.b16 %v4081
        %v4098 = vunpack.c.l.b16 %v4082
        %v4099 = vunpack.c.l.b16 %v4083
        %v4100 = vunpack.c.l.b16 %v4084
        %v4101 = vunpack.c.l.b16 %v4085
        %v4102 = vunpack.c.l.b16 %v4086
        %v4103 = vunpack.c.l.b16 %v4087
        %v4104 = vrot.slane %v4097, 7
        %v4105 = vsel %vm1018, %v4104, %v4096
        %v4106 = vrot.slane %v4098, 6
        %v4107 = vsel %vm1021, %v4106, %v4105
        %v4108 = vrot.slane %v4099, 5
        %v4109 = vsel %vm1024, %v4108, %v4107
        %v4110 = vrot.slane %v4100, 4
        %v4111 = vsel %vm1027, %v4110, %v4109
        %v4112 = vrot.slane %v4101, 3
        %v4113 = vsel %vm1030, %v4112, %v4111
        %v4114 = vrot.slane %v4102, 2
        %v4115 = vsel %vm1033, %v4114, %v4113
        %v4116 = vrot.slane %v4103, 1
        %v4117 = vsel %vm1036, %v4116, %v4115
        %v4118 = vpack.c.b16 %v4117, %v4117
        %4119 = vrot.lane.b32.xlu0 %v4118, 32
        %v4120 = vpop.permute.xlu0 %4119
        %v4122 = vsel %vm725, %v4120, 0
        %4124 = vmatprep.subr.bf16.mxu0 0
        %4125 = vmatpush1.bf16.msra.mxu0 %v721
        %4126 = vmatprep.subr.bf16.mxu0 0
        %4127 = vmatpush1.bf16.msra.mxu0 %v722
        %4128 = vmatprep.subr.bf16.mxu0 0
        %4129 = vmatpush1.bf16.msra.mxu0 0
        %4130 = vmatprep.subr.bf16.mxu0 0
        %4131 = vmatpush1.bf16.msra.mxu0 0
        %4132 = vmatprep.subr.bf16.mxu0 0
        %4133 = vmatpush1.bf16.msra.mxu0 0
        %4134 = vmatprep.subr.bf16.mxu0 0
        %4135 = vmatpush1.bf16.msra.mxu0 0
        %4136 = vmatprep.subr.bf16.mxu0 0
        %4137 = vmatpush1.bf16.msra.mxu0 0
        %4138 = vmatprep.subr.bf16.mxu0 0
        %4139 = vmatpush1.bf16.msra.mxu0 0
        %4140 = vmatprep.subr.bf16.mxu0 0
        %4141 = vmatpush1.bf16.msra.mxu0 0
        %4142 = vmatprep.subr.bf16.mxu0 0
        %4143 = vmatpush1.bf16.msra.mxu0 0
        %4144 = vmatprep.subr.bf16.mxu0 0
        %4145 = vmatpush1.bf16.msra.mxu0 0
        %4146 = vmatprep.subr.bf16.mxu0 0
        %4147 = vmatpush1.bf16.msra.mxu0 0
        %4148 = vmatprep.subr.bf16.mxu0 0
        %4149 = vmatpush1.bf16.msra.mxu0 0
        %4150 = vmatprep.subr.bf16.mxu0 0
        %4151 = vmatpush1.bf16.msra.mxu0 0
        %4152 = vmatprep.subr.bf16.mxu0 0
        %4153 = vmatpush1.bf16.msra.mxu0 0
        %4154 = vmatprep.subr.bf16.mxu0 0
        %4155 = vmatpush1.bf16.msra.mxu0 0
        %4156 = vmatprep.mubr.bf16.mxu0 0
        %4157 = vmatmul.mubr.bf16.gmra.mrb[0].mxu0 %v4122
        %v4158 = vpop.f32.mrb[0].mxu0
        %v4159 = vadd.f32 0.0, %v4158
        %v4160 = vpop.f32.mrb[0].mxu0
        %v4161 = vpop.f32.mrb[0].mxu0
        %v4162 = vpop.f32.mrb[0].mxu0
        %4163 = vdwg.mxu0
        %v4165 = vrot.slane %v4159, 1
        %v4166 = vrot.slane %v4159, 2
        %v4167 = vrot.slane %v4159, 3
        %v4168 = vrot.slane %v4159, 4
        %v4169 = vrot.slane %v4159, 5
        %v4170 = vrot.slane %v4159, 6
        %v4171 = vrot.slane %v4159, 7
        %v4180 = vadd.f32 %v4072, %v4159
        %v4181 = vadd.f32 %v4073, %v4165
        %v4182 = vadd.f32 %v4074, %v4166
        %v4183 = vadd.f32 %v4075, %v4167
        %v4184 = vadd.f32 %v4076, %v4168
        %v4185 = vadd.f32 %v4077, %v4169
        %v4186 = vadd.f32 %v4078, %v4170
        %v4187 = vadd.f32 %v4079, %v4171
        %v4188 = vxor.u32 %v4180, 2147483648
        %v4189 = vxor.u32 %v4181, 2147483648
        %v4190 = vxor.u32 %v4182, 2147483648
        %v4191 = vxor.u32 %v4183, 2147483648
        %v4192 = vxor.u32 %v4184, 2147483648
        %v4193 = vxor.u32 %v4185, 2147483648
        %v4194 = vxor.u32 %v4186, 2147483648
        %v4195 = vxor.u32 %v4187, 2147483648
        %v4196 = vmul.f32 %v4188, 1.442695
        %v4197 = vpow.pop %v4196
        %v4198 = vmul.f32 %v4189, 1.442695
        %v4199 = vpow.pop %v4198
        %v4200 = vmul.f32 %v4190, 1.442695
        %v4201 = vpow.pop %v4200
        %v4202 = vmul.f32 %v4191, 1.442695
        %v4203 = vpow.pop %v4202
        %v4204 = vmul.f32 %v4192, 1.442695
        %v4205 = vpow.pop %v4204
        %v4206 = vmul.f32 %v4193, 1.442695
        %v4207 = vpow.pop %v4206
        %v4208 = vmul.f32 %v4194, 1.442695
        %v4209 = vpow.pop %v4208
        %v4210 = vmul.f32 %v4195, 1.442695
        %v4211 = vpow.pop %v4210
        %v4212 = vadd.f32 %v4197, 1.0
        %v4213 = vadd.f32 %v4199, 1.0
        %v4214 = vadd.f32 %v4201, 1.0
        %v4215 = vadd.f32 %v4203, 1.0
        %v4216 = vadd.f32 %v4205, 1.0
        %v4217 = vadd.f32 %v4207, 1.0
        %v4218 = vadd.f32 %v4209, 1.0
        %v4219 = vadd.f32 %v4211, 1.0
        %v4220 = vrcp.pop %v4212
        %v4221 = vmul.f32 1.0, %v4220
        %v4222 = vrcp.pop %v4213
        %v4223 = vmul.f32 1.0, %v4222
        %v4224 = vrcp.pop %v4214
        %v4225 = vmul.f32 1.0, %v4224
        %v4226 = vrcp.pop %v4215
        %v4227 = vmul.f32 1.0, %v4226
        %v4228 = vrcp.pop %v4216
        %v4229 = vmul.f32 1.0, %v4228
        %v4230 = vrcp.pop %v4217
        %v4231 = vmul.f32 1.0, %v4230
        %v4232 = vrcp.pop %v4218
        %v4233 = vmul.f32 1.0, %v4232
        %v4234 = vrcp.pop %v4219
        %v4235 = vmul.f32 1.0, %v4234
        %v4236 = vtanh.pop %v4180
        %v4237 = vtanh.pop %v4181
        %v4238 = vtanh.pop %v4182
        %v4239 = vtanh.pop %v4183
        %v4240 = vtanh.pop %v4184
        %v4241 = vtanh.pop %v4185
        %v4242 = vtanh.pop %v4186
        %v4243 = vtanh.pop %v4187
        %v4244 = vmul.f32 %v4221, %v4016
        %v4245 = vmul.f32 %v4223, %v4017
        %v4246 = vmul.f32 %v4225, %v4018
        %v4247 = vmul.f32 %v4227, %v4019
        %v4248 = vmul.f32 %v4229, %v4020
        %v4249 = vmul.f32 %v4231, %v4021
        %v4250 = vmul.f32 %v4233, %v4022
        %v4251 = vmul.f32 %v4235, %v4023
        %4260 = vrot.lane.b32.xlu0 %v4236, 64
        %v4261 = vpop.permute.xlu0 %4260
        %4262 = vrot.lane.b32.xlu0 %v4237, 64
        %v4263 = vpop.permute.xlu0 %4262
        %4264 = vrot.lane.b32.xlu0 %v4238, 64
        %v4265 = vpop.permute.xlu0 %4264
        %4266 = vrot.lane.b32.xlu0 %v4239, 64
        %v4267 = vpop.permute.xlu0 %4266
        %4268 = vrot.lane.b32.xlu0 %v4240, 64
        %v4269 = vpop.permute.xlu0 %4268
        %4270 = vrot.lane.b32.xlu0 %v4241, 64
        %v4271 = vpop.permute.xlu0 %4270
        %4272 = vrot.lane.b32.xlu0 %v4242, 64
        %v4273 = vpop.permute.xlu0 %4272
        %4274 = vrot.lane.b32.xlu0 %v4243, 64
        %v4275 = vpop.permute.xlu0 %4274
        %v4284 = vmul.f32 %v4221, %v4261
        %v4285 = vmul.f32 %v4223, %v4263
        %v4286 = vmul.f32 %v4225, %v4265
        %v4287 = vmul.f32 %v4227, %v4267
        %v4288 = vmul.f32 %v4229, %v4269
        %v4289 = vmul.f32 %v4231, %v4271
        %v4290 = vmul.f32 %v4233, %v4273
        %v4291 = vmul.f32 %v4235, %v4275
        %4300 = vrot.lane.b32.xlu0 %v4284, 32
        %v4301 = vpop.permute.xlu0 %4300
        %4302 = vrot.lane.b32.xlu0 %v4285, 32
        %v4303 = vpop.permute.xlu0 %4302
        %4304 = vrot.lane.b32.xlu0 %v4286, 32
        %v4305 = vpop.permute.xlu0 %4304
        %4306 = vrot.lane.b32.xlu0 %v4287, 32
        %v4307 = vpop.permute.xlu0 %4306
        %4308 = vrot.lane.b32.xlu0 %v4288, 32
        %v4309 = vpop.permute.xlu0 %4308
        %4310 = vrot.lane.b32.xlu0 %v4289, 32
        %v4311 = vpop.permute.xlu0 %4310
        %4312 = vrot.lane.b32.xlu0 %v4290, 32
        %v4313 = vpop.permute.xlu0 %4312
        %4314 = vrot.lane.b32.xlu0 %v4291, 32
        %v4315 = vpop.permute.xlu0 %4314
        %v4324 = vadd.f32 %v4244, %v4301
        %v4325 = vadd.f32 %v4245, %v4303
        %v4326 = vadd.f32 %v4246, %v4305
        %v4327 = vadd.f32 %v4247, %v4307
        %v4328 = vadd.f32 %v4248, %v4309
        %v4329 = vadd.f32 %v4249, %v4311
        %v4330 = vadd.f32 %v4250, %v4313
        %v4331 = vadd.f32 %v4251, %v4315
        %v4332 = vtanh.pop %v4324
        %v4333 = vtanh.pop %v4325
        %v4334 = vtanh.pop %v4326
        %v4335 = vtanh.pop %v4327
        %v4336 = vtanh.pop %v4328
        %v4337 = vtanh.pop %v4329
        %v4338 = vtanh.pop %v4330
        %v4339 = vtanh.pop %v4331
        %4348 = vrot.lane.b32.xlu0 %v4332, 64
        %v4349 = vpop.permute.xlu0 %4348
        %4350 = vrot.lane.b32.xlu0 %v4333, 64
        %v4351 = vpop.permute.xlu0 %4350
        %4352 = vrot.lane.b32.xlu0 %v4334, 64
        %v4353 = vpop.permute.xlu0 %4352
        %4354 = vrot.lane.b32.xlu0 %v4335, 64
        %v4355 = vpop.permute.xlu0 %4354
        %4356 = vrot.lane.b32.xlu0 %v4336, 64
        %v4357 = vpop.permute.xlu0 %4356
        %4358 = vrot.lane.b32.xlu0 %v4337, 64
        %v4359 = vpop.permute.xlu0 %4358
        %4360 = vrot.lane.b32.xlu0 %v4338, 64
        %v4361 = vpop.permute.xlu0 %4360
        %4362 = vrot.lane.b32.xlu0 %v4339, 64
        %v4363 = vpop.permute.xlu0 %4362
        %v4372 = vmul.f32 %v4221, %v4349
        %v4373 = vmul.f32 %v4223, %v4351
        %v4374 = vmul.f32 %v4225, %v4353
        %v4375 = vmul.f32 %v4227, %v4355
        %v4376 = vmul.f32 %v4229, %v4357
        %v4377 = vmul.f32 %v4231, %v4359
        %v4378 = vmul.f32 %v4233, %v4361
        %v4379 = vmul.f32 %v4235, %v4363
        %v4380 = vld [vmem:[#allocation2 + $0xc] sm:$0x1]
        %v4381 = vld [vmem:[#allocation2 + $0x1c] sm:$0x1]
        %v4382 = vld [vmem:[#allocation2 + $0x2c] sm:$0x1]
        %v4383 = vld [vmem:[#allocation2 + $0x3c] sm:$0x1]
        %v4384 = vld [vmem:[#allocation2 + $0x4c] sm:$0x1]
        %v4385 = vld [vmem:[#allocation2 + $0x5c] sm:$0x1]
        %v4386 = vld [vmem:[#allocation2 + $0x6c] sm:$0x1]
        %v4387 = vld [vmem:[#allocation2 + $0x7c] sm:$0x1]
        %v4388 = vpack.c.bf16 %v4372, %v4372
        %v4389 = vpack.c.bf16 %v4373, %v4373
        %v4390 = vpack.c.bf16 %v4374, %v4374
        %v4391 = vpack.c.bf16 %v4375, %v4375
        %v4392 = vpack.c.bf16 %v4376, %v4376
        %v4393 = vpack.c.bf16 %v4377, %v4377
        %v4394 = vpack.c.bf16 %v4378, %v4378
        %v4395 = vpack.c.bf16 %v4379, %v4379
        %v4404 = vunpack.c.l.b16 %v4388
        %v4405 = vunpack.c.l.b16 %v4389
        %v4406 = vunpack.c.l.b16 %v4390
        %v4407 = vunpack.c.l.b16 %v4391
        %v4408 = vunpack.c.l.b16 %v4392
        %v4409 = vunpack.c.l.b16 %v4393
        %v4410 = vunpack.c.l.b16 %v4394
        %v4411 = vunpack.c.l.b16 %v4395
        %v4412 = vrot.slane %v4405, 7
        %v4413 = vsel %vm1018, %v4412, %v4404
        %v4414 = vrot.slane %v4406, 6
        %v4415 = vsel %vm1021, %v4414, %v4413
        %v4416 = vrot.slane %v4407, 5
        %v4417 = vsel %vm1024, %v4416, %v4415
        %v4418 = vrot.slane %v4408, 4
        %v4419 = vsel %vm1027, %v4418, %v4417
        %v4420 = vrot.slane %v4409, 3
        %v4421 = vsel %vm1030, %v4420, %v4419
        %v4422 = vrot.slane %v4410, 2
        %v4423 = vsel %vm1033, %v4422, %v4421
        %v4424 = vrot.slane %v4411, 1
        %v4425 = vsel %vm1036, %v4424, %v4423
        %v4426 = vpack.c.b16 %v4425, %v4425
        %4427 = vrot.lane.b32.xlu0 %v4426, 32
        %v4428 = vpop.permute.xlu0 %4427
        %v4430 = vsel %vm725, %v4428, 0
        %4432 = vmatprep.subr.bf16.mxu0 0
        %4433 = vmatpush1.bf16.msra.mxu0 %v721
        %4434 = vmatprep.subr.bf16.mxu0 0
        %4435 = vmatpush1.bf16.msra.mxu0 %v722
        %4436 = vmatprep.subr.bf16.mxu0 0
        %4437 = vmatpush1.bf16.msra.mxu0 0
        %4438 = vmatprep.subr.bf16.mxu0 0
        %4439 = vmatpush1.bf16.msra.mxu0 0
        %4440 = vmatprep.subr.bf16.mxu0 0
        %4441 = vmatpush1.bf16.msra.mxu0 0
        %4442 = vmatprep.subr.bf16.mxu0 0
        %4443 = vmatpush1.bf16.msra.mxu0 0
        %4444 = vmatprep.subr.bf16.mxu0 0
        %4445 = vmatpush1.bf16.msra.mxu0 0
        %4446 = vmatprep.subr.bf16.mxu0 0
        %4447 = vmatpush1.bf16.msra.mxu0 0
        %4448 = vmatprep.subr.bf16.mxu0 0
        %4449 = vmatpush1.bf16.msra.mxu0 0
        %4450 = vmatprep.subr.bf16.mxu0 0
        %4451 = vmatpush1.bf16.msra.mxu0 0
        %4452 = vmatprep.subr.bf16.mxu0 0
        %4453 = vmatpush1.bf16.msra.mxu0 0
        %4454 = vmatprep.subr.bf16.mxu0 0
        %4455 = vmatpush1.bf16.msra.mxu0 0
        %4456 = vmatprep.subr.bf16.mxu0 0
        %4457 = vmatpush1.bf16.msra.mxu0 0
        %4458 = vmatprep.subr.bf16.mxu0 0
        %4459 = vmatpush1.bf16.msra.mxu0 0
        %4460 = vmatprep.subr.bf16.mxu0 0
        %4461 = vmatpush1.bf16.msra.mxu0 0
        %4462 = vmatprep.subr.bf16.mxu0 0
        %4463 = vmatpush1.bf16.msra.mxu0 0
        %4464 = vmatprep.mubr.bf16.mxu0 0
        %4465 = vmatmul.mubr.bf16.gmra.mrb[0].mxu0 %v4430
        %v4466 = vpop.f32.mrb[0].mxu0
        %v4467 = vadd.f32 0.0, %v4466
        %v4468 = vpop.f32.mrb[0].mxu0
        %v4469 = vpop.f32.mrb[0].mxu0
        %v4470 = vpop.f32.mrb[0].mxu0
        %4471 = vdwg.mxu0
        %v4473 = vrot.slane %v4467, 1
        %v4474 = vrot.slane %v4467, 2
        %v4475 = vrot.slane %v4467, 3
        %v4476 = vrot.slane %v4467, 4
        %v4477 = vrot.slane %v4467, 5
        %v4478 = vrot.slane %v4467, 6
        %v4479 = vrot.slane %v4467, 7
        %v4488 = vadd.f32 %v4380, %v4467
        %v4489 = vadd.f32 %v4381, %v4473
        %v4490 = vadd.f32 %v4382, %v4474
        %v4491 = vadd.f32 %v4383, %v4475
        %v4492 = vadd.f32 %v4384, %v4476
        %v4493 = vadd.f32 %v4385, %v4477
        %v4494 = vadd.f32 %v4386, %v4478
        %v4495 = vadd.f32 %v4387, %v4479
        %v4496 = vxor.u32 %v4488, 2147483648
        %v4497 = vxor.u32 %v4489, 2147483648
        %v4498 = vxor.u32 %v4490, 2147483648
        %v4499 = vxor.u32 %v4491, 2147483648
        %v4500 = vxor.u32 %v4492, 2147483648
        %v4501 = vxor.u32 %v4493, 2147483648
        %v4502 = vxor.u32 %v4494, 2147483648
        %v4503 = vxor.u32 %v4495, 2147483648
        %v4504 = vmul.f32 %v4496, 1.442695
        %v4505 = vpow.pop %v4504
        %v4506 = vmul.f32 %v4497, 1.442695
        %v4507 = vpow.pop %v4506
        %v4508 = vmul.f32 %v4498, 1.442695
        %v4509 = vpow.pop %v4508
        %v4510 = vmul.f32 %v4499, 1.442695
        %v4511 = vpow.pop %v4510
        %v4512 = vmul.f32 %v4500, 1.442695
        %v4513 = vpow.pop %v4512
        %v4514 = vmul.f32 %v4501, 1.442695
        %v4515 = vpow.pop %v4514
        %v4516 = vmul.f32 %v4502, 1.442695
        %v4517 = vpow.pop %v4516
        %v4518 = vmul.f32 %v4503, 1.442695
        %v4519 = vpow.pop %v4518
        %v4520 = vadd.f32 %v4505, 1.0
        %v4521 = vadd.f32 %v4507, 1.0
        %v4522 = vadd.f32 %v4509, 1.0
        %v4523 = vadd.f32 %v4511, 1.0
        %v4524 = vadd.f32 %v4513, 1.0
        %v4525 = vadd.f32 %v4515, 1.0
        %v4526 = vadd.f32 %v4517, 1.0
        %v4527 = vadd.f32 %v4519, 1.0
        %v4528 = vrcp.pop %v4520
        %v4529 = vmul.f32 1.0, %v4528
        %v4530 = vrcp.pop %v4521
        %v4531 = vmul.f32 1.0, %v4530
        %v4532 = vrcp.pop %v4522
        %v4533 = vmul.f32 1.0, %v4532
        %v4534 = vrcp.pop %v4523
        %v4535 = vmul.f32 1.0, %v4534
        %v4536 = vrcp.pop %v4524
        %v4537 = vmul.f32 1.0, %v4536
        %v4538 = vrcp.pop %v4525
        %v4539 = vmul.f32 1.0, %v4538
        %v4540 = vrcp.pop %v4526
        %v4541 = vmul.f32 1.0, %v4540
        %v4542 = vrcp.pop %v4527
        %v4543 = vmul.f32 1.0, %v4542
        %v4544 = vtanh.pop %v4488
        %v4545 = vtanh.pop %v4489
        %v4546 = vtanh.pop %v4490
        %v4547 = vtanh.pop %v4491
        %v4548 = vtanh.pop %v4492
        %v4549 = vtanh.pop %v4493
        %v4550 = vtanh.pop %v4494
        %v4551 = vtanh.pop %v4495
        %v4552 = vmul.f32 %v4529, %v4324
        %v4553 = vmul.f32 %v4531, %v4325
        %v4554 = vmul.f32 %v4533, %v4326
        %v4555 = vmul.f32 %v4535, %v4327
        %v4556 = vmul.f32 %v4537, %v4328
        %v4557 = vmul.f32 %v4539, %v4329
        %v4558 = vmul.f32 %v4541, %v4330
        %v4559 = vmul.f32 %v4543, %v4331
        %4568 = vrot.lane.b32.xlu0 %v4544, 64
        %v4569 = vpop.permute.xlu0 %4568
        %4570 = vrot.lane.b32.xlu0 %v4545, 64
        %v4571 = vpop.permute.xlu0 %4570
        %4572 = vrot.lane.b32.xlu0 %v4546, 64
        %v4573 = vpop.permute.xlu0 %4572
        %4574 = vrot.lane.b32.xlu0 %v4547, 64
        %v4575 = vpop.permute.xlu0 %4574
        %4576 = vrot.lane.b32.xlu0 %v4548, 64
        %v4577 = vpop.permute.xlu0 %4576
        %4578 = vrot.lane.b32.xlu0 %v4549, 64
        %v4579 = vpop.permute.xlu0 %4578
        %4580 = vrot.lane.b32.xlu0 %v4550, 64
        %v4581 = vpop.permute.xlu0 %4580
        %4582 = vrot.lane.b32.xlu0 %v4551, 64
        %v4583 = vpop.permute.xlu0 %4582
        %v4592 = vmul.f32 %v4529, %v4569
        %v4593 = vmul.f32 %v4531, %v4571
        %v4594 = vmul.f32 %v4533, %v4573
        %v4595 = vmul.f32 %v4535, %v4575
        %v4596 = vmul.f32 %v4537, %v4577
        %v4597 = vmul.f32 %v4539, %v4579
        %v4598 = vmul.f32 %v4541, %v4581
        %v4599 = vmul.f32 %v4543, %v4583
        %4608 = vrot.lane.b32.xlu0 %v4592, 32
        %v4609 = vpop.permute.xlu0 %4608
        %4610 = vrot.lane.b32.xlu0 %v4593, 32
        %v4611 = vpop.permute.xlu0 %4610
        %4612 = vrot.lane.b32.xlu0 %v4594, 32
        %v4613 = vpop.permute.xlu0 %4612
        %4614 = vrot.lane.b32.xlu0 %v4595, 32
        %v4615 = vpop.permute.xlu0 %4614
        %4616 = vrot.lane.b32.xlu0 %v4596, 32
        %v4617 = vpop.permute.xlu0 %4616
        %4618 = vrot.lane.b32.xlu0 %v4597, 32
        %v4619 = vpop.permute.xlu0 %4618
        %4620 = vrot.lane.b32.xlu0 %v4598, 32
        %v4621 = vpop.permute.xlu0 %4620
        %4622 = vrot.lane.b32.xlu0 %v4599, 32
        %v4623 = vpop.permute.xlu0 %4622
        %v4632 = vadd.f32 %v4552, %v4609
        %v4633 = vadd.f32 %v4553, %v4611
        %v4634 = vadd.f32 %v4554, %v4613
        %v4635 = vadd.f32 %v4555, %v4615
        %v4636 = vadd.f32 %v4556, %v4617
        %v4637 = vadd.f32 %v4557, %v4619
        %v4638 = vadd.f32 %v4558, %v4621
        %v4639 = vadd.f32 %v4559, %v4623
        %v4640 = vtanh.pop %v4632
        %v4641 = vtanh.pop %v4633
        %v4642 = vtanh.pop %v4634
        %v4643 = vtanh.pop %v4635
        %v4644 = vtanh.pop %v4636
        %v4645 = vtanh.pop %v4637
        %v4646 = vtanh.pop %v4638
        %v4647 = vtanh.pop %v4639
        %4656 = vrot.lane.b32.xlu0 %v4640, 64
        %v4657 = vpop.permute.xlu0 %4656
        %4658 = vrot.lane.b32.xlu0 %v4641, 64
        %v4659 = vpop.permute.xlu0 %4658
        %4660 = vrot.lane.b32.xlu0 %v4642, 64
        %v4661 = vpop.permute.xlu0 %4660
        %4662 = vrot.lane.b32.xlu0 %v4643, 64
        %v4663 = vpop.permute.xlu0 %4662
        %4664 = vrot.lane.b32.xlu0 %v4644, 64
        %v4665 = vpop.permute.xlu0 %4664
        %4666 = vrot.lane.b32.xlu0 %v4645, 64
        %v4667 = vpop.permute.xlu0 %4666
        %4668 = vrot.lane.b32.xlu0 %v4646, 64
        %v4669 = vpop.permute.xlu0 %4668
        %4670 = vrot.lane.b32.xlu0 %v4647, 64
        %v4671 = vpop.permute.xlu0 %4670
        %v4680 = vmul.f32 %v4529, %v4657
        %v4681 = vmul.f32 %v4531, %v4659
        %v4682 = vmul.f32 %v4533, %v4661
        %v4683 = vmul.f32 %v4535, %v4663
        %v4684 = vmul.f32 %v4537, %v4665
        %v4685 = vmul.f32 %v4539, %v4667
        %v4686 = vmul.f32 %v4541, %v4669
        %v4687 = vmul.f32 %v4543, %v4671
        %v4688 = vld [vmem:[#allocation2 + $0xd] sm:$0x1]
        %v4689 = vld [vmem:[#allocation2 + $0x1d] sm:$0x1]
        %v4690 = vld [vmem:[#allocation2 + $0x2d] sm:$0x1]
        %v4691 = vld [vmem:[#allocation2 + $0x3d] sm:$0x1]
        %v4692 = vld [vmem:[#allocation2 + $0x4d] sm:$0x1]
        %v4693 = vld [vmem:[#allocation2 + $0x5d] sm:$0x1]
        %v4694 = vld [vmem:[#allocation2 + $0x6d] sm:$0x1]
        %v4695 = vld [vmem:[#allocation2 + $0x7d] sm:$0x1]
        %v4696 = vpack.c.bf16 %v4680, %v4680
        %v4697 = vpack.c.bf16 %v4681, %v4681
        %v4698 = vpack.c.bf16 %v4682, %v4682
        %v4699 = vpack.c.bf16 %v4683, %v4683
        %v4700 = vpack.c.bf16 %v4684, %v4684
        %v4701 = vpack.c.bf16 %v4685, %v4685
        %v4702 = vpack.c.bf16 %v4686, %v4686
        %v4703 = vpack.c.bf16 %v4687, %v4687
        %v4712 = vunpack.c.l.b16 %v4696
        %v4713 = vunpack.c.l.b16 %v4697
        %v4714 = vunpack.c.l.b16 %v4698
        %v4715 = vunpack.c.l.b16 %v4699
        %v4716 = vunpack.c.l.b16 %v4700
        %v4717 = vunpack.c.l.b16 %v4701
        %v4718 = vunpack.c.l.b16 %v4702
        %v4719 = vunpack.c.l.b16 %v4703
        %v4720 = vrot.slane %v4713, 7
        %v4721 = vsel %vm1018, %v4720, %v4712
        %v4722 = vrot.slane %v4714, 6
        %v4723 = vsel %vm1021, %v4722, %v4721
        %v4724 = vrot.slane %v4715, 5
        %v4725 = vsel %vm1024, %v4724, %v4723
        %v4726 = vrot.slane %v4716, 4
        %v4727 = vsel %vm1027, %v4726, %v4725
        %v4728 = vrot.slane %v4717, 3
        %v4729 = vsel %vm1030, %v4728, %v4727
        %v4730 = vrot.slane %v4718, 2
        %v4731 = vsel %vm1033, %v4730, %v4729
        %v4732 = vrot.slane %v4719, 1
        %v4733 = vsel %vm1036, %v4732, %v4731
        %v4734 = vpack.c.b16 %v4733, %v4733
        %4735 = vrot.lane.b32.xlu0 %v4734, 32
        %v4736 = vpop.permute.xlu0 %4735
        %v4738 = vsel %vm725, %v4736, 0
        %4740 = vmatprep.subr.bf16.mxu0 0
        %4741 = vmatpush1.bf16.msra.mxu0 %v721
        %4742 = vmatprep.subr.bf16.mxu0 0
        %4743 = vmatpush1.bf16.msra.mxu0 %v722
        %4744 = vmatprep.subr.bf16.mxu0 0
        %4745 = vmatpush1.bf16.msra.mxu0 0
        %4746 = vmatprep.subr.bf16.mxu0 0
        %4747 = vmatpush1.bf16.msra.mxu0 0
        %4748 = vmatprep.subr.bf16.mxu0 0
        %4749 = vmatpush1.bf16.msra.mxu0 0
        %4750 = vmatprep.subr.bf16.mxu0 0
        %4751 = vmatpush1.bf16.msra.mxu0 0
        %4752 = vmatprep.subr.bf16.mxu0 0
        %4753 = vmatpush1.bf16.msra.mxu0 0
        %4754 = vmatprep.subr.bf16.mxu0 0
        %4755 = vmatpush1.bf16.msra.mxu0 0
        %4756 = vmatprep.subr.bf16.mxu0 0
        %4757 = vmatpush1.bf16.msra.mxu0 0
        %4758 = vmatprep.subr.bf16.mxu0 0
        %4759 = vmatpush1.bf16.msra.mxu0 0
        %4760 = vmatprep.subr.bf16.mxu0 0
        %4761 = vmatpush1.bf16.msra.mxu0 0
        %4762 = vmatprep.subr.bf16.mxu0 0
        %4763 = vmatpush1.bf16.msra.mxu0 0
        %4764 = vmatprep.subr.bf16.mxu0 0
        %4765 = vmatpush1.bf16.msra.mxu0 0
        %4766 = vmatprep.subr.bf16.mxu0 0
        %4767 = vmatpush1.bf16.msra.mxu0 0
        %4768 = vmatprep.subr.bf16.mxu0 0
        %4769 = vmatpush1.bf16.msra.mxu0 0
        %4770 = vmatprep.subr.bf16.mxu0 0
        %4771 = vmatpush1.bf16.msra.mxu0 0
        %4772 = vmatprep.mubr.bf16.mxu0 0
        %4773 = vmatmul.mubr.bf16.gmra.mrb[0].mxu0 %v4738
        %v4774 = vpop.f32.mrb[0].mxu0
        %v4775 = vadd.f32 0.0, %v4774
        %v4776 = vpop.f32.mrb[0].mxu0
        %v4777 = vpop.f32.mrb[0].mxu0
        %v4778 = vpop.f32.mrb[0].mxu0
        %4779 = vdwg.mxu0
        %v4781 = vrot.slane %v4775, 1
        %v4782 = vrot.slane %v4775, 2
        %v4783 = vrot.slane %v4775, 3
        %v4784 = vrot.slane %v4775, 4
        %v4785 = vrot.slane %v4775, 5
        %v4786 = vrot.slane %v4775, 6
        %v4787 = vrot.slane %v4775, 7
        %v4796 = vadd.f32 %v4688, %v4775
        %v4797 = vadd.f32 %v4689, %v4781
        %v4798 = vadd.f32 %v4690, %v4782
        %v4799 = vadd.f32 %v4691, %v4783
        %v4800 = vadd.f32 %v4692, %v4784
        %v4801 = vadd.f32 %v4693, %v4785
        %v4802 = vadd.f32 %v4694, %v4786
        %v4803 = vadd.f32 %v4695, %v4787
        %v4804 = vxor.u32 %v4796, 2147483648
        %v4805 = vxor.u32 %v4797, 2147483648
        %v4806 = vxor.u32 %v4798, 2147483648
        %v4807 = vxor.u32 %v4799, 2147483648
        %v4808 = vxor.u32 %v4800, 2147483648
        %v4809 = vxor.u32 %v4801, 2147483648
        %v4810 = vxor.u32 %v4802, 2147483648
        %v4811 = vxor.u32 %v4803, 2147483648
        %v4812 = vmul.f32 %v4804, 1.442695
        %v4813 = vpow.pop %v4812
        %v4814 = vmul.f32 %v4805, 1.442695
        %v4815 = vpow.pop %v4814
        %v4816 = vmul.f32 %v4806, 1.442695
        %v4817 = vpow.pop %v4816
        %v4818 = vmul.f32 %v4807, 1.442695
        %v4819 = vpow.pop %v4818
        %v4820 = vmul.f32 %v4808, 1.442695
        %v4821 = vpow.pop %v4820
        %v4822 = vmul.f32 %v4809, 1.442695
        %v4823 = vpow.pop %v4822
        %v4824 = vmul.f32 %v4810, 1.442695
        %v4825 = vpow.pop %v4824
        %v4826 = vmul.f32 %v4811, 1.442695
        %v4827 = vpow.pop %v4826
        %v4828 = vadd.f32 %v4813, 1.0
        %v4829 = vadd.f32 %v4815, 1.0
        %v4830 = vadd.f32 %v4817, 1.0
        %v4831 = vadd.f32 %v4819, 1.0
        %v4832 = vadd.f32 %v4821, 1.0
        %v4833 = vadd.f32 %v4823, 1.0
        %v4834 = vadd.f32 %v4825, 1.0
        %v4835 = vadd.f32 %v4827, 1.0
        %v4836 = vrcp.pop %v4828
        %v4837 = vmul.f32 1.0, %v4836
        %v4838 = vrcp.pop %v4829
        %v4839 = vmul.f32 1.0, %v4838
        %v4840 = vrcp.pop %v4830
        %v4841 = vmul.f32 1.0, %v4840
        %v4842 = vrcp.pop %v4831
        %v4843 = vmul.f32 1.0, %v4842
        %v4844 = vrcp.pop %v4832
        %v4845 = vmul.f32 1.0, %v4844
        %v4846 = vrcp.pop %v4833
        %v4847 = vmul.f32 1.0, %v4846
        %v4848 = vrcp.pop %v4834
        %v4849 = vmul.f32 1.0, %v4848
        %v4850 = vrcp.pop %v4835
        %v4851 = vmul.f32 1.0, %v4850
        %v4852 = vtanh.pop %v4796
        %v4853 = vtanh.pop %v4797
        %v4854 = vtanh.pop %v4798
        %v4855 = vtanh.pop %v4799
        %v4856 = vtanh.pop %v4800
        %v4857 = vtanh.pop %v4801
        %v4858 = vtanh.pop %v4802
        %v4859 = vtanh.pop %v4803
        %v4860 = vmul.f32 %v4837, %v4632
        %v4861 = vmul.f32 %v4839, %v4633
        %v4862 = vmul.f32 %v4841, %v4634
        %v4863 = vmul.f32 %v4843, %v4635
        %v4864 = vmul.f32 %v4845, %v4636
        %v4865 = vmul.f32 %v4847, %v4637
        %v4866 = vmul.f32 %v4849, %v4638
        %v4867 = vmul.f32 %v4851, %v4639
        %4876 = vrot.lane.b32.xlu0 %v4852, 64
        %v4877 = vpop.permute.xlu0 %4876
        %4878 = vrot.lane.b32.xlu0 %v4853, 64
        %v4879 = vpop.permute.xlu0 %4878
        %4880 = vrot.lane.b32.xlu0 %v4854, 64
        %v4881 = vpop.permute.xlu0 %4880
        %4882 = vrot.lane.b32.xlu0 %v4855, 64
        %v4883 = vpop.permute.xlu0 %4882
        %4884 = vrot.lane.b32.xlu0 %v4856, 64
        %v4885 = vpop.permute.xlu0 %4884
        %4886 = vrot.lane.b32.xlu0 %v4857, 64
        %v4887 = vpop.permute.xlu0 %4886
        %4888 = vrot.lane.b32.xlu0 %v4858, 64
        %v4889 = vpop.permute.xlu0 %4888
        %4890 = vrot.lane.b32.xlu0 %v4859, 64
        %v4891 = vpop.permute.xlu0 %4890
        %v4900 = vmul.f32 %v4837, %v4877
        %v4901 = vmul.f32 %v4839, %v4879
        %v4902 = vmul.f32 %v4841, %v4881
        %v4903 = vmul.f32 %v4843, %v4883
        %v4904 = vmul.f32 %v4845, %v4885
        %v4905 = vmul.f32 %v4847, %v4887
        %v4906 = vmul.f32 %v4849, %v4889
        %v4907 = vmul.f32 %v4851, %v4891
        %4916 = vrot.lane.b32.xlu0 %v4900, 32
        %v4917 = vpop.permute.xlu0 %4916
        %4918 = vrot.lane.b32.xlu0 %v4901, 32
        %v4919 = vpop.permute.xlu0 %4918
        %4920 = vrot.lane.b32.xlu0 %v4902, 32
        %v4921 = vpop.permute.xlu0 %4920
        %4922 = vrot.lane.b32.xlu0 %v4903, 32
        %v4923 = vpop.permute.xlu0 %4922
        %4924 = vrot.lane.b32.xlu0 %v4904, 32
        %v4925 = vpop.permute.xlu0 %4924
        %4926 = vrot.lane.b32.xlu0 %v4905, 32
        %v4927 = vpop.permute.xlu0 %4926
        %4928 = vrot.lane.b32.xlu0 %v4906, 32
        %v4929 = vpop.permute.xlu0 %4928
        %4930 = vrot.lane.b32.xlu0 %v4907, 32
        %v4931 = vpop.permute.xlu0 %4930
        %v4940 = vadd.f32 %v4860, %v4917
        %v4941 = vadd.f32 %v4861, %v4919
        %v4942 = vadd.f32 %v4862, %v4921
        %v4943 = vadd.f32 %v4863, %v4923
        %v4944 = vadd.f32 %v4864, %v4925
        %v4945 = vadd.f32 %v4865, %v4927
        %v4946 = vadd.f32 %v4866, %v4929
        %v4947 = vadd.f32 %v4867, %v4931
        %v4948 = vtanh.pop %v4940
        %v4949 = vtanh.pop %v4941
        %v4950 = vtanh.pop %v4942
        %v4951 = vtanh.pop %v4943
        %v4952 = vtanh.pop %v4944
        %v4953 = vtanh.pop %v4945
        %v4954 = vtanh.pop %v4946
        %v4955 = vtanh.pop %v4947
        %4964 = vrot.lane.b32.xlu0 %v4948, 64
        %v4965 = vpop.permute.xlu0 %4964
        %4966 = vrot.lane.b32.xlu0 %v4949, 64
        %v4967 = vpop.permute.xlu0 %4966
        %4968 = vrot.lane.b32.xlu0 %v4950, 64
        %v4969 = vpop.permute.xlu0 %4968
        %4970 = vrot.lane.b32.xlu0 %v4951, 64
        %v4971 = vpop.permute.xlu0 %4970
        %4972 = vrot.lane.b32.xlu0 %v4952, 64
        %v4973 = vpop.permute.xlu0 %4972
        %4974 = vrot.lane.b32.xlu0 %v4953, 64
        %v4975 = vpop.permute.xlu0 %4974
        %4976 = vrot.lane.b32.xlu0 %v4954, 64
        %v4977 = vpop.permute.xlu0 %4976
        %4978 = vrot.lane.b32.xlu0 %v4955, 64
        %v4979 = vpop.permute.xlu0 %4978
        %v4988 = vmul.f32 %v4837, %v4965
        %v4989 = vmul.f32 %v4839, %v4967
        %v4990 = vmul.f32 %v4841, %v4969
        %v4991 = vmul.f32 %v4843, %v4971
        %v4992 = vmul.f32 %v4845, %v4973
        %v4993 = vmul.f32 %v4847, %v4975
        %v4994 = vmul.f32 %v4849, %v4977
        %v4995 = vmul.f32 %v4851, %v4979
        %v4996 = vld [vmem:[#allocation2 + $0xe] sm:$0x1]
        %v4997 = vld [vmem:[#allocation2 + $0x1e] sm:$0x1]
        %v4998 = vld [vmem:[#allocation2 + $0x2e] sm:$0x1]
        %v4999 = vld [vmem:[#allocation2 + $0x3e] sm:$0x1]
        %v5000 = vld [vmem:[#allocation2 + $0x4e] sm:$0x1]
        %v5001 = vld [vmem:[#allocation2 + $0x5e] sm:$0x1]
        %v5002 = vld [vmem:[#allocation2 + $0x6e] sm:$0x1]
        %v5003 = vld [vmem:[#allocation2 + $0x7e] sm:$0x1]
        %v5004 = vpack.c.bf16 %v4988, %v4988
        %v5005 = vpack.c.bf16 %v4989, %v4989
        %v5006 = vpack.c.bf16 %v4990, %v4990
        %v5007 = vpack.c.bf16 %v4991, %v4991
        %v5008 = vpack.c.bf16 %v4992, %v4992
        %v5009 = vpack.c.bf16 %v4993, %v4993
        %v5010 = vpack.c.bf16 %v4994, %v4994
        %v5011 = vpack.c.bf16 %v4995, %v4995
        %v5020 = vunpack.c.l.b16 %v5004
        %v5021 = vunpack.c.l.b16 %v5005
        %v5022 = vunpack.c.l.b16 %v5006
        %v5023 = vunpack.c.l.b16 %v5007
        %v5024 = vunpack.c.l.b16 %v5008
        %v5025 = vunpack.c.l.b16 %v5009
        %v5026 = vunpack.c.l.b16 %v5010
        %v5027 = vunpack.c.l.b16 %v5011
        %v5028 = vrot.slane %v5021, 7
        %v5029 = vsel %vm1018, %v5028, %v5020
        %v5030 = vrot.slane %v5022, 6
        %v5031 = vsel %vm1021, %v5030, %v5029
        %v5032 = vrot.slane %v5023, 5
        %v5033 = vsel %vm1024, %v5032, %v5031
        %v5034 = vrot.slane %v5024, 4
        %v5035 = vsel %vm1027, %v5034, %v5033
        %v5036 = vrot.slane %v5025, 3
        %v5037 = vsel %vm1030, %v5036, %v5035
        %v5038 = vrot.slane %v5026, 2
        %v5039 = vsel %vm1033, %v5038, %v5037
        %v5040 = vrot.slane %v5027, 1
        %v5041 = vsel %vm1036, %v5040, %v5039
        %v5042 = vpack.c.b16 %v5041, %v5041
        %5043 = vrot.lane.b32.xlu0 %v5042, 32
        %v5044 = vpop.permute.xlu0 %5043
        %v5046 = vsel %vm725, %v5044, 0
        %5048 = vmatprep.subr.bf16.mxu0 0
        %5049 = vmatpush1.bf16.msra.mxu0 %v721
        %5050 = vmatprep.subr.bf16.mxu0 0
        %5051 = vmatpush1.bf16.msra.mxu0 %v722
        %5052 = vmatprep.subr.bf16.mxu0 0
        %5053 = vmatpush1.bf16.msra.mxu0 0
        %5054 = vmatprep.subr.bf16.mxu0 0
        %5055 = vmatpush1.bf16.msra.mxu0 0
        %5056 = vmatprep.subr.bf16.mxu0 0
        %5057 = vmatpush1.bf16.msra.mxu0 0
        %5058 = vmatprep.subr.bf16.mxu0 0
        %5059 = vmatpush1.bf16.msra.mxu0 0
        %5060 = vmatprep.subr.bf16.mxu0 0
        %5061 = vmatpush1.bf16.msra.mxu0 0
        %5062 = vmatprep.subr.bf16.mxu0 0
        %5063 = vmatpush1.bf16.msra.mxu0 0
        %5064 = vmatprep.subr.bf16.mxu0 0
        %5065 = vmatpush1.bf16.msra.mxu0 0
        %5066 = vmatprep.subr.bf16.mxu0 0
        %5067 = vmatpush1.bf16.msra.mxu0 0
        %5068 = vmatprep.subr.bf16.mxu0 0
        %5069 = vmatpush1.bf16.msra.mxu0 0
        %5070 = vmatprep.subr.bf16.mxu0 0
        %5071 = vmatpush1.bf16.msra.mxu0 0
        %5072 = vmatprep.subr.bf16.mxu0 0
        %5073 = vmatpush1.bf16.msra.mxu0 0
        %5074 = vmatprep.subr.bf16.mxu0 0
        %5075 = vmatpush1.bf16.msra.mxu0 0
        %5076 = vmatprep.subr.bf16.mxu0 0
        %5077 = vmatpush1.bf16.msra.mxu0 0
        %5078 = vmatprep.subr.bf16.mxu0 0
        %5079 = vmatpush1.bf16.msra.mxu0 0
        %5080 = vmatprep.mubr.bf16.mxu0 0
        %5081 = vmatmul.mubr.bf16.gmra.mrb[0].mxu0 %v5046
        %v5082 = vpop.f32.mrb[0].mxu0
        %v5083 = vadd.f32 0.0, %v5082
        %v5084 = vpop.f32.mrb[0].mxu0
        %v5085 = vpop.f32.mrb[0].mxu0
        %v5086 = vpop.f32.mrb[0].mxu0
        %5087 = vdwg.mxu0
        %v5089 = vrot.slane %v5083, 1
        %v5090 = vrot.slane %v5083, 2
        %v5091 = vrot.slane %v5083, 3
        %v5092 = vrot.slane %v5083, 4
        %v5093 = vrot.slane %v5083, 5
        %v5094 = vrot.slane %v5083, 6
        %v5095 = vrot.slane %v5083, 7
        %v5104 = vadd.f32 %v4996, %v5083
        %v5105 = vadd.f32 %v4997, %v5089
        %v5106 = vadd.f32 %v4998, %v5090
        %v5107 = vadd.f32 %v4999, %v5091
        %v5108 = vadd.f32 %v5000, %v5092
        %v5109 = vadd.f32 %v5001, %v5093
        %v5110 = vadd.f32 %v5002, %v5094
        %v5111 = vadd.f32 %v5003, %v5095
        %v5112 = vxor.u32 %v5104, 2147483648
        %v5113 = vxor.u32 %v5105, 2147483648
        %v5114 = vxor.u32 %v5106, 2147483648
        %v5115 = vxor.u32 %v5107, 2147483648
        %v5116 = vxor.u32 %v5108, 2147483648
        %v5117 = vxor.u32 %v5109, 2147483648
        %v5118 = vxor.u32 %v5110, 2147483648
        %v5119 = vxor.u32 %v5111, 2147483648
        %v5120 = vmul.f32 %v5112, 1.442695
        %v5121 = vpow.pop %v5120
        %v5122 = vmul.f32 %v5113, 1.442695
        %v5123 = vpow.pop %v5122
        %v5124 = vmul.f32 %v5114, 1.442695
        %v5125 = vpow.pop %v5124
        %v5126 = vmul.f32 %v5115, 1.442695
        %v5127 = vpow.pop %v5126
        %v5128 = vmul.f32 %v5116, 1.442695
        %v5129 = vpow.pop %v5128
        %v5130 = vmul.f32 %v5117, 1.442695
        %v5131 = vpow.pop %v5130
        %v5132 = vmul.f32 %v5118, 1.442695
        %v5133 = vpow.pop %v5132
        %v5134 = vmul.f32 %v5119, 1.442695
        %v5135 = vpow.pop %v5134
        %v5136 = vadd.f32 %v5121, 1.0
        %v5137 = vadd.f32 %v5123, 1.0
        %v5138 = vadd.f32 %v5125, 1.0
        %v5139 = vadd.f32 %v5127, 1.0
        %v5140 = vadd.f32 %v5129, 1.0
        %v5141 = vadd.f32 %v5131, 1.0
        %v5142 = vadd.f32 %v5133, 1.0
        %v5143 = vadd.f32 %v5135, 1.0
        %v5144 = vrcp.pop %v5136
        %v5145 = vmul.f32 1.0, %v5144
        %v5146 = vrcp.pop %v5137
        %v5147 = vmul.f32 1.0, %v5146
        %v5148 = vrcp.pop %v5138
        %v5149 = vmul.f32 1.0, %v5148
        %v5150 = vrcp.pop %v5139
        %v5151 = vmul.f32 1.0, %v5150
        %v5152 = vrcp.pop %v5140
        %v5153 = vmul.f32 1.0, %v5152
        %v5154 = vrcp.pop %v5141
        %v5155 = vmul.f32 1.0, %v5154
        %v5156 = vrcp.pop %v5142
        %v5157 = vmul.f32 1.0, %v5156
        %v5158 = vrcp.pop %v5143
        %v5159 = vmul.f32 1.0, %v5158
        %v5160 = vtanh.pop %v5104
        %v5161 = vtanh.pop %v5105
        %v5162 = vtanh.pop %v5106
        %v5163 = vtanh.pop %v5107
        %v5164 = vtanh.pop %v5108
        %v5165 = vtanh.pop %v5109
        %v5166 = vtanh.pop %v5110
        %v5167 = vtanh.pop %v5111
        %v5168 = vmul.f32 %v5145, %v4940
        %v5169 = vmul.f32 %v5147, %v4941
        %v5170 = vmul.f32 %v5149, %v4942
        %v5171 = vmul.f32 %v5151, %v4943
        %v5172 = vmul.f32 %v5153, %v4944
        %v5173 = vmul.f32 %v5155, %v4945
        %v5174 = vmul.f32 %v5157, %v4946
        %v5175 = vmul.f32 %v5159, %v4947
        %5184 = vrot.lane.b32.xlu0 %v5160, 64
        %v5185 = vpop.permute.xlu0 %5184
        %5186 = vrot.lane.b32.xlu0 %v5161, 64
        %v5187 = vpop.permute.xlu0 %5186
        %5188 = vrot.lane.b32.xlu0 %v5162, 64
        %v5189 = vpop.permute.xlu0 %5188
        %5190 = vrot.lane.b32.xlu0 %v5163, 64
        %v5191 = vpop.permute.xlu0 %5190
        %5192 = vrot.lane.b32.xlu0 %v5164, 64
        %v5193 = vpop.permute.xlu0 %5192
        %5194 = vrot.lane.b32.xlu0 %v5165, 64
        %v5195 = vpop.permute.xlu0 %5194
        %5196 = vrot.lane.b32.xlu0 %v5166, 64
        %v5197 = vpop.permute.xlu0 %5196
        %5198 = vrot.lane.b32.xlu0 %v5167, 64
        %v5199 = vpop.permute.xlu0 %5198
        %v5208 = vmul.f32 %v5145, %v5185
        %v5209 = vmul.f32 %v5147, %v5187
        %v5210 = vmul.f32 %v5149, %v5189
        %v5211 = vmul.f32 %v5151, %v5191
        %v5212 = vmul.f32 %v5153, %v5193
        %v5213 = vmul.f32 %v5155, %v5195
        %v5214 = vmul.f32 %v5157, %v5197
        %v5215 = vmul.f32 %v5159, %v5199
        %5224 = vrot.lane.b32.xlu0 %v5208, 32
        %v5225 = vpop.permute.xlu0 %5224
        %5226 = vrot.lane.b32.xlu0 %v5209, 32
        %v5227 = vpop.permute.xlu0 %5226
        %5228 = vrot.lane.b32.xlu0 %v5210, 32
        %v5229 = vpop.permute.xlu0 %5228
        %5230 = vrot.lane.b32.xlu0 %v5211, 32
        %v5231 = vpop.permute.xlu0 %5230
        %5232 = vrot.lane.b32.xlu0 %v5212, 32
        %v5233 = vpop.permute.xlu0 %5232
        %5234 = vrot.lane.b32.xlu0 %v5213, 32
        %v5235 = vpop.permute.xlu0 %5234
        %5236 = vrot.lane.b32.xlu0 %v5214, 32
        %v5237 = vpop.permute.xlu0 %5236
        %5238 = vrot.lane.b32.xlu0 %v5215, 32
        %v5239 = vpop.permute.xlu0 %5238
        %v5248 = vadd.f32 %v5168, %v5225
        %v5249 = vadd.f32 %v5169, %v5227
        %v5250 = vadd.f32 %v5170, %v5229
        %v5251 = vadd.f32 %v5171, %v5231
        %v5252 = vadd.f32 %v5172, %v5233
        %v5253 = vadd.f32 %v5173, %v5235
        %v5254 = vadd.f32 %v5174, %v5237
        %v5255 = vadd.f32 %v5175, %v5239
        %v5256 = vtanh.pop %v5248
        %v5257 = vtanh.pop %v5249
        %v5258 = vtanh.pop %v5250
        %v5259 = vtanh.pop %v5251
        %v5260 = vtanh.pop %v5252
        %v5261 = vtanh.pop %v5253
        %v5262 = vtanh.pop %v5254
        %v5263 = vtanh.pop %v5255
        %5272 = vrot.lane.b32.xlu0 %v5256, 64
        %v5273 = vpop.permute.xlu0 %5272
        %5274 = vrot.lane.b32.xlu0 %v5257, 64
        %v5275 = vpop.permute.xlu0 %5274
        %5276 = vrot.lane.b32.xlu0 %v5258, 64
        %v5277 = vpop.permute.xlu0 %5276
        %5278 = vrot.lane.b32.xlu0 %v5259, 64
        %v5279 = vpop.permute.xlu0 %5278
        %5280 = vrot.lane.b32.xlu0 %v5260, 64
        %v5281 = vpop.permute.xlu0 %5280
        %5282 = vrot.lane.b32.xlu0 %v5261, 64
        %v5283 = vpop.permute.xlu0 %5282
        %5284 = vrot.lane.b32.xlu0 %v5262, 64
        %v5285 = vpop.permute.xlu0 %5284
        %5286 = vrot.lane.b32.xlu0 %v5263, 64
        %v5287 = vpop.permute.xlu0 %5286
        %v5296 = vmul.f32 %v5145, %v5273
        %v5297 = vmul.f32 %v5147, %v5275
        %v5298 = vmul.f32 %v5149, %v5277
        %v5299 = vmul.f32 %v5151, %v5279
        %v5300 = vmul.f32 %v5153, %v5281
        %v5301 = vmul.f32 %v5155, %v5283
        %v5302 = vmul.f32 %v5157, %v5285
        %v5303 = vmul.f32 %v5159, %v5287
        %v5304 = vld [vmem:[#allocation2 + $0xf] sm:$0x1]
        %v5305 = vld [vmem:[#allocation2 + $0x1f] sm:$0x1]
        %v5306 = vld [vmem:[#allocation2 + $0x2f] sm:$0x1]
        %v5307 = vld [vmem:[#allocation2 + $0x3f] sm:$0x1]
        %v5308 = vld [vmem:[#allocation2 + $0x4f] sm:$0x1]
        %v5309 = vld [vmem:[#allocation2 + $0x5f] sm:$0x1]
        %v5310 = vld [vmem:[#allocation2 + $0x6f] sm:$0x1]
        %v5311 = vld [vmem:[#allocation2 + $0x7f] sm:$0x1]
        %v5312 = vpack.c.bf16 %v5296, %v5296
        %v5313 = vpack.c.bf16 %v5297, %v5297
        %v5314 = vpack.c.bf16 %v5298, %v5298
        %v5315 = vpack.c.bf16 %v5299, %v5299
        %v5316 = vpack.c.bf16 %v5300, %v5300
        %v5317 = vpack.c.bf16 %v5301, %v5301
        %v5318 = vpack.c.bf16 %v5302, %v5302
        %v5319 = vpack.c.bf16 %v5303, %v5303
        %v5328 = vunpack.c.l.b16 %v5312
        %v5329 = vunpack.c.l.b16 %v5313
        %v5330 = vunpack.c.l.b16 %v5314
        %v5331 = vunpack.c.l.b16 %v5315
        %v5332 = vunpack.c.l.b16 %v5316
        %v5333 = vunpack.c.l.b16 %v5317
        %v5334 = vunpack.c.l.b16 %v5318
        %v5335 = vunpack.c.l.b16 %v5319
        %v5336 = vrot.slane %v5329, 7
        %v5337 = vsel %vm1018, %v5336, %v5328
        %v5338 = vrot.slane %v5330, 6
        %v5339 = vsel %vm1021, %v5338, %v5337
        %v5340 = vrot.slane %v5331, 5
        %v5341 = vsel %vm1024, %v5340, %v5339
        %v5342 = vrot.slane %v5332, 4
        %v5343 = vsel %vm1027, %v5342, %v5341
        %v5344 = vrot.slane %v5333, 3
        %v5345 = vsel %vm1030, %v5344, %v5343
        %v5346 = vrot.slane %v5334, 2
        %v5347 = vsel %vm1033, %v5346, %v5345
        %v5348 = vrot.slane %v5335, 1
        %v5349 = vsel %vm1036, %v5348, %v5347
        %v5350 = vpack.c.b16 %v5349, %v5349
        %5351 = vrot.lane.b32.xlu0 %v5350, 32
        %v5352 = vpop.permute.xlu0 %5351
        %v5354 = vsel %vm725, %v5352, 0
        %5356 = vmatprep.subr.bf16.mxu0 0
        %5357 = vmatpush1.bf16.msra.mxu0 %v721
        %5358 = vmatprep.subr.bf16.mxu0 0
        %5359 = vmatpush1.bf16.msra.mxu0 %v722
        %5360 = vmatprep.subr.bf16.mxu0 0
        %5361 = vmatpush1.bf16.msra.mxu0 0
        %5362 = vmatprep.subr.bf16.mxu0 0
        %5363 = vmatpush1.bf16.msra.mxu0 0
        %5364 = vmatprep.subr.bf16.mxu0 0
        %5365 = vmatpush1.bf16.msra.mxu0 0
        %5366 = vmatprep.subr.bf16.mxu0 0
        %5367 = vmatpush1.bf16.msra.mxu0 0
        %5368 = vmatprep.subr.bf16.mxu0 0
        %5369 = vmatpush1.bf16.msra.mxu0 0
        %5370 = vmatprep.subr.bf16.mxu0 0
        %5371 = vmatpush1.bf16.msra.mxu0 0
        %5372 = vmatprep.subr.bf16.mxu0 0
        %5373 = vmatpush1.bf16.msra.mxu0 0
        %5374 = vmatprep.subr.bf16.mxu0 0
        %5375 = vmatpush1.bf16.msra.mxu0 0
        %5376 = vmatprep.subr.bf16.mxu0 0
        %5377 = vmatpush1.bf16.msra.mxu0 0
        %5378 = vmatprep.subr.bf16.mxu0 0
        %5379 = vmatpush1.bf16.msra.mxu0 0
        %5380 = vmatprep.subr.bf16.mxu0 0
        %5381 = vmatpush1.bf16.msra.mxu0 0
        %5382 = vmatprep.subr.bf16.mxu0 0
        %5383 = vmatpush1.bf16.msra.mxu0 0
        %5384 = vmatprep.subr.bf16.mxu0 0
        %5385 = vmatpush1.bf16.msra.mxu0 0
        %5386 = vmatprep.subr.bf16.mxu0 0
        %5387 = vmatpush1.bf16.msra.mxu0 0
        %5388 = vmatprep.mubr.bf16.mxu0 0
        %5389 = vmatmul.mubr.bf16.gmra.mrb[0].mxu0 %v5354
        %v5390 = vpop.f32.mrb[0].mxu0
        %v5391 = vadd.f32 0.0, %v5390
        %v5392 = vpop.f32.mrb[0].mxu0
        %v5393 = vpop.f32.mrb[0].mxu0
        %v5394 = vpop.f32.mrb[0].mxu0
        %5395 = vdwg.mxu0
        %v5397 = vrot.slane %v5391, 1
        %v5398 = vrot.slane %v5391, 2
        %v5399 = vrot.slane %v5391, 3
        %v5400 = vrot.slane %v5391, 4
        %v5401 = vrot.slane %v5391, 5
        %v5402 = vrot.slane %v5391, 6
        %v5403 = vrot.slane %v5391, 7
        %v5412 = vadd.f32 %v5304, %v5391
        %v5413 = vadd.f32 %v5305, %v5397
        %v5414 = vadd.f32 %v5306, %v5398
        %v5415 = vadd.f32 %v5307, %v5399
        %v5416 = vadd.f32 %v5308, %v5400
        %v5417 = vadd.f32 %v5309, %v5401
        %v5418 = vadd.f32 %v5310, %v5402
        %v5419 = vadd.f32 %v5311, %v5403
        %v5420 = vxor.u32 %v5412, 2147483648
        %v5421 = vxor.u32 %v5413, 2147483648
        %v5422 = vxor.u32 %v5414, 2147483648
        %v5423 = vxor.u32 %v5415, 2147483648
        %v5424 = vxor.u32 %v5416, 2147483648
        %v5425 = vxor.u32 %v5417, 2147483648
        %v5426 = vxor.u32 %v5418, 2147483648
        %v5427 = vxor.u32 %v5419, 2147483648
        %v5428 = vmul.f32 %v5420, 1.442695
        %v5429 = vpow.pop %v5428
        %v5430 = vmul.f32 %v5421, 1.442695
        %v5431 = vpow.pop %v5430
        %v5432 = vmul.f32 %v5422, 1.442695
        %v5433 = vpow.pop %v5432
        %v5434 = vmul.f32 %v5423, 1.442695
        %v5435 = vpow.pop %v5434
        %v5436 = vmul.f32 %v5424, 1.442695
        %v5437 = vpow.pop %v5436
        %v5438 = vmul.f32 %v5425, 1.442695
        %v5439 = vpow.pop %v5438
        %v5440 = vmul.f32 %v5426, 1.442695
        %v5441 = vpow.pop %v5440
        %v5442 = vmul.f32 %v5427, 1.442695
        %v5443 = vpow.pop %v5442
        %v5444 = vadd.f32 %v5429, 1.0
        %v5445 = vadd.f32 %v5431, 1.0
        %v5446 = vadd.f32 %v5433, 1.0
        %v5447 = vadd.f32 %v5435, 1.0
        %v5448 = vadd.f32 %v5437, 1.0
        %v5449 = vadd.f32 %v5439, 1.0
        %v5450 = vadd.f32 %v5441, 1.0
        %v5451 = vadd.f32 %v5443, 1.0
        %v5452 = vrcp.pop %v5444
        %v5453 = vmul.f32 1.0, %v5452
        %v5454 = vrcp.pop %v5445
        %v5455 = vmul.f32 1.0, %v5454
        %v5456 = vrcp.pop %v5446
        %v5457 = vmul.f32 1.0, %v5456
        %v5458 = vrcp.pop %v5447
        %v5459 = vmul.f32 1.0, %v5458
        %v5460 = vrcp.pop %v5448
        %v5461 = vmul.f32 1.0, %v5460
        %v5462 = vrcp.pop %v5449
        %v5463 = vmul.f32 1.0, %v5462
        %v5464 = vrcp.pop %v5450
        %v5465 = vmul.f32 1.0, %v5464
        %v5466 = vrcp.pop %v5451
        %v5467 = vmul.f32 1.0, %v5466
        %v5468 = vtanh.pop %v5412
        %v5469 = vtanh.pop %v5413
        %v5470 = vtanh.pop %v5414
        %v5471 = vtanh.pop %v5415
        %v5472 = vtanh.pop %v5416
        %v5473 = vtanh.pop %v5417
        %v5474 = vtanh.pop %v5418
        %v5475 = vtanh.pop %v5419
        %v5476 = vmul.f32 %v5453, %v5248
        %v5477 = vmul.f32 %v5455, %v5249
        %v5478 = vmul.f32 %v5457, %v5250
        %v5479 = vmul.f32 %v5459, %v5251
        %v5480 = vmul.f32 %v5461, %v5252
        %v5481 = vmul.f32 %v5463, %v5253
        %v5482 = vmul.f32 %v5465, %v5254
        %v5483 = vmul.f32 %v5467, %v5255
        %5492 = vrot.lane.b32.xlu0 %v5468, 64
        %v5493 = vpop.permute.xlu0 %5492
        %5494 = vrot.lane.b32.xlu0 %v5469, 64
        %v5495 = vpop.permute.xlu0 %5494
        %5496 = vrot.lane.b32.xlu0 %v5470, 64
        %v5497 = vpop.permute.xlu0 %5496
        %5498 = vrot.lane.b32.xlu0 %v5471, 64
        %v5499 = vpop.permute.xlu0 %5498
        %5500 = vrot.lane.b32.xlu0 %v5472, 64
        %v5501 = vpop.permute.xlu0 %5500
        %5502 = vrot.lane.b32.xlu0 %v5473, 64
        %v5503 = vpop.permute.xlu0 %5502
        %5504 = vrot.lane.b32.xlu0 %v5474, 64
        %v5505 = vpop.permute.xlu0 %5504
        %5506 = vrot.lane.b32.xlu0 %v5475, 64
        %v5507 = vpop.permute.xlu0 %5506
        %v5516 = vmul.f32 %v5453, %v5493
        %v5517 = vmul.f32 %v5455, %v5495
        %v5518 = vmul.f32 %v5457, %v5497
        %v5519 = vmul.f32 %v5459, %v5499
        %v5520 = vmul.f32 %v5461, %v5501
        %v5521 = vmul.f32 %v5463, %v5503
        %v5522 = vmul.f32 %v5465, %v5505
        %v5523 = vmul.f32 %v5467, %v5507
        %5532 = vrot.lane.b32.xlu0 %v5516, 32
        %v5533 = vpop.permute.xlu0 %5532
        %5534 = vrot.lane.b32.xlu0 %v5517, 32
        %v5535 = vpop.permute.xlu0 %5534
        %5536 = vrot.lane.b32.xlu0 %v5518, 32
        %v5537 = vpop.permute.xlu0 %5536
        %5538 = vrot.lane.b32.xlu0 %v5519, 32
        %v5539 = vpop.permute.xlu0 %5538
        %5540 = vrot.lane.b32.xlu0 %v5520, 32
        %v5541 = vpop.permute.xlu0 %5540
        %5542 = vrot.lane.b32.xlu0 %v5521, 32
        %v5543 = vpop.permute.xlu0 %5542
        %5544 = vrot.lane.b32.xlu0 %v5522, 32
        %v5545 = vpop.permute.xlu0 %5544
        %5546 = vrot.lane.b32.xlu0 %v5523, 32
        %v5547 = vpop.permute.xlu0 %5546
        %v5556 = vadd.f32 %v5476, %v5533
        %v5557 = vadd.f32 %v5477, %v5535
        %v5558 = vadd.f32 %v5478, %v5537
        %v5559 = vadd.f32 %v5479, %v5539
        %v5560 = vadd.f32 %v5480, %v5541
        %v5561 = vadd.f32 %v5481, %v5543
        %v5562 = vadd.f32 %v5482, %v5545
        %v5563 = vadd.f32 %v5483, %v5547
        %v5564 = vtanh.pop %v5556
        %v5565 = vtanh.pop %v5557
        %v5566 = vtanh.pop %v5558
        %v5567 = vtanh.pop %v5559
        %v5568 = vtanh.pop %v5560
        %v5569 = vtanh.pop %v5561
        %v5570 = vtanh.pop %v5562
        %v5571 = vtanh.pop %v5563
        %5580 = vrot.lane.b32.xlu0 %v5564, 64
        %v5581 = vpop.permute.xlu0 %5580
        %5582 = vrot.lane.b32.xlu0 %v5565, 64
        %v5583 = vpop.permute.xlu0 %5582
        %5584 = vrot.lane.b32.xlu0 %v5566, 64
        %v5585 = vpop.permute.xlu0 %5584
        %5586 = vrot.lane.b32.xlu0 %v5567, 64
        %v5587 = vpop.permute.xlu0 %5586
        %5588 = vrot.lane.b32.xlu0 %v5568, 64
        %v5589 = vpop.permute.xlu0 %5588
        %5590 = vrot.lane.b32.xlu0 %v5569, 64
        %v5591 = vpop.permute.xlu0 %5590
        %5592 = vrot.lane.b32.xlu0 %v5570, 64
        %v5593 = vpop.permute.xlu0 %5592
        %5594 = vrot.lane.b32.xlu0 %v5571, 64
        %v5595 = vpop.permute.xlu0 %5594
        %v5604 = vmul.f32 %v5453, %v5581
        %v5605 = vmul.f32 %v5455, %v5583
        %v5606 = vmul.f32 %v5457, %v5585
        %v5607 = vmul.f32 %v5459, %v5587
        %v5608 = vmul.f32 %v5461, %v5589
        %v5609 = vmul.f32 %v5463, %v5591
        %v5610 = vmul.f32 %v5465, %v5593
        %v5611 = vmul.f32 %v5467, %v5595
        %v5612 = vshrl.u32 %v543, 16
        %v5614 = vrot.slane %v5612, 6
        %v5615 = vshll.u32 %v543, 16
        %v5617 = vrot.slane %v5615, 7
        %v5618 = vor.u32 %v5614, %v5617
        %v5619 = vshrl.u32 %v544, 16
        %v5621 = vrot.slane %v5619, 6
        %v5622 = vshll.u32 %v544, 16
        %v5624 = vrot.slane %v5622, 7
        %v5625 = vor.u32 %v5621, %v5624
        %v5626 = vshrl.u32 %v545, 16
        %v5628 = vrot.slane %v5626, 6
        %v5629 = vshll.u32 %v545, 16
        %v5631 = vrot.slane %v5629, 7
        %v5632 = vor.u32 %v5628, %v5631
        %v5633 = vshrl.u32 %v546, 16
        %v5635 = vrot.slane %v5633, 6
        %v5636 = vshll.u32 %v546, 16
        %v5638 = vrot.slane %v5636, 7
        %v5639 = vor.u32 %v5635, %v5638
        %v5640 = vshrl.u32 %v547, 16
        %v5642 = vrot.slane %v5640, 6
        %v5643 = vshll.u32 %v547, 16
        %v5645 = vrot.slane %v5643, 7
        %v5646 = vor.u32 %v5642, %v5645
        %v5647 = vshrl.u32 %v548, 16
        %v5649 = vrot.slane %v5647, 6
        %v5650 = vshll.u32 %v548, 16
        %v5652 = vrot.slane %v5650, 7
        %v5653 = vor.u32 %v5649, %v5652
        %v5654 = vshrl.u32 %v549, 16
        %v5656 = vrot.slane %v5654, 6
        %v5657 = vshll.u32 %v549, 16
        %v5659 = vrot.slane %v5657, 7
        %v5660 = vor.u32 %v5656, %v5659
        %v5661 = vshrl.u32 %v550, 16
        %v5663 = vrot.slane %v5661, 6
        %v5664 = vshll.u32 %v550, 16
        %v5666 = vrot.slane %v5664, 7
        %v5667 = vor.u32 %v5663, %v5666
        %vm5676 = vcmask 1041408
        %vm5677 = vsmask.f32 1280
        %vm5678 = vmand %vm5676, %vm5677
        %v5679 = vsel %vm5678, 0, %v5618
        %v5680 = vsel %vm5678, 0, %v5625
        %v5681 = vsel %vm5678, 0, %v5632
        %v5682 = vsel %vm5678, 0, %v5639
        %v5683 = vsel %vm5678, 0, %v5646
        %v5684 = vsel %vm5678, 0, %v5653
        %v5685 = vsel %vm5678, 0, %v5660
        %v5686 = vsel %vm5678, 0, %v5667
        %v5687 = vsel %vm5678, %v5618, 0
        %v5688 = vsel %vm5678, %v5625, 0
        %v5689 = vsel %vm5678, %v5632, 0
        %v5690 = vsel %vm5678, %v5639, 0
        %v5691 = vsel %vm5678, %v5646, 0
        %v5692 = vsel %vm5678, %v5653, 0
        %v5693 = vsel %vm5678, %v5660, 0
        %v5694 = vsel %vm5678, %v5667, 0
        %vm5695 = vsmask.f32 7424
        %v5697 = vshrl.u32 %v5679, 16
        %v5699 = vshll.u32 %v5679, 16
        %v5701 = vrot.slane %v5699, 1
        %v5702 = vor.u32 %v5697, %v5701
        %v5704 = vshll.u32 %v5687, 16
        %v5706 = vrot.slane %v5704, 1
        %v5707 = vsel %vm5695, %v5702, %v5706
        %v5709 = vshrl.u32 %v5680, 16
        %v5711 = vshll.u32 %v5680, 16
        %v5713 = vrot.slane %v5711, 1
        %v5714 = vor.u32 %v5709, %v5713
        %v5716 = vshll.u32 %v5688, 16
        %v5718 = vrot.slane %v5716, 1
        %v5719 = vsel %vm5695, %v5714, %v5718
        %v5721 = vshrl.u32 %v5681, 16
        %v5723 = vshll.u32 %v5681, 16
        %v5725 = vrot.slane %v5723, 1
        %v5726 = vor.u32 %v5721, %v5725
        %v5728 = vshll.u32 %v5689, 16
        %v5730 = vrot.slane %v5728, 1
        %v5731 = vsel %vm5695, %v5726, %v5730
        %v5733 = vshrl.u32 %v5682, 16
        %v5735 = vshll.u32 %v5682, 16
        %v5737 = vrot.slane %v5735, 1
        %v5738 = vor.u32 %v5733, %v5737
        %v5740 = vshll.u32 %v5690, 16
        %v5742 = vrot.slane %v5740, 1
        %v5743 = vsel %vm5695, %v5738, %v5742
        %v5745 = vshrl.u32 %v5683, 16
        %v5747 = vshll.u32 %v5683, 16
        %v5749 = vrot.slane %v5747, 1
        %v5750 = vor.u32 %v5745, %v5749
        %v5752 = vshll.u32 %v5691, 16
        %v5754 = vrot.slane %v5752, 1
        %v5755 = vsel %vm5695, %v5750, %v5754
        %v5757 = vshrl.u32 %v5684, 16
        %v5759 = vshll.u32 %v5684, 16
        %v5761 = vrot.slane %v5759, 1
        %v5762 = vor.u32 %v5757, %v5761
        %v5764 = vshll.u32 %v5692, 16
        %v5766 = vrot.slane %v5764, 1
        %v5767 = vsel %vm5695, %v5762, %v5766
        %v5769 = vshrl.u32 %v5685, 16
        %v5771 = vshll.u32 %v5685, 16
        %v5773 = vrot.slane %v5771, 1
        %v5774 = vor.u32 %v5769, %v5773
        %v5776 = vshll.u32 %v5693, 16
        %v5778 = vrot.slane %v5776, 1
        %v5779 = vsel %vm5695, %v5774, %v5778
        %v5781 = vshrl.u32 %v5686, 16
        %v5783 = vshll.u32 %v5686, 16
        %v5785 = vrot.slane %v5783, 1
        %v5786 = vor.u32 %v5781, %v5785
        %v5788 = vshll.u32 %v5694, 16
        %v5790 = vrot.slane %v5788, 1
        %v5791 = vsel %vm5695, %v5786, %v5790
        %5792 = vrot.lane.b32.xlu0 %v5707, 4
        %v5793 = vpop.permute.xlu0 %5792
        %5794 = vrot.lane.b32.xlu0 %v5719, 4
        %v5795 = vpop.permute.xlu0 %5794
        %5796 = vrot.lane.b32.xlu0 %v5731, 4
        %v5797 = vpop.permute.xlu0 %5796
        %5798 = vrot.lane.b32.xlu0 %v5743, 4
        %v5799 = vpop.permute.xlu0 %5798
        %5800 = vrot.lane.b32.xlu0 %v5755, 4
        %v5801 = vpop.permute.xlu0 %5800
        %5802 = vrot.lane.b32.xlu0 %v5767, 4
        %v5803 = vpop.permute.xlu0 %5802
        %5804 = vrot.lane.b32.xlu0 %v5779, 4
        %v5805 = vpop.permute.xlu0 %5804
        %5806 = vrot.lane.b32.xlu0 %v5791, 4
        %v5807 = vpop.permute.xlu0 %5806
        %vm5824 = vcmask 1046528
        %v5825 = vrot.slane %v5679, 1
        %v5826 = vrot.slane %v5687, 1
        %v5827 = vsel %vm5824, %v5825, %v5826
        %v5828 = vrot.slane %v5680, 1
        %v5829 = vrot.slane %v5688, 1
        %v5830 = vsel %vm5824, %v5828, %v5829
        %v5831 = vrot.slane %v5681, 1
        %v5832 = vrot.slane %v5689, 1
        %v5833 = vsel %vm5824, %v5831, %v5832
        %v5834 = vrot.slane %v5682, 1
        %v5835 = vrot.slane %v5690, 1
        %v5836 = vsel %vm5824, %v5834, %v5835
        %v5837 = vrot.slane %v5683, 1
        %v5838 = vrot.slane %v5691, 1
        %v5839 = vsel %vm5824, %v5837, %v5838
        %v5840 = vrot.slane %v5684, 1
        %v5841 = vrot.slane %v5692, 1
        %v5842 = vsel %vm5824, %v5840, %v5841
        %v5843 = vrot.slane %v5685, 1
        %v5844 = vrot.slane %v5693, 1
        %v5845 = vsel %vm5824, %v5843, %v5844
        %v5846 = vrot.slane %v5686, 1
        %v5847 = vrot.slane %v5694, 1
        %v5848 = vsel %vm5824, %v5846, %v5847
        %5849 = vrot.lane.b32.xlu0 %v5827, 8
        %v5850 = vpop.permute.xlu0 %5849
        %5851 = vrot.lane.b32.xlu0 %v5830, 8
        %v5852 = vpop.permute.xlu0 %5851
        %5853 = vrot.lane.b32.xlu0 %v5833, 8
        %v5854 = vpop.permute.xlu0 %5853
        %5855 = vrot.lane.b32.xlu0 %v5836, 8
        %v5856 = vpop.permute.xlu0 %5855
        %5857 = vrot.lane.b32.xlu0 %v5839, 8
        %v5858 = vpop.permute.xlu0 %5857
        %5859 = vrot.lane.b32.xlu0 %v5842, 8
        %v5860 = vpop.permute.xlu0 %5859
        %5861 = vrot.lane.b32.xlu0 %v5845, 8
        %v5862 = vpop.permute.xlu0 %5861
        %5863 = vrot.lane.b32.xlu0 %v5848, 8
        %v5864 = vpop.permute.xlu0 %5863
        %vm5865 = vsmask.f32 6400
        %v5866 = vrot.slane %v5697, 1
        %v5867 = vrot.slane %v5699, 2
        %v5868 = vor.u32 %v5866, %v5867
        %v5869 = vshrl.u32 %v5687, 16
        %v5871 = vrot.slane %v5869, 1
        %v5872 = vrot.slane %v5704, 2
        %v5873 = vor.u32 %v5871, %v5872
        %v5874 = vsel %vm5865, %v5868, %v5873
        %v5875 = vrot.slane %v5709, 1
        %v5876 = vrot.slane %v5711, 2
        %v5877 = vor.u32 %v5875, %v5876
        %v5878 = vshrl.u32 %v5688, 16
        %v5880 = vrot.slane %v5878, 1
        %v5881 = vrot.slane %v5716, 2
        %v5882 = vor.u32 %v5880, %v5881
        %v5883 = vsel %vm5865, %v5877, %v5882
        %v5884 = vrot.slane %v5721, 1
        %v5885 = vrot.slane %v5723, 2
        %v5886 = vor.u32 %v5884, %v5885
        %v5887 = vshrl.u32 %v5689, 16
        %v5889 = vrot.slane %v5887, 1
        %v5890 = vrot.slane %v5728, 2
        %v5891 = vor.u32 %v5889, %v5890
        %v5892 = vsel %vm5865, %v5886, %v5891
        %v5893 = vrot.slane %v5733, 1
        %v5894 = vrot.slane %v5735, 2
        %v5895 = vor.u32 %v5893, %v5894
        %v5896 = vshrl.u32 %v5690, 16
        %v5898 = vrot.slane %v5896, 1
        %v5899 = vrot.slane %v5740, 2
        %v5900 = vor.u32 %v5898, %v5899
        %v5901 = vsel %vm5865, %v5895, %v5900
        %v5902 = vrot.slane %v5745, 1
        %v5903 = vrot.slane %v5747, 2
        %v5904 = vor.u32 %v5902, %v5903
        %v5905 = vshrl.u32 %v5691, 16
        %v5907 = vrot.slane %v5905, 1
        %v5908 = vrot.slane %v5752, 2
        %v5909 = vor.u32 %v5907, %v5908
        %v5910 = vsel %vm5865, %v5904, %v5909
        %v5911 = vrot.slane %v5757, 1
        %v5912 = vrot.slane %v5759, 2
        %v5913 = vor.u32 %v5911, %v5912
        %v5914 = vshrl.u32 %v5692, 16
        %v5916 = vrot.slane %v5914, 1
        %v5917 = vrot.slane %v5764, 2
        %v5918 = vor.u32 %v5916, %v5917
        %v5919 = vsel %vm5865, %v5913, %v5918
        %v5920 = vrot.slane %v5769, 1
        %v5921 = vrot.slane %v5771, 2
        %v5922 = vor.u32 %v5920, %v5921
        %v5923 = vshrl.u32 %v5693, 16
        %v5925 = vrot.slane %v5923, 1
        %v5926 = vrot.slane %v5776, 2
        %v5927 = vor.u32 %v5925, %v5926
        %v5928 = vsel %vm5865, %v5922, %v5927
        %v5929 = vrot.slane %v5781, 1
        %v5930 = vrot.slane %v5783, 2
        %v5931 = vor.u32 %v5929, %v5930
        %v5932 = vshrl.u32 %v5694, 16
        %v5934 = vrot.slane %v5932, 1
        %v5935 = vrot.slane %v5788, 2
        %v5936 = vor.u32 %v5934, %v5935
        %v5937 = vsel %vm5865, %v5931, %v5936
        %5938 = vrot.lane.b32.xlu0 %v5874, 12
        %v5939 = vpop.permute.xlu0 %5938
        %5940 = vrot.lane.b32.xlu0 %v5883, 12
        %v5941 = vpop.permute.xlu0 %5940
        %5942 = vrot.lane.b32.xlu0 %v5892, 12
        %v5943 = vpop.permute.xlu0 %5942
        %5944 = vrot.lane.b32.xlu0 %v5901, 12
        %v5945 = vpop.permute.xlu0 %5944
        %5946 = vrot.lane.b32.xlu0 %v5910, 12
        %v5947 = vpop.permute.xlu0 %5946
        %5948 = vrot.lane.b32.xlu0 %v5919, 12
        %v5949 = vpop.permute.xlu0 %5948
        %5950 = vrot.lane.b32.xlu0 %v5928, 12
        %v5951 = vpop.permute.xlu0 %5950
        %5952 = vrot.lane.b32.xlu0 %v5937, 12
        %v5953 = vpop.permute.xlu0 %5952
        %vm5954 = vcmask 1045504
        %v5955 = vrot.slane %v5679, 2
        %v5956 = vrot.slane %v5687, 2
        %v5957 = vsel %vm5954, %v5955, %v5956
        %v5958 = vrot.slane %v5680, 2
        %v5959 = vrot.slane %v5688, 2
        %v5960 = vsel %vm5954, %v5958, %v5959
        %v5961 = vrot.slane %v5681, 2
        %v5962 = vrot.slane %v5689, 2
        %v5963 = vsel %vm5954, %v5961, %v5962
        %v5964 = vrot.slane %v5682, 2
        %v5965 = vrot.slane %v5690, 2
        %v5966 = vsel %vm5954, %v5964, %v5965
        %v5967 = vrot.slane %v5683, 2
        %v5968 = vrot.slane %v5691, 2
        %v5969 = vsel %vm5954, %v5967, %v5968
        %v5970 = vrot.slane %v5684, 2
        %v5971 = vrot.slane %v5692, 2
        %v5972 = vsel %vm5954, %v5970, %v5971
        %v5973 = vrot.slane %v5685, 2
        %v5974 = vrot.slane %v5693, 2
        %v5975 = vsel %vm5954, %v5973, %v5974
        %v5976 = vrot.slane %v5686, 2
        %v5977 = vrot.slane %v5694, 2
        %v5978 = vsel %vm5954, %v5976, %v5977
        %5979 = vrot.lane.b32.xlu0 %v5957, 16
        %v5980 = vpop.permute.xlu0 %5979
        %5981 = vrot.lane.b32.xlu0 %v5960, 16
        %v5982 = vpop.permute.xlu0 %5981
        %5983 = vrot.lane.b32.xlu0 %v5963, 16
        %v5984 = vpop.permute.xlu0 %5983
        %5985 = vrot.lane.b32.xlu0 %v5966, 16
        %v5986 = vpop.permute.xlu0 %5985
        %5987 = vrot.lane.b32.xlu0 %v5969, 16
        %v5988 = vpop.permute.xlu0 %5987
        %5989 = vrot.lane.b32.xlu0 %v5972, 16
        %v5990 = vpop.permute.xlu0 %5989
        %5991 = vrot.lane.b32.xlu0 %v5975, 16
        %v5992 = vpop.permute.xlu0 %5991
        %5993 = vrot.lane.b32.xlu0 %v5978, 16
        %v5994 = vpop.permute.xlu0 %5993
        %vm5995 = vsmask.f32 5376
        %v5996 = vrot.slane %v5697, 2
        %v5997 = vrot.slane %v5699, 3
        %v5998 = vor.u32 %v5996, %v5997
        %v5999 = vrot.slane %v5869, 2
        %v6000 = vrot.slane %v5704, 3
        %v6001 = vor.u32 %v5999, %v6000
        %v6002 = vsel %vm5995, %v5998, %v6001
        %v6003 = vrot.slane %v5709, 2
        %v6004 = vrot.slane %v5711, 3
        %v6005 = vor.u32 %v6003, %v6004
        %v6006 = vrot.slane %v5878, 2
        %v6007 = vrot.slane %v5716, 3
        %v6008 = vor.u32 %v6006, %v6007
        %v6009 = vsel %vm5995, %v6005, %v6008
        %v6010 = vrot.slane %v5721, 2
        %v6011 = vrot.slane %v5723, 3
        %v6012 = vor.u32 %v6010, %v6011
        %v6013 = vrot.slane %v5887, 2
        %v6014 = vrot.slane %v5728, 3
        %v6015 = vor.u32 %v6013, %v6014
        %v6016 = vsel %vm5995, %v6012, %v6015
        %v6017 = vrot.slane %v5733, 2
        %v6018 = vrot.slane %v5735, 3
        %v6019 = vor.u32 %v6017, %v6018
        %v6020 = vrot.slane %v5896, 2
        %v6021 = vrot.slane %v5740, 3
        %v6022 = vor.u32 %v6020, %v6021
        %v6023 = vsel %vm5995, %v6019, %v6022
        %v6024 = vrot.slane %v5745, 2
        %v6025 = vrot.slane %v5747, 3
        %v6026 = vor.u32 %v6024, %v6025
        %v6027 = vrot.slane %v5905, 2
        %v6028 = vrot.slane %v5752, 3
        %v6029 = vor.u32 %v6027, %v6028
        %v6030 = vsel %vm5995, %v6026, %v6029
        %v6031 = vrot.slane %v5757, 2
        %v6032 = vrot.slane %v5759, 3
        %v6033 = vor.u32 %v6031, %v6032
        %v6034 = vrot.slane %v5914, 2
        %v6035 = vrot.slane %v5764, 3
        %v6036 = vor.u32 %v6034, %v6035
        %v6037 = vsel %vm5995, %v6033, %v6036
        %v6038 = vrot.slane %v5769, 2
        %v6039 = vrot.slane %v5771, 3
        %v6040 = vor.u32 %v6038, %v6039
        %v6041 = vrot.slane %v5923, 2
        %v6042 = vrot.slane %v5776, 3
        %v6043 = vor.u32 %v6041, %v6042
        %v6044 = vsel %vm5995, %v6040, %v6043
        %v6045 = vrot.slane %v5781, 2
        %v6046 = vrot.slane %v5783, 3
        %v6047 = vor.u32 %v6045, %v6046
        %v6048 = vrot.slane %v5932, 2
        %v6049 = vrot.slane %v5788, 3
        %v6050 = vor.u32 %v6048, %v6049
        %v6051 = vsel %vm5995, %v6047, %v6050
        %6052 = vrot.lane.b32.xlu0 %v6002, 20
        %v6053 = vpop.permute.xlu0 %6052
        %6054 = vrot.lane.b32.xlu0 %v6009, 20
        %v6055 = vpop.permute.xlu0 %6054
        %6056 = vrot.lane.b32.xlu0 %v6016, 20
        %v6057 = vpop.permute.xlu0 %6056
        %6058 = vrot.lane.b32.xlu0 %v6023, 20
        %v6059 = vpop.permute.xlu0 %6058
        %6060 = vrot.lane.b32.xlu0 %v6030, 20
        %v6061 = vpop.permute.xlu0 %6060
        %6062 = vrot.lane.b32.xlu0 %v6037, 20
        %v6063 = vpop.permute.xlu0 %6062
        %6064 = vrot.lane.b32.xlu0 %v6044, 20
        %v6065 = vpop.permute.xlu0 %6064
        %6066 = vrot.lane.b32.xlu0 %v6051, 20
        %v6067 = vpop.permute.xlu0 %6066
        %vm6068 = vcmask 1044480
        %v6069 = vrot.slane %v5679, 3
        %v6070 = vrot.slane %v5687, 3
        %v6071 = vsel %vm6068, %v6069, %v6070
        %v6072 = vrot.slane %v5680, 3
        %v6073 = vrot.slane %v5688, 3
        %v6074 = vsel %vm6068, %v6072, %v6073
        %v6075 = vrot.slane %v5681, 3
        %v6076 = vrot.slane %v5689, 3
        %v6077 = vsel %vm6068, %v6075, %v6076
        %v6078 = vrot.slane %v5682, 3
        %v6079 = vrot.slane %v5690, 3
        %v6080 = vsel %vm6068, %v6078, %v6079
        %v6081 = vrot.slane %v5683, 3
        %v6082 = vrot.slane %v5691, 3
        %v6083 = vsel %vm6068, %v6081, %v6082
        %v6084 = vrot.slane %v5684, 3
        %v6085 = vrot.slane %v5692, 3
        %v6086 = vsel %vm6068, %v6084, %v6085
        %v6087 = vrot.slane %v5685, 3
        %v6088 = vrot.slane %v5693, 3
        %v6089 = vsel %vm6068, %v6087, %v6088
        %v6090 = vrot.slane %v5686, 3
        %v6091 = vrot.slane %v5694, 3
        %v6092 = vsel %vm6068, %v6090, %v6091
        %6093 = vrot.lane.b32.xlu0 %v6071, 24
        %v6094 = vpop.permute.xlu0 %6093
        %6095 = vrot.lane.b32.xlu0 %v6074, 24
        %v6096 = vpop.permute.xlu0 %6095
        %6097 = vrot.lane.b32.xlu0 %v6077, 24
        %v6098 = vpop.permute.xlu0 %6097
        %6099 = vrot.lane.b32.xlu0 %v6080, 24
        %v6100 = vpop.permute.xlu0 %6099
        %6101 = vrot.lane.b32.xlu0 %v6083, 24
        %v6102 = vpop.permute.xlu0 %6101
        %6103 = vrot.lane.b32.xlu0 %v6086, 24
        %v6104 = vpop.permute.xlu0 %6103
        %6105 = vrot.lane.b32.xlu0 %v6089, 24
        %v6106 = vpop.permute.xlu0 %6105
        %6107 = vrot.lane.b32.xlu0 %v6092, 24
        %v6108 = vpop.permute.xlu0 %6107
        %vm6109 = vsmask.f32 4352
        %v6110 = vrot.slane %v5697, 3
        %v6111 = vrot.slane %v5699, 4
        %v6112 = vor.u32 %v6110, %v6111
        %v6113 = vrot.slane %v5869, 3
        %v6114 = vrot.slane %v5704, 4
        %v6115 = vor.u32 %v6113, %v6114
        %v6116 = vsel %vm6109, %v6112, %v6115
        %v6117 = vrot.slane %v5709, 3
        %v6118 = vrot.slane %v5711, 4
        %v6119 = vor.u32 %v6117, %v6118
        %v6120 = vrot.slane %v5878, 3
        %v6121 = vrot.slane %v5716, 4
        %v6122 = vor.u32 %v6120, %v6121
        %v6123 = vsel %vm6109, %v6119, %v6122
        %v6124 = vrot.slane %v5721, 3
        %v6125 = vrot.slane %v5723, 4
        %v6126 = vor.u32 %v6124, %v6125
        %v6127 = vrot.slane %v5887, 3
        %v6128 = vrot.slane %v5728, 4
        %v6129 = vor.u32 %v6127, %v6128
        %v6130 = vsel %vm6109, %v6126, %v6129
        %v6131 = vrot.slane %v5733, 3
        %v6132 = vrot.slane %v5735, 4
        %v6133 = vor.u32 %v6131, %v6132
        %v6134 = vrot.slane %v5896, 3
        %v6135 = vrot.slane %v5740, 4
        %v6136 = vor.u32 %v6134, %v6135
        %v6137 = vsel %vm6109, %v6133, %v6136
        %v6138 = vrot.slane %v5745, 3
        %v6139 = vrot.slane %v5747, 4
        %v6140 = vor.u32 %v6138, %v6139
        %v6141 = vrot.slane %v5905, 3
        %v6142 = vrot.slane %v5752, 4
        %v6143 = vor.u32 %v6141, %v6142
        %v6144 = vsel %vm6109, %v6140, %v6143
        %v6145 = vrot.slane %v5757, 3
        %v6146 = vrot.slane %v5759, 4
        %v6147 = vor.u32 %v6145, %v6146
        %v6148 = vrot.slane %v5914, 3
        %v6149 = vrot.slane %v5764, 4
        %v6150 = vor.u32 %v6148, %v6149
        %v6151 = vsel %vm6109, %v6147, %v6150
        %v6152 = vrot.slane %v5769, 3
        %v6153 = vrot.slane %v5771, 4
        %v6154 = vor.u32 %v6152, %v6153
        %v6155 = vrot.slane %v5923, 3
        %v6156 = vrot.slane %v5776, 4
        %v6157 = vor.u32 %v6155, %v6156
        %v6158 = vsel %vm6109, %v6154, %v6157
        %v6159 = vrot.slane %v5781, 3
        %v6160 = vrot.slane %v5783, 4
        %v6161 = vor.u32 %v6159, %v6160
        %v6162 = vrot.slane %v5932, 3
        %v6163 = vrot.slane %v5788, 4
        %v6164 = vor.u32 %v6162, %v6163
        %v6165 = vsel %vm6109, %v6161, %v6164
        %6166 = vrot.lane.b32.xlu0 %v6116, 28
        %v6167 = vpop.permute.xlu0 %6166
        %6168 = vrot.lane.b32.xlu0 %v6123, 28
        %v6169 = vpop.permute.xlu0 %6168
        %6170 = vrot.lane.b32.xlu0 %v6130, 28
        %v6171 = vpop.permute.xlu0 %6170
        %6172 = vrot.lane.b32.xlu0 %v6137, 28
        %v6173 = vpop.permute.xlu0 %6172
        %6174 = vrot.lane.b32.xlu0 %v6144, 28
        %v6175 = vpop.permute.xlu0 %6174
        %6176 = vrot.lane.b32.xlu0 %v6151, 28
        %v6177 = vpop.permute.xlu0 %6176
        %6178 = vrot.lane.b32.xlu0 %v6158, 28
        %v6179 = vpop.permute.xlu0 %6178
        %6180 = vrot.lane.b32.xlu0 %v6165, 28
        %v6181 = vpop.permute.xlu0 %6180
        %v6183 = vsel %vm559, %v5679, %v5793
        %v6185 = vsel %vm559, %v5680, %v5795
        %v6187 = vsel %vm559, %v5681, %v5797
        %v6189 = vsel %vm559, %v5682, %v5799
        %v6191 = vsel %vm559, %v5683, %v5801
        %v6193 = vsel %vm559, %v5684, %v5803
        %v6195 = vsel %vm559, %v5685, %v5805
        %v6197 = vsel %vm559, %v5686, %v5807
        %vm6198 = vcmask 64512
        %v6200 = vsel %vm6198, %v6183, %v5850
        %v6202 = vsel %vm6198, %v6185, %v5852
        %v6204 = vsel %vm6198, %v6187, %v5854
        %v6206 = vsel %vm6198, %v6189, %v5856
        %v6208 = vsel %vm6198, %v6191, %v5858
        %v6210 = vsel %vm6198, %v6193, %v5860
        %v6212 = vsel %vm6198, %v6195, %v5862
        %v6214 = vsel %vm6198, %v6197, %v5864
        %vm6215 = vcmask 97280
        %v6217 = vsel %vm6215, %v6200, %v5939
        %v6219 = vsel %vm6215, %v6202, %v5941
        %v6221 = vsel %vm6215, %v6204, %v5943
        %v6223 = vsel %vm6215, %v6206, %v5945
        %v6225 = vsel %vm6215, %v6208, %v5947
        %v6227 = vsel %vm6215, %v6210, %v5949
        %v6229 = vsel %vm6215, %v6212, %v5951
        %v6231 = vsel %vm6215, %v6214, %v5953
        %vm6232 = vcmask 130048
        %v6234 = vsel %vm6232, %v6217, %v5980
        %v6236 = vsel %vm6232, %v6219, %v5982
        %v6238 = vsel %vm6232, %v6221, %v5984
        %v6240 = vsel %vm6232, %v6223, %v5986
        %v6242 = vsel %vm6232, %v6225, %v5988
        %v6244 = vsel %vm6232, %v6227, %v5990
        %v6246 = vsel %vm6232, %v6229, %v5992
        %v6248 = vsel %vm6232, %v6231, %v5994
        %vm6249 = vcmask 162816
        %v6251 = vsel %vm6249, %v6234, %v6053
        %v6253 = vsel %vm6249, %v6236, %v6055
        %v6255 = vsel %vm6249, %v6238, %v6057
        %v6257 = vsel %vm6249, %v6240, %v6059
        %v6259 = vsel %vm6249, %v6242, %v6061
        %v6261 = vsel %vm6249, %v6244, %v6063
        %v6263 = vsel %vm6249, %v6246, %v6065
        %v6265 = vsel %vm6249, %v6248, %v6067
        %vm6266 = vcmask 195584
        %v6268 = vsel %vm6266, %v6251, %v6094
        %v6270 = vsel %vm6266, %v6253, %v6096
        %v6272 = vsel %vm6266, %v6255, %v6098
        %v6274 = vsel %vm6266, %v6257, %v6100
        %v6276 = vsel %vm6266, %v6259, %v6102
        %v6278 = vsel %vm6266, %v6261, %v6104
        %v6280 = vsel %vm6266, %v6263, %v6106
        %v6282 = vsel %vm6266, %v6265, %v6108
        %vm6283 = vcmask 228352
        %v6285 = vsel %vm6283, %v6268, %v6167
        %v6287 = vsel %vm6283, %v6270, %v6169
        %v6289 = vsel %vm6283, %v6272, %v6171
        %v6291 = vsel %vm6283, %v6274, %v6173
        %v6293 = vsel %vm6283, %v6276, %v6175
        %v6295 = vsel %vm6283, %v6278, %v6177
        %v6297 = vsel %vm6283, %v6280, %v6179
        %v6299 = vsel %vm6283, %v6282, %v6181
        %v6300 = vld [vmem:[#allocation3] sm:$0xf]
        %v6301 = vld [vmem:[#allocation3 + $0x4] sm:$0xf]
        %v6302 = vld [vmem:[#allocation3 + $0x8] sm:$0xf]
        %v6303 = vld [vmem:[#allocation3 + $0xc] sm:$0xf]
        %v6308 = vunpack.c.l.b16 %v6300
        %v6309 = vunpack.c.l.b16 %v6301
        %v6310 = vunpack.c.l.b16 %v6302
        %v6311 = vunpack.c.l.b16 %v6303
        %v6312 = vpack.c.b16 %v6309, %v6308
        %v6313 = vpack.c.b16 %v6311, %v6310
        %v6316 = vsel %vm725, %v6285, 0
        %v6318 = vsel %vm725, %v6287, 0
        %v6320 = vsel %vm725, %v6289, 0
        %v6322 = vsel %vm725, %v6291, 0
        %v6324 = vsel %vm725, %v6293, 0
        %v6326 = vsel %vm725, %v6295, 0
        %v6328 = vsel %vm725, %v6297, 0
        %v6330 = vsel %vm725, %v6299, 0
        %6332 = vmatprep.subr.bf16.mxu0 0
        %6333 = vmatpush1.bf16.msra.mxu0 %v6312
        %6334 = vmatprep.subr.bf16.mxu0 0
        %6335 = vmatpush1.bf16.msra.mxu0 %v6313
        %6336 = vmatprep.subr.bf16.mxu0 0
        %6337 = vmatpush1.bf16.msra.mxu0 0
        %6338 = vmatprep.subr.bf16.mxu0 0
        %6339 = vmatpush1.bf16.msra.mxu0 0
        %6340 = vmatprep.subr.bf16.mxu0 0
        %6341 = vmatpush1.bf16.msra.mxu0 0
        %6342 = vmatprep.subr.bf16.mxu0 0
        %6343 = vmatpush1.bf16.msra.mxu0 0
        %6344 = vmatprep.subr.bf16.mxu0 0
        %6345 = vmatpush1.bf16.msra.mxu0 0
        %6346 = vmatprep.subr.bf16.mxu0 0
        %6347 = vmatpush1.bf16.msra.mxu0 0
        %6348 = vmatprep.subr.bf16.mxu0 0
        %6349 = vmatpush1.bf16.msra.mxu0 0
        %6350 = vmatprep.subr.bf16.mxu0 0
        %6351 = vmatpush1.bf16.msra.mxu0 0
        %6352 = vmatprep.subr.bf16.mxu0 0
        %6353 = vmatpush1.bf16.msra.mxu0 0
        %6354 = vmatprep.subr.bf16.mxu0 0
        %6355 = vmatpush1.bf16.msra.mxu0 0
        %6356 = vmatprep.subr.bf16.mxu0 0
        %6357 = vmatpush1.bf16.msra.mxu0 0
        %6358 = vmatprep.subr.bf16.mxu0 0
        %6359 = vmatpush1.bf16.msra.mxu0 0
        %6360 = vmatprep.subr.bf16.mxu0 0
        %6361 = vmatpush1.bf16.msra.mxu0 0
        %6362 = vmatprep.subr.bf16.mxu0 0
        %6363 = vmatpush1.bf16.msra.mxu0 0
        %6364 = vmatprep.mubr.bf16.mxu0 0
        %6365 = vmatmul.mubr.bf16.gmra.mrb[0].mxu0 %v6316
        %v6366 = vpop.f32.mrb[0].mxu0
        %v6367 = vadd.f32 0.0, %v6366
        %v6368 = vpop.f32.mrb[0].mxu0
        %v6369 = vpop.f32.mrb[0].mxu0
        %v6370 = vadd.f32 0.0, %v6369
        %v6371 = vpop.f32.mrb[0].mxu0
        %6372 = vmatprep.mubr.bf16.mxu0 0
        %6373 = vmatmul.mubr.bf16.gmra.mrb[0].mxu0 %v6318
        %v6374 = vpop.f32.mrb[0].mxu0
        %v6375 = vadd.f32 0.0, %v6374
        %v6376 = vpop.f32.mrb[0].mxu0
        %v6377 = vpop.f32.mrb[0].mxu0
        %v6378 = vadd.f32 0.0, %v6377
        %v6379 = vpop.f32.mrb[0].mxu0
        %6380 = vmatprep.mubr.bf16.mxu0 0
        %6381 = vmatmul.mubr.bf16.gmra.mrb[0].mxu0 %v6320
        %v6382 = vpop.f32.mrb[0].mxu0
        %v6383 = vadd.f32 0.0, %v6382
        %v6384 = vpop.f32.mrb[0].mxu0
        %v6385 = vpop.f32.mrb[0].mxu0
        %v6386 = vadd.f32 0.0, %v6385
        %v6387 = vpop.f32.mrb[0].mxu0
        %6388 = vmatprep.mubr.bf16.mxu0 0
        %6389 = vmatmul.mubr.bf16.gmra.mrb[0].mxu0 %v6322
        %v6390 = vpop.f32.mrb[0].mxu0
        %v6391 = vadd.f32 0.0, %v6390
        %v6392 = vpop.f32.mrb[0].mxu0
        %v6393 = vpop.f32.mrb[0].mxu0
        %v6394 = vadd.f32 0.0, %v6393
        %v6395 = vpop.f32.mrb[0].mxu0
        %6396 = vmatprep.mubr.bf16.mxu0 0
        %6397 = vmatmul.mubr.bf16.gmra.mrb[0].mxu0 %v6324
        %v6398 = vpop.f32.mrb[0].mxu0
        %v6399 = vadd.f32 0.0, %v6398
        %v6400 = vpop.f32.mrb[0].mxu0
        %v6401 = vpop.f32.mrb[0].mxu0
        %v6402 = vadd.f32 0.0, %v6401
        %v6403 = vpop.f32.mrb[0].mxu0
        %6404 = vmatprep.mubr.bf16.mxu0 0
        %6405 = vmatmul.mubr.bf16.gmra.mrb[0].mxu0 %v6326
        %v6406 = vpop.f32.mrb[0].mxu0
        %v6407 = vadd.f32 0.0, %v6406
        %v6408 = vpop.f32.mrb[0].mxu0
        %v6409 = vpop.f32.mrb[0].mxu0
        %v6410 = vadd.f32 0.0, %v6409
        %v6411 = vpop.f32.mrb[0].mxu0
        %6412 = vmatprep.mubr.bf16.mxu0 0
        %6413 = vmatmul.mubr.bf16.gmra.mrb[0].mxu0 %v6328
        %v6414 = vpop.f32.mrb[0].mxu0
        %v6415 = vadd.f32 0.0, %v6414
        %v6416 = vpop.f32.mrb[0].mxu0
        %v6417 = vpop.f32.mrb[0].mxu0
        %v6418 = vadd.f32 0.0, %v6417
        %v6419 = vpop.f32.mrb[0].mxu0
        %6420 = vmatprep.mubr.bf16.mxu0 0
        %6421 = vmatmul.mubr.bf16.gmra.mrb[0].mxu0 %v6330
        %v6422 = vpop.f32.mrb[0].mxu0
        %v6423 = vadd.f32 0.0, %v6422
        %v6424 = vpop.f32.mrb[0].mxu0
        %v6425 = vpop.f32.mrb[0].mxu0
        %v6426 = vadd.f32 0.0, %v6425
        %v6427 = vpop.f32.mrb[0].mxu0
        %6428 = vdwg.mxu0
        %v6429 = vld [vmem:[#allocation6] sm:$0x1]
        %v6431 = vlaneseq
        %v6432 = vshrl.u32 %v6431, 7
        %v6433 = vsub.s32 0, %v6432
        %v6434 = vrot.slane %v6429, %v6433
        %v6436 = vadd.f32 %v6367, %v6434
        %v6437 = vadd.f32 %v6370, %v6434
        %v6438 = vadd.f32 %v6375, %v6434
        %v6439 = vadd.f32 %v6378, %v6434
        %v6440 = vadd.f32 %v6383, %v6434
        %v6441 = vadd.f32 %v6386, %v6434
        %v6442 = vadd.f32 %v6391, %v6434
        %v6443 = vadd.f32 %v6394, %v6434
        %v6444 = vadd.f32 %v6399, %v6434
        %v6445 = vadd.f32 %v6402, %v6434
        %v6446 = vadd.f32 %v6407, %v6434
        %v6447 = vadd.f32 %v6410, %v6434
        %v6448 = vadd.f32 %v6415, %v6434
        %v6449 = vadd.f32 %v6418, %v6434
        %v6450 = vadd.f32 %v6423, %v6434
        %v6451 = vadd.f32 %v6426, %v6434
        %v6452 = vmax.f32 %v6436, 0.0
        %v6453 = vmax.f32 %v6437, 0.0
        %v6454 = vmax.f32 %v6438, 0.0
        %v6455 = vmax.f32 %v6439, 0.0
        %v6456 = vmax.f32 %v6440, 0.0
        %v6457 = vmax.f32 %v6441, 0.0
        %v6458 = vmax.f32 %v6442, 0.0
        %v6459 = vmax.f32 %v6443, 0.0
        %v6460 = vmax.f32 %v6444, 0.0
        %v6461 = vmax.f32 %v6445, 0.0
        %v6462 = vmax.f32 %v6446, 0.0
        %v6463 = vmax.f32 %v6447, 0.0
        %v6464 = vmax.f32 %v6448, 0.0
        %v6465 = vmax.f32 %v6449, 0.0
        %v6466 = vmax.f32 %v6450, 0.0
        %v6467 = vmax.f32 %v6451, 0.0
        %v6468 = vpack.c.bf16 %v6453, %v6452
        %v6469 = vpack.c.bf16 %v6455, %v6454
        %v6470 = vpack.c.bf16 %v6457, %v6456
        %v6471 = vpack.c.bf16 %v6459, %v6458
        %v6472 = vpack.c.bf16 %v6461, %v6460
        %v6473 = vpack.c.bf16 %v6463, %v6462
        %v6474 = vpack.c.bf16 %v6465, %v6464
        %v6475 = vpack.c.bf16 %v6467, %v6466
        %v6484 = vrot.slane %v6468, 7
        %v6485 = vrot.slane %v6469, 7
        %v6486 = vrot.slane %v6470, 7
        %v6487 = vrot.slane %v6471, 7
        %v6488 = vrot.slane %v6472, 7
        %v6489 = vrot.slane %v6473, 7
        %v6490 = vrot.slane %v6474, 7
        %v6491 = vrot.slane %v6475, 7
        %vm6492 = vcmask 1040384
        %v6494 = vsel %vm6492, 0, %v6484
        %v6497 = vsel %vm6492, 0, %v6485
        %v6500 = vsel %vm6492, 0, %v6486
        %v6503 = vsel %vm6492, 0, %v6487
        %v6506 = vsel %vm6492, 0, %v6488
        %v6509 = vsel %vm6492, 0, %v6489
        %v6512 = vsel %vm6492, 0, %v6490
        %v6515 = vsel %vm6492, 0, %v6491
        %v6517 = vsel %vm6492, %v6484, 0
        %v6518 = vsel %vm6492, %v6485, 0
        %v6519 = vsel %vm6492, %v6486, 0
        %v6520 = vsel %vm6492, %v6487, 0
        %v6521 = vsel %vm6492, %v6488, 0
        %v6522 = vsel %vm6492, %v6489, 0
        %v6523 = vsel %vm6492, %v6490, 0
        %v6524 = vsel %vm6492, %v6491, 0
        %v6525 = vld [vmem:[#allocation8] sm:$0xff]
        %v6526 = vld [vmem:[#allocation8 + $0x8] sm:$0xff]
        %v6527 = vld [vmem:[#allocation8 + $0x10] sm:$0xff]
        %v6528 = vld [vmem:[#allocation8 + $0x18] sm:$0xff]
        %v6529 = vld [vmem:[#allocation8 + $0x20] sm:$0xff]
        %v6530 = vld [vmem:[#allocation8 + $0x28] sm:$0xff]
        %v6531 = vld [vmem:[#allocation8 + $0x30] sm:$0xff]
        %v6532 = vld [vmem:[#allocation8 + $0x38] sm:$0xff]
        %v6533 = vld [vmem:[#allocation8 + $0x40] sm:$0xff]
        %v6534 = vld [vmem:[#allocation8 + $0x48] sm:$0xff]
        %v6535 = vld [vmem:[#allocation8 + $0x50] sm:$0xff]
        %v6536 = vld [vmem:[#allocation8 + $0x58] sm:$0xff]
        %v6537 = vld [vmem:[#allocation8 + $0x60] sm:$0xff]
        %v6538 = vld [vmem:[#allocation8 + $0x68] sm:$0xff]
        %v6539 = vld [vmem:[#allocation8 + $0x70] sm:$0xff]
        %v6540 = vld [vmem:[#allocation8 + $0x78] sm:$0xff]
        %v6541 = vshrl.u32 %v6494, 16
        %v6543 = vshll.u32 %v6494, 16
        %v6545 = vrot.slane %v6543, 1
        %v6546 = vor.u32 %v6541, %v6545
        %v6547 = vshll.u32 %v6517, 16
        %v6549 = vrot.slane %v6547, 1
        %v6550 = vsel %vm5695, %v6546, %v6549
        %v6551 = vshrl.u32 %v6497, 16
        %v6553 = vshll.u32 %v6497, 16
        %v6555 = vrot.slane %v6553, 1
        %v6556 = vor.u32 %v6551, %v6555
        %v6557 = vshll.u32 %v6518, 16
        %v6559 = vrot.slane %v6557, 1
        %v6560 = vsel %vm5695, %v6556, %v6559
        %v6561 = vshrl.u32 %v6500, 16
        %v6563 = vshll.u32 %v6500, 16
        %v6565 = vrot.slane %v6563, 1
        %v6566 = vor.u32 %v6561, %v6565
        %v6567 = vshll.u32 %v6519, 16
        %v6569 = vrot.slane %v6567, 1
        %v6570 = vsel %vm5695, %v6566, %v6569
        %v6571 = vshrl.u32 %v6503, 16
        %v6573 = vshll.u32 %v6503, 16
        %v6575 = vrot.slane %v6573, 1
        %v6576 = vor.u32 %v6571, %v6575
        %v6577 = vshll.u32 %v6520, 16
        %v6579 = vrot.slane %v6577, 1
        %v6580 = vsel %vm5695, %v6576, %v6579
        %v6581 = vshrl.u32 %v6506, 16
        %v6583 = vshll.u32 %v6506, 16
        %v6585 = vrot.slane %v6583, 1
        %v6586 = vor.u32 %v6581, %v6585
        %v6587 = vshll.u32 %v6521, 16
        %v6589 = vrot.slane %v6587, 1
        %v6590 = vsel %vm5695, %v6586, %v6589
        %v6591 = vshrl.u32 %v6509, 16
        %v6593 = vshll.u32 %v6509, 16
        %v6595 = vrot.slane %v6593, 1
        %v6596 = vor.u32 %v6591, %v6595
        %v6597 = vshll.u32 %v6522, 16
        %v6599 = vrot.slane %v6597, 1
        %v6600 = vsel %vm5695, %v6596, %v6599
        %v6601 = vshrl.u32 %v6512, 16
        %v6603 = vshll.u32 %v6512, 16
        %v6605 = vrot.slane %v6603, 1
        %v6606 = vor.u32 %v6601, %v6605
        %v6607 = vshll.u32 %v6523, 16
        %v6609 = vrot.slane %v6607, 1
        %v6610 = vsel %vm5695, %v6606, %v6609
        %v6611 = vshrl.u32 %v6515, 16
        %v6613 = vshll.u32 %v6515, 16
        %v6615 = vrot.slane %v6613, 1
        %v6616 = vor.u32 %v6611, %v6615
        %v6617 = vshll.u32 %v6524, 16
        %v6619 = vrot.slane %v6617, 1
        %v6620 = vsel %vm5695, %v6616, %v6619
        %s6629 = scalar_lea.vmem [#allocation8], 128
        %v6630 = vld [vmem:[%s6629] sm:$0xff]
        %v6631 = vld [vmem:[%s6629 + $0x8] sm:$0xff]
        %v6632 = vld [vmem:[%s6629 + $0x10] sm:$0xff]
        %v6633 = vld [vmem:[%s6629 + $0x18] sm:$0xff]
        %v6634 = vld [vmem:[%s6629 + $0x20] sm:$0xff]
        %v6635 = vld [vmem:[%s6629 + $0x28] sm:$0xff]
        %v6636 = vld [vmem:[%s6629 + $0x30] sm:$0xff]
        %v6637 = vld [vmem:[%s6629 + $0x38] sm:$0xff]
        %v6638 = vld [vmem:[%s6629 + $0x40] sm:$0xff]
        %v6639 = vld [vmem:[%s6629 + $0x48] sm:$0xff]
        %v6640 = vld [vmem:[%s6629 + $0x50] sm:$0xff]
        %v6641 = vld [vmem:[%s6629 + $0x58] sm:$0xff]
        %v6642 = vld [vmem:[%s6629 + $0x60] sm:$0xff]
        %v6643 = vld [vmem:[%s6629 + $0x68] sm:$0xff]
        %v6644 = vld [vmem:[%s6629 + $0x70] sm:$0xff]
        %v6645 = vld [vmem:[%s6629 + $0x78] sm:$0xff]
        %v6662 = vunpack.c.l.b16 %v6630
        %v6663 = vunpack.c.h.b16 %v6630
        %v6664 = vunpack.c.l.b16 %v6631
        %v6665 = vunpack.c.h.b16 %v6631
        %v6666 = vunpack.c.l.b16 %v6632
        %v6667 = vunpack.c.h.b16 %v6632
        %v6668 = vunpack.c.l.b16 %v6633
        %v6669 = vunpack.c.h.b16 %v6633
        %v6670 = vunpack.c.l.b16 %v6634
        %v6671 = vunpack.c.h.b16 %v6634
        %v6672 = vunpack.c.l.b16 %v6635
        %v6673 = vunpack.c.h.b16 %v6635
        %v6674 = vunpack.c.l.b16 %v6636
        %v6675 = vunpack.c.h.b16 %v6636
        %v6676 = vunpack.c.l.b16 %v6637
        %v6677 = vunpack.c.h.b16 %v6637
        %v6678 = vunpack.c.l.b16 %v6638
        %v6679 = vunpack.c.h.b16 %v6638
        %v6680 = vunpack.c.l.b16 %v6639
        %v6681 = vunpack.c.h.b16 %v6639
        %v6682 = vunpack.c.l.b16 %v6640
        %v6683 = vunpack.c.h.b16 %v6640
        %v6684 = vunpack.c.l.b16 %v6641
        %v6685 = vunpack.c.h.b16 %v6641
        %v6686 = vunpack.c.l.b16 %v6642
        %v6687 = vunpack.c.h.b16 %v6642
        %v6688 = vunpack.c.l.b16 %v6643
        %v6689 = vunpack.c.h.b16 %v6643
        %v6690 = vunpack.c.l.b16 %v6644
        %v6691 = vunpack.c.h.b16 %v6644
        %v6692 = vunpack.c.l.b16 %v6645
        %v6693 = vunpack.c.h.b16 %v6645
        %v6694 = vpack.c.b16 %v6664, %v6662
        %v6695 = vpack.c.b16 %v6665, %v6663
        %v6696 = vpack.c.b16 %v6668, %v6666
        %v6697 = vpack.c.b16 %v6669, %v6667
        %v6698 = vpack.c.b16 %v6672, %v6670
        %v6699 = vpack.c.b16 %v6673, %v6671
        %v6700 = vpack.c.b16 %v6676, %v6674
        %v6701 = vpack.c.b16 %v6677, %v6675
        %v6702 = vpack.c.b16 %v6680, %v6678
        %v6703 = vpack.c.b16 %v6681, %v6679
        %v6704 = vpack.c.b16 %v6684, %v6682
        %v6705 = vpack.c.b16 %v6685, %v6683
        %v6706 = vpack.c.b16 %v6688, %v6686
        %v6707 = vpack.c.b16 %v6689, %v6687
        %v6708 = vpack.c.b16 %v6692, %v6690
        %v6709 = vpack.c.b16 %v6693, %v6691
        %6726 = vmatprep.subr.bf16.mxu0 %v6695
        %6727 = vmatpush1.bf16.msra.mxu0 %v6694
        %6728 = vmatprep.subr.bf16.mxu0 %v6697
        %6729 = vmatpush1.bf16.msra.mxu0 %v6696
        %6730 = vmatprep.subr.bf16.mxu0 %v6699
        %6731 = vmatpush1.bf16.msra.mxu0 %v6698
        %6732 = vmatprep.subr.bf16.mxu0 %v6701
        %6733 = vmatpush1.bf16.msra.mxu0 %v6700
        %6734 = vmatprep.subr.bf16.mxu0 %v6703
        %6735 = vmatpush1.bf16.msra.mxu0 %v6702
        %6736 = vmatprep.subr.bf16.mxu0 %v6705
        %6737 = vmatpush1.bf16.msra.mxu0 %v6704
        %6738 = vmatprep.subr.bf16.mxu0 %v6707
        %6739 = vmatpush1.bf16.msra.mxu0 %v6706
        %6740 = vmatprep.subr.bf16.mxu0 %v6709
        %6741 = vmatpush1.bf16.msra.mxu0 %v6708
        %6742 = vmatprep.subr.bf16.mxu0 0
        %6743 = vmatpush1.bf16.msra.mxu0 0
        %6744 = vmatprep.subr.bf16.mxu0 0
        %6745 = vmatpush1.bf16.msra.mxu0 0
        %6746 = vmatprep.subr.bf16.mxu0 0
        %6747 = vmatpush1.bf16.msra.mxu0 0
        %6748 = vmatprep.subr.bf16.mxu0 0
        %6749 = vmatpush1.bf16.msra.mxu0 0
        %6750 = vmatprep.subr.bf16.mxu0 0
        %6751 = vmatpush1.bf16.msra.mxu0 0
        %6752 = vmatprep.subr.bf16.mxu0 0
        %6753 = vmatpush1.bf16.msra.mxu0 0
        %6754 = vmatprep.subr.bf16.mxu0 0
        %6755 = vmatpush1.bf16.msra.mxu0 0
        %6756 = vmatprep.subr.bf16.mxu0 0
        %6757 = vmatpush1.bf16.msra.mxu0 0
        %6758 = vmatprep.mubr.bf16.mxu0 0
        %6759 = vmatmul.mubr.bf16.gmra.mrb[0].mxu0 %v6550
        %v6760 = vpop.f32.mrb[0].mxu0
        %v6761 = vadd.f32 0.0, %v6760
        %v6762 = vpop.f32.mrb[0].mxu0
        %v6763 = vadd.f32 0.0, %v6762
        %v6764 = vpop.f32.mrb[0].mxu0
        %v6765 = vadd.f32 0.0, %v6764
        %v6766 = vpop.f32.mrb[0].mxu0
        %v6767 = vadd.f32 0.0, %v6766
        %6768 = vmatprep.mubr.bf16.mxu0 0
        %6769 = vmatmul.mubr.bf16.gmra.mrb[0].mxu0 %v6560
        %v6770 = vpop.f32.mrb[0].mxu0
        %v6771 = vadd.f32 0.0, %v6770
        %v6772 = vpop.f32.mrb[0].mxu0
        %v6773 = vadd.f32 0.0, %v6772
        %v6774 = vpop.f32.mrb[0].mxu0
        %v6775 = vadd.f32 0.0, %v6774
        %v6776 = vpop.f32.mrb[0].mxu0
        %v6777 = vadd.f32 0.0, %v6776
        %6778 = vmatprep.mubr.bf16.mxu0 0
        %6779 = vmatmul.mubr.bf16.gmra.mrb[0].mxu0 %v6570
        %v6780 = vpop.f32.mrb[0].mxu0
        %v6781 = vadd.f32 0.0, %v6780
        %v6782 = vpop.f32.mrb[0].mxu0
        %v6783 = vadd.f32 0.0, %v6782
        %v6784 = vpop.f32.mrb[0].mxu0
        %v6785 = vadd.f32 0.0, %v6784
        %v6786 = vpop.f32.mrb[0].mxu0
        %v6787 = vadd.f32 0.0, %v6786
        %6788 = vmatprep.mubr.bf16.mxu0 0
        %6789 = vmatmul.mubr.bf16.gmra.mrb[0].mxu0 %v6580
        %v6790 = vpop.f32.mrb[0].mxu0
        %v6791 = vadd.f32 0.0, %v6790
        %v6792 = vpop.f32.mrb[0].mxu0
        %v6793 = vadd.f32 0.0, %v6792
        %v6794 = vpop.f32.mrb[0].mxu0
        %v6795 = vadd.f32 0.0, %v6794
        %v6796 = vpop.f32.mrb[0].mxu0
        %v6797 = vadd.f32 0.0, %v6796
        %6798 = vmatprep.mubr.bf16.mxu0 0
        %6799 = vmatmul.mubr.bf16.gmra.mrb[0].mxu0 %v6590
        %v6800 = vpop.f32.mrb[0].mxu0
        %v6801 = vadd.f32 0.0, %v6800
        %v6802 = vpop.f32.mrb[0].mxu0
        %v6803 = vadd.f32 0.0, %v6802
        %v6804 = vpop.f32.mrb[0].mxu0
        %v6805 = vadd.f32 0.0, %v6804
        %v6806 = vpop.f32.mrb[0].mxu0
        %v6807 = vadd.f32 0.0, %v6806
        %6808 = vmatprep.mubr.bf16.mxu0 0
        %6809 = vmatmul.mubr.bf16.gmra.mrb[0].mxu0 %v6600
        %v6810 = vpop.f32.mrb[0].mxu0
        %v6811 = vadd.f32 0.0, %v6810
        %v6812 = vpop.f32.mrb[0].mxu0
        %v6813 = vadd.f32 0.0, %v6812
        %v6814 = vpop.f32.mrb[0].mxu0
        %v6815 = vadd.f32 0.0, %v6814
        %v6816 = vpop.f32.mrb[0].mxu0
        %v6817 = vadd.f32 0.0, %v6816
        %6818 = vmatprep.mubr.bf16.mxu0 0
        %6819 = vmatmul.mubr.bf16.gmra.mrb[0].mxu0 %v6610
        %v6820 = vpop.f32.mrb[0].mxu0
        %v6821 = vadd.f32 0.0, %v6820
        %v6822 = vpop.f32.mrb[0].mxu0
        %v6823 = vadd.f32 0.0, %v6822
        %v6824 = vpop.f32.mrb[0].mxu0
        %v6825 = vadd.f32 0.0, %v6824
        %v6826 = vpop.f32.mrb[0].mxu0
        %v6827 = vadd.f32 0.0, %v6826
        %6828 = vmatprep.mubr.bf16.mxu0 0
        %6829 = vmatmul.mubr.bf16.gmra.mrb[0].mxu0 %v6620
        %v6830 = vpop.f32.mrb[0].mxu0
        %v6831 = vadd.f32 0.0, %v6830
        %v6832 = vpop.f32.mrb[0].mxu0
        %v6833 = vadd.f32 0.0, %v6832
        %v6834 = vpop.f32.mrb[0].mxu0
        %v6835 = vadd.f32 0.0, %v6834
        %v6836 = vpop.f32.mrb[0].mxu0
        %v6837 = vadd.f32 0.0, %v6836
        %6838 = vdwg.mxu0
        %v6855 = vunpack.c.l.b16 %v6525
        %v6856 = vunpack.c.h.b16 %v6525
        %v6857 = vunpack.c.l.b16 %v6526
        %v6858 = vunpack.c.h.b16 %v6526
        %v6859 = vunpack.c.l.b16 %v6527
        %v6860 = vunpack.c.h.b16 %v6527
        %v6861 = vunpack.c.l.b16 %v6528
        %v6862 = vunpack.c.h.b16 %v6528
        %v6863 = vunpack.c.l.b16 %v6529
        %v6864 = vunpack.c.h.b16 %v6529
        %v6865 = vunpack.c.l.b16 %v6530
        %v6866 = vunpack.c.h.b16 %v6530
        %v6867 = vunpack.c.l.b16 %v6531
        %v6868 = vunpack.c.h.b16 %v6531
        %v6869 = vunpack.c.l.b16 %v6532
        %v6870 = vunpack.c.h.b16 %v6532
        %v6871 = vunpack.c.l.b16 %v6533
        %v6872 = vunpack.c.h.b16 %v6533
        %v6873 = vunpack.c.l.b16 %v6534
        %v6874 = vunpack.c.h.b16 %v6534
        %v6875 = vunpack.c.l.b16 %v6535
        %v6876 = vunpack.c.h.b16 %v6535
        %v6877 = vunpack.c.l.b16 %v6536
        %v6878 = vunpack.c.h.b16 %v6536
        %v6879 = vunpack.c.l.b16 %v6537
        %v6880 = vunpack.c.h.b16 %v6537
        %v6881 = vunpack.c.l.b16 %v6538
        %v6882 = vunpack.c.h.b16 %v6538
        %v6883 = vunpack.c.l.b16 %v6539
        %v6884 = vunpack.c.h.b16 %v6539
        %v6885 = vunpack.c.l.b16 %v6540
        %v6886 = vunpack.c.h.b16 %v6540
        %v6887 = vpack.c.b16 %v6857, %v6855
        %v6888 = vpack.c.b16 %v6858, %v6856
        %v6889 = vpack.c.b16 %v6861, %v6859
        %v6890 = vpack.c.b16 %v6862, %v6860
        %v6891 = vpack.c.b16 %v6865, %v6863
        %v6892 = vpack.c.b16 %v6866, %v6864
        %v6893 = vpack.c.b16 %v6869, %v6867
        %v6894 = vpack.c.b16 %v6870, %v6868
        %v6895 = vpack.c.b16 %v6873, %v6871
        %v6896 = vpack.c.b16 %v6874, %v6872
        %v6897 = vpack.c.b16 %v6877, %v6875
        %v6898 = vpack.c.b16 %v6878, %v6876
        %v6899 = vpack.c.b16 %v6881, %v6879
        %v6900 = vpack.c.b16 %v6882, %v6880
        %v6901 = vpack.c.b16 %v6885, %v6883
        %v6902 = vpack.c.b16 %v6886, %v6884
        %6919 = vmatprep.subr.bf16.mxu0 %v6888
        %6920 = vmatpush1.bf16.msra.mxu0 %v6887
        %6921 = vmatprep.subr.bf16.mxu0 %v6890
        %6922 = vmatpush1.bf16.msra.mxu0 %v6889
        %6923 = vmatprep.subr.bf16.mxu0 %v6892
        %6924 = vmatpush1.bf16.msra.mxu0 %v6891
        %6925 = vmatprep.subr.bf16.mxu0 %v6894
        %6926 = vmatpush1.bf16.msra.mxu0 %v6893
        %6927 = vmatprep.subr.bf16.mxu0 %v6896
        %6928 = vmatpush1.bf16.msra.mxu0 %v6895
        %6929 = vmatprep.subr.bf16.mxu0 %v6898
        %6930 = vmatpush1.bf16.msra.mxu0 %v6897
        %6931 = vmatprep.subr.bf16.mxu0 %v6900
        %6932 = vmatpush1.bf16.msra.mxu0 %v6899
        %6933 = vmatprep.subr.bf16.mxu0 %v6902
        %6934 = vmatpush1.bf16.msra.mxu0 %v6901
        %6935 = vmatprep.subr.bf16.mxu0 0
        %6936 = vmatpush1.bf16.msra.mxu0 0
        %6937 = vmatprep.subr.bf16.mxu0 0
        %6938 = vmatpush1.bf16.msra.mxu0 0
        %6939 = vmatprep.subr.bf16.mxu0 0
        %6940 = vmatpush1.bf16.msra.mxu0 0
        %6941 = vmatprep.subr.bf16.mxu0 0
        %6942 = vmatpush1.bf16.msra.mxu0 0
        %6943 = vmatprep.subr.bf16.mxu0 0
        %6944 = vmatpush1.bf16.msra.mxu0 0
        %6945 = vmatprep.subr.bf16.mxu0 0
        %6946 = vmatpush1.bf16.msra.mxu0 0
        %6947 = vmatprep.subr.bf16.mxu0 0
        %6948 = vmatpush1.bf16.msra.mxu0 0
        %6949 = vmatprep.subr.bf16.mxu0 0
        %6950 = vmatpush1.bf16.msra.mxu0 0
        %6951 = vmatprep.mubr.bf16.mxu0 0
        %6952 = vmatmul.mubr.bf16.gmra.mrb[0].mxu0 %v6494
        %v6953 = vpop.f32.mrb[0].mxu0
        %v6954 = vadd.f32 %v6761, %v6953
        %v6955 = vpop.f32.mrb[0].mxu0
        %v6956 = vadd.f32 %v6763, %v6955
        %v6957 = vpop.f32.mrb[0].mxu0
        %v6958 = vadd.f32 %v6765, %v6957
        %v6959 = vpop.f32.mrb[0].mxu0
        %v6960 = vadd.f32 %v6767, %v6959
        %6961 = vmatprep.mubr.bf16.mxu0 0
        %6962 = vmatmul.mubr.bf16.gmra.mrb[0].mxu0 %v6497
        %v6963 = vpop.f32.mrb[0].mxu0
        %v6964 = vadd.f32 %v6771, %v6963
        %v6965 = vpop.f32.mrb[0].mxu0
        %v6966 = vadd.f32 %v6773, %v6965
        %v6967 = vpop.f32.mrb[0].mxu0
        %v6968 = vadd.f32 %v6775, %v6967
        %v6969 = vpop.f32.mrb[0].mxu0
        %v6970 = vadd.f32 %v6777, %v6969
        %6971 = vmatprep.mubr.bf16.mxu0 0
        %6972 = vmatmul.mubr.bf16.gmra.mrb[0].mxu0 %v6500
        %v6973 = vpop.f32.mrb[0].mxu0
        %v6974 = vadd.f32 %v6781, %v6973
        %v6975 = vpop.f32.mrb[0].mxu0
        %v6976 = vadd.f32 %v6783, %v6975
        %v6977 = vpop.f32.mrb[0].mxu0
        %v6978 = vadd.f32 %v6785, %v6977
        %v6979 = vpop.f32.mrb[0].mxu0
        %v6980 = vadd.f32 %v6787, %v6979
        %6981 = vmatprep.mubr.bf16.mxu0 0
        %6982 = vmatmul.mubr.bf16.gmra.mrb[0].mxu0 %v6503
        %v6983 = vpop.f32.mrb[0].mxu0
        %v6984 = vadd.f32 %v6791, %v6983
        %v6985 = vpop.f32.mrb[0].mxu0
        %v6986 = vadd.f32 %v6793, %v6985
        %v6987 = vpop.f32.mrb[0].mxu0
        %v6988 = vadd.f32 %v6795, %v6987
        %v6989 = vpop.f32.mrb[0].mxu0
        %v6990 = vadd.f32 %v6797, %v6989
        %6991 = vmatprep.mubr.bf16.mxu0 0
        %6992 = vmatmul.mubr.bf16.gmra.mrb[0].mxu0 %v6506
        %v6993 = vpop.f32.mrb[0].mxu0
        %v6994 = vadd.f32 %v6801, %v6993
        %v6995 = vpop.f32.mrb[0].mxu0
        %v6996 = vadd.f32 %v6803, %v6995
        %v6997 = vpop.f32.mrb[0].mxu0
        %v6998 = vadd.f32 %v6805, %v6997
        %v6999 = vpop.f32.mrb[0].mxu0
        %v7000 = vadd.f32 %v6807, %v6999
        %7001 = vmatprep.mubr.bf16.mxu0 0
        %7002 = vmatmul.mubr.bf16.gmra.mrb[0].mxu0 %v6509
        %v7003 = vpop.f32.mrb[0].mxu0
        %v7004 = vadd.f32 %v6811, %v7003
        %v7005 = vpop.f32.mrb[0].mxu0
        %v7006 = vadd.f32 %v6813, %v7005
        %v7007 = vpop.f32.mrb[0].mxu0
        %v7008 = vadd.f32 %v6815, %v7007
        %v7009 = vpop.f32.mrb[0].mxu0
        %v7010 = vadd.f32 %v6817, %v7009
        %7011 = vmatprep.mubr.bf16.mxu0 0
        %7012 = vmatmul.mubr.bf16.gmra.mrb[0].mxu0 %v6512
        %v7013 = vpop.f32.mrb[0].mxu0
        %v7014 = vadd.f32 %v6821, %v7013
        %v7015 = vpop.f32.mrb[0].mxu0
        %v7016 = vadd.f32 %v6823, %v7015
        %v7017 = vpop.f32.mrb[0].mxu0
        %v7018 = vadd.f32 %v6825, %v7017
        %v7019 = vpop.f32.mrb[0].mxu0
        %v7020 = vadd.f32 %v6827, %v7019
        %7021 = vmatprep.mubr.bf16.mxu0 0
        %7022 = vmatmul.mubr.bf16.gmra.mrb[0].mxu0 %v6515
        %v7023 = vpop.f32.mrb[0].mxu0
        %v7024 = vadd.f32 %v6831, %v7023
        %v7025 = vpop.f32.mrb[0].mxu0
        %v7026 = vadd.f32 %v6833, %v7025
        %v7027 = vpop.f32.mrb[0].mxu0
        %v7028 = vadd.f32 %v6835, %v7027
        %v7029 = vpop.f32.mrb[0].mxu0
        %v7030 = vadd.f32 %v6837, %v7029
        %7031 = vdwg.mxu0
        %v7048 = vrot.slane %v6494, 1
        %v7049 = vrot.slane %v6517, 1
        %v7050 = vsel %vm5824, %v7048, %v7049
        %v7051 = vrot.slane %v6497, 1
        %v7052 = vrot.slane %v6518, 1
        %v7053 = vsel %vm5824, %v7051, %v7052
        %v7054 = vrot.slane %v6500, 1
        %v7055 = vrot.slane %v6519, 1
        %v7056 = vsel %vm5824, %v7054, %v7055
        %v7057 = vrot.slane %v6503, 1
        %v7058 = vrot.slane %v6520, 1
        %v7059 = vsel %vm5824, %v7057, %v7058
        %v7060 = vrot.slane %v6506, 1
        %v7061 = vrot.slane %v6521, 1
        %v7062 = vsel %vm5824, %v7060, %v7061
        %v7063 = vrot.slane %v6509, 1
        %v7064 = vrot.slane %v6522, 1
        %v7065 = vsel %vm5824, %v7063, %v7064
        %v7066 = vrot.slane %v6512, 1
        %v7067 = vrot.slane %v6523, 1
        %v7068 = vsel %vm5824, %v7066, %v7067
        %v7069 = vrot.slane %v6515, 1
        %v7070 = vrot.slane %v6524, 1
        %v7071 = vsel %vm5824, %v7069, %v7070
        %s7080 = scalar_lea.vmem [#allocation8], 256
        %v7081 = vld [vmem:[%s7080] sm:$0xff]
        %v7082 = vld [vmem:[%s7080 + $0x8] sm:$0xff]
        %v7083 = vld [vmem:[%s7080 + $0x10] sm:$0xff]
        %v7084 = vld [vmem:[%s7080 + $0x18] sm:$0xff]
        %v7085 = vld [vmem:[%s7080 + $0x20] sm:$0xff]
        %v7086 = vld [vmem:[%s7080 + $0x28] sm:$0xff]
        %v7087 = vld [vmem:[%s7080 + $0x30] sm:$0xff]
        %v7088 = vld [vmem:[%s7080 + $0x38] sm:$0xff]
        %v7089 = vld [vmem:[%s7080 + $0x40] sm:$0xff]
        %v7090 = vld [vmem:[%s7080 + $0x48] sm:$0xff]
        %v7091 = vld [vmem:[%s7080 + $0x50] sm:$0xff]
        %v7092 = vld [vmem:[%s7080 + $0x58] sm:$0xff]
        %v7093 = vld [vmem:[%s7080 + $0x60] sm:$0xff]
        %v7094 = vld [vmem:[%s7080 + $0x68] sm:$0xff]
        %v7095 = vld [vmem:[%s7080 + $0x70] sm:$0xff]
        %v7096 = vld [vmem:[%s7080 + $0x78] sm:$0xff]
        %v7113 = vunpack.c.l.b16 %v7081
        %v7114 = vunpack.c.h.b16 %v7081
        %v7115 = vunpack.c.l.b16 %v7082
        %v7116 = vunpack.c.h.b16 %v7082
        %v7117 = vunpack.c.l.b16 %v7083
        %v7118 = vunpack.c.h.b16 %v7083
        %v7119 = vunpack.c.l.b16 %v7084
        %v7120 = vunpack.c.h.b16 %v7084
        %v7121 = vunpack.c.l.b16 %v7085
        %v7122 = vunpack.c.h.b16 %v7085
        %v7123 = vunpack.c.l.b16 %v7086
        %v7124 = vunpack.c.h.b16 %v7086
        %v7125 = vunpack.c.l.b16 %v7087
        %v7126 = vunpack.c.h.b16 %v7087
        %v7127 = vunpack.c.l.b16 %v7088
        %v7128 = vunpack.c.h.b16 %v7088
        %v7129 = vunpack.c.l.b16 %v7089
        %v7130 = vunpack.c.h.b16 %v7089
        %v7131 = vunpack.c.l.b16 %v7090
        %v7132 = vunpack.c.h.b16 %v7090
        %v7133 = vunpack.c.l.b16 %v7091
        %v7134 = vunpack.c.h.b16 %v7091
        %v7135 = vunpack.c.l.b16 %v7092
        %v7136 = vunpack.c.h.b16 %v7092
        %v7137 = vunpack.c.l.b16 %v7093
        %v7138 = vunpack.c.h.b16 %v7093
        %v7139 = vunpack.c.l.b16 %v7094
        %v7140 = vunpack.c.h.b16 %v7094
        %v7141 = vunpack.c.l.b16 %v7095
        %v7142 = vunpack.c.h.b16 %v7095
        %v7143 = vunpack.c.l.b16 %v7096
        %v7144 = vunpack.c.h.b16 %v7096
        %v7145 = vpack.c.b16 %v7115, %v7113
        %v7146 = vpack.c.b16 %v7116, %v7114
        %v7147 = vpack.c.b16 %v7119, %v7117
        %v7148 = vpack.c.b16 %v7120, %v7118
        %v7149 = vpack.c.b16 %v7123, %v7121
        %v7150 = vpack.c.b16 %v7124, %v7122
        %v7151 = vpack.c.b16 %v7127, %v7125
        %v7152 = vpack.c.b16 %v7128, %v7126
        %v7153 = vpack.c.b16 %v7131, %v7129
        %v7154 = vpack.c.b16 %v7132, %v7130
        %v7155 = vpack.c.b16 %v7135, %v7133
        %v7156 = vpack.c.b16 %v7136, %v7134
        %v7157 = vpack.c.b16 %v7139, %v7137
        %v7158 = vpack.c.b16 %v7140, %v7138
        %v7159 = vpack.c.b16 %v7143, %v7141
        %v7160 = vpack.c.b16 %v7144, %v7142
        %7177 = vmatprep.subr.bf16.mxu0 %v7146
        %7178 = vmatpush1.bf16.msra.mxu0 %v7145
        %7179 = vmatprep.subr.bf16.mxu0 %v7148
        %7180 = vmatpush1.bf16.msra.mxu0 %v7147
        %7181 = vmatprep.subr.bf16.mxu0 %v7150
        %7182 = vmatpush1.bf16.msra.mxu0 %v7149
        %7183 = vmatprep.subr.bf16.mxu0 %v7152
        %7184 = vmatpush1.bf16.msra.mxu0 %v7151
        %7185 = vmatprep.subr.bf16.mxu0 %v7154
        %7186 = vmatpush1.bf16.msra.mxu0 %v7153
        %7187 = vmatprep.subr.bf16.mxu0 %v7156
        %7188 = vmatpush1.bf16.msra.mxu0 %v7155
        %7189 = vmatprep.subr.bf16.mxu0 %v7158
        %7190 = vmatpush1.bf16.msra.mxu0 %v7157
        %7191 = vmatprep.subr.bf16.mxu0 %v7160
        %7192 = vmatpush1.bf16.msra.mxu0 %v7159
        %7193 = vmatprep.subr.bf16.mxu0 0
        %7194 = vmatpush1.bf16.msra.mxu0 0
        %7195 = vmatprep.subr.bf16.mxu0 0
        %7196 = vmatpush1.bf16.msra.mxu0 0
        %7197 = vmatprep.subr.bf16.mxu0 0
        %7198 = vmatpush1.bf16.msra.mxu0 0
        %7199 = vmatprep.subr.bf16.mxu0 0
        %7200 = vmatpush1.bf16.msra.mxu0 0
        %7201 = vmatprep.subr.bf16.mxu0 0
        %7202 = vmatpush1.bf16.msra.mxu0 0
        %7203 = vmatprep.subr.bf16.mxu0 0
        %7204 = vmatpush1.bf16.msra.mxu0 0
        %7205 = vmatprep.subr.bf16.mxu0 0
        %7206 = vmatpush1.bf16.msra.mxu0 0
        %7207 = vmatprep.subr.bf16.mxu0 0
        %7208 = vmatpush1.bf16.msra.mxu0 0
        %7209 = vmatprep.mubr.bf16.mxu0 0
        %7210 = vmatmul.mubr.bf16.gmra.mrb[0].mxu0 %v7050
        %v7211 = vpop.f32.mrb[0].mxu0
        %v7212 = vadd.f32 0.0, %v7211
        %v7213 = vpop.f32.mrb[0].mxu0
        %v7214 = vadd.f32 0.0, %v7213
        %v7215 = vpop.f32.mrb[0].mxu0
        %v7216 = vadd.f32 0.0, %v7215
        %v7217 = vpop.f32.mrb[0].mxu0
        %v7218 = vadd.f32 0.0, %v7217
        %7219 = vmatprep.mubr.bf16.mxu0 0
        %7220 = vmatmul.mubr.bf16.gmra.mrb[0].mxu0 %v7053
        %v7221 = vpop.f32.mrb[0].mxu0
        %v7222 = vadd.f32 0.0, %v7221
        %v7223 = vpop.f32.mrb[0].mxu0
        %v7224 = vadd.f32 0.0, %v7223
        %v7225 = vpop.f32.mrb[0].mxu0
        %v7226 = vadd.f32 0.0, %v7225
        %v7227 = vpop.f32.mrb[0].mxu0
        %v7228 = vadd.f32 0.0, %v7227
        %7229 = vmatprep.mubr.bf16.mxu0 0
        %7230 = vmatmul.mubr.bf16.gmra.mrb[0].mxu0 %v7056
        %v7231 = vpop.f32.mrb[0].mxu0
        %v7232 = vadd.f32 0.0, %v7231
        %v7233 = vpop.f32.mrb[0].mxu0
        %v7234 = vadd.f32 0.0, %v7233
        %v7235 = vpop.f32.mrb[0].mxu0
        %v7236 = vadd.f32 0.0, %v7235
        %v7237 = vpop.f32.mrb[0].mxu0
        %v7238 = vadd.f32 0.0, %v7237
        %7239 = vmatprep.mubr.bf16.mxu0 0
        %7240 = vmatmul.mubr.bf16.gmra.mrb[0].mxu0 %v7059
        %v7241 = vpop.f32.mrb[0].mxu0
        %v7242 = vadd.f32 0.0, %v7241
        %v7243 = vpop.f32.mrb[0].mxu0
        %v7244 = vadd.f32 0.0, %v7243
        %v7245 = vpop.f32.mrb[0].mxu0
        %v7246 = vadd.f32 0.0, %v7245
        %v7247 = vpop.f32.mrb[0].mxu0
        %v7248 = vadd.f32 0.0, %v7247
        %7249 = vmatprep.mubr.bf16.mxu0 0
        %7250 = vmatmul.mubr.bf16.gmra.mrb[0].mxu0 %v7062
        %v7251 = vpop.f32.mrb[0].mxu0
        %v7252 = vadd.f32 0.0, %v7251
        %v7253 = vpop.f32.mrb[0].mxu0
        %v7254 = vadd.f32 0.0, %v7253
        %v7255 = vpop.f32.mrb[0].mxu0
        %v7256 = vadd.f32 0.0, %v7255
        %v7257 = vpop.f32.mrb[0].mxu0
        %v7258 = vadd.f32 0.0, %v7257
        %7259 = vmatprep.mubr.bf16.mxu0 0
        %7260 = vmatmul.mubr.bf16.gmra.mrb[0].mxu0 %v7065
        %v7261 = vpop.f32.mrb[0].mxu0
        %v7262 = vadd.f32 0.0, %v7261
        %v7263 = vpop.f32.mrb[0].mxu0
        %v7264 = vadd.f32 0.0, %v7263
        %v7265 = vpop.f32.mrb[0].mxu0
        %v7266 = vadd.f32 0.0, %v7265
        %v7267 = vpop.f32.mrb[0].mxu0
        %v7268 = vadd.f32 0.0, %v7267
        %7269 = vmatprep.mubr.bf16.mxu0 0
        %7270 = vmatmul.mubr.bf16.gmra.mrb[0].mxu0 %v7068
        %v7271 = vpop.f32.mrb[0].mxu0
        %v7272 = vadd.f32 0.0, %v7271
        %v7273 = vpop.f32.mrb[0].mxu0
        %v7274 = vadd.f32 0.0, %v7273
        %v7275 = vpop.f32.mrb[0].mxu0
        %v7276 = vadd.f32 0.0, %v7275
        %v7277 = vpop.f32.mrb[0].mxu0
        %v7278 = vadd.f32 0.0, %v7277
        %7279 = vmatprep.mubr.bf16.mxu0 0
        %7280 = vmatmul.mubr.bf16.gmra.mrb[0].mxu0 %v7071
        %v7281 = vpop.f32.mrb[0].mxu0
        %v7282 = vadd.f32 0.0, %v7281
        %v7283 = vpop.f32.mrb[0].mxu0
        %v7284 = vadd.f32 0.0, %v7283
        %v7285 = vpop.f32.mrb[0].mxu0
        %v7286 = vadd.f32 0.0, %v7285
        %v7287 = vpop.f32.mrb[0].mxu0
        %v7288 = vadd.f32 0.0, %v7287
        %7289 = vdwg.mxu0
        %v7290 = vadd.f32 %v6954, %v7212
        %v7291 = vadd.f32 %v6956, %v7214
        %v7292 = vadd.f32 %v6958, %v7216
        %v7293 = vadd.f32 %v6960, %v7218
        %v7294 = vadd.f32 %v6964, %v7222
        %v7295 = vadd.f32 %v6966, %v7224
        %v7296 = vadd.f32 %v6968, %v7226
        %v7297 = vadd.f32 %v6970, %v7228
        %v7298 = vadd.f32 %v6974, %v7232
        %v7299 = vadd.f32 %v6976, %v7234
        %v7300 = vadd.f32 %v6978, %v7236
        %v7301 = vadd.f32 %v6980, %v7238
        %v7302 = vadd.f32 %v6984, %v7242
        %v7303 = vadd.f32 %v6986, %v7244
        %v7304 = vadd.f32 %v6988, %v7246
        %v7305 = vadd.f32 %v6990, %v7248
        %v7306 = vadd.f32 %v6994, %v7252
        %v7307 = vadd.f32 %v6996, %v7254
        %v7308 = vadd.f32 %v6998, %v7256
        %v7309 = vadd.f32 %v7000, %v7258
        %v7310 = vadd.f32 %v7004, %v7262
        %v7311 = vadd.f32 %v7006, %v7264
        %v7312 = vadd.f32 %v7008, %v7266
        %v7313 = vadd.f32 %v7010, %v7268
        %v7314 = vadd.f32 %v7014, %v7272
        %v7315 = vadd.f32 %v7016, %v7274
        %v7316 = vadd.f32 %v7018, %v7276
        %v7317 = vadd.f32 %v7020, %v7278
        %v7318 = vadd.f32 %v7024, %v7282
        %v7319 = vadd.f32 %v7026, %v7284
        %v7320 = vadd.f32 %v7028, %v7286
        %v7321 = vadd.f32 %v7030, %v7288
        %v7322 = vrot.slane %v6541, 1
        %v7323 = vrot.slane %v6543, 2
        %v7324 = vor.u32 %v7322, %v7323
        %v7325 = vshrl.u32 %v6517, 16
        %v7327 = vrot.slane %v7325, 1
        %v7328 = vrot.slane %v6547, 2
        %v7329 = vor.u32 %v7327, %v7328
        %v7330 = vsel %vm5865, %v7324, %v7329
        %v7331 = vrot.slane %v6551, 1
        %v7332 = vrot.slane %v6553, 2
        %v7333 = vor.u32 %v7331, %v7332
        %v7334 = vshrl.u32 %v6518, 16
        %v7336 = vrot.slane %v7334, 1
        %v7337 = vrot.slane %v6557, 2
        %v7338 = vor.u32 %v7336, %v7337
        %v7339 = vsel %vm5865, %v7333, %v7338
        %v7340 = vrot.slane %v6561, 1
        %v7341 = vrot.slane %v6563, 2
        %v7342 = vor.u32 %v7340, %v7341
        %v7343 = vshrl.u32 %v6519, 16
        %v7345 = vrot.slane %v7343, 1
        %v7346 = vrot.slane %v6567, 2
        %v7347 = vor.u32 %v7345, %v7346
        %v7348 = vsel %vm5865, %v7342, %v7347
        %v7349 = vrot.slane %v6571, 1
        %v7350 = vrot.slane %v6573, 2
        %v7351 = vor.u32 %v7349, %v7350
        %v7352 = vshrl.u32 %v6520, 16
        %v7354 = vrot.slane %v7352, 1
        %v7355 = vrot.slane %v6577, 2
        %v7356 = vor.u32 %v7354, %v7355
        %v7357 = vsel %vm5865, %v7351, %v7356
        %v7358 = vrot.slane %v6581, 1
        %v7359 = vrot.slane %v6583, 2
        %v7360 = vor.u32 %v7358, %v7359
        %v7361 = vshrl.u32 %v6521, 16
        %v7363 = vrot.slane %v7361, 1
        %v7364 = vrot.slane %v6587, 2
        %v7365 = vor.u32 %v7363, %v7364
        %v7366 = vsel %vm5865, %v7360, %v7365
        %v7367 = vrot.slane %v6591, 1
        %v7368 = vrot.slane %v6593, 2
        %v7369 = vor.u32 %v7367, %v7368
        %v7370 = vshrl.u32 %v6522, 16
        %v7372 = vrot.slane %v7370, 1
        %v7373 = vrot.slane %v6597, 2
        %v7374 = vor.u32 %v7372, %v7373
        %v7375 = vsel %vm5865, %v7369, %v7374
        %v7376 = vrot.slane %v6601, 1
        %v7377 = vrot.slane %v6603, 2
        %v7378 = vor.u32 %v7376, %v7377
        %v7379 = vshrl.u32 %v6523, 16
        %v7381 = vrot.slane %v7379, 1
        %v7382 = vrot.slane %v6607, 2
        %v7383 = vor.u32 %v7381, %v7382
        %v7384 = vsel %vm5865, %v7378, %v7383
        %v7385 = vrot.slane %v6611, 1
        %v7386 = vrot.slane %v6613, 2
        %v7387 = vor.u32 %v7385, %v7386
        %v7388 = vshrl.u32 %v6524, 16
        %v7390 = vrot.slane %v7388, 1
        %v7391 = vrot.slane %v6617, 2
        %v7392 = vor.u32 %v7390, %v7391
        %v7393 = vsel %vm5865, %v7387, %v7392
        %s7402 = scalar_lea.vmem [#allocation8], 384
        %v7403 = vld [vmem:[%s7402] sm:$0xff]
        %v7404 = vld [vmem:[%s7402 + $0x8] sm:$0xff]
        %v7405 = vld [vmem:[%s7402 + $0x10] sm:$0xff]
        %v7406 = vld [vmem:[%s7402 + $0x18] sm:$0xff]
        %v7407 = vld [vmem:[%s7402 + $0x20] sm:$0xff]
        %v7408 = vld [vmem:[%s7402 + $0x28] sm:$0xff]
        %v7409 = vld [vmem:[%s7402 + $0x30] sm:$0xff]
        %v7410 = vld [vmem:[%s7402 + $0x38] sm:$0xff]
        %v7411 = vld [vmem:[%s7402 + $0x40] sm:$0xff]
        %v7412 = vld [vmem:[%s7402 + $0x48] sm:$0xff]
        %v7413 = vld [vmem:[%s7402 + $0x50] sm:$0xff]
        %v7414 = vld [vmem:[%s7402 + $0x58] sm:$0xff]
        %v7415 = vld [vmem:[%s7402 + $0x60] sm:$0xff]
        %v7416 = vld [vmem:[%s7402 + $0x68] sm:$0xff]
        %v7417 = vld [vmem:[%s7402 + $0x70] sm:$0xff]
        %v7418 = vld [vmem:[%s7402 + $0x78] sm:$0xff]
        %v7435 = vunpack.c.l.b16 %v7403
        %v7436 = vunpack.c.h.b16 %v7403
        %v7437 = vunpack.c.l.b16 %v7404
        %v7438 = vunpack.c.h.b16 %v7404
        %v7439 = vunpack.c.l.b16 %v7405
        %v7440 = vunpack.c.h.b16 %v7405
        %v7441 = vunpack.c.l.b16 %v7406
        %v7442 = vunpack.c.h.b16 %v7406
        %v7443 = vunpack.c.l.b16 %v7407
        %v7444 = vunpack.c.h.b16 %v7407
        %v7445 = vunpack.c.l.b16 %v7408
        %v7446 = vunpack.c.h.b16 %v7408
        %v7447 = vunpack.c.l.b16 %v7409
        %v7448 = vunpack.c.h.b16 %v7409
        %v7449 = vunpack.c.l.b16 %v7410
        %v7450 = vunpack.c.h.b16 %v7410
        %v7451 = vunpack.c.l.b16 %v7411
        %v7452 = vunpack.c.h.b16 %v7411
        %v7453 = vunpack.c.l.b16 %v7412
        %v7454 = vunpack.c.h.b16 %v7412
        %v7455 = vunpack.c.l.b16 %v7413
        %v7456 = vunpack.c.h.b16 %v7413
        %v7457 = vunpack.c.l.b16 %v7414
        %v7458 = vunpack.c.h.b16 %v7414
        %v7459 = vunpack.c.l.b16 %v7415
        %v7460 = vunpack.c.h.b16 %v7415
        %v7461 = vunpack.c.l.b16 %v7416
        %v7462 = vunpack.c.h.b16 %v7416
        %v7463 = vunpack.c.l.b16 %v7417
        %v7464 = vunpack.c.h.b16 %v7417
        %v7465 = vunpack.c.l.b16 %v7418
        %v7466 = vunpack.c.h.b16 %v7418
        %v7467 = vpack.c.b16 %v7437, %v7435
        %v7468 = vpack.c.b16 %v7438, %v7436
        %v7469 = vpack.c.b16 %v7441, %v7439
        %v7470 = vpack.c.b16 %v7442, %v7440
        %v7471 = vpack.c.b16 %v7445, %v7443
        %v7472 = vpack.c.b16 %v7446, %v7444
        %v7473 = vpack.c.b16 %v7449, %v7447
        %v7474 = vpack.c.b16 %v7450, %v7448
        %v7475 = vpack.c.b16 %v7453, %v7451
        %v7476 = vpack.c.b16 %v7454, %v7452
        %v7477 = vpack.c.b16 %v7457, %v7455
        %v7478 = vpack.c.b16 %v7458, %v7456
        %v7479 = vpack.c.b16 %v7461, %v7459
        %v7480 = vpack.c.b16 %v7462, %v7460
        %v7481 = vpack.c.b16 %v7465, %v7463
        %v7482 = vpack.c.b16 %v7466, %v7464
        %7499 = vmatprep.subr.bf16.mxu0 %v7468
        %7500 = vmatpush1.bf16.msra.mxu0 %v7467
        %7501 = vmatprep.subr.bf16.mxu0 %v7470
        %7502 = vmatpush1.bf16.msra.mxu0 %v7469
        %7503 = vmatprep.subr.bf16.mxu0 %v7472
        %7504 = vmatpush1.bf16.msra.mxu0 %v7471
        %7505 = vmatprep.subr.bf16.mxu0 %v7474
        %7506 = vmatpush1.bf16.msra.mxu0 %v7473
        %7507 = vmatprep.subr.bf16.mxu0 %v7476
        %7508 = vmatpush1.bf16.msra.mxu0 %v7475
        %7509 = vmatprep.subr.bf16.mxu0 %v7478
        %7510 = vmatpush1.bf16.msra.mxu0 %v7477
        %7511 = vmatprep.subr.bf16.mxu0 %v7480
        %7512 = vmatpush1.bf16.msra.mxu0 %v7479
        %7513 = vmatprep.subr.bf16.mxu0 %v7482
        %7514 = vmatpush1.bf16.msra.mxu0 %v7481
        %7515 = vmatprep.subr.bf16.mxu0 0
        %7516 = vmatpush1.bf16.msra.mxu0 0
        %7517 = vmatprep.subr.bf16.mxu0 0
        %7518 = vmatpush1.bf16.msra.mxu0 0
        %7519 = vmatprep.subr.bf16.mxu0 0
        %7520 = vmatpush1.bf16.msra.mxu0 0
        %7521 = vmatprep.subr.bf16.mxu0 0
        %7522 = vmatpush1.bf16.msra.mxu0 0
        %7523 = vmatprep.subr.bf16.mxu0 0
        %7524 = vmatpush1.bf16.msra.mxu0 0
        %7525 = vmatprep.subr.bf16.mxu0 0
        %7526 = vmatpush1.bf16.msra.mxu0 0
        %7527 = vmatprep.subr.bf16.mxu0 0
        %7528 = vmatpush1.bf16.msra.mxu0 0
        %7529 = vmatprep.subr.bf16.mxu0 0
        %7530 = vmatpush1.bf16.msra.mxu0 0
        %7531 = vmatprep.mubr.bf16.mxu0 0
        %7532 = vmatmul.mubr.bf16.gmra.mrb[0].mxu0 %v7330
        %v7533 = vpop.f32.mrb[0].mxu0
        %v7534 = vadd.f32 0.0, %v7533
        %v7535 = vpop.f32.mrb[0].mxu0
        %v7536 = vadd.f32 0.0, %v7535
        %v7537 = vpop.f32.mrb[0].mxu0
        %v7538 = vadd.f32 0.0, %v7537
        %v7539 = vpop.f32.mrb[0].mxu0
        %v7540 = vadd.f32 0.0, %v7539
        %7541 = vmatprep.mubr.bf16.mxu0 0
        %7542 = vmatmul.mubr.bf16.gmra.mrb[0].mxu0 %v7339
        %v7543 = vpop.f32.mrb[0].mxu0
        %v7544 = vadd.f32 0.0, %v7543
        %v7545 = vpop.f32.mrb[0].mxu0
        %v7546 = vadd.f32 0.0, %v7545
        %v7547 = vpop.f32.mrb[0].mxu0
        %v7548 = vadd.f32 0.0, %v7547
        %v7549 = vpop.f32.mrb[0].mxu0
        %v7550 = vadd.f32 0.0, %v7549
        %7551 = vmatprep.mubr.bf16.mxu0 0
        %7552 = vmatmul.mubr.bf16.gmra.mrb[0].mxu0 %v7348
        %v7553 = vpop.f32.mrb[0].mxu0
        %v7554 = vadd.f32 0.0, %v7553
        %v7555 = vpop.f32.mrb[0].mxu0
        %v7556 = vadd.f32 0.0, %v7555
        %v7557 = vpop.f32.mrb[0].mxu0
        %v7558 = vadd.f32 0.0, %v7557
        %v7559 = vpop.f32.mrb[0].mxu0
        %v7560 = vadd.f32 0.0, %v7559
        %7561 = vmatprep.mubr.bf16.mxu0 0
        %7562 = vmatmul.mubr.bf16.gmra.mrb[0].mxu0 %v7357
        %v7563 = vpop.f32.mrb[0].mxu0
        %v7564 = vadd.f32 0.0, %v7563
        %v7565 = vpop.f32.mrb[0].mxu0
        %v7566 = vadd.f32 0.0, %v7565
        %v7567 = vpop.f32.mrb[0].mxu0
        %v7568 = vadd.f32 0.0, %v7567
        %v7569 = vpop.f32.mrb[0].mxu0
        %v7570 = vadd.f32 0.0, %v7569
        %7571 = vmatprep.mubr.bf16.mxu0 0
        %7572 = vmatmul.mubr.bf16.gmra.mrb[0].mxu0 %v7366
        %v7573 = vpop.f32.mrb[0].mxu0
        %v7574 = vadd.f32 0.0, %v7573
        %v7575 = vpop.f32.mrb[0].mxu0
        %v7576 = vadd.f32 0.0, %v7575
        %v7577 = vpop.f32.mrb[0].mxu0
        %v7578 = vadd.f32 0.0, %v7577
        %v7579 = vpop.f32.mrb[0].mxu0
        %v7580 = vadd.f32 0.0, %v7579
        %7581 = vmatprep.mubr.bf16.mxu0 0
        %7582 = vmatmul.mubr.bf16.gmra.mrb[0].mxu0 %v7375
        %v7583 = vpop.f32.mrb[0].mxu0
        %v7584 = vadd.f32 0.0, %v7583
        %v7585 = vpop.f32.mrb[0].mxu0
        %v7586 = vadd.f32 0.0, %v7585
        %v7587 = vpop.f32.mrb[0].mxu0
        %v7588 = vadd.f32 0.0, %v7587
        %v7589 = vpop.f32.mrb[0].mxu0
        %v7590 = vadd.f32 0.0, %v7589
        %7591 = vmatprep.mubr.bf16.mxu0 0
        %7592 = vmatmul.mubr.bf16.gmra.mrb[0].mxu0 %v7384
        %v7593 = vpop.f32.mrb[0].mxu0
        %v7594 = vadd.f32 0.0, %v7593
        %v7595 = vpop.f32.mrb[0].mxu0
        %v7596 = vadd.f32 0.0, %v7595
        %v7597 = vpop.f32.mrb[0].mxu0
        %v7598 = vadd.f32 0.0, %v7597
        %v7599 = vpop.f32.mrb[0].mxu0
        %v7600 = vadd.f32 0.0, %v7599
        %7601 = vmatprep.mubr.bf16.mxu0 0
        %7602 = vmatmul.mubr.bf16.gmra.mrb[0].mxu0 %v7393
        %v7603 = vpop.f32.mrb[0].mxu0
        %v7604 = vadd.f32 0.0, %v7603
        %v7605 = vpop.f32.mrb[0].mxu0
        %v7606 = vadd.f32 0.0, %v7605
        %v7607 = vpop.f32.mrb[0].mxu0
        %v7608 = vadd.f32 0.0, %v7607
        %v7609 = vpop.f32.mrb[0].mxu0
        %v7610 = vadd.f32 0.0, %v7609
        %7611 = vdwg.mxu0
        %v7612 = vadd.f32 %v7290, %v7534
        %v7613 = vadd.f32 %v7291, %v7536
        %v7614 = vadd.f32 %v7292, %v7538
        %v7615 = vadd.f32 %v7293, %v7540
        %v7616 = vadd.f32 %v7294, %v7544
        %v7617 = vadd.f32 %v7295, %v7546
        %v7618 = vadd.f32 %v7296, %v7548
        %v7619 = vadd.f32 %v7297, %v7550
        %v7620 = vadd.f32 %v7298, %v7554
        %v7621 = vadd.f32 %v7299, %v7556
        %v7622 = vadd.f32 %v7300, %v7558
        %v7623 = vadd.f32 %v7301, %v7560
        %v7624 = vadd.f32 %v7302, %v7564
        %v7625 = vadd.f32 %v7303, %v7566
        %v7626 = vadd.f32 %v7304, %v7568
        %v7627 = vadd.f32 %v7305, %v7570
        %v7628 = vadd.f32 %v7306, %v7574
        %v7629 = vadd.f32 %v7307, %v7576
        %v7630 = vadd.f32 %v7308, %v7578
        %v7631 = vadd.f32 %v7309, %v7580
        %v7632 = vadd.f32 %v7310, %v7584
        %v7633 = vadd.f32 %v7311, %v7586
        %v7634 = vadd.f32 %v7312, %v7588
        %v7635 = vadd.f32 %v7313, %v7590
        %v7636 = vadd.f32 %v7314, %v7594
        %v7637 = vadd.f32 %v7315, %v7596
        %v7638 = vadd.f32 %v7316, %v7598
        %v7639 = vadd.f32 %v7317, %v7600
        %v7640 = vadd.f32 %v7318, %v7604
        %v7641 = vadd.f32 %v7319, %v7606
        %v7642 = vadd.f32 %v7320, %v7608
        %v7643 = vadd.f32 %v7321, %v7610
        %v7644 = vrot.slane %v6494, 2
        %v7645 = vrot.slane %v6517, 2
        %v7646 = vsel %vm5954, %v7644, %v7645
        %v7647 = vrot.slane %v6497, 2
        %v7648 = vrot.slane %v6518, 2
        %v7649 = vsel %vm5954, %v7647, %v7648
        %v7650 = vrot.slane %v6500, 2
        %v7651 = vrot.slane %v6519, 2
        %v7652 = vsel %vm5954, %v7650, %v7651
        %v7653 = vrot.slane %v6503, 2
        %v7654 = vrot.slane %v6520, 2
        %v7655 = vsel %vm5954, %v7653, %v7654
        %v7656 = vrot.slane %v6506, 2
        %v7657 = vrot.slane %v6521, 2
        %v7658 = vsel %vm5954, %v7656, %v7657
        %v7659 = vrot.slane %v6509, 2
        %v7660 = vrot.slane %v6522, 2
        %v7661 = vsel %vm5954, %v7659, %v7660
        %v7662 = vrot.slane %v6512, 2
        %v7663 = vrot.slane %v6523, 2
        %v7664 = vsel %vm5954, %v7662, %v7663
        %v7665 = vrot.slane %v6515, 2
        %v7666 = vrot.slane %v6524, 2
        %v7667 = vsel %vm5954, %v7665, %v7666
        %s7676 = scalar_lea.vmem [#allocation8], 512
        %v7677 = vld [vmem:[%s7676] sm:$0xff]
        %v7678 = vld [vmem:[%s7676 + $0x8] sm:$0xff]
        %v7679 = vld [vmem:[%s7676 + $0x10] sm:$0xff]
        %v7680 = vld [vmem:[%s7676 + $0x18] sm:$0xff]
        %v7681 = vld [vmem:[%s7676 + $0x20] sm:$0xff]
        %v7682 = vld [vmem:[%s7676 + $0x28] sm:$0xff]
        %v7683 = vld [vmem:[%s7676 + $0x30] sm:$0xff]
        %v7684 = vld [vmem:[%s7676 + $0x38] sm:$0xff]
        %v7685 = vld [vmem:[%s7676 + $0x40] sm:$0xff]
        %v7686 = vld [vmem:[%s7676 + $0x48] sm:$0xff]
        %v7687 = vld [vmem:[%s7676 + $0x50] sm:$0xff]
        %v7688 = vld [vmem:[%s7676 + $0x58] sm:$0xff]
        %v7689 = vld [vmem:[%s7676 + $0x60] sm:$0xff]
        %v7690 = vld [vmem:[%s7676 + $0x68] sm:$0xff]
        %v7691 = vld [vmem:[%s7676 + $0x70] sm:$0xff]
        %v7692 = vld [vmem:[%s7676 + $0x78] sm:$0xff]
        %v7709 = vunpack.c.l.b16 %v7677
        %v7710 = vunpack.c.h.b16 %v7677
        %v7711 = vunpack.c.l.b16 %v7678
        %v7712 = vunpack.c.h.b16 %v7678
        %v7713 = vunpack.c.l.b16 %v7679
        %v7714 = vunpack.c.h.b16 %v7679
        %v7715 = vunpack.c.l.b16 %v7680
        %v7716 = vunpack.c.h.b16 %v7680
        %v7717 = vunpack.c.l.b16 %v7681
        %v7718 = vunpack.c.h.b16 %v7681
        %v7719 = vunpack.c.l.b16 %v7682
        %v7720 = vunpack.c.h.b16 %v7682
        %v7721 = vunpack.c.l.b16 %v7683
        %v7722 = vunpack.c.h.b16 %v7683
        %v7723 = vunpack.c.l.b16 %v7684
        %v7724 = vunpack.c.h.b16 %v7684
        %v7725 = vunpack.c.l.b16 %v7685
        %v7726 = vunpack.c.h.b16 %v7685
        %v7727 = vunpack.c.l.b16 %v7686
        %v7728 = vunpack.c.h.b16 %v7686
        %v7729 = vunpack.c.l.b16 %v7687
        %v7730 = vunpack.c.h.b16 %v7687
        %v7731 = vunpack.c.l.b16 %v7688
        %v7732 = vunpack.c.h.b16 %v7688
        %v7733 = vunpack.c.l.b16 %v7689
        %v7734 = vunpack.c.h.b16 %v7689
        %v7735 = vunpack.c.l.b16 %v7690
        %v7736 = vunpack.c.h.b16 %v7690
        %v7737 = vunpack.c.l.b16 %v7691
        %v7738 = vunpack.c.h.b16 %v7691
        %v7739 = vunpack.c.l.b16 %v7692
        %v7740 = vunpack.c.h.b16 %v7692
        %v7741 = vpack.c.b16 %v7711, %v7709
        %v7742 = vpack.c.b16 %v7712, %v7710
        %v7743 = vpack.c.b16 %v7715, %v7713
        %v7744 = vpack.c.b16 %v7716, %v7714
        %v7745 = vpack.c.b16 %v7719, %v7717
        %v7746 = vpack.c.b16 %v7720, %v7718
        %v7747 = vpack.c.b16 %v7723, %v7721
        %v7748 = vpack.c.b16 %v7724, %v7722
        %v7749 = vpack.c.b16 %v7727, %v7725
        %v7750 = vpack.c.b16 %v7728, %v7726
        %v7751 = vpack.c.b16 %v7731, %v7729
        %v7752 = vpack.c.b16 %v7732, %v7730
        %v7753 = vpack.c.b16 %v7735, %v7733
        %v7754 = vpack.c.b16 %v7736, %v7734
        %v7755 = vpack.c.b16 %v7739, %v7737
        %v7756 = vpack.c.b16 %v7740, %v7738
        %7773 = vmatprep.subr.bf16.mxu0 %v7742
        %7774 = vmatpush1.bf16.msra.mxu0 %v7741
        %7775 = vmatprep.subr.bf16.mxu0 %v7744
        %7776 = vmatpush1.bf16.msra.mxu0 %v7743
        %7777 = vmatprep.subr.bf16.mxu0 %v7746
        %7778 = vmatpush1.bf16.msra.mxu0 %v7745
        %7779 = vmatprep.subr.bf16.mxu0 %v7748
        %7780 = vmatpush1.bf16.msra.mxu0 %v7747
        %7781 = vmatprep.subr.bf16.mxu0 %v7750
        %7782 = vmatpush1.bf16.msra.mxu0 %v7749
        %7783 = vmatprep.subr.bf16.mxu0 %v7752
        %7784 = vmatpush1.bf16.msra.mxu0 %v7751
        %7785 = vmatprep.subr.bf16.mxu0 %v7754
        %7786 = vmatpush1.bf16.msra.mxu0 %v7753
        %7787 = vmatprep.subr.bf16.mxu0 %v7756
        %7788 = vmatpush1.bf16.msra.mxu0 %v7755
        %7789 = vmatprep.subr.bf16.mxu0 0
        %7790 = vmatpush1.bf16.msra.mxu0 0
        %7791 = vmatprep.subr.bf16.mxu0 0
        %7792 = vmatpush1.bf16.msra.mxu0 0
        %7793 = vmatprep.subr.bf16.mxu0 0
        %7794 = vmatpush1.bf16.msra.mxu0 0
        %7795 = vmatprep.subr.bf16.mxu0 0
        %7796 = vmatpush1.bf16.msra.mxu0 0
        %7797 = vmatprep.subr.bf16.mxu0 0
        %7798 = vmatpush1.bf16.msra.mxu0 0
        %7799 = vmatprep.subr.bf16.mxu0 0
        %7800 = vmatpush1.bf16.msra.mxu0 0
        %7801 = vmatprep.subr.bf16.mxu0 0
        %7802 = vmatpush1.bf16.msra.mxu0 0
        %7803 = vmatprep.subr.bf16.mxu0 0
        %7804 = vmatpush1.bf16.msra.mxu0 0
        %7805 = vmatprep.mubr.bf16.mxu0 0
        %7806 = vmatmul.mubr.bf16.gmra.mrb[0].mxu0 %v7646
        %v7807 = vpop.f32.mrb[0].mxu0
        %v7808 = vadd.f32 0.0, %v7807
        %v7809 = vpop.f32.mrb[0].mxu0
        %v7810 = vadd.f32 0.0, %v7809
        %v7811 = vpop.f32.mrb[0].mxu0
        %v7812 = vadd.f32 0.0, %v7811
        %v7813 = vpop.f32.mrb[0].mxu0
        %v7814 = vadd.f32 0.0, %v7813
        %7815 = vmatprep.mubr.bf16.mxu0 0
        %7816 = vmatmul.mubr.bf16.gmra.mrb[0].mxu0 %v7649
        %v7817 = vpop.f32.mrb[0].mxu0
        %v7818 = vadd.f32 0.0, %v7817
        %v7819 = vpop.f32.mrb[0].mxu0
        %v7820 = vadd.f32 0.0, %v7819
        %v7821 = vpop.f32.mrb[0].mxu0
        %v7822 = vadd.f32 0.0, %v7821
        %v7823 = vpop.f32.mrb[0].mxu0
        %v7824 = vadd.f32 0.0, %v7823
        %7825 = vmatprep.mubr.bf16.mxu0 0
        %7826 = vmatmul.mubr.bf16.gmra.mrb[0].mxu0 %v7652
        %v7827 = vpop.f32.mrb[0].mxu0
        %v7828 = vadd.f32 0.0, %v7827
        %v7829 = vpop.f32.mrb[0].mxu0
        %v7830 = vadd.f32 0.0, %v7829
        %v7831 = vpop.f32.mrb[0].mxu0
        %v7832 = vadd.f32 0.0, %v7831
        %v7833 = vpop.f32.mrb[0].mxu0
        %v7834 = vadd.f32 0.0, %v7833
        %7835 = vmatprep.mubr.bf16.mxu0 0
        %7836 = vmatmul.mubr.bf16.gmra.mrb[0].mxu0 %v7655
        %v7837 = vpop.f32.mrb[0].mxu0
        %v7838 = vadd.f32 0.0, %v7837
        %v7839 = vpop.f32.mrb[0].mxu0
        %v7840 = vadd.f32 0.0, %v7839
        %v7841 = vpop.f32.mrb[0].mxu0
        %v7842 = vadd.f32 0.0, %v7841
        %v7843 = vpop.f32.mrb[0].mxu0
        %v7844 = vadd.f32 0.0, %v7843
        %7845 = vmatprep.mubr.bf16.mxu0 0
        %7846 = vmatmul.mubr.bf16.gmra.mrb[0].mxu0 %v7658
        %v7847 = vpop.f32.mrb[0].mxu0
        %v7848 = vadd.f32 0.0, %v7847
        %v7849 = vpop.f32.mrb[0].mxu0
        %v7850 = vadd.f32 0.0, %v7849
        %v7851 = vpop.f32.mrb[0].mxu0
        %v7852 = vadd.f32 0.0, %v7851
        %v7853 = vpop.f32.mrb[0].mxu0
        %v7854 = vadd.f32 0.0, %v7853
        %7855 = vmatprep.mubr.bf16.mxu0 0
        %7856 = vmatmul.mubr.bf16.gmra.mrb[0].mxu0 %v7661
        %v7857 = vpop.f32.mrb[0].mxu0
        %v7858 = vadd.f32 0.0, %v7857
        %v7859 = vpop.f32.mrb[0].mxu0
        %v7860 = vadd.f32 0.0, %v7859
        %v7861 = vpop.f32.mrb[0].mxu0
        %v7862 = vadd.f32 0.0, %v7861
        %v7863 = vpop.f32.mrb[0].mxu0
        %v7864 = vadd.f32 0.0, %v7863
        %7865 = vmatprep.mubr.bf16.mxu0 0
        %7866 = vmatmul.mubr.bf16.gmra.mrb[0].mxu0 %v7664
        %v7867 = vpop.f32.mrb[0].mxu0
        %v7868 = vadd.f32 0.0, %v7867
        %v7869 = vpop.f32.mrb[0].mxu0
        %v7870 = vadd.f32 0.0, %v7869
        %v7871 = vpop.f32.mrb[0].mxu0
        %v7872 = vadd.f32 0.0, %v7871
        %v7873 = vpop.f32.mrb[0].mxu0
        %v7874 = vadd.f32 0.0, %v7873
        %7875 = vmatprep.mubr.bf16.mxu0 0
        %7876 = vmatmul.mubr.bf16.gmra.mrb[0].mxu0 %v7667
        %v7877 = vpop.f32.mrb[0].mxu0
        %v7878 = vadd.f32 0.0, %v7877
        %v7879 = vpop.f32.mrb[0].mxu0
        %v7880 = vadd.f32 0.0, %v7879
        %v7881 = vpop.f32.mrb[0].mxu0
        %v7882 = vadd.f32 0.0, %v7881
        %v7883 = vpop.f32.mrb[0].mxu0
        %v7884 = vadd.f32 0.0, %v7883
        %7885 = vdwg.mxu0
        %v7886 = vadd.f32 %v7612, %v7808
        %v7887 = vadd.f32 %v7613, %v7810
        %v7888 = vadd.f32 %v7614, %v7812
        %v7889 = vadd.f32 %v7615, %v7814
        %v7890 = vadd.f32 %v7616, %v7818
        %v7891 = vadd.f32 %v7617, %v7820
        %v7892 = vadd.f32 %v7618, %v7822
        %v7893 = vadd.f32 %v7619, %v7824
        %v7894 = vadd.f32 %v7620, %v7828
        %v7895 = vadd.f32 %v7621, %v7830
        %v7896 = vadd.f32 %v7622, %v7832
        %v7897 = vadd.f32 %v7623, %v7834
        %v7898 = vadd.f32 %v7624, %v7838
        %v7899 = vadd.f32 %v7625, %v7840
        %v7900 = vadd.f32 %v7626, %v7842
        %v7901 = vadd.f32 %v7627, %v7844
        %v7902 = vadd.f32 %v7628, %v7848
        %v7903 = vadd.f32 %v7629, %v7850
        %v7904 = vadd.f32 %v7630, %v7852
        %v7905 = vadd.f32 %v7631, %v7854
        %v7906 = vadd.f32 %v7632, %v7858
        %v7907 = vadd.f32 %v7633, %v7860
        %v7908 = vadd.f32 %v7634, %v7862
        %v7909 = vadd.f32 %v7635, %v7864
        %v7910 = vadd.f32 %v7636, %v7868
        %v7911 = vadd.f32 %v7637, %v7870
        %v7912 = vadd.f32 %v7638, %v7872
        %v7913 = vadd.f32 %v7639, %v7874
        %v7914 = vadd.f32 %v7640, %v7878
        %v7915 = vadd.f32 %v7641, %v7880
        %v7916 = vadd.f32 %v7642, %v7882
        %v7917 = vadd.f32 %v7643, %v7884
        %v7918 = vld [vmem:[%s7] sm:$0x3]
        %v7920 = vlaneseq
        %v7921 = vshrl.u32 %v7920, 7
        %v7922 = vsub.s32 0, %v7921
        %v7923 = vrot.slane %v7918, %v7922
        %v7924 = vlaneseq
        %v7925 = vshrl.u32 %v7924, 7
        %v7926 = vsub.s32 1, %v7925
        %v7927 = vrot.slane %v7918, %v7926
        %v7930 = vadd.f32 %v7886, %v7923
        %v7931 = vadd.f32 %v7887, %v7927
        %v7932 = vadd.f32 %v7888, %v7923
        %v7933 = vadd.f32 %v7889, %v7927
        %v7934 = vadd.f32 %v7890, %v7923
        %v7935 = vadd.f32 %v7891, %v7927
        %v7936 = vadd.f32 %v7892, %v7923
        %v7937 = vadd.f32 %v7893, %v7927
        %v7938 = vadd.f32 %v7894, %v7923
        %v7939 = vadd.f32 %v7895, %v7927
        %v7940 = vadd.f32 %v7896, %v7923
        %v7941 = vadd.f32 %v7897, %v7927
        %v7942 = vadd.f32 %v7898, %v7923
        %v7943 = vadd.f32 %v7899, %v7927
        %v7944 = vadd.f32 %v7900, %v7923
        %v7945 = vadd.f32 %v7901, %v7927
        %v7946 = vadd.f32 %v7902, %v7923
        %v7947 = vadd.f32 %v7903, %v7927
        %v7948 = vadd.f32 %v7904, %v7923
        %v7949 = vadd.f32 %v7905, %v7927
        %v7950 = vadd.f32 %v7906, %v7923
        %v7951 = vadd.f32 %v7907, %v7927
        %v7952 = vadd.f32 %v7908, %v7923
        %v7953 = vadd.f32 %v7909, %v7927
        %v7954 = vadd.f32 %v7910, %v7923
        %v7955 = vadd.f32 %v7911, %v7927
        %v7956 = vadd.f32 %v7912, %v7923
        %v7957 = vadd.f32 %v7913, %v7927
        %v7958 = vadd.f32 %v7914, %v7923
        %v7959 = vadd.f32 %v7915, %v7927
        %v7960 = vadd.f32 %v7916, %v7923
        %v7961 = vadd.f32 %v7917, %v7927
        %v7962 = vmax.f32 %v7930, 0.0
        %v7963 = vmax.f32 %v7931, 0.0
        %v7964 = vmax.f32 %v7932, 0.0
        %v7965 = vmax.f32 %v7933, 0.0
        %v7966 = vmax.f32 %v7934, 0.0
        %v7967 = vmax.f32 %v7935, 0.0
        %v7968 = vmax.f32 %v7936, 0.0
        %v7969 = vmax.f32 %v7937, 0.0
        %v7970 = vmax.f32 %v7938, 0.0
        %v7971 = vmax.f32 %v7939, 0.0
        %v7972 = vmax.f32 %v7940, 0.0
        %v7973 = vmax.f32 %v7941, 0.0
        %v7974 = vmax.f32 %v7942, 0.0
        %v7975 = vmax.f32 %v7943, 0.0
        %v7976 = vmax.f32 %v7944, 0.0
        %v7977 = vmax.f32 %v7945, 0.0
        %v7978 = vmax.f32 %v7946, 0.0
        %v7979 = vmax.f32 %v7947, 0.0
        %v7980 = vmax.f32 %v7948, 0.0
        %v7981 = vmax.f32 %v7949, 0.0
        %v7982 = vmax.f32 %v7950, 0.0
        %v7983 = vmax.f32 %v7951, 0.0
        %v7984 = vmax.f32 %v7952, 0.0
        %v7985 = vmax.f32 %v7953, 0.0
        %v7986 = vmax.f32 %v7954, 0.0
        %v7987 = vmax.f32 %v7955, 0.0
        %v7988 = vmax.f32 %v7956, 0.0
        %v7989 = vmax.f32 %v7957, 0.0
        %v7990 = vmax.f32 %v7958, 0.0
        %v7991 = vmax.f32 %v7959, 0.0
        %v7992 = vmax.f32 %v7960, 0.0
        %v7993 = vmax.f32 %v7961, 0.0
        %v7994 = vpack.c.bf16 %v7964, %v7962
        %v7995 = vpack.c.bf16 %v7965, %v7963
        %v7996 = vpack.c.bf16 %v7968, %v7966
        %v7997 = vpack.c.bf16 %v7969, %v7967
        %v7998 = vpack.c.bf16 %v7972, %v7970
        %v7999 = vpack.c.bf16 %v7973, %v7971
        %v8000 = vpack.c.bf16 %v7976, %v7974
        %v8001 = vpack.c.bf16 %v7977, %v7975
        %v8002 = vpack.c.bf16 %v7980, %v7978
        %v8003 = vpack.c.bf16 %v7981, %v7979
        %v8004 = vpack.c.bf16 %v7984, %v7982
        %v8005 = vpack.c.bf16 %v7985, %v7983
        %v8006 = vpack.c.bf16 %v7988, %v7986
        %v8007 = vpack.c.bf16 %v7989, %v7987
        %v8008 = vpack.c.bf16 %v7992, %v7990
        %v8009 = vpack.c.bf16 %v7993, %v7991
        %v8011 = vshrl.u32 %v7994, 16
        %v8013 = vrot.slane %v8011, 7
        %v8014 = vshll.u32 %v7994, 16
        %v8016 = vor.u32 %v8013, %v8014
        %v8018 = vshrl.u32 %v7995, 16
        %v8020 = vrot.slane %v8018, 7
        %v8021 = vshll.u32 %v7995, 16
        %v8023 = vor.u32 %v8020, %v8021
        %v8025 = vshrl.u32 %v7996, 16
        %v8027 = vrot.slane %v8025, 7
        %v8028 = vshll.u32 %v7996, 16
        %v8030 = vor.u32 %v8027, %v8028
        %v8032 = vshrl.u32 %v7997, 16
        %v8034 = vrot.slane %v8032, 7
        %v8035 = vshll.u32 %v7997, 16
        %v8037 = vor.u32 %v8034, %v8035
        %v8039 = vshrl.u32 %v7998, 16
        %v8041 = vrot.slane %v8039, 7
        %v8042 = vshll.u32 %v7998, 16
        %v8044 = vor.u32 %v8041, %v8042
        %v8046 = vshrl.u32 %v7999, 16
        %v8048 = vrot.slane %v8046, 7
        %v8049 = vshll.u32 %v7999, 16
        %v8051 = vor.u32 %v8048, %v8049
        %v8053 = vshrl.u32 %v8000, 16
        %v8055 = vrot.slane %v8053, 7
        %v8056 = vshll.u32 %v8000, 16
        %v8058 = vor.u32 %v8055, %v8056
        %v8060 = vshrl.u32 %v8001, 16
        %v8062 = vrot.slane %v8060, 7
        %v8063 = vshll.u32 %v8001, 16
        %v8065 = vor.u32 %v8062, %v8063
        %v8067 = vshrl.u32 %v8002, 16
        %v8069 = vrot.slane %v8067, 7
        %v8070 = vshll.u32 %v8002, 16
        %v8072 = vor.u32 %v8069, %v8070
        %v8074 = vshrl.u32 %v8003, 16
        %v8076 = vrot.slane %v8074, 7
        %v8077 = vshll.u32 %v8003, 16
        %v8079 = vor.u32 %v8076, %v8077
        %v8081 = vshrl.u32 %v8004, 16
        %v8083 = vrot.slane %v8081, 7
        %v8084 = vshll.u32 %v8004, 16
        %v8086 = vor.u32 %v8083, %v8084
        %v8088 = vshrl.u32 %v8005, 16
        %v8090 = vrot.slane %v8088, 7
        %v8091 = vshll.u32 %v8005, 16
        %v8093 = vor.u32 %v8090, %v8091
        %v8095 = vshrl.u32 %v8006, 16
        %v8097 = vrot.slane %v8095, 7
        %v8098 = vshll.u32 %v8006, 16
        %v8100 = vor.u32 %v8097, %v8098
        %v8102 = vshrl.u32 %v8007, 16
        %v8104 = vrot.slane %v8102, 7
        %v8105 = vshll.u32 %v8007, 16
        %v8107 = vor.u32 %v8104, %v8105
        %v8109 = vshrl.u32 %v8008, 16
        %v8111 = vrot.slane %v8109, 7
        %v8112 = vshll.u32 %v8008, 16
        %v8114 = vor.u32 %v8111, %v8112
        %v8116 = vshrl.u32 %v8009, 16
        %v8118 = vrot.slane %v8116, 7
        %v8119 = vshll.u32 %v8009, 16
        %v8121 = vor.u32 %v8118, %v8119
        %vm8154 = vcmask 1040384
        %vm8155 = vsmask.f32 256
        %vm8156 = vmand %vm8154, %vm8155
        %v8157 = vsel %vm8156, 0, %v8016
        %v8158 = vsel %vm8156, 0, %v8023
        %v8159 = vsel %vm8156, 0, %v8030
        %v8160 = vsel %vm8156, 0, %v8037
        %v8161 = vsel %vm8156, 0, %v8044
        %v8162 = vsel %vm8156, 0, %v8051
        %v8163 = vsel %vm8156, 0, %v8058
        %v8164 = vsel %vm8156, 0, %v8065
        %v8165 = vsel %vm8156, 0, %v8072
        %v8166 = vsel %vm8156, 0, %v8079
        %v8167 = vsel %vm8156, 0, %v8086
        %v8168 = vsel %vm8156, 0, %v8093
        %v8169 = vsel %vm8156, 0, %v8100
        %v8170 = vsel %vm8156, 0, %v8107
        %v8171 = vsel %vm8156, 0, %v8114
        %v8172 = vsel %vm8156, 0, %v8121
        %v8173 = vsel %vm8156, %v8013, 0
        %v8174 = vsel %vm8156, %v8020, 0
        %v8175 = vsel %vm8156, %v8027, 0
        %v8176 = vsel %vm8156, %v8034, 0
        %v8177 = vsel %vm8156, %v8041, 0
        %v8178 = vsel %vm8156, %v8048, 0
        %v8179 = vsel %vm8156, %v8055, 0
        %v8180 = vsel %vm8156, %v8062, 0
        %v8181 = vsel %vm8156, %v8069, 0
        %v8182 = vsel %vm8156, %v8076, 0
        %v8183 = vsel %vm8156, %v8083, 0
        %v8184 = vsel %vm8156, %v8090, 0
        %v8185 = vsel %vm8156, %v8097, 0
        %v8186 = vsel %vm8156, %v8104, 0
        %v8187 = vsel %vm8156, %v8111, 0
        %v8188 = vsel %vm8156, %v8118, 0
        %v8189 = vld [vmem:[%s8] sm:$0xf]
        %v8190 = vld [vmem:[%s8 + $0x4] sm:$0xf]
        %v8191 = vld [vmem:[%s8 + $0x8] sm:$0xf]
        %v8192 = vld [vmem:[%s8 + $0xc] sm:$0xf]
        %v8193 = vld [vmem:[%s8 + $0x10] sm:$0xf]
        %v8194 = vld [vmem:[%s8 + $0x14] sm:$0xf]
        %v8195 = vld [vmem:[%s8 + $0x18] sm:$0xf]
        %v8196 = vld [vmem:[%s8 + $0x1c] sm:$0xf]
        %v8197 = vld [vmem:[%s8 + $0x20] sm:$0xf]
        %v8198 = vld [vmem:[%s8 + $0x24] sm:$0xf]
        %v8199 = vld [vmem:[%s8 + $0x28] sm:$0xf]
        %v8200 = vld [vmem:[%s8 + $0x2c] sm:$0xf]
        %v8201 = vld [vmem:[%s8 + $0x30] sm:$0xf]
        %v8202 = vld [vmem:[%s8 + $0x34] sm:$0xf]
        %v8203 = vld [vmem:[%s8 + $0x38] sm:$0xf]
        %v8204 = vld [vmem:[%s8 + $0x3c] sm:$0xf]
        %v8205 = vld [vmem:[%s8 + $0x40] sm:$0xf]
        %v8206 = vld [vmem:[%s8 + $0x44] sm:$0xf]
        %v8207 = vld [vmem:[%s8 + $0x48] sm:$0xf]
        %v8208 = vld [vmem:[%s8 + $0x4c] sm:$0xf]
        %v8209 = vld [vmem:[%s8 + $0x50] sm:$0xf]
        %v8210 = vld [vmem:[%s8 + $0x54] sm:$0xf]
        %v8211 = vld [vmem:[%s8 + $0x58] sm:$0xf]
        %v8212 = vld [vmem:[%s8 + $0x5c] sm:$0xf]
        %v8213 = vld [vmem:[%s8 + $0x60] sm:$0xf]
        %v8214 = vld [vmem:[%s8 + $0x64] sm:$0xf]
        %v8215 = vld [vmem:[%s8 + $0x68] sm:$0xf]
        %v8216 = vld [vmem:[%s8 + $0x6c] sm:$0xf]
        %v8217 = vld [vmem:[%s8 + $0x70] sm:$0xf]
        %v8218 = vld [vmem:[%s8 + $0x74] sm:$0xf]
        %v8219 = vld [vmem:[%s8 + $0x78] sm:$0xf]
        %v8220 = vld [vmem:[%s8 + $0x7c] sm:$0xf]
        %v8222 = vshrl.u32 %v8157, 16
        %v8224 = vshll.u32 %v8157, 16
        %v8226 = vrot.slane %v8224, 1
        %v8227 = vor.u32 %v8222, %v8226
        %v8229 = vshll.u32 %v8173, 16
        %v8231 = vrot.slane %v8229, 1
        %v8232 = vsel %vm5695, %v8227, %v8231
        %v8234 = vshrl.u32 %v8158, 16
        %v8236 = vshll.u32 %v8158, 16
        %v8238 = vrot.slane %v8236, 1
        %v8239 = vor.u32 %v8234, %v8238
        %v8241 = vshll.u32 %v8174, 16
        %v8243 = vrot.slane %v8241, 1
        %v8244 = vsel %vm5695, %v8239, %v8243
        %v8246 = vshrl.u32 %v8159, 16
        %v8248 = vshll.u32 %v8159, 16
        %v8250 = vrot.slane %v8248, 1
        %v8251 = vor.u32 %v8246, %v8250
        %v8253 = vshll.u32 %v8175, 16
        %v8255 = vrot.slane %v8253, 1
        %v8256 = vsel %vm5695, %v8251, %v8255
        %v8258 = vshrl.u32 %v8160, 16
        %v8260 = vshll.u32 %v8160, 16
        %v8262 = vrot.slane %v8260, 1
        %v8263 = vor.u32 %v8258, %v8262
        %v8265 = vshll.u32 %v8176, 16
        %v8267 = vrot.slane %v8265, 1
        %v8268 = vsel %vm5695, %v8263, %v8267
        %v8270 = vshrl.u32 %v8161, 16
        %v8272 = vshll.u32 %v8161, 16
        %v8274 = vrot.slane %v8272, 1
        %v8275 = vor.u32 %v8270, %v8274
        %v8277 = vshll.u32 %v8177, 16
        %v8279 = vrot.slane %v8277, 1
        %v8280 = vsel %vm5695, %v8275, %v8279
        %v8282 = vshrl.u32 %v8162, 16
        %v8284 = vshll.u32 %v8162, 16
        %v8286 = vrot.slane %v8284, 1
        %v8287 = vor.u32 %v8282, %v8286
        %v8289 = vshll.u32 %v8178, 16
        %v8291 = vrot.slane %v8289, 1
        %v8292 = vsel %vm5695, %v8287, %v8291
        %v8294 = vshrl.u32 %v8163, 16
        %v8296 = vshll.u32 %v8163, 16
        %v8298 = vrot.slane %v8296, 1
        %v8299 = vor.u32 %v8294, %v8298
        %v8301 = vshll.u32 %v8179, 16
        %v8303 = vrot.slane %v8301, 1
        %v8304 = vsel %vm5695, %v8299, %v8303
        %v8306 = vshrl.u32 %v8164, 16
        %v8308 = vshll.u32 %v8164, 16
        %v8310 = vrot.slane %v8308, 1
        %v8311 = vor.u32 %v8306, %v8310
        %v8313 = vshll.u32 %v8180, 16
        %v8315 = vrot.slane %v8313, 1
        %v8316 = vsel %vm5695, %v8311, %v8315
        %v8318 = vshrl.u32 %v8165, 16
        %v8320 = vshll.u32 %v8165, 16
        %v8322 = vrot.slane %v8320, 1
        %v8323 = vor.u32 %v8318, %v8322
        %v8325 = vshll.u32 %v8181, 16
        %v8327 = vrot.slane %v8325, 1
        %v8328 = vsel %vm5695, %v8323, %v8327
        %v8330 = vshrl.u32 %v8166, 16
        %v8332 = vshll.u32 %v8166, 16
        %v8334 = vrot.slane %v8332, 1
        %v8335 = vor.u32 %v8330, %v8334
        %v8337 = vshll.u32 %v8182, 16
        %v8339 = vrot.slane %v8337, 1
        %v8340 = vsel %vm5695, %v8335, %v8339
        %v8342 = vshrl.u32 %v8167, 16
        %v8344 = vshll.u32 %v8167, 16
        %v8346 = vrot.slane %v8344, 1
        %v8347 = vor.u32 %v8342, %v8346
        %v8349 = vshll.u32 %v8183, 16
        %v8351 = vrot.slane %v8349, 1
        %v8352 = vsel %vm5695, %v8347, %v8351
        %v8354 = vshrl.u32 %v8168, 16
        %v8356 = vshll.u32 %v8168, 16
        %v8358 = vrot.slane %v8356, 1
        %v8359 = vor.u32 %v8354, %v8358
        %v8361 = vshll.u32 %v8184, 16
        %v8363 = vrot.slane %v8361, 1
        %v8364 = vsel %vm5695, %v8359, %v8363
        %v8366 = vshrl.u32 %v8169, 16
        %v8368 = vshll.u32 %v8169, 16
        %v8370 = vrot.slane %v8368, 1
        %v8371 = vor.u32 %v8366, %v8370
        %v8373 = vshll.u32 %v8185, 16
        %v8375 = vrot.slane %v8373, 1
        %v8376 = vsel %vm5695, %v8371, %v8375
        %v8378 = vshrl.u32 %v8170, 16
        %v8380 = vshll.u32 %v8170, 16
        %v8382 = vrot.slane %v8380, 1
        %v8383 = vor.u32 %v8378, %v8382
        %v8385 = vshll.u32 %v8186, 16
        %v8387 = vrot.slane %v8385, 1
        %v8388 = vsel %vm5695, %v8383, %v8387
        %v8390 = vshrl.u32 %v8171, 16
        %v8392 = vshll.u32 %v8171, 16
        %v8394 = vrot.slane %v8392, 1
        %v8395 = vor.u32 %v8390, %v8394
        %v8397 = vshll.u32 %v8187, 16
        %v8399 = vrot.slane %v8397, 1
        %v8400 = vsel %vm5695, %v8395, %v8399
        %v8402 = vshrl.u32 %v8172, 16
        %v8404 = vshll.u32 %v8172, 16
        %v8406 = vrot.slane %v8404, 1
        %v8407 = vor.u32 %v8402, %v8406
        %v8409 = vshll.u32 %v8188, 16
        %v8411 = vrot.slane %v8409, 1
        %v8412 = vsel %vm5695, %v8407, %v8411
        %s8429 = scalar_lea.vmem %s8, 128
        %v8430 = vld [vmem:[%s8429] sm:$0xf]
        %v8431 = vld [vmem:[%s8429 + $0x4] sm:$0xf]
        %v8432 = vld [vmem:[%s8429 + $0x8] sm:$0xf]
        %v8433 = vld [vmem:[%s8429 + $0xc] sm:$0xf]
        %v8434 = vld [vmem:[%s8429 + $0x10] sm:$0xf]
        %v8435 = vld [vmem:[%s8429 + $0x14] sm:$0xf]
        %v8436 = vld [vmem:[%s8429 + $0x18] sm:$0xf]
        %v8437 = vld [vmem:[%s8429 + $0x1c] sm:$0xf]
        %v8438 = vld [vmem:[%s8429 + $0x20] sm:$0xf]
        %v8439 = vld [vmem:[%s8429 + $0x24] sm:$0xf]
        %v8440 = vld [vmem:[%s8429 + $0x28] sm:$0xf]
        %v8441 = vld [vmem:[%s8429 + $0x2c] sm:$0xf]
        %v8442 = vld [vmem:[%s8429 + $0x30] sm:$0xf]
        %v8443 = vld [vmem:[%s8429 + $0x34] sm:$0xf]
        %v8444 = vld [vmem:[%s8429 + $0x38] sm:$0xf]
        %v8445 = vld [vmem:[%s8429 + $0x3c] sm:$0xf]
        %v8446 = vld [vmem:[%s8429 + $0x40] sm:$0xf]
        %v8447 = vld [vmem:[%s8429 + $0x44] sm:$0xf]
        %v8448 = vld [vmem:[%s8429 + $0x48] sm:$0xf]
        %v8449 = vld [vmem:[%s8429 + $0x4c] sm:$0xf]
        %v8450 = vld [vmem:[%s8429 + $0x50] sm:$0xf]
        %v8451 = vld [vmem:[%s8429 + $0x54] sm:$0xf]
        %v8452 = vld [vmem:[%s8429 + $0x58] sm:$0xf]
        %v8453 = vld [vmem:[%s8429 + $0x5c] sm:$0xf]
        %v8454 = vld [vmem:[%s8429 + $0x60] sm:$0xf]
        %v8455 = vld [vmem:[%s8429 + $0x64] sm:$0xf]
        %v8456 = vld [vmem:[%s8429 + $0x68] sm:$0xf]
        %v8457 = vld [vmem:[%s8429 + $0x6c] sm:$0xf]
        %v8458 = vld [vmem:[%s8429 + $0x70] sm:$0xf]
        %v8459 = vld [vmem:[%s8429 + $0x74] sm:$0xf]
        %v8460 = vld [vmem:[%s8429 + $0x78] sm:$0xf]
        %v8461 = vld [vmem:[%s8429 + $0x7c] sm:$0xf]
        %v8494 = vunpack.c.l.b16 %v8430
        %v8495 = vunpack.c.l.b16 %v8431
        %v8496 = vunpack.c.l.b16 %v8432
        %v8497 = vunpack.c.l.b16 %v8433
        %v8498 = vunpack.c.l.b16 %v8434
        %v8499 = vunpack.c.l.b16 %v8435
        %v8500 = vunpack.c.l.b16 %v8436
        %v8501 = vunpack.c.l.b16 %v8437
        %v8502 = vunpack.c.l.b16 %v8438
        %v8503 = vunpack.c.l.b16 %v8439
        %v8504 = vunpack.c.l.b16 %v8440
        %v8505 = vunpack.c.l.b16 %v8441
        %v8506 = vunpack.c.l.b16 %v8442
        %v8507 = vunpack.c.l.b16 %v8443
        %v8508 = vunpack.c.l.b16 %v8444
        %v8509 = vunpack.c.l.b16 %v8445
        %v8510 = vunpack.c.l.b16 %v8446
        %v8511 = vunpack.c.l.b16 %v8447
        %v8512 = vunpack.c.l.b16 %v8448
        %v8513 = vunpack.c.l.b16 %v8449
        %v8514 = vunpack.c.l.b16 %v8450
        %v8515 = vunpack.c.l.b16 %v8451
        %v8516 = vunpack.c.l.b16 %v8452
        %v8517 = vunpack.c.l.b16 %v8453
        %v8518 = vunpack.c.l.b16 %v8454
        %v8519 = vunpack.c.l.b16 %v8455
        %v8520 = vunpack.c.l.b16 %v8456
        %v8521 = vunpack.c.l.b16 %v8457
        %v8522 = vunpack.c.l.b16 %v8458
        %v8523 = vunpack.c.l.b16 %v8459
        %v8524 = vunpack.c.l.b16 %v8460
        %v8525 = vunpack.c.l.b16 %v8461
        %v8526 = vpack.c.b16 %v8495, %v8494
        %v8527 = vpack.c.b16 %v8497, %v8496
        %v8528 = vpack.c.b16 %v8499, %v8498
        %v8529 = vpack.c.b16 %v8501, %v8500
        %v8530 = vpack.c.b16 %v8503, %v8502
        %v8531 = vpack.c.b16 %v8505, %v8504
        %v8532 = vpack.c.b16 %v8507, %v8506
        %v8533 = vpack.c.b16 %v8509, %v8508
        %v8534 = vpack.c.b16 %v8511, %v8510
        %v8535 = vpack.c.b16 %v8513, %v8512
        %v8536 = vpack.c.b16 %v8515, %v8514
        %v8537 = vpack.c.b16 %v8517, %v8516
        %v8538 = vpack.c.b16 %v8519, %v8518
        %v8539 = vpack.c.b16 %v8521, %v8520
        %v8540 = vpack.c.b16 %v8523, %v8522
        %v8541 = vpack.c.b16 %v8525, %v8524
        %8558 = vmatprep.subr.bf16.mxu0 0
        %8559 = vmatpush1.bf16.msra.mxu0 %v8526
        %8560 = vmatprep.subr.bf16.mxu0 0
        %8561 = vmatpush1.bf16.msra.mxu0 %v8527
        %8562 = vmatprep.subr.bf16.mxu0 0
        %8563 = vmatpush1.bf16.msra.mxu0 %v8528
        %8564 = vmatprep.subr.bf16.mxu0 0
        %8565 = vmatpush1.bf16.msra.mxu0 %v8529
        %8566 = vmatprep.subr.bf16.mxu0 0
        %8567 = vmatpush1.bf16.msra.mxu0 %v8530
        %8568 = vmatprep.subr.bf16.mxu0 0
        %8569 = vmatpush1.bf16.msra.mxu0 %v8531
        %8570 = vmatprep.subr.bf16.mxu0 0
        %8571 = vmatpush1.bf16.msra.mxu0 %v8532
        %8572 = vmatprep.subr.bf16.mxu0 0
        %8573 = vmatpush1.bf16.msra.mxu0 %v8533
        %8574 = vmatprep.subr.bf16.mxu0 0
        %8575 = vmatpush1.bf16.msra.mxu0 %v8534
        %8576 = vmatprep.subr.bf16.mxu0 0
        %8577 = vmatpush1.bf16.msra.mxu0 %v8535
        %8578 = vmatprep.subr.bf16.mxu0 0
        %8579 = vmatpush1.bf16.msra.mxu0 %v8536
        %8580 = vmatprep.subr.bf16.mxu0 0
        %8581 = vmatpush1.bf16.msra.mxu0 %v8537
        %8582 = vmatprep.subr.bf16.mxu0 0
        %8583 = vmatpush1.bf16.msra.mxu0 %v8538
        %8584 = vmatprep.subr.bf16.mxu0 0
        %8585 = vmatpush1.bf16.msra.mxu0 %v8539
        %8586 = vmatprep.subr.bf16.mxu0 0
        %8587 = vmatpush1.bf16.msra.mxu0 %v8540
        %8588 = vmatprep.subr.bf16.mxu0 0
        %8589 = vmatpush1.bf16.msra.mxu0 %v8541
        %8590 = vmatprep.mubr.bf16.mxu0 %v8244
        %8591 = vmatmul.mubr.bf16.gmra.mrb[0].mxu0 %v8232
        %v8592 = vpop.f32.mrb[0].mxu0
        %v8593 = vadd.f32 0.0, %v8592
        %v8594 = vpop.f32.mrb[0].mxu0
        %v8595 = vpop.f32.mrb[0].mxu0
        %v8596 = vadd.f32 0.0, %v8595
        %v8597 = vpop.f32.mrb[0].mxu0
        %8598 = vmatprep.mubr.bf16.mxu0 %v8268
        %8599 = vmatmul.mubr.bf16.gmra.mrb[0].mxu0 %v8256
        %v8600 = vpop.f32.mrb[0].mxu0
        %v8601 = vadd.f32 0.0, %v8600
        %v8602 = vpop.f32.mrb[0].mxu0
        %v8603 = vpop.f32.mrb[0].mxu0
        %v8604 = vadd.f32 0.0, %v8603
        %v8605 = vpop.f32.mrb[0].mxu0
        %8606 = vmatprep.mubr.bf16.mxu0 %v8292
        %8607 = vmatmul.mubr.bf16.gmra.mrb[0].mxu0 %v8280
        %v8608 = vpop.f32.mrb[0].mxu0
        %v8609 = vadd.f32 0.0, %v8608
        %v8610 = vpop.f32.mrb[0].mxu0
        %v8611 = vpop.f32.mrb[0].mxu0
        %v8612 = vadd.f32 0.0, %v8611
        %v8613 = vpop.f32.mrb[0].mxu0
        %8614 = vmatprep.mubr.bf16.mxu0 %v8316
        %8615 = vmatmul.mubr.bf16.gmra.mrb[0].mxu0 %v8304
        %v8616 = vpop.f32.mrb[0].mxu0
        %v8617 = vadd.f32 0.0, %v8616
        %v8618 = vpop.f32.mrb[0].mxu0
        %v8619 = vpop.f32.mrb[0].mxu0
        %v8620 = vadd.f32 0.0, %v8619
        %v8621 = vpop.f32.mrb[0].mxu0
        %8622 = vmatprep.mubr.bf16.mxu0 %v8340
        %8623 = vmatmul.mubr.bf16.gmra.mrb[0].mxu0 %v8328
        %v8624 = vpop.f32.mrb[0].mxu0
        %v8625 = vadd.f32 0.0, %v8624
        %v8626 = vpop.f32.mrb[0].mxu0
        %v8627 = vpop.f32.mrb[0].mxu0
        %v8628 = vadd.f32 0.0, %v8627
        %v8629 = vpop.f32.mrb[0].mxu0
        %8630 = vmatprep.mubr.bf16.mxu0 %v8364
        %8631 = vmatmul.mubr.bf16.gmra.mrb[0].mxu0 %v8352
        %v8632 = vpop.f32.mrb[0].mxu0
        %v8633 = vadd.f32 0.0, %v8632
        %v8634 = vpop.f32.mrb[0].mxu0
        %v8635 = vpop.f32.mrb[0].mxu0
        %v8636 = vadd.f32 0.0, %v8635
        %v8637 = vpop.f32.mrb[0].mxu0
        %8638 = vmatprep.mubr.bf16.mxu0 %v8388
        %8639 = vmatmul.mubr.bf16.gmra.mrb[0].mxu0 %v8376
        %v8640 = vpop.f32.mrb[0].mxu0
        %v8641 = vadd.f32 0.0, %v8640
        %v8642 = vpop.f32.mrb[0].mxu0
        %v8643 = vpop.f32.mrb[0].mxu0
        %v8644 = vadd.f32 0.0, %v8643
        %v8645 = vpop.f32.mrb[0].mxu0
        %8646 = vmatprep.mubr.bf16.mxu0 %v8412
        %8647 = vmatmul.mubr.bf16.gmra.mrb[0].mxu0 %v8400
        %v8648 = vpop.f32.mrb[0].mxu0
        %v8649 = vadd.f32 0.0, %v8648
        %v8650 = vpop.f32.mrb[0].mxu0
        %v8651 = vpop.f32.mrb[0].mxu0
        %v8652 = vadd.f32 0.0, %v8651
        %v8653 = vpop.f32.mrb[0].mxu0
        %8654 = vdwg.mxu0
        %v8687 = vunpack.c.l.b16 %v8189
        %v8688 = vunpack.c.l.b16 %v8190
        %v8689 = vunpack.c.l.b16 %v8191
        %v8690 = vunpack.c.l.b16 %v8192
        %v8691 = vunpack.c.l.b16 %v8193
        %v8692 = vunpack.c.l.b16 %v8194
        %v8693 = vunpack.c.l.b16 %v8195
        %v8694 = vunpack.c.l.b16 %v8196
        %v8695 = vunpack.c.l.b16 %v8197
        %v8696 = vunpack.c.l.b16 %v8198
        %v8697 = vunpack.c.l.b16 %v8199
        %v8698 = vunpack.c.l.b16 %v8200
        %v8699 = vunpack.c.l.b16 %v8201
        %v8700 = vunpack.c.l.b16 %v8202
        %v8701 = vunpack.c.l.b16 %v8203
        %v8702 = vunpack.c.l.b16 %v8204
        %v8703 = vunpack.c.l.b16 %v8205
        %v8704 = vunpack.c.l.b16 %v8206
        %v8705 = vunpack.c.l.b16 %v8207
        %v8706 = vunpack.c.l.b16 %v8208
        %v8707 = vunpack.c.l.b16 %v8209
        %v8708 = vunpack.c.l.b16 %v8210
        %v8709 = vunpack.c.l.b16 %v8211
        %v8710 = vunpack.c.l.b16 %v8212
        %v8711 = vunpack.c.l.b16 %v8213
        %v8712 = vunpack.c.l.b16 %v8214
        %v8713 = vunpack.c.l.b16 %v8215
        %v8714 = vunpack.c.l.b16 %v8216
        %v8715 = vunpack.c.l.b16 %v8217
        %v8716 = vunpack.c.l.b16 %v8218
        %v8717 = vunpack.c.l.b16 %v8219
        %v8718 = vunpack.c.l.b16 %v8220
        %v8719 = vpack.c.b16 %v8688, %v8687
        %v8720 = vpack.c.b16 %v8690, %v8689
        %v8721 = vpack.c.b16 %v8692, %v8691
        %v8722 = vpack.c.b16 %v8694, %v8693
        %v8723 = vpack.c.b16 %v8696, %v8695
        %v8724 = vpack.c.b16 %v8698, %v8697
        %v8725 = vpack.c.b16 %v8700, %v8699
        %v8726 = vpack.c.b16 %v8702, %v8701
        %v8727 = vpack.c.b16 %v8704, %v8703
        %v8728 = vpack.c.b16 %v8706, %v8705
        %v8729 = vpack.c.b16 %v8708, %v8707
        %v8730 = vpack.c.b16 %v8710, %v8709
        %v8731 = vpack.c.b16 %v8712, %v8711
        %v8732 = vpack.c.b16 %v8714, %v8713
        %v8733 = vpack.c.b16 %v8716, %v8715
        %v8734 = vpack.c.b16 %v8718, %v8717
        %8751 = vmatprep.subr.bf16.mxu0 0
        %8752 = vmatpush1.bf16.msra.mxu0 %v8719
        %8753 = vmatprep.subr.bf16.mxu0 0
        %8754 = vmatpush1.bf16.msra.mxu0 %v8720
        %8755 = vmatprep.subr.bf16.mxu0 0
        %8756 = vmatpush1.bf16.msra.mxu0 %v8721
        %8757 = vmatprep.subr.bf16.mxu0 0
        %8758 = vmatpush1.bf16.msra.mxu0 %v8722
        %8759 = vmatprep.subr.bf16.mxu0 0
        %8760 = vmatpush1.bf16.msra.mxu0 %v8723
        %8761 = vmatprep.subr.bf16.mxu0 0
        %8762 = vmatpush1.bf16.msra.mxu0 %v8724
        %8763 = vmatprep.subr.bf16.mxu0 0
        %8764 = vmatpush1.bf16.msra.mxu0 %v8725
        %8765 = vmatprep.subr.bf16.mxu0 0
        %8766 = vmatpush1.bf16.msra.mxu0 %v8726
        %8767 = vmatprep.subr.bf16.mxu0 0
        %8768 = vmatpush1.bf16.msra.mxu0 %v8727
        %8769 = vmatprep.subr.bf16.mxu0 0
        %8770 = vmatpush1.bf16.msra.mxu0 %v8728
        %8771 = vmatprep.subr.bf16.mxu0 0
        %8772 = vmatpush1.bf16.msra.mxu0 %v8729
        %8773 = vmatprep.subr.bf16.mxu0 0
        %8774 = vmatpush1.bf16.msra.mxu0 %v8730
        %8775 = vmatprep.subr.bf16.mxu0 0
        %8776 = vmatpush1.bf16.msra.mxu0 %v8731
        %8777 = vmatprep.subr.bf16.mxu0 0
        %8778 = vmatpush1.bf16.msra.mxu0 %v8732
        %8779 = vmatprep.subr.bf16.mxu0 0
        %8780 = vmatpush1.bf16.msra.mxu0 %v8733
        %8781 = vmatprep.subr.bf16.mxu0 0
        %8782 = vmatpush1.bf16.msra.mxu0 %v8734
        %8783 = vmatprep.mubr.bf16.mxu0 %v8158
        %8784 = vmatmul.mubr.bf16.gmra.mrb[0].mxu0 %v8157
        %v8785 = vpop.f32.mrb[0].mxu0
        %v8786 = vadd.f32 %v8593, %v8785
        %v8787 = vpop.f32.mrb[0].mxu0
        %v8788 = vpop.f32.mrb[0].mxu0
        %v8789 = vadd.f32 %v8596, %v8788
        %v8790 = vpop.f32.mrb[0].mxu0
        %8791 = vmatprep.mubr.bf16.mxu0 %v8160
        %8792 = vmatmul.mubr.bf16.gmra.mrb[0].mxu0 %v8159
        %v8793 = vpop.f32.mrb[0].mxu0
        %v8794 = vadd.f32 %v8601, %v8793
        %v8795 = vpop.f32.mrb[0].mxu0
        %v8796 = vpop.f32.mrb[0].mxu0
        %v8797 = vadd.f32 %v8604, %v8796
        %v8798 = vpop.f32.mrb[0].mxu0
        %8799 = vmatprep.mubr.bf16.mxu0 %v8162
        %8800 = vmatmul.mubr.bf16.gmra.mrb[0].mxu0 %v8161
        %v8801 = vpop.f32.mrb[0].mxu0
        %v8802 = vadd.f32 %v8609, %v8801
        %v8803 = vpop.f32.mrb[0].mxu0
        %v8804 = vpop.f32.mrb[0].mxu0
        %v8805 = vadd.f32 %v8612, %v8804
        %v8806 = vpop.f32.mrb[0].mxu0
        %8807 = vmatprep.mubr.bf16.mxu0 %v8164
        %8808 = vmatmul.mubr.bf16.gmra.mrb[0].mxu0 %v8163
        %v8809 = vpop.f32.mrb[0].mxu0
        %v8810 = vadd.f32 %v8617, %v8809
        %v8811 = vpop.f32.mrb[0].mxu0
        %v8812 = vpop.f32.mrb[0].mxu0
        %v8813 = vadd.f32 %v8620, %v8812
        %v8814 = vpop.f32.mrb[0].mxu0
        %8815 = vmatprep.mubr.bf16.mxu0 %v8166
        %8816 = vmatmul.mubr.bf16.gmra.mrb[0].mxu0 %v8165
        %v8817 = vpop.f32.mrb[0].mxu0
        %v8818 = vadd.f32 %v8625, %v8817
        %v8819 = vpop.f32.mrb[0].mxu0
        %v8820 = vpop.f32.mrb[0].mxu0
        %v8821 = vadd.f32 %v8628, %v8820
        %v8822 = vpop.f32.mrb[0].mxu0
        %8823 = vmatprep.mubr.bf16.mxu0 %v8168
        %8824 = vmatmul.mubr.bf16.gmra.mrb[0].mxu0 %v8167
        %v8825 = vpop.f32.mrb[0].mxu0
        %v8826 = vadd.f32 %v8633, %v8825
        %v8827 = vpop.f32.mrb[0].mxu0
        %v8828 = vpop.f32.mrb[0].mxu0
        %v8829 = vadd.f32 %v8636, %v8828
        %v8830 = vpop.f32.mrb[0].mxu0
        %8831 = vmatprep.mubr.bf16.mxu0 %v8170
        %8832 = vmatmul.mubr.bf16.gmra.mrb[0].mxu0 %v8169
        %v8833 = vpop.f32.mrb[0].mxu0
        %v8834 = vadd.f32 %v8641, %v8833
        %v8835 = vpop.f32.mrb[0].mxu0
        %v8836 = vpop.f32.mrb[0].mxu0
        %v8837 = vadd.f32 %v8644, %v8836
        %v8838 = vpop.f32.mrb[0].mxu0
        %8839 = vmatprep.mubr.bf16.mxu0 %v8172
        %8840 = vmatmul.mubr.bf16.gmra.mrb[0].mxu0 %v8171
        %v8841 = vpop.f32.mrb[0].mxu0
        %v8842 = vadd.f32 %v8649, %v8841
        %v8843 = vpop.f32.mrb[0].mxu0
        %v8844 = vpop.f32.mrb[0].mxu0
        %v8845 = vadd.f32 %v8652, %v8844
        %v8846 = vpop.f32.mrb[0].mxu0
        %8847 = vdwg.mxu0
        %v8880 = vrot.slane %v8157, 1
        %v8881 = vrot.slane %v8173, 1
        %v8882 = vsel %vm5824, %v8880, %v8881
        %v8883 = vrot.slane %v8158, 1
        %v8884 = vrot.slane %v8174, 1
        %v8885 = vsel %vm5824, %v8883, %v8884
        %v8886 = vrot.slane %v8159, 1
        %v8887 = vrot.slane %v8175, 1
        %v8888 = vsel %vm5824, %v8886, %v8887
        %v8889 = vrot.slane %v8160, 1
        %v8890 = vrot.slane %v8176, 1
        %v8891 = vsel %vm5824, %v8889, %v8890
        %v8892 = vrot.slane %v8161, 1
        %v8893 = vrot.slane %v8177, 1
        %v8894 = vsel %vm5824, %v8892, %v8893
        %v8895 = vrot.slane %v8162, 1
        %v8896 = vrot.slane %v8178, 1
        %v8897 = vsel %vm5824, %v8895, %v8896
        %v8898 = vrot.slane %v8163, 1
        %v8899 = vrot.slane %v8179, 1
        %v8900 = vsel %vm5824, %v8898, %v8899
        %v8901 = vrot.slane %v8164, 1
        %v8902 = vrot.slane %v8180, 1
        %v8903 = vsel %vm5824, %v8901, %v8902
        %v8904 = vrot.slane %v8165, 1
        %v8905 = vrot.slane %v8181, 1
        %v8906 = vsel %vm5824, %v8904, %v8905
        %v8907 = vrot.slane %v8166, 1
        %v8908 = vrot.slane %v8182, 1
        %v8909 = vsel %vm5824, %v8907, %v8908
        %v8910 = vrot.slane %v8167, 1
        %v8911 = vrot.slane %v8183, 1
        %v8912 = vsel %vm5824, %v8910, %v8911
        %v8913 = vrot.slane %v8168, 1
        %v8914 = vrot.slane %v8184, 1
        %v8915 = vsel %vm5824, %v8913, %v8914
        %v8916 = vrot.slane %v8169, 1
        %v8917 = vrot.slane %v8185, 1
        %v8918 = vsel %vm5824, %v8916, %v8917
        %v8919 = vrot.slane %v8170, 1
        %v8920 = vrot.slane %v8186, 1
        %v8921 = vsel %vm5824, %v8919, %v8920
        %v8922 = vrot.slane %v8171, 1
        %v8923 = vrot.slane %v8187, 1
        %v8924 = vsel %vm5824, %v8922, %v8923
        %v8925 = vrot.slane %v8172, 1
        %v8926 = vrot.slane %v8188, 1
        %v8927 = vsel %vm5824, %v8925, %v8926
        %s8944 = scalar_lea.vmem %s8, 256
        %v8945 = vld [vmem:[%s8944] sm:$0xf]
        %v8946 = vld [vmem:[%s8944 + $0x4] sm:$0xf]
        %v8947 = vld [vmem:[%s8944 + $0x8] sm:$0xf]
        %v8948 = vld [vmem:[%s8944 + $0xc] sm:$0xf]
        %v8949 = vld [vmem:[%s8944 + $0x10] sm:$0xf]
        %v8950 = vld [vmem:[%s8944 + $0x14] sm:$0xf]
        %v8951 = vld [vmem:[%s8944 + $0x18] sm:$0xf]
        %v8952 = vld [vmem:[%s8944 + $0x1c] sm:$0xf]
        %v8953 = vld [vmem:[%s8944 + $0x20] sm:$0xf]
        %v8954 = vld [vmem:[%s8944 + $0x24] sm:$0xf]
        %v8955 = vld [vmem:[%s8944 + $0x28] sm:$0xf]
        %v8956 = vld [vmem:[%s8944 + $0x2c] sm:$0xf]
        %v8957 = vld [vmem:[%s8944 + $0x30] sm:$0xf]
        %v8958 = vld [vmem:[%s8944 + $0x34] sm:$0xf]
        %v8959 = vld [vmem:[%s8944 + $0x38] sm:$0xf]
        %v8960 = vld [vmem:[%s8944 + $0x3c] sm:$0xf]
        %v8961 = vld [vmem:[%s8944 + $0x40] sm:$0xf]
        %v8962 = vld [vmem:[%s8944 + $0x44] sm:$0xf]
        %v8963 = vld [vmem:[%s8944 + $0x48] sm:$0xf]
        %v8964 = vld [vmem:[%s8944 + $0x4c] sm:$0xf]
        %v8965 = vld [vmem:[%s8944 + $0x50] sm:$0xf]
        %v8966 = vld [vmem:[%s8944 + $0x54] sm:$0xf]
        %v8967 = vld [vmem:[%s8944 + $0x58] sm:$0xf]
        %v8968 = vld [vmem:[%s8944 + $0x5c] sm:$0xf]
        %v8969 = vld [vmem:[%s8944 + $0x60] sm:$0xf]
        %v8970 = vld [vmem:[%s8944 + $0x64] sm:$0xf]
        %v8971 = vld [vmem:[%s8944 + $0x68] sm:$0xf]
        %v8972 = vld [vmem:[%s8944 + $0x6c] sm:$0xf]
        %v8973 = vld [vmem:[%s8944 + $0x70] sm:$0xf]
        %v8974 = vld [vmem:[%s8944 + $0x74] sm:$0xf]
        %v8975 = vld [vmem:[%s8944 + $0x78] sm:$0xf]
        %v8976 = vld [vmem:[%s8944 + $0x7c] sm:$0xf]
        %v9009 = vunpack.c.l.b16 %v8945
        %v9010 = vunpack.c.l.b16 %v8946
        %v9011 = vunpack.c.l.b16 %v8947
        %v9012 = vunpack.c.l.b16 %v8948
        %v9013 = vunpack.c.l.b16 %v8949
        %v9014 = vunpack.c.l.b16 %v8950
        %v9015 = vunpack.c.l.b16 %v8951
        %v9016 = vunpack.c.l.b16 %v8952
        %v9017 = vunpack.c.l.b16 %v8953
        %v9018 = vunpack.c.l.b16 %v8954
        %v9019 = vunpack.c.l.b16 %v8955
        %v9020 = vunpack.c.l.b16 %v8956
        %v9021 = vunpack.c.l.b16 %v8957
        %v9022 = vunpack.c.l.b16 %v8958
        %v9023 = vunpack.c.l.b16 %v8959
        %v9024 = vunpack.c.l.b16 %v8960
        %v9025 = vunpack.c.l.b16 %v8961
        %v9026 = vunpack.c.l.b16 %v8962
        %v9027 = vunpack.c.l.b16 %v8963
        %v9028 = vunpack.c.l.b16 %v8964
        %v9029 = vunpack.c.l.b16 %v8965
        %v9030 = vunpack.c.l.b16 %v8966
        %v9031 = vunpack.c.l.b16 %v8967
        %v9032 = vunpack.c.l.b16 %v8968
        %v9033 = vunpack.c.l.b16 %v8969
        %v9034 = vunpack.c.l.b16 %v8970
        %v9035 = vunpack.c.l.b16 %v8971
        %v9036 = vunpack.c.l.b16 %v8972
        %v9037 = vunpack.c.l.b16 %v8973
        %v9038 = vunpack.c.l.b16 %v8974
        %v9039 = vunpack.c.l.b16 %v8975
        %v9040 = vunpack.c.l.b16 %v8976
        %v9041 = vpack.c.b16 %v9010, %v9009
        %v9042 = vpack.c.b16 %v9012, %v9011
        %v9043 = vpack.c.b16 %v9014, %v9013
        %v9044 = vpack.c.b16 %v9016, %v9015
        %v9045 = vpack.c.b16 %v9018, %v9017
        %v9046 = vpack.c.b16 %v9020, %v9019
        %v9047 = vpack.c.b16 %v9022, %v9021
        %v9048 = vpack.c.b16 %v9024, %v9023
        %v9049 = vpack.c.b16 %v9026, %v9025
        %v9050 = vpack.c.b16 %v9028, %v9027
        %v9051 = vpack.c.b16 %v9030, %v9029
        %v9052 = vpack.c.b16 %v9032, %v9031
        %v9053 = vpack.c.b16 %v9034, %v9033
        %v9054 = vpack.c.b16 %v9036, %v9035
        %v9055 = vpack.c.b16 %v9038, %v9037
        %v9056 = vpack.c.b16 %v9040, %v9039
        %9073 = vmatprep.subr.bf16.mxu0 0
        %9074 = vmatpush1.bf16.msra.mxu0 %v9041
        %9075 = vmatprep.subr.bf16.mxu0 0
        %9076 = vmatpush1.bf16.msra.mxu0 %v9042
        %9077 = vmatprep.subr.bf16.mxu0 0
        %9078 = vmatpush1.bf16.msra.mxu0 %v9043
        %9079 = vmatprep.subr.bf16.mxu0 0
        %9080 = vmatpush1.bf16.msra.mxu0 %v9044
        %9081 = vmatprep.subr.bf16.mxu0 0
        %9082 = vmatpush1.bf16.msra.mxu0 %v9045
        %9083 = vmatprep.subr.bf16.mxu0 0
        %9084 = vmatpush1.bf16.msra.mxu0 %v9046
        %9085 = vmatprep.subr.bf16.mxu0 0
        %9086 = vmatpush1.bf16.msra.mxu0 %v9047
        %9087 = vmatprep.subr.bf16.mxu0 0
        %9088 = vmatpush1.bf16.msra.mxu0 %v9048
        %9089 = vmatprep.subr.bf16.mxu0 0
        %9090 = vmatpush1.bf16.msra.mxu0 %v9049
        %9091 = vmatprep.subr.bf16.mxu0 0
        %9092 = vmatpush1.bf16.msra.mxu0 %v9050
        %9093 = vmatprep.subr.bf16.mxu0 0
        %9094 = vmatpush1.bf16.msra.mxu0 %v9051
        %9095 = vmatprep.subr.bf16.mxu0 0
        %9096 = vmatpush1.bf16.msra.mxu0 %v9052
        %9097 = vmatprep.subr.bf16.mxu0 0
        %9098 = vmatpush1.bf16.msra.mxu0 %v9053
        %9099 = vmatprep.subr.bf16.mxu0 0
        %9100 = vmatpush1.bf16.msra.mxu0 %v9054
        %9101 = vmatprep.subr.bf16.mxu0 0
        %9102 = vmatpush1.bf16.msra.mxu0 %v9055
        %9103 = vmatprep.subr.bf16.mxu0 0
        %9104 = vmatpush1.bf16.msra.mxu0 %v9056
        %9105 = vmatprep.mubr.bf16.mxu0 %v8885
        %9106 = vmatmul.mubr.bf16.gmra.mrb[0].mxu0 %v8882
        %v9107 = vpop.f32.mrb[0].mxu0
        %v9108 = vadd.f32 0.0, %v9107
        %v9109 = vpop.f32.mrb[0].mxu0
        %v9110 = vpop.f32.mrb[0].mxu0
        %v9111 = vadd.f32 0.0, %v9110
        %v9112 = vpop.f32.mrb[0].mxu0
        %9113 = vmatprep.mubr.bf16.mxu0 %v8891
        %9114 = vmatmul.mubr.bf16.gmra.mrb[0].mxu0 %v8888
        %v9115 = vpop.f32.mrb[0].mxu0
        %v9116 = vadd.f32 0.0, %v9115
        %v9117 = vpop.f32.mrb[0].mxu0
        %v9118 = vpop.f32.mrb[0].mxu0
        %v9119 = vadd.f32 0.0, %v9118
        %v9120 = vpop.f32.mrb[0].mxu0
        %9121 = vmatprep.mubr.bf16.mxu0 %v8897
        %9122 = vmatmul.mubr.bf16.gmra.mrb[0].mxu0 %v8894
        %v9123 = vpop.f32.mrb[0].mxu0
        %v9124 = vadd.f32 0.0, %v9123
        %v9125 = vpop.f32.mrb[0].mxu0
        %v9126 = vpop.f32.mrb[0].mxu0
        %v9127 = vadd.f32 0.0, %v9126
        %v9128 = vpop.f32.mrb[0].mxu0
        %9129 = vmatprep.mubr.bf16.mxu0 %v8903
        %9130 = vmatmul.mubr.bf16.gmra.mrb[0].mxu0 %v8900
        %v9131 = vpop.f32.mrb[0].mxu0
        %v9132 = vadd.f32 0.0, %v9131
        %v9133 = vpop.f32.mrb[0].mxu0
        %v9134 = vpop.f32.mrb[0].mxu0
        %v9135 = vadd.f32 0.0, %v9134
        %v9136 = vpop.f32.mrb[0].mxu0
        %9137 = vmatprep.mubr.bf16.mxu0 %v8909
        %9138 = vmatmul.mubr.bf16.gmra.mrb[0].mxu0 %v8906
        %v9139 = vpop.f32.mrb[0].mxu0
        %v9140 = vadd.f32 0.0, %v9139
        %v9141 = vpop.f32.mrb[0].mxu0
        %v9142 = vpop.f32.mrb[0].mxu0
        %v9143 = vadd.f32 0.0, %v9142
        %v9144 = vpop.f32.mrb[0].mxu0
        %9145 = vmatprep.mubr.bf16.mxu0 %v8915
        %9146 = vmatmul.mubr.bf16.gmra.mrb[0].mxu0 %v8912
        %v9147 = vpop.f32.mrb[0].mxu0
        %v9148 = vadd.f32 0.0, %v9147
        %v9149 = vpop.f32.mrb[0].mxu0
        %v9150 = vpop.f32.mrb[0].mxu0
        %v9151 = vadd.f32 0.0, %v9150
        %v9152 = vpop.f32.mrb[0].mxu0
        %9153 = vmatprep.mubr.bf16.mxu0 %v8921
        %9154 = vmatmul.mubr.bf16.gmra.mrb[0].mxu0 %v8918
        %v9155 = vpop.f32.mrb[0].mxu0
        %v9156 = vadd.f32 0.0, %v9155
        %v9157 = vpop.f32.mrb[0].mxu0
        %v9158 = vpop.f32.mrb[0].mxu0
        %v9159 = vadd.f32 0.0, %v9158
        %v9160 = vpop.f32.mrb[0].mxu0
        %9161 = vmatprep.mubr.bf16.mxu0 %v8927
        %9162 = vmatmul.mubr.bf16.gmra.mrb[0].mxu0 %v8924
        %v9163 = vpop.f32.mrb[0].mxu0
        %v9164 = vadd.f32 0.0, %v9163
        %v9165 = vpop.f32.mrb[0].mxu0
        %v9166 = vpop.f32.mrb[0].mxu0
        %v9167 = vadd.f32 0.0, %v9166
        %v9168 = vpop.f32.mrb[0].mxu0
        %9169 = vdwg.mxu0
        %v9170 = vadd.f32 %v8786, %v9108
        %v9171 = vadd.f32 %v8789, %v9111
        %v9172 = vadd.f32 %v8794, %v9116
        %v9173 = vadd.f32 %v8797, %v9119
        %v9174 = vadd.f32 %v8802, %v9124
        %v9175 = vadd.f32 %v8805, %v9127
        %v9176 = vadd.f32 %v8810, %v9132
        %v9177 = vadd.f32 %v8813, %v9135
        %v9178 = vadd.f32 %v8818, %v9140
        %v9179 = vadd.f32 %v8821, %v9143
        %v9180 = vadd.f32 %v8826, %v9148
        %v9181 = vadd.f32 %v8829, %v9151
        %v9182 = vadd.f32 %v8834, %v9156
        %v9183 = vadd.f32 %v8837, %v9159
        %v9184 = vadd.f32 %v8842, %v9164
        %v9185 = vadd.f32 %v8845, %v9167
        %v9186 = vld [vmem:[#allocation9] sm:$0x1]
        %v9188 = vlaneseq
        %v9189 = vshrl.u32 %v9188, 7
        %v9190 = vsub.s32 0, %v9189
        %v9191 = vrot.slane %v9186, %v9190
        %v9193 = vadd.f32 %v9170, %v9191
        %v9194 = vadd.f32 %v9171, %v9191
        %v9195 = vadd.f32 %v9172, %v9191
        %v9196 = vadd.f32 %v9173, %v9191
        %v9197 = vadd.f32 %v9174, %v9191
        %v9198 = vadd.f32 %v9175, %v9191
        %v9199 = vadd.f32 %v9176, %v9191
        %v9200 = vadd.f32 %v9177, %v9191
        %v9201 = vadd.f32 %v9178, %v9191
        %v9202 = vadd.f32 %v9179, %v9191
        %v9203 = vadd.f32 %v9180, %v9191
        %v9204 = vadd.f32 %v9181, %v9191
        %v9205 = vadd.f32 %v9182, %v9191
        %v9206 = vadd.f32 %v9183, %v9191
        %v9207 = vadd.f32 %v9184, %v9191
        %v9208 = vadd.f32 %v9185, %v9191
        %v9209 = vmax.f32 %v9193, 0.0
        %v9210 = vmax.f32 %v9194, 0.0
        %v9211 = vmax.f32 %v9195, 0.0
        %v9212 = vmax.f32 %v9196, 0.0
        %v9213 = vmax.f32 %v9197, 0.0
        %v9214 = vmax.f32 %v9198, 0.0
        %v9215 = vmax.f32 %v9199, 0.0
        %v9216 = vmax.f32 %v9200, 0.0
        %v9217 = vmax.f32 %v9201, 0.0
        %v9218 = vmax.f32 %v9202, 0.0
        %v9219 = vmax.f32 %v9203, 0.0
        %v9220 = vmax.f32 %v9204, 0.0
        %v9221 = vmax.f32 %v9205, 0.0
        %v9222 = vmax.f32 %v9206, 0.0
        %v9223 = vmax.f32 %v9207, 0.0
        %v9224 = vmax.f32 %v9208, 0.0
        %v9225 = vadd.f32 %v9209, %v9210
        %v9226 = vrot.slane %v9225, 4
        %v9227 = vadd.f32 %v9225, %v9226
        %v9228 = vrot.slane %v9227, 2
        %v9229 = vadd.f32 %v9227, %v9228
        %v9230 = vrot.slane %v9229, 1
        %v9231 = vadd.f32 %v9229, %v9230
        %v9232 = vadd.f32 %v9211, %v9212
        %v9233 = vrot.slane %v9232, 4
        %v9234 = vadd.f32 %v9232, %v9233
        %v9235 = vrot.slane %v9234, 2
        %v9236 = vadd.f32 %v9234, %v9235
        %v9237 = vrot.slane %v9236, 1
        %v9238 = vadd.f32 %v9236, %v9237
        %v9239 = vadd.f32 %v9213, %v9214
        %v9240 = vrot.slane %v9239, 4
        %v9241 = vadd.f32 %v9239, %v9240
        %v9242 = vrot.slane %v9241, 2
        %v9243 = vadd.f32 %v9241, %v9242
        %v9244 = vrot.slane %v9243, 1
        %v9245 = vadd.f32 %v9243, %v9244
        %v9246 = vadd.f32 %v9215, %v9216
        %v9247 = vrot.slane %v9246, 4
        %v9248 = vadd.f32 %v9246, %v9247
        %v9249 = vrot.slane %v9248, 2
        %v9250 = vadd.f32 %v9248, %v9249
        %v9251 = vrot.slane %v9250, 1
        %v9252 = vadd.f32 %v9250, %v9251
        %v9253 = vadd.f32 %v9217, %v9218
        %v9254 = vrot.slane %v9253, 4
        %v9255 = vadd.f32 %v9253, %v9254
        %v9256 = vrot.slane %v9255, 2
        %v9257 = vadd.f32 %v9255, %v9256
        %v9258 = vrot.slane %v9257, 1
        %v9259 = vadd.f32 %v9257, %v9258
        %v9260 = vadd.f32 %v9219, %v9220
        %v9261 = vrot.slane %v9260, 4
        %v9262 = vadd.f32 %v9260, %v9261
        %v9263 = vrot.slane %v9262, 2
        %v9264 = vadd.f32 %v9262, %v9263
        %v9265 = vrot.slane %v9264, 1
        %v9266 = vadd.f32 %v9264, %v9265
        %v9267 = vadd.f32 %v9221, %v9222
        %v9268 = vrot.slane %v9267, 4
        %v9269 = vadd.f32 %v9267, %v9268
        %v9270 = vrot.slane %v9269, 2
        %v9271 = vadd.f32 %v9269, %v9270
        %v9272 = vrot.slane %v9271, 1
        %v9273 = vadd.f32 %v9271, %v9272
        %v9274 = vadd.f32 %v9223, %v9224
        %v9275 = vrot.slane %v9274, 4
        %v9276 = vadd.f32 %v9274, %v9275
        %v9277 = vrot.slane %v9276, 2
        %v9278 = vadd.f32 %v9276, %v9277
        %v9279 = vrot.slane %v9278, 1
        %v9280 = vadd.f32 %v9278, %v9279
        %v9281 = vrcp.pop 16.0
        %v9282 = vmul.f32 %v9231, %v9281
        %v9283 = vmul.f32 %v9238, %v9281
        %v9284 = vmul.f32 %v9245, %v9281
        %v9285 = vmul.f32 %v9252, %v9281
        %v9286 = vmul.f32 %v9259, %v9281
        %v9287 = vmul.f32 %v9266, %v9281
        %v9288 = vmul.f32 %v9273, %v9281
        %v9289 = vmul.f32 %v9280, %v9281
        %v9290 = vld [vmem:[%s10] sm:$0xff]
        %v9291 = vld [vmem:[%s10 + $0x8] sm:$0xff]
        %v9292 = vld [vmem:[%s10 + $0x10] sm:$0xff]
        %v9293 = vld [vmem:[%s10 + $0x18] sm:$0xff]
        %v9294 = vld [vmem:[%s10 + $0x20] sm:$0xff]
        %v9295 = vld [vmem:[%s10 + $0x28] sm:$0xff]
        %v9296 = vld [vmem:[%s10 + $0x30] sm:$0xff]
        %v9297 = vld [vmem:[%s10 + $0x38] sm:$0xff]
        %v9298 = vld [vmem:[%s10 + $0x40] sm:$0xff]
        %v9299 = vld [vmem:[%s10 + $0x48] sm:$0xff]
        %v9300 = vld [vmem:[%s10 + $0x50] sm:$0xff]
        %v9301 = vld [vmem:[%s10 + $0x58] sm:$0xff]
        %v9302 = vld [vmem:[%s10 + $0x60] sm:$0xff]
        %v9303 = vld [vmem:[%s10 + $0x68] sm:$0xff]
        %v9304 = vld [vmem:[%s10 + $0x70] sm:$0xff]
        %v9305 = vld [vmem:[%s10 + $0x78] sm:$0xff]
        %v9314 = vsel %vm1018, %v9283, %v9282
        %v9315 = vsel %vm1021, %v9284, %v9314
        %v9316 = vsel %vm1024, %v9285, %v9315
        %v9317 = vsel %vm1027, %v9286, %v9316
        %v9318 = vsel %vm1030, %v9287, %v9317
        %v9319 = vsel %vm1033, %v9288, %v9318
        %v9320 = vsel %vm1036, %v9289, %v9319
        %9322 = vmatprep.subr.mxu0 0.0
        %9323 = vmatpush1.msra.mxu0 %v9290
        %9324 = vmatprep.subr.mxu0 0.0
        %9325 = vmatpush1.msra.mxu0 %v9291
        %9326 = vmatprep.subr.mxu0 0.0
        %9327 = vmatpush1.msra.mxu0 %v9292
        %9328 = vmatprep.subr.mxu0 0.0
        %9329 = vmatpush1.msra.mxu0 %v9293
        %9330 = vmatprep.subr.mxu0 0.0
        %9331 = vmatpush1.msra.mxu0 %v9294
        %9332 = vmatprep.subr.mxu0 0.0
        %9333 = vmatpush1.msra.mxu0 %v9295
        %9334 = vmatprep.subr.mxu0 0.0
        %9335 = vmatpush1.msra.mxu0 %v9296
        %9336 = vmatprep.subr.mxu0 0.0
        %9337 = vmatpush1.msra.mxu0 %v9297
        %9338 = vmatprep.subr.mxu0 0.0
        %9339 = vmatpush1.msra.mxu0 %v9298
        %9340 = vmatprep.subr.mxu0 0.0
        %9341 = vmatpush1.msra.mxu0 %v9299
        %9342 = vmatprep.subr.mxu0 0.0
        %9343 = vmatpush1.msra.mxu0 %v9300
        %9344 = vmatprep.subr.mxu0 0.0
        %9345 = vmatpush1.msra.mxu0 %v9301
        %9346 = vmatprep.subr.mxu0 0.0
        %9347 = vmatpush1.msra.mxu0 %v9302
        %9348 = vmatprep.subr.mxu0 0.0
        %9349 = vmatpush1.msra.mxu0 %v9303
        %9350 = vmatprep.subr.mxu0 0.0
        %9351 = vmatpush1.msra.mxu0 %v9304
        %9352 = vmatprep.subr.mxu0 0.0
        %9353 = vmatpush1.msra.mxu0 %v9305
        %9354 = vmatprep.subr.mxu0 0.0
        %9355 = vmatpush1.msra.mxu0 0.0
        %9356 = vmatprep.subr.mxu0 0.0
        %9357 = vmatpush1.msra.mxu0 0.0
        %9358 = vmatprep.subr.mxu0 0.0
        %9359 = vmatpush1.msra.mxu0 0.0
        %9360 = vmatprep.subr.mxu0 0.0
        %9361 = vmatpush1.msra.mxu0 0.0
        %9362 = vmatprep.subr.mxu0 0.0
        %9363 = vmatpush1.msra.mxu0 0.0
        %9364 = vmatprep.subr.mxu0 0.0
        %9365 = vmatpush1.msra.mxu0 0.0
        %9366 = vmatprep.subr.mxu0 0.0
        %9367 = vmatpush1.msra.mxu0 0.0
        %9368 = vmatprep.subr.mxu0 0.0
        %9369 = vmatpush1.msra.mxu0 0.0
        %9370 = vmatprep.subr.mxu0 0.0
        %9371 = vmatpush1.msra.mxu0 0.0
        %9372 = vmatprep.subr.mxu0 0.0
        %9373 = vmatpush1.msra.mxu0 0.0
        %9374 = vmatprep.subr.mxu0 0.0
        %9375 = vmatpush1.msra.mxu0 0.0
        %9376 = vmatprep.subr.mxu0 0.0
        %9377 = vmatpush1.msra.mxu0 0.0
        %9378 = vmatprep.subr.mxu0 0.0
        %9379 = vmatpush1.msra.mxu0 0.0
        %9380 = vmatprep.subr.mxu0 0.0
        %9381 = vmatpush1.msra.mxu0 0.0
        %9382 = vmatprep.subr.mxu0 0.0
        %9383 = vmatpush1.msra.mxu0 0.0
        %9384 = vmatprep.subr.mxu0 0.0
        %9385 = vmatpush1.msra.mxu0 0.0
        %9386 = vmatprep.mubr.f32.mxu0 0.0
        %9387 = vmatmul.mubr.f32.gmra.mrb[0].mxu0 %v9320
        %v9388 = vpop.f32.mrb[0].mxu0
        %v9389 = vadd.f32 0.0, %v9388
        %v9390 = vpop.f32.mrb[0].mxu0
        %9391 = vdwg.mxu0
        %v9392 = vmax.f32 %v9389, 0.0
        %v9393 = vld [vmem:[%s11] sm:$0xff]
        %v9395 = vsel %vm6198, %v9392, 0
        %9397 = vmatprep.subr.mxu0 0.0
        %9398 = vmatpush1.msra.mxu0 %v9393
        %9399 = vmatprep.subr.mxu0 0.0
        %9400 = vmatpush1.msra.mxu0 0.0
        %9401 = vmatprep.subr.mxu0 0.0
        %9402 = vmatpush1.msra.mxu0 0.0
        %9403 = vmatprep.subr.mxu0 0.0
        %9404 = vmatpush1.msra.mxu0 0.0
        %9405 = vmatprep.subr.mxu0 0.0
        %9406 = vmatpush1.msra.mxu0 0.0
        %9407 = vmatprep.subr.mxu0 0.0
        %9408 = vmatpush1.msra.mxu0 0.0
        %9409 = vmatprep.subr.mxu0 0.0
        %9410 = vmatpush1.msra.mxu0 0.0
        %9411 = vmatprep.subr.mxu0 0.0
        %9412 = vmatpush1.msra.mxu0 0.0
        %9413 = vmatprep.subr.mxu0 0.0
        %9414 = vmatpush1.msra.mxu0 0.0
        %9415 = vmatprep.subr.mxu0 0.0
        %9416 = vmatpush1.msra.mxu0 0.0
        %9417 = vmatprep.subr.mxu0 0.0
        %9418 = vmatpush1.msra.mxu0 0.0
        %9419 = vmatprep.subr.mxu0 0.0
        %9420 = vmatpush1.msra.mxu0 0.0
        %9421 = vmatprep.subr.mxu0 0.0
        %9422 = vmatpush1.msra.mxu0 0.0
        %9423 = vmatprep.subr.mxu0 0.0
        %9424 = vmatpush1.msra.mxu0 0.0
        %9425 = vmatprep.subr.mxu0 0.0
        %9426 = vmatpush1.msra.mxu0 0.0
        %9427 = vmatprep.subr.mxu0 0.0
        %9428 = vmatpush1.msra.mxu0 0.0
        %9429 = vmatprep.subr.mxu0 0.0
        %9430 = vmatpush1.msra.mxu0 0.0
        %9431 = vmatprep.subr.mxu0 0.0
        %9432 = vmatpush1.msra.mxu0 0.0
        %9433 = vmatprep.subr.mxu0 0.0
        %9434 = vmatpush1.msra.mxu0 0.0
        %9435 = vmatprep.subr.mxu0 0.0
        %9436 = vmatpush1.msra.mxu0 0.0
        %9437 = vmatprep.subr.mxu0 0.0
        %9438 = vmatpush1.msra.mxu0 0.0
        %9439 = vmatprep.subr.mxu0 0.0
        %9440 = vmatpush1.msra.mxu0 0.0
        %9441 = vmatprep.subr.mxu0 0.0
        %9442 = vmatpush1.msra.mxu0 0.0
        %9443 = vmatprep.subr.mxu0 0.0
        %9444 = vmatpush1.msra.mxu0 0.0
        %9445 = vmatprep.subr.mxu0 0.0
        %9446 = vmatpush1.msra.mxu0 0.0
        %9447 = vmatprep.subr.mxu0 0.0
        %9448 = vmatpush1.msra.mxu0 0.0
        %9449 = vmatprep.subr.mxu0 0.0
        %9450 = vmatpush1.msra.mxu0 0.0
        %9451 = vmatprep.subr.mxu0 0.0
        %9452 = vmatpush1.msra.mxu0 0.0
        %9453 = vmatprep.subr.mxu0 0.0
        %9454 = vmatpush1.msra.mxu0 0.0
        %9455 = vmatprep.subr.mxu0 0.0
        %9456 = vmatpush1.msra.mxu0 0.0
        %9457 = vmatprep.subr.mxu0 0.0
        %9458 = vmatpush1.msra.mxu0 0.0
        %9459 = vmatprep.subr.mxu0 0.0
        %9460 = vmatpush1.msra.mxu0 0.0
        %9461 = vmatprep.mubr.f32.mxu0 0.0
        %9462 = vmatmul.mubr.f32.gmra.mrb[0].mxu0 %v9395
        %v9463 = vpop.f32.mrb[0].mxu0
        %v9464 = vadd.f32 0.0, %v9463
        %v9465 = vpop.f32.mrb[0].mxu0
        %9466 = vdwg.mxu0
        %v9467 = vxor.u32 %v9464, 2147483648
        %v9468 = vmul.f32 %v9467, 1.442695
        %v9469 = vpow.pop %v9468
        %v9470 = vadd.f32 %v9469, 1.0
        %v9471 = vrcp.pop %v9470
        %v9472 = vmul.f32 1.0, %v9471
        %v9474 = vrot.slane %v9472, 1
        %v9475 = vrot.slane %v9472, 2
        %v9476 = vrot.slane %v9472, 3
        %v9477 = vrot.slane %v9472, 4
        %v9478 = vrot.slane %v9472, 5
        %v9479 = vrot.slane %v9472, 6
        %v9480 = vrot.slane %v9472, 7
        %v9489 = vmul.f32 %v9282, %v9472
        %v9490 = vmul.f32 %v9283, %v9474
        %v9491 = vmul.f32 %v9284, %v9475
        %v9492 = vmul.f32 %v9285, %v9476
        %v9493 = vmul.f32 %v9286, %v9477
        %v9494 = vmul.f32 %v9287, %v9478
        %v9495 = vmul.f32 %v9288, %v9479
        %v9496 = vmul.f32 %v9289, %v9480
        %v9505 = vrot.slane %v5605, 7
        %v9506 = vsel %vm1018, %v9505, %v5604
        %v9507 = vrot.slane %v5606, 6
        %v9508 = vsel %vm1021, %v9507, %v9506
        %v9509 = vrot.slane %v5607, 5
        %v9510 = vsel %vm1024, %v9509, %v9508
        %v9511 = vrot.slane %v5608, 4
        %v9512 = vsel %vm1027, %v9511, %v9510
        %v9513 = vrot.slane %v5609, 3
        %v9514 = vsel %vm1030, %v9513, %v9512
        %v9515 = vrot.slane %v5610, 2
        %v9516 = vsel %vm1033, %v9515, %v9514
        %v9517 = vrot.slane %v5611, 1
        %v9518 = vsel %vm1036, %v9517, %v9516
        %9519 = vrot.lane.b32.xlu0 %v9518, 32
        %v9520 = vpop.permute.xlu0 %9519
        %v9530 = vrot.slane %v9490, 7
        %v9531 = vsel %vm1018, %v9530, %v9489
        %v9532 = vrot.slane %v9491, 6
        %v9533 = vsel %vm1021, %v9532, %v9531
        %v9534 = vrot.slane %v9492, 5
        %v9535 = vsel %vm1024, %v9534, %v9533
        %v9536 = vrot.slane %v9493, 4
        %v9537 = vsel %vm1027, %v9536, %v9535
        %v9538 = vrot.slane %v9494, 3
        %v9539 = vsel %vm1030, %v9538, %v9537
        %v9540 = vrot.slane %v9495, 2
        %v9541 = vsel %vm1033, %v9540, %v9539
        %v9542 = vrot.slane %v9496, 1
        %v9543 = vsel %vm1036, %v9542, %v9541
        %9544 = vrot.lane.b32.xlu0 %v9543, 32
        %v9545 = vpop.permute.xlu0 %9544
        %v9547 = vsel %vm725, %v9520, %v9545
        %v9548 = vpack.c.bf16 %v9547, %v9547
        %v9549 = vpack.c.bf16 %v9545, %v9545
        %v9550 = vld [vmem:[%s12] sm:$0xf]
        %v9551 = vld [vmem:[%s12 + $0x4] sm:$0xf]
        %v9552 = vld [vmem:[%s12 + $0x8] sm:$0xf]
        %v9553 = vld [vmem:[%s12 + $0xc] sm:$0xf]
        %v9554 = vld [vmem:[%s12 + $0x10] sm:$0xf]
        %v9555 = vld [vmem:[%s12 + $0x14] sm:$0xf]
        %v9556 = vld [vmem:[%s12 + $0x18] sm:$0xf]
        %v9557 = vld [vmem:[%s12 + $0x1c] sm:$0xf]
        %v9558 = vld [vmem:[%s12 + $0x20] sm:$0xf]
        %v9559 = vld [vmem:[%s12 + $0x24] sm:$0xf]
        %v9560 = vld [vmem:[%s12 + $0x28] sm:$0xf]
        %v9561 = vld [vmem:[%s12 + $0x2c] sm:$0xf]
        %v9562 = vld [vmem:[%s12 + $0x30] sm:$0xf]
        %v9563 = vld [vmem:[%s12 + $0x34] sm:$0xf]
        %v9564 = vld [vmem:[%s12 + $0x38] sm:$0xf]
        %v9565 = vld [vmem:[%s12 + $0x3c] sm:$0xf]
        %v9566 = vld [vmem:[%s12 + $0x40] sm:$0xf]
        %v9567 = vld [vmem:[%s12 + $0x44] sm:$0xf]
        %v9568 = vld [vmem:[%s12 + $0x48] sm:$0xf]
        %v9569 = vld [vmem:[%s12 + $0x4c] sm:$0xf]
        %v9570 = vld [vmem:[%s13] sm:$0x1]
        %v9572 = vlaneseq
        %v9573 = vshrl.u32 %v9572, 7
        %v9574 = vsub.s32 0, %v9573
        %v9575 = vrot.slane %v9570, %v9574
        %v9597 = vunpack.c.l.b16 %v9550
        %v9598 = vunpack.c.l.b16 %v9551
        %v9599 = vunpack.c.l.b16 %v9552
        %v9600 = vunpack.c.l.b16 %v9553
        %v9601 = vunpack.c.l.b16 %v9554
        %v9602 = vunpack.c.l.b16 %v9555
        %v9603 = vunpack.c.l.b16 %v9556
        %v9604 = vunpack.c.l.b16 %v9557
        %v9605 = vunpack.c.l.b16 %v9558
        %v9606 = vunpack.c.l.b16 %v9559
        %v9607 = vunpack.c.l.b16 %v9560
        %v9608 = vunpack.c.l.b16 %v9561
        %v9609 = vunpack.c.l.b16 %v9562
        %v9610 = vunpack.c.l.b16 %v9563
        %v9611 = vunpack.c.l.b16 %v9564
        %v9612 = vunpack.c.l.b16 %v9565
        %v9613 = vunpack.c.l.b16 %v9566
        %v9614 = vunpack.c.l.b16 %v9567
        %v9615 = vunpack.c.l.b16 %v9568
        %v9616 = vunpack.c.l.b16 %v9569
        %v9617 = vpack.c.b16 %v9598, %v9597
        %v9618 = vpack.c.b16 %v9600, %v9599
        %v9619 = vpack.c.b16 %v9602, %v9601
        %v9620 = vpack.c.b16 %v9604, %v9603
        %v9621 = vpack.c.b16 %v9606, %v9605
        %v9622 = vpack.c.b16 %v9608, %v9607
        %v9623 = vpack.c.b16 %v9610, %v9609
        %v9624 = vpack.c.b16 %v9612, %v9611
        %v9625 = vpack.c.b16 %v9614, %v9613
        %v9626 = vpack.c.b16 %v9616, %v9615
        %v9638 = vsel %vm725, %v9549, 0
        %9640 = vmatprep.subr.bf16.mxu0 0
        %9641 = vmatpush1.bf16.msra.mxu0 %v9617
        %9642 = vmatprep.subr.bf16.mxu0 0
        %9643 = vmatpush1.bf16.msra.mxu0 %v9618
        %9644 = vmatprep.subr.bf16.mxu0 0
        %9645 = vmatpush1.bf16.msra.mxu0 %v9619
        %9646 = vmatprep.subr.bf16.mxu0 0
        %9647 = vmatpush1.bf16.msra.mxu0 %v9620
        %9648 = vmatprep.subr.bf16.mxu0 0
        %9649 = vmatpush1.bf16.msra.mxu0 %v9621
        %9650 = vmatprep.subr.bf16.mxu0 0
        %9651 = vmatpush1.bf16.msra.mxu0 %v9622
        %9652 = vmatprep.subr.bf16.mxu0 0
        %9653 = vmatpush1.bf16.msra.mxu0 %v9623
        %9654 = vmatprep.subr.bf16.mxu0 0
        %9655 = vmatpush1.bf16.msra.mxu0 %v9624
        %9656 = vmatprep.subr.bf16.mxu0 0
        %9657 = vmatpush1.bf16.msra.mxu0 %v9625
        %9658 = vmatprep.subr.bf16.mxu0 0
        %9659 = vmatpush1.bf16.msra.mxu0 %v9626
        %9660 = vmatprep.subr.bf16.mxu0 0
        %9661 = vmatpush1.bf16.msra.mxu0 0
        %9662 = vmatprep.subr.bf16.mxu0 0
        %9663 = vmatpush1.bf16.msra.mxu0 0
        %9664 = vmatprep.subr.bf16.mxu0 0
        %9665 = vmatpush1.bf16.msra.mxu0 0
        %9666 = vmatprep.subr.bf16.mxu0 0
        %9667 = vmatpush1.bf16.msra.mxu0 0
        %9668 = vmatprep.subr.bf16.mxu0 0
        %9669 = vmatpush1.bf16.msra.mxu0 0
        %9670 = vmatprep.subr.bf16.mxu0 0
        %9671 = vmatpush1.bf16.msra.mxu0 0
        %9672 = vmatprep.mubr.bf16.mxu0 %v9638
        %9673 = vmatmul.mubr.bf16.gmra.mrb[0].mxu0 %v9548
        %v9674 = vpop.f32.mrb[0].mxu0
        %v9675 = vadd.f32 %v9575, %v9674
        %v9676 = vpop.f32.mrb[0].mxu0
        %v9677 = vpop.f32.mrb[0].mxu0
        %v9678 = vpop.f32.mrb[0].mxu0
        %9679 = vdwg.mxu0
        %9680 = vmax.xlane.f32.xlu0 %v9675
        %v9681 = vpop.xlane.xlu0 %9680
        %v9682 = vsub.f32 %v9675, %v9681
        %v9683 = vmul.f32 %v9682, 1.442695
        %v9684 = vpow.pop %v9683
        %9685 = vadd.xlane.f32.xlu0 %v9684
        %v9686 = vpop.xlane.xlu0 %9685
        %v9687 = vrcp.pop %v9686
        %v9688 = vmul.f32 %v9684, %v9687
        %9689 = vst [vmem:[%s518] sm:$0xff] %v9688
        %s9690 = sand.u32 %s338, 1
        %s9691 = scalar_lea.sflag [#allocation5], %s9690
        %s9692 = sand.u32 %s338, 1
        %s9693 = smul.addr %s9692, 8
        %s9694 = scalar_lea.vmem [#allocation11], %s9693
        // Predicated region
        $region93: #{tpu_custom_call.1} parent=75 // pred_check
          %p9695 = pneg %p348
        $region94: #{tpu_custom_call.1} parent=75 // pred_check_branch
          %9697 = sbr.rel (%p9695) target = $region96
        $region95: #{tpu_custom_call.1} parent=75 // pred_region
          %s9699 = ssub.s32 128, 128
          %9700 = vsyncadd %s9691, %s9699
          %s9701 = smul.addr %s31, 128
          %s9702 = scalar_lea.hbm %s14, %s9701
          %s9704 = sshll.u32 %s9694, 4
          %s9705 = int_to_ptr.vmem [resolvable:$true] %s9704
          %9707 = dma.vmem_to_hbm [thread:$0]  %s9705, 128, %s9702, %s9691
        $region96: #{tpu_custom_call.1} parent=75 // pred_fallthru
          _
      $region76: #{tpu_custom_call.1} parent=5 // pred_fallthru
        _
      %p9708 = scmp.le.s32.totalorder 2, %s26
      // Predicated region
      $region97: #{tpu_custom_call.1} parent=5 // pred_check
        %p9709 = pneg %p9708
      $region98: #{tpu_custom_call.1} parent=5 // pred_check_branch
        %9711 = sbr.rel (%p9709) target = $region100
      $region99: #{tpu_custom_call.1} parent=5 // pred_region
        %s9712 = ssub.s32 %s26, 2
        // Predicated region
        $region101: #{tpu_custom_call.1} parent=99 // pred_check
          %p9713 = pneg %p354
        $region102: #{tpu_custom_call.1} parent=99 // pred_check_branch
          %9715 = sbr.rel (%p9713) target = $region104
        $region103: #{tpu_custom_call.1} parent=99 // pred_region
          %s9716 = sand.u32 %s339, 1
          %s9717 = scalar_lea.sflag [#allocation5], %s9716
          %s9718 = sand.u32 %s339, 1
          %s9719 = smul.addr %s9718, 8
          %s9720 = scalar_lea.vmem [#allocation11], %s9719
          %9721 = dma.done %s9717, 128
        $region104: #{tpu_custom_call.1} parent=99 // pred_fallthru
          _
      $region100: #{tpu_custom_call.1} parent=5 // pred_fallthru
        _
    $region6: #{tpu_custom_call.1} parent=1 // loop_footer
      %s30 = sadd.s32 1, %s26
    $region7: #{tpu_custom_call.1} parent=1 // loop_footer_branch
      %25 = sbr.rel target = $region3
    $region8: #{tpu_custom_call.1} parent=1 // loop_exit
      _
    %9722 = vsyncpa [#allocation4], 1
    %s9723 = scalar_lea.sflag [#allocation4], 1
    %9724 = vsyncpa %s9723, 1
    %9725 = vsyncpa [#allocation7], 1
    %9726 = vsyncpa [#allocation10], 1
    %9727 = vsyncpa [#allocation5], 1
    %s9728 = scalar_lea.sflag [#allocation5], 1
    %9729 = vsyncpa %s9728, 1

</llo_original>
